<compile_context>
chip_gen: v6e
topology: v6e:2x2x1
jax: 0.10.0
libtpu: 0.0.40
codegen_flags: <defaults>
</compile_context>

<pallas_src>
import functools

import jax
import jax.numpy as jnp
from jax.experimental import pallas as pl
from jax.experimental.pallas import tpu as pltpu  # noqa: F401  (TPU backend; defaults used)

# ---- small synthetic config consistent with the reference forward pass ----
B, S, D, H, DH, DFF, VOCAB = 2, 8, 32, 4, 8, 64, 64
N_ENC_LAYERS, N_DEC_LAYERS = 1, 1
NEG = -1e9
BS = B * S
assert S & (S - 1) == 0, "S must be a power of two (row % S done with a bitmask)"
assert H * DH == D


# ---------------- static packed-weight layout (128-lane-aligned column blocks) ----------------
def _aligned_layout(entries, align=128):
    off, col = {}, 0
    for name, width in entries:
        off[name] = (col, width)
        col += ((width + align - 1) // align) * align
    return off, col


def _w32_entries():
    e = []
    for li in range(N_ENC_LAYERS):
        e += [(f"enc{li}_wqkv", 3 * D), (f"enc{li}_wo", D), (f"enc{li}_wi", DFF)]
    for li in range(N_DEC_LAYERS):
        e += [(f"dec{li}_wqkv", 3 * D), (f"dec{li}_wo", D), (f"dec{li}_cq", D),
              (f"dec{li}_ckv", 2 * D), (f"dec{li}_co", D), (f"dec{li}_wi", DFF)]
    e += [("lm_head", VOCAB)]
    return e


def _w64_entries():
    e = [(f"enc{li}_wo_ff", D) for li in range(N_ENC_LAYERS)]
    e += [(f"dec{li}_wo_ff", D) for li in range(N_DEC_LAYERS)]
    return e


W32_OFF, W32_COLS = _aligned_layout(_w32_entries())
W64_OFF, W64_COLS = _aligned_layout(_w64_entries())

LN_NAMES = []
for _li in range(N_ENC_LAYERS):
    LN_NAMES += [f"enc{_li}_ln1", f"enc{_li}_ln2"]
LN_NAMES += ["enc_ln_f"]
for _li in range(N_DEC_LAYERS):
    LN_NAMES += [f"dec{_li}_ln1", f"dec{_li}_ln2", f"dec{_li}_ln3"]
LN_NAMES += ["dec_ln_f"]
LN_OFF = {n: i for i, n in enumerate(LN_NAMES)}


# ============================== the fused forward kernel ==============================

def _forward_kernel(ids_ref, mask_ref, embed_ref, ln_ref, w32_ref, w64_ref, out_ref):
    f32, bf16 = jnp.float32, jnp.bfloat16

    # -------- packed-weight accessors (static slices of VMEM-resident inputs) --------
    def w32(name):
        c, w = W32_OFF[name]
        return w32_ref[:, c:c + w]

    def w64(name):
        c, w = W64_OFF[name]
        return w64_ref[:, c:c + w]

    def ln(name):
        i = LN_OFF[name]
        return ln_ref[i:i + 1, :]

    def mm(a, wgt):
        # activations stay f32 on the VPU; cast only at the MXU input (weights pre-cast to bf16)
        return jnp.dot(a.astype(bf16), wgt, preferred_element_type=f32)

    def rms(x, g):
        var = jnp.mean(x * x, axis=-1, keepdims=True)
        return x * jax.lax.rsqrt(var + 1e-6) * g

    # -------- head-batched attention on register-resident values (no scratch) --------
    def split_heads(x):                      # [BS, D] -> [H*B, S, DH], index = h*B + b
        return jnp.concatenate(
            [x[:, h * DH:(h + 1) * DH].reshape(B, S, DH) for h in range(H)], axis=0)

    def merge_heads(x):                      # [H*B, S, DH] -> [BS, D]
        return jnp.concatenate(
            [x[h * B:(h + 1) * B].reshape(BS, DH) for h in range(H)], axis=1)

    def tile_heads(x):                       # [B, ., S] -> [H*B, ., S], index = h*B + b
        return jnp.concatenate([x] * H, axis=0)

    def mha(q2, k2, v2, bias):               # q2/k2/v2: [BS, D]; bias: [H*B, 1|S, S] or None
        q = split_heads(q2).astype(bf16)
        k = split_heads(k2).astype(bf16)
        v = split_heads(v2).astype(bf16)
        # T5/MT5-style attention: no 1/sqrt(dh) scaling.
        s = jnp.einsum("bqd,bkd->bqk", q, k, preferred_element_type=f32)   # [HB, S, S]
        if bias is not None:
            s = s + bias
        m = jnp.max(s, axis=-1, keepdims=True)
        p = jnp.exp(s - m)
        p = p / jnp.sum(p, axis=-1, keepdims=True)        # exact softmax (argmax path shares it)
        ctx = jnp.einsum("bqk,bkd->bqd", p.astype(bf16), v, preferred_element_type=f32)
        return merge_heads(ctx)

    def enc_layer(x, bias, li):
        h = rms(x, ln(f"enc{li}_ln1"))
        qkv = mm(h, w32(f"enc{li}_wqkv"))                 # fused q|k|v projection
        x = x + mm(mha(qkv[:, :D], qkv[:, D:2 * D], qkv[:, 2 * D:], bias),
                   w32(f"enc{li}_wo"))
        h = rms(x, ln(f"enc{li}_ln2"))
        return x + mm(jnp.maximum(mm(h, w32(f"enc{li}_wi")), 0.0),
                      w64(f"enc{li}_wo_ff"))

    def encoder_body(x, bias):
        for li in range(N_ENC_LAYERS):
            x = enc_layer(x, bias, li)
        return x

    def dec_layer(x, self_bias, enc_h, li):
        h = rms(x, ln(f"dec{li}_ln1"))
        qkv = mm(h, w32(f"dec{li}_wqkv"))
        x = x + mm(mha(qkv[:, :D], qkv[:, D:2 * D], qkv[:, 2 * D:], self_bias),
                   w32(f"dec{li}_wo"))
        h = rms(x, ln(f"dec{li}_ln2"))
        q = mm(h, w32(f"dec{li}_cq"))
        kv = mm(enc_h, w32(f"dec{li}_ckv"))               # fused cross k|v
        x = x + mm(mha(q, kv[:, :D], kv[:, D:], None),    # reference passes no encoder mask
                   w32(f"dec{li}_co"))
        h = rms(x, ln(f"dec{li}_ln3"))
        return x + mm(jnp.maximum(mm(h, w32(f"dec{li}_wi")), 0.0),
                      w64(f"dec{li}_wo_ff"))

    # -------- token embeddings: one-hot @ embed on the MXU (no HBM gather) --------
    embed = embed_ref[...]                                             # [VOCAB, D] f32
    v_iota = jax.lax.broadcasted_iota(jnp.int32, (BS, VOCAB), 1)
    x1_emb = jnp.dot((ids_ref[:, 0:1] == v_iota).astype(f32), embed,
                     preferred_element_type=f32)                       # [BS, D]
    x2_emb = jnp.dot((ids_ref[:, 1:2] == v_iota).astype(f32), embed,
                     preferred_element_type=f32)

    # -------- attention biases built in-kernel from the lane-major mask pack --------
    m1 = mask_ref[0:B, :, :]                 # x1 attention mask        [B, 1, S]
    m2 = mask_ref[B:2 * B, :, :]             # x2 attention mask        [B, 1, S]
    x2f = mask_ref[2 * B:3 * B, :, :]        # x2 token ids as f32      [B, 1, S]
    bias_x1 = tile_heads((1.0 - m1) * NEG)                             # [HB, 1, S]
    # model.generate(..., attention_mask=x2_ids) in the reference (a bug): treat nonzero id
    # as "attend".  TODO(synk): confirm this intended interpretation of the reference bug.
    bias_gen = tile_heads(jnp.where(x2f != 0.0, 0.0, NEG))             # [HB, 1, S]
    q_idx = jax.lax.broadcasted_iota(jnp.int32, (H * B, S, S), 1)
    k_idx = jax.lax.broadcasted_iota(jnp.int32, (H * B, S, S), 2)
    bias_dec = jnp.where(k_idx <= q_idx, 0.0, NEG) + tile_heads((1.0 - m2) * NEG)

    # -------- pass 1: style_x1 = encoder(x1, x1_masks).last_hidden_state[:, 0, :] --------
    enc1 = rms(encoder_body(x1_emb, bias_x1), ln("enc_ln_f"))          # [BS, D]
    style = jnp.concatenate(
        [jnp.broadcast_to(enc1[b * S:b * S + 1, :], (S, D)) for b in range(B)], axis=0)

    # NOTE: the reference's second encoder pass on x2 (x2_encoding = encoder(x2) - style) is
    # assigned onto the HF output object and never read downstream; dead work, removed.

    # -------- generate() surrogate: encoder + lm_head + greedy argmax (single shot) --------
    # TODO(synk): true autoregressive generation loop (temperature sampling) not implemented.
    logits = mm(rms(encoder_body(x2_emb, bias_gen), ln("enc_ln_f")), w32("lm_head"))  # [BS, V]
    vmax = jnp.max(logits, axis=-1, keepdims=True)
    v_iota_f = v_iota.astype(f32)
    arg = jnp.min(jnp.where(logits >= vmax, v_iota_f, float(VOCAB)),
                  axis=-1, keepdims=True)                              # first-max argmax
    gen_oh = (v_iota_f == arg).astype(f32)                             # one-hot of x2_en

    # tokenizer.batch_decode + '<cls> ' + lx prefix + re-tokenize: surrogate fixed prefix ids
    # [2, 3] followed by x2_en[:, :S-2], realized as a one-hot shift matmul (no string ops).
    # TODO(synk): tokenizer string decode/encode round trip has no Pallas/JAX equivalent.
    r_i = jax.lax.broadcasted_iota(jnp.int32, (BS, BS), 0)
    c_i = jax.lax.broadcasted_iota(jnp.int32, (BS, BS), 1)
    shift2 = jnp.logical_and(c_i == r_i - 2, (r_i & (S - 1)) >= 2).astype(f32)
    row_s = jax.lax.broadcasted_iota(jnp.int32, (BS, VOCAB), 0) & (S - 1)
    prefix_oh = (jnp.logical_and(row_s == 0, v_iota == 2)
                 | jnp.logical_and(row_s == 1, v_iota == 3)).astype(f32)
    tok_oh = jnp.dot(shift2, gen_oh, preferred_element_type=f32) + prefix_oh
    x_gen = jnp.dot(tok_oh, embed, preferred_element_type=f32)         # embed(x2_en_tok)

    # -------- pass 3: encoder(x2_en_tok) (no mask in reference) + style_x1 --------
    enc3 = rms(encoder_body(x_gen, None), ln("enc_ln_f")) + style

    # -------- decoder(x2_ids, x2_masks, encoder_hidden_states=enc3) --------
    x = x2_emb
    for li in range(N_DEC_LAYERS):
        x = dec_layer(x, bias_dec, enc3, li)
    out_ref[...] = rms(x, ln("dec_ln_f"))


# ============================== wrappers / packing ==============================

def pack_params(params):
    """Pre-cast matmul weights to bf16 and pack everything into a few contiguous slabs."""
    w32 = jnp.zeros((D, W32_COLS), jnp.bfloat16)
    w64 = jnp.zeros((DFF, W64_COLS), jnp.bfloat16)

    def put(buf, off, name, arr):
        c, w = off[name]
        return buf.at[:, c:c + w].set(arr.astype(jnp.bfloat16))

    ln_rows = {}
    for li, lyr in enumerate(params["enc_layers"]):
        w32 = put(w32, W32_OFF, f"enc{li}_wqkv", lyr["wqkv"])
        w32 = put(w32, W32_OFF, f"enc{li}_wo", lyr["wo"])
        w32 = put(w32, W32_OFF, f"enc{li}_wi", lyr["wi"])
        w64 = put(w64, W64_OFF, f"enc{li}_wo_ff", lyr["wo_ff"])
        ln_rows[f"enc{li}_ln1"] = lyr["ln1"]
        ln_rows[f"enc{li}_ln2"] = lyr["ln2"]
    for li, lyr in enumerate(params["dec_layers"]):
        w32 = put(w32, W32_OFF, f"dec{li}_wqkv", lyr["wqkv"])
        w32 = put(w32, W32_OFF, f"dec{li}_wo", lyr["wo"])
        w32 = put(w32, W32_OFF, f"dec{li}_cq", lyr["cq"])
        w32 = put(w32, W32_OFF, f"dec{li}_ckv", lyr["ckv"])
        w32 = put(w32, W32_OFF, f"dec{li}_co", lyr["co"])
        w32 = put(w32, W32_OFF, f"dec{li}_wi", lyr["wi"])
        w64 = put(w64, W64_OFF, f"dec{li}_wo_ff", lyr["wo_ff"])
        ln_rows[f"dec{li}_ln1"] = lyr["ln1"]
        ln_rows[f"dec{li}_ln2"] = lyr["ln2"]
        ln_rows[f"dec{li}_ln3"] = lyr["ln3"]
    w32 = put(w32, W32_OFF, "lm_head", params["lm_head"])
    ln_rows["enc_ln_f"] = params["enc_ln_f"]
    ln_rows["dec_ln_f"] = params["dec_ln_f"]
    ln = jnp.stack([ln_rows[n].astype(jnp.float32) for n in LN_NAMES], axis=0)

    return dict(embed=params["embed"].astype(jnp.float32), ln=ln, w32=w32, w64=w64)


def forward(packed, x1_ids, x1_masks, x2_ids, x2_masks):
    # Pack token ids (row-major, for one-hot embeddings) and mask data (lane-major, for key-bias
    # construction) so the single fused kernel sees 6 small VMEM-resident inputs in total.
    ids2 = jnp.stack([x1_ids.reshape(BS), x2_ids.reshape(BS)], axis=1).astype(jnp.int32)
    maskpack = jnp.concatenate(
        [x1_masks.astype(jnp.float32), x2_masks.astype(jnp.float32),
         x2_ids.astype(jnp.float32)], axis=0).reshape(3 * B, 1, S)

    decoded = pl.pallas_call(
        _forward_kernel,
        out_shape=jax.ShapeDtypeStruct((BS, D), jnp.float32),
    )(ids2, maskpack, packed["embed"], packed["ln"], packed["w32"], packed["w64"])
    return x2_ids, decoded.reshape(B, S, D)


# ============================== deterministic init ==============================

def init_params(key):
    keys = iter(jax.random.split(key, 64))

    def w(shape):
        return jax.random.normal(next(keys), shape, jnp.float32) * 0.02

    def enc_layer():
        return dict(ln1=jnp.ones((D,), jnp.float32),
                    wqkv=w((D, 3 * D)),                  # fused q|k|v
                    wo=w((D, D)),
                    ln2=jnp.ones((D,), jnp.float32),
                    wi=w((D, DFF)), wo_ff=w((DFF, D)))

    def dec_layer():
        lyr = enc_layer()
        lyr.update(dict(ln3=jnp.ones((D,), jnp.float32),
                        cq=w((D, D)),
                        ckv=w((D, 2 * D)),               # fused cross k|v
                        co=w((D, D))))
        return lyr

    return dict(
        embed=w((VOCAB, D)),
        enc_layers=[enc_layer() for _ in range(N_ENC_LAYERS)],
        enc_ln_f=jnp.ones((D,), jnp.float32),
        dec_layers=[dec_layer() for _ in range(N_DEC_LAYERS)],
        dec_ln_f=jnp.ones((D,), jnp.float32),
        lm_head=w((D, VOCAB)),
    )


if __name__ == "__main__":
    key = jax.random.PRNGKey(0)
    kp, k1, k2 = jax.random.split(key, 3)
    params = init_params(kp)
    packed = pack_params(params)

    x1_ids = jax.random.randint(k1, (B, S), 1, VOCAB, dtype=jnp.int32)
    x2_ids = jax.random.randint(k2, (B, S), 1, VOCAB, dtype=jnp.int32)
    x1_masks = jnp.ones((B, S), jnp.float32).at[:, S - 2:].set(0.0)
    x2_masks = jnp.ones((B, S), jnp.float32).at[:, S - 1:].set(0.0)

    fwd = jax.jit(functools.partial(forward, packed))
    out_ids, decoded = fwd(x1_ids, x1_masks, x2_ids, x2_masks)
    jax.block_until_ready((out_ids, decoded))

    assert out_ids.shape == (B, S) and decoded.shape == (B, S, D)
    print("KERNEL_OK")
</pallas_src>

<mosaic_0001>
module attributes {stable_mosaic.version = 11 : i64} {
  func.func @_forward_kernel(%arg0: memref<16x2xi32, #tpu.memory_space<vmem>>, %arg1: memref<6x1x8xf32, #tpu.memory_space<vmem>>, %arg2: memref<64x32xf32, #tpu.memory_space<vmem>>, %arg3: memref<7x32xf32, #tpu.memory_space<vmem>>, %arg4: memref<32x1280xbf16, #tpu.memory_space<vmem>>, %arg5: memref<64x256xbf16, #tpu.memory_space<vmem>>, %arg6: memref<16x32xf32, #tpu.memory_space<vmem>>) attributes {dimension_semantics = [], scalar_prefetch = 0 : i64, scratch_operands = 0 : i64, tpu.core_type = #tpu.core_type<tc>} {
    %c0 = arith.constant 0 : index
    %c0_0 = arith.constant 0 : index
    %0 = vector.load %arg2[%c0, %c0_0] : memref<64x32xf32, #tpu.memory_space<vmem>>, vector<64x32xf32>
    %1 = tpu.iota {dimensions = array<i32: 1>} : vector<16x64xi32>
    %c0_1 = arith.constant 0 : index
    %c0_2 = arith.constant 0 : index
    %2 = vector.load %arg0[%c0_1, %c0_2] : memref<16x2xi32, #tpu.memory_space<vmem>>, vector<16x1xi32>
    %3 = vector.broadcast %2 : vector<16x1xi32> to vector<16x64xi32>
    %4 = arith.cmpi eq, %3, %1 : vector<16x64xi32>
    %5 = arith.extui %4 : vector<16x64xi1> to vector<16x64xi32>
    %6 = arith.sitofp %5 : vector<16x64xi32> to vector<16x64xf32>
    %cst = arith.constant dense<0.000000e+00> : vector<16x32xf32>
    %7 = tpu.matmul %6, %0, %cst {dimension_numbers = #tpu.dot_dimension_numbers<[1], [0], [0], [1], [0, 0, 1, 1], [], []>} : vector<16x64xf32>, vector<64x32xf32>, vector<16x32xf32> -> vector<16x32xf32>
    %c0_3 = arith.constant 0 : index
    %c1 = arith.constant 1 : index
    %8 = vector.load %arg0[%c0_3, %c1] : memref<16x2xi32, #tpu.memory_space<vmem>>, vector<16x1xi32>
    %9 = vector.broadcast %8 : vector<16x1xi32> to vector<16x64xi32>
    %10 = arith.cmpi eq, %9, %1 : vector<16x64xi32>
    %11 = arith.extui %10 : vector<16x64xi1> to vector<16x64xi32>
    %12 = arith.sitofp %11 : vector<16x64xi32> to vector<16x64xf32>
    %cst_4 = arith.constant dense<0.000000e+00> : vector<16x32xf32>
    %13 = tpu.matmul %12, %0, %cst_4 {dimension_numbers = #tpu.dot_dimension_numbers<[1], [0], [0], [1], [0, 0, 1, 1], [], []>} : vector<16x64xf32>, vector<64x32xf32>, vector<16x32xf32> -> vector<16x32xf32>
    %c0_5 = arith.constant 0 : index
    %c0_6 = arith.constant 0 : index
    %c0_7 = arith.constant 0 : index
    %14 = vector.load %arg1[%c0_5, %c0_6, %c0_7] : memref<6x1x8xf32, #tpu.memory_space<vmem>>, vector<2x1x8xf32>
    %c2 = arith.constant 2 : index
    %c0_8 = arith.constant 0 : index
    %c0_9 = arith.constant 0 : index
    %15 = vector.load %arg1[%c2, %c0_8, %c0_9] : memref<6x1x8xf32, #tpu.memory_space<vmem>>, vector<2x1x8xf32>
    %c4 = arith.constant 4 : index
    %c0_10 = arith.constant 0 : index
    %c0_11 = arith.constant 0 : index
    %16 = vector.load %arg1[%c4, %c0_10, %c0_11] : memref<6x1x8xf32, #tpu.memory_space<vmem>>, vector<2x1x8xf32>
    %cst_12 = arith.constant 1.000000e+00 : f32
    %17 = vector.broadcast %cst_12 : f32 to vector<2x1x8xf32>
    %18 = arith.subf %17, %14 : vector<2x1x8xf32>
    %cst_13 = arith.constant -1.000000e+09 : f32
    %19 = vector.broadcast %cst_13 : f32 to vector<2x1x8xf32>
    %20 = arith.mulf %18, %19 : vector<2x1x8xf32>
    %21 = tpu.concatenate %20, %20, %20, %20 in 0 : vector<2x1x8xf32>, vector<2x1x8xf32>, vector<2x1x8xf32>, vector<2x1x8xf32> -> vector<8x1x8xf32>
    %cst_14 = arith.constant 0.000000e+00 : f32
    %22 = vector.broadcast %cst_14 : f32 to vector<2x1x8xf32>
    %23 = arith.cmpf one, %16, %22 : vector<2x1x8xf32>
    %cst_15 = arith.constant 0.000000e+00 : f32
    %cst_16 = arith.constant -1.000000e+09 : f32
    %24 = vector.broadcast %cst_15 : f32 to vector<2x1x8xf32>
    %25 = vector.broadcast %cst_16 : f32 to vector<2x1x8xf32>
    %26 = arith.select %23, %24, %25 : vector<2x1x8xi1>, vector<2x1x8xf32>
    %27 = tpu.concatenate %26, %26, %26, %26 in 0 : vector<2x1x8xf32>, vector<2x1x8xf32>, vector<2x1x8xf32>, vector<2x1x8xf32> -> vector<8x1x8xf32>
    %28 = tpu.iota {dimensions = array<i32: 1>} : vector<8x8x8xi32>
    %29 = tpu.iota {dimensions = array<i32: 2>} : vector<8x8x8xi32>
    %30 = arith.cmpi sle, %29, %28 : vector<8x8x8xi32>
    %cst_17 = arith.constant 0.000000e+00 : f32
    %cst_18 = arith.constant -1.000000e+09 : f32
    %31 = vector.broadcast %cst_17 : f32 to vector<8x8x8xf32>
    %32 = vector.broadcast %cst_18 : f32 to vector<8x8x8xf32>
    %33 = arith.select %30, %31, %32 : vector<8x8x8xi1>, vector<8x8x8xf32>
    %cst_19 = arith.constant 1.000000e+00 : f32
    %34 = vector.broadcast %cst_19 : f32 to vector<2x1x8xf32>
    %35 = arith.subf %34, %15 : vector<2x1x8xf32>
    %cst_20 = arith.constant -1.000000e+09 : f32
    %36 = vector.broadcast %cst_20 : f32 to vector<2x1x8xf32>
    %37 = arith.mulf %35, %36 : vector<2x1x8xf32>
    %38 = tpu.concatenate %37, %37, %37, %37 in 0 : vector<2x1x8xf32>, vector<2x1x8xf32>, vector<2x1x8xf32>, vector<2x1x8xf32> -> vector<8x1x8xf32>
    %39 = vector.broadcast %38 : vector<8x1x8xf32> to vector<8x8x8xf32>
    %40 = arith.addf %33, %39 : vector<8x8x8xf32>
    %c0_21 = arith.constant 0 : index
    %c0_22 = arith.constant 0 : index
    %41 = vector.load %arg3[%c0_21, %c0_22] : memref<7x32xf32, #tpu.memory_space<vmem>>, vector<1x32xf32>
    %42 = arith.mulf %7, %7 : vector<16x32xf32>
    %cst_23 = arith.constant dense<0.000000e+00> : vector<16xf32>
    %43 = vector.multi_reduction <add>, %42, %cst_23 [1] : vector<16x32xf32> to vector<16xf32>
    %44 = vector.shape_cast %43 : vector<16xf32> to vector<16x1xf32>
    %cst_24 = arith.constant 3.200000e+01 : f32
    %45 = vector.broadcast %cst_24 : f32 to vector<16x1xf32>
    %46 = arith.divf %44, %45 : vector<16x1xf32>
    %cst_25 = arith.constant 9.99999997E-7 : f32
    %47 = vector.broadcast %cst_25 : f32 to vector<16x1xf32>
    %48 = arith.addf %46, %47 : vector<16x1xf32>
    %49 = math.rsqrt %48 : vector<16x1xf32>
    %50 = vector.broadcast %49 : vector<16x1xf32> to vector<16x32xf32>
    %51 = arith.mulf %7, %50 : vector<16x32xf32>
    %52 = vector.broadcast %41 : vector<1x32xf32> to vector<16x32xf32>
    %53 = arith.mulf %51, %52 : vector<16x32xf32>
    %c0_26 = arith.constant 0 : index
    %c0_27 = arith.constant 0 : index
    %54 = vector.load %arg4[%c0_26, %c0_27] : memref<32x1280xbf16, #tpu.memory_space<vmem>>, vector<32x96xbf16>
    %55 = arith.truncf %53 : vector<16x32xf32> to vector<16x32xbf16>
    %cst_28 = arith.constant dense<0.000000e+00> : vector<16x96xf32>
    %56 = tpu.matmul %55, %54, %cst_28 {dimension_numbers = #tpu.dot_dimension_numbers<[1], [0], [0], [1], [0, 0, 1, 1], [], []>} : vector<16x32xbf16>, vector<32x96xbf16>, vector<16x96xf32> -> vector<16x96xf32>
    %57 = vector.extract_strided_slice %56 {offsets = [0, 0], sizes = [16, 32], strides = [1, 1]} : vector<16x96xf32> to vector<16x32xf32>
    %58 = vector.extract_strided_slice %56 {offsets = [0, 32], sizes = [16, 32], strides = [1, 1]} : vector<16x96xf32> to vector<16x32xf32>
    %59 = vector.extract_strided_slice %56 {offsets = [0, 64], sizes = [16, 32], strides = [1, 1]} : vector<16x96xf32> to vector<16x32xf32>
    %60 = vector.extract_strided_slice %57 {offsets = [0, 0], sizes = [16, 8], strides = [1, 1]} : vector<16x32xf32> to vector<16x8xf32>
    %61 = vector.shape_cast %60 : vector<16x8xf32> to vector<2x8x8xf32>
    %62 = vector.extract_strided_slice %57 {offsets = [0, 8], sizes = [16, 8], strides = [1, 1]} : vector<16x32xf32> to vector<16x8xf32>
    %63 = vector.shape_cast %62 : vector<16x8xf32> to vector<2x8x8xf32>
    %64 = vector.extract_strided_slice %57 {offsets = [0, 16], sizes = [16, 8], strides = [1, 1]} : vector<16x32xf32> to vector<16x8xf32>
    %65 = vector.shape_cast %64 : vector<16x8xf32> to vector<2x8x8xf32>
    %66 = vector.extract_strided_slice %57 {offsets = [0, 24], sizes = [16, 8], strides = [1, 1]} : vector<16x32xf32> to vector<16x8xf32>
    %67 = vector.shape_cast %66 : vector<16x8xf32> to vector<2x8x8xf32>
    %68 = tpu.concatenate %61, %63, %65, %67 in 0 : vector<2x8x8xf32>, vector<2x8x8xf32>, vector<2x8x8xf32>, vector<2x8x8xf32> -> vector<8x8x8xf32>
    %69 = arith.truncf %68 : vector<8x8x8xf32> to vector<8x8x8xbf16>
    %70 = vector.extract_strided_slice %58 {offsets = [0, 0], sizes = [16, 8], strides = [1, 1]} : vector<16x32xf32> to vector<16x8xf32>
    %71 = vector.shape_cast %70 : vector<16x8xf32> to vector<2x8x8xf32>
    %72 = vector.extract_strided_slice %58 {offsets = [0, 8], sizes = [16, 8], strides = [1, 1]} : vector<16x32xf32> to vector<16x8xf32>
    %73 = vector.shape_cast %72 : vector<16x8xf32> to vector<2x8x8xf32>
    %74 = vector.extract_strided_slice %58 {offsets = [0, 16], sizes = [16, 8], strides = [1, 1]} : vector<16x32xf32> to vector<16x8xf32>
    %75 = vector.shape_cast %74 : vector<16x8xf32> to vector<2x8x8xf32>
    %76 = vector.extract_strided_slice %58 {offsets = [0, 24], sizes = [16, 8], strides = [1, 1]} : vector<16x32xf32> to vector<16x8xf32>
    %77 = vector.shape_cast %76 : vector<16x8xf32> to vector<2x8x8xf32>
    %78 = tpu.concatenate %71, %73, %75, %77 in 0 : vector<2x8x8xf32>, vector<2x8x8xf32>, vector<2x8x8xf32>, vector<2x8x8xf32> -> vector<8x8x8xf32>
    %79 = arith.truncf %78 : vector<8x8x8xf32> to vector<8x8x8xbf16>
    %80 = vector.extract_strided_slice %59 {offsets = [0, 0], sizes = [16, 8], strides = [1, 1]} : vector<16x32xf32> to vector<16x8xf32>
    %81 = vector.shape_cast %80 : vector<16x8xf32> to vector<2x8x8xf32>
    %82 = vector.extract_strided_slice %59 {offsets = [0, 8], sizes = [16, 8], strides = [1, 1]} : vector<16x32xf32> to vector<16x8xf32>
    %83 = vector.shape_cast %82 : vector<16x8xf32> to vector<2x8x8xf32>
    %84 = vector.extract_strided_slice %59 {offsets = [0, 16], sizes = [16, 8], strides = [1, 1]} : vector<16x32xf32> to vector<16x8xf32>
    %85 = vector.shape_cast %84 : vector<16x8xf32> to vector<2x8x8xf32>
    %86 = vector.extract_strided_slice %59 {offsets = [0, 24], sizes = [16, 8], strides = [1, 1]} : vector<16x32xf32> to vector<16x8xf32>
    %87 = vector.shape_cast %86 : vector<16x8xf32> to vector<2x8x8xf32>
    %88 = tpu.concatenate %81, %83, %85, %87 in 0 : vector<2x8x8xf32>, vector<2x8x8xf32>, vector<2x8x8xf32>, vector<2x8x8xf32> -> vector<8x8x8xf32>
    %89 = arith.truncf %88 : vector<8x8x8xf32> to vector<8x8x8xbf16>
    "tpu.trace_start"() <{level = 10 : i32, message = "bqd,bkd->bqk"}> : () -> ()
    %cst_29 = arith.constant dense<0.000000e+00> : vector<8x8x8xf32>
    %90 = tpu.matmul %69, %79, %cst_29 {dimension_numbers = #tpu.dot_dimension_numbers<[2], [2], [1], [1], [0, 0, 0, 1, 1, 1], [0], [0]>} : vector<8x8x8xbf16>, vector<8x8x8xbf16>, vector<8x8x8xf32> -> vector<8x8x8xf32>
    "tpu.trace_stop"() : () -> ()
    %91 = vector.broadcast %21 : vector<8x1x8xf32> to vector<8x8x8xf32>
    %92 = arith.addf %90, %91 : vector<8x8x8xf32>
    %cst_30 = arith.constant dense<0xFF800000> : vector<8x8xf32>
    %93 = vector.multi_reduction <maximumf>, %92, %cst_30 [2] : vector<8x8x8xf32> to vector<8x8xf32>
    %94 = vector.shape_cast %93 : vector<8x8xf32> to vector<8x8x1xf32>
    %95 = vector.broadcast %94 : vector<8x8x1xf32> to vector<8x8x8xf32>
    %96 = arith.subf %92, %95 : vector<8x8x8xf32>
    %97 = math.exp %96 : vector<8x8x8xf32>
    %cst_31 = arith.constant dense<0.000000e+00> : vector<8x8xf32>
    %98 = vector.multi_reduction <add>, %97, %cst_31 [2] : vector<8x8x8xf32> to vector<8x8xf32>
    %99 = vector.shape_cast %98 : vector<8x8xf32> to vector<8x8x1xf32>
    %100 = vector.broadcast %99 : vector<8x8x1xf32> to vector<8x8x8xf32>
    %101 = arith.divf %97, %100 : vector<8x8x8xf32>
    %102 = arith.truncf %101 : vector<8x8x8xf32> to vector<8x8x8xbf16>
    "tpu.trace_start"() <{level = 10 : i32, message = "bqk,bkd->bqd"}> : () -> ()
    %cst_32 = arith.constant dense<0.000000e+00> : vector<8x8x8xf32>
    %103 = tpu.matmul %102, %89, %cst_32 {dimension_numbers = #tpu.dot_dimension_numbers<[2], [1], [1], [2], [0, 0, 0, 1, 1, 2], [0], [0]>} : vector<8x8x8xbf16>, vector<8x8x8xbf16>, vector<8x8x8xf32> -> vector<8x8x8xf32>
    "tpu.trace_stop"() : () -> ()
    %104 = vector.extract_strided_slice %103 {offsets = [0, 0, 0], sizes = [2, 8, 8], strides = [1, 1, 1]} : vector<8x8x8xf32> to vector<2x8x8xf32>
    %105 = vector.shape_cast %104 : vector<2x8x8xf32> to vector<16x8xf32>
    %106 = vector.extract_strided_slice %103 {offsets = [2, 0, 0], sizes = [2, 8, 8], strides = [1, 1, 1]} : vector<8x8x8xf32> to vector<2x8x8xf32>
    %107 = vector.shape_cast %106 : vector<2x8x8xf32> to vector<16x8xf32>
    %108 = vector.extract_strided_slice %103 {offsets = [4, 0, 0], sizes = [2, 8, 8], strides = [1, 1, 1]} : vector<8x8x8xf32> to vector<2x8x8xf32>
    %109 = vector.shape_cast %108 : vector<2x8x8xf32> to vector<16x8xf32>
    %110 = vector.extract_strided_slice %103 {offsets = [6, 0, 0], sizes = [2, 8, 8], strides = [1, 1, 1]} : vector<8x8x8xf32> to vector<2x8x8xf32>
    %111 = vector.shape_cast %110 : vector<2x8x8xf32> to vector<16x8xf32>
    %112 = tpu.concatenate %105, %107, %109, %111 in 1 : vector<16x8xf32>, vector<16x8xf32>, vector<16x8xf32>, vector<16x8xf32> -> vector<16x32xf32>
    %c0_33 = arith.constant 0 : index
    %c128 = arith.constant 128 : index
    %113 = vector.load %arg4[%c0_33, %c128] : memref<32x1280xbf16, #tpu.memory_space<vmem>>, vector<32x32xbf16>
    %114 = arith.truncf %112 : vector<16x32xf32> to vector<16x32xbf16>
    %cst_34 = arith.constant dense<0.000000e+00> : vector<16x32xf32>
    %115 = tpu.matmul %114, %113, %cst_34 {dimension_numbers = #tpu.dot_dimension_numbers<[1], [0], [0], [1], [0, 0, 1, 1], [], []>} : vector<16x32xbf16>, vector<32x32xbf16>, vector<16x32xf32> -> vector<16x32xf32>
    %116 = arith.addf %7, %115 : vector<16x32xf32>
    %c1_35 = arith.constant 1 : index
    %c0_36 = arith.constant 0 : index
    %117 = vector.load %arg3[%c1_35, %c0_36] : memref<7x32xf32, #tpu.memory_space<vmem>>, vector<1x32xf32>
    %118 = arith.mulf %116, %116 : vector<16x32xf32>
    %cst_37 = arith.constant dense<0.000000e+00> : vector<16xf32>
    %119 = vector.multi_reduction <add>, %118, %cst_37 [1] : vector<16x32xf32> to vector<16xf32>
    %120 = vector.shape_cast %119 : vector<16xf32> to vector<16x1xf32>
    %cst_38 = arith.constant 3.200000e+01 : f32
    %121 = vector.broadcast %cst_38 : f32 to vector<16x1xf32>
    %122 = arith.divf %120, %121 : vector<16x1xf32>
    %cst_39 = arith.constant 9.99999997E-7 : f32
    %123 = vector.broadcast %cst_39 : f32 to vector<16x1xf32>
    %124 = arith.addf %122, %123 : vector<16x1xf32>
    %125 = math.rsqrt %124 : vector<16x1xf32>
    %126 = vector.broadcast %125 : vector<16x1xf32> to vector<16x32xf32>
    %127 = arith.mulf %116, %126 : vector<16x32xf32>
    %128 = vector.broadcast %117 : vector<1x32xf32> to vector<16x32xf32>
    %129 = arith.mulf %127, %128 : vector<16x32xf32>
    %c0_40 = arith.constant 0 : index
    %c256 = arith.constant 256 : index
    %130 = vector.load %arg4[%c0_40, %c256] : memref<32x1280xbf16, #tpu.memory_space<vmem>>, vector<32x64xbf16>
    %131 = arith.truncf %129 : vector<16x32xf32> to vector<16x32xbf16>
    %cst_41 = arith.constant dense<0.000000e+00> : vector<16x64xf32>
    %132 = tpu.matmul %131, %130, %cst_41 {dimension_numbers = #tpu.dot_dimension_numbers<[1], [0], [0], [1], [0, 0, 1, 1], [], []>} : vector<16x32xbf16>, vector<32x64xbf16>, vector<16x64xf32> -> vector<16x64xf32>
    %cst_42 = arith.constant 0.000000e+00 : f32
    %133 = vector.broadcast %cst_42 : f32 to vector<16x64xf32>
    %134 = arith.maximumf %132, %133 : vector<16x64xf32>
    %c0_43 = arith.constant 0 : index
    %c0_44 = arith.constant 0 : index
    %135 = vector.load %arg5[%c0_43, %c0_44] : memref<64x256xbf16, #tpu.memory_space<vmem>>, vector<64x32xbf16>
    %136 = arith.truncf %134 : vector<16x64xf32> to vector<16x64xbf16>
    %cst_45 = arith.constant dense<0.000000e+00> : vector<16x32xf32>
    %137 = tpu.matmul %136, %135, %cst_45 {dimension_numbers = #tpu.dot_dimension_numbers<[1], [0], [0], [1], [0, 0, 1, 1], [], []>} : vector<16x64xbf16>, vector<64x32xbf16>, vector<16x32xf32> -> vector<16x32xf32>
    %138 = arith.addf %116, %137 : vector<16x32xf32>
    %c2_46 = arith.constant 2 : index
    %c0_47 = arith.constant 0 : index
    %139 = vector.load %arg3[%c2_46, %c0_47] : memref<7x32xf32, #tpu.memory_space<vmem>>, vector<1x32xf32>
    %140 = arith.mulf %138, %138 : vector<16x32xf32>
    %cst_48 = arith.constant dense<0.000000e+00> : vector<16xf32>
    %141 = vector.multi_reduction <add>, %140, %cst_48 [1] : vector<16x32xf32> to vector<16xf32>
    %142 = vector.shape_cast %141 : vector<16xf32> to vector<16x1xf32>
    %cst_49 = arith.constant 3.200000e+01 : f32
    %143 = vector.broadcast %cst_49 : f32 to vector<16x1xf32>
    %144 = arith.divf %142, %143 : vector<16x1xf32>
    %cst_50 = arith.constant 9.99999997E-7 : f32
    %145 = vector.broadcast %cst_50 : f32 to vector<16x1xf32>
    %146 = arith.addf %144, %145 : vector<16x1xf32>
    %147 = math.rsqrt %146 : vector<16x1xf32>
    %148 = vector.broadcast %147 : vector<16x1xf32> to vector<16x32xf32>
    %149 = arith.mulf %138, %148 : vector<16x32xf32>
    %150 = vector.broadcast %139 : vector<1x32xf32> to vector<16x32xf32>
    %151 = arith.mulf %149, %150 : vector<16x32xf32>
    %152 = vector.extract_strided_slice %151 {offsets = [0, 0], sizes = [1, 32], strides = [1, 1]} : vector<16x32xf32> to vector<1x32xf32>
    %153 = vector.shape_cast %152 : vector<1x32xf32> to vector<1x32xf32>
    %154 = vector.broadcast %153 : vector<1x32xf32> to vector<8x32xf32>
    %155 = vector.extract_strided_slice %151 {offsets = [8, 0], sizes = [1, 32], strides = [1, 1]} : vector<16x32xf32> to vector<1x32xf32>
    %156 = vector.shape_cast %155 : vector<1x32xf32> to vector<1x32xf32>
    %157 = vector.broadcast %156 : vector<1x32xf32> to vector<8x32xf32>
    %158 = tpu.concatenate %154, %157 in 0 : vector<8x32xf32>, vector<8x32xf32> -> vector<16x32xf32>
    %c0_51 = arith.constant 0 : index
    %c0_52 = arith.constant 0 : index
    %159 = vector.load %arg3[%c0_51, %c0_52] : memref<7x32xf32, #tpu.memory_space<vmem>>, vector<1x32xf32>
    %160 = arith.mulf %13, %13 : vector<16x32xf32>
    %cst_53 = arith.constant dense<0.000000e+00> : vector<16xf32>
    %161 = vector.multi_reduction <add>, %160, %cst_53 [1] : vector<16x32xf32> to vector<16xf32>
    %162 = vector.shape_cast %161 : vector<16xf32> to vector<16x1xf32>
    %cst_54 = arith.constant 3.200000e+01 : f32
    %163 = vector.broadcast %cst_54 : f32 to vector<16x1xf32>
    %164 = arith.divf %162, %163 : vector<16x1xf32>
    %cst_55 = arith.constant 9.99999997E-7 : f32
    %165 = vector.broadcast %cst_55 : f32 to vector<16x1xf32>
    %166 = arith.addf %164, %165 : vector<16x1xf32>
    %167 = math.rsqrt %166 : vector<16x1xf32>
    %168 = vector.broadcast %167 : vector<16x1xf32> to vector<16x32xf32>
    %169 = arith.mulf %13, %168 : vector<16x32xf32>
    %170 = vector.broadcast %159 : vector<1x32xf32> to vector<16x32xf32>
    %171 = arith.mulf %169, %170 : vector<16x32xf32>
    %c0_56 = arith.constant 0 : index
    %c0_57 = arith.constant 0 : index
    %172 = vector.load %arg4[%c0_56, %c0_57] : memref<32x1280xbf16, #tpu.memory_space<vmem>>, vector<32x96xbf16>
    %173 = arith.truncf %171 : vector<16x32xf32> to vector<16x32xbf16>
    %cst_58 = arith.constant dense<0.000000e+00> : vector<16x96xf32>
    %174 = tpu.matmul %173, %172, %cst_58 {dimension_numbers = #tpu.dot_dimension_numbers<[1], [0], [0], [1], [0, 0, 1, 1], [], []>} : vector<16x32xbf16>, vector<32x96xbf16>, vector<16x96xf32> -> vector<16x96xf32>
    %175 = vector.extract_strided_slice %174 {offsets = [0, 0], sizes = [16, 32], strides = [1, 1]} : vector<16x96xf32> to vector<16x32xf32>
    %176 = vector.extract_strided_slice %174 {offsets = [0, 32], sizes = [16, 32], strides = [1, 1]} : vector<16x96xf32> to vector<16x32xf32>
    %177 = vector.extract_strided_slice %174 {offsets = [0, 64], sizes = [16, 32], strides = [1, 1]} : vector<16x96xf32> to vector<16x32xf32>
    %178 = vector.extract_strided_slice %175 {offsets = [0, 0], sizes = [16, 8], strides = [1, 1]} : vector<16x32xf32> to vector<16x8xf32>
    %179 = vector.shape_cast %178 : vector<16x8xf32> to vector<2x8x8xf32>
    %180 = vector.extract_strided_slice %175 {offsets = [0, 8], sizes = [16, 8], strides = [1, 1]} : vector<16x32xf32> to vector<16x8xf32>
    %181 = vector.shape_cast %180 : vector<16x8xf32> to vector<2x8x8xf32>
    %182 = vector.extract_strided_slice %175 {offsets = [0, 16], sizes = [16, 8], strides = [1, 1]} : vector<16x32xf32> to vector<16x8xf32>
    %183 = vector.shape_cast %182 : vector<16x8xf32> to vector<2x8x8xf32>
    %184 = vector.extract_strided_slice %175 {offsets = [0, 24], sizes = [16, 8], strides = [1, 1]} : vector<16x32xf32> to vector<16x8xf32>
    %185 = vector.shape_cast %184 : vector<16x8xf32> to vector<2x8x8xf32>
    %186 = tpu.concatenate %179, %181, %183, %185 in 0 : vector<2x8x8xf32>, vector<2x8x8xf32>, vector<2x8x8xf32>, vector<2x8x8xf32> -> vector<8x8x8xf32>
    %187 = arith.truncf %186 : vector<8x8x8xf32> to vector<8x8x8xbf16>
    %188 = vector.extract_strided_slice %176 {offsets = [0, 0], sizes = [16, 8], strides = [1, 1]} : vector<16x32xf32> to vector<16x8xf32>
    %189 = vector.shape_cast %188 : vector<16x8xf32> to vector<2x8x8xf32>
    %190 = vector.extract_strided_slice %176 {offsets = [0, 8], sizes = [16, 8], strides = [1, 1]} : vector<16x32xf32> to vector<16x8xf32>
    %191 = vector.shape_cast %190 : vector<16x8xf32> to vector<2x8x8xf32>
    %192 = vector.extract_strided_slice %176 {offsets = [0, 16], sizes = [16, 8], strides = [1, 1]} : vector<16x32xf32> to vector<16x8xf32>
    %193 = vector.shape_cast %192 : vector<16x8xf32> to vector<2x8x8xf32>
    %194 = vector.extract_strided_slice %176 {offsets = [0, 24], sizes = [16, 8], strides = [1, 1]} : vector<16x32xf32> to vector<16x8xf32>
    %195 = vector.shape_cast %194 : vector<16x8xf32> to vector<2x8x8xf32>
    %196 = tpu.concatenate %189, %191, %193, %195 in 0 : vector<2x8x8xf32>, vector<2x8x8xf32>, vector<2x8x8xf32>, vector<2x8x8xf32> -> vector<8x8x8xf32>
    %197 = arith.truncf %196 : vector<8x8x8xf32> to vector<8x8x8xbf16>
    %198 = vector.extract_strided_slice %177 {offsets = [0, 0], sizes = [16, 8], strides = [1, 1]} : vector<16x32xf32> to vector<16x8xf32>
    %199 = vector.shape_cast %198 : vector<16x8xf32> to vector<2x8x8xf32>
    %200 = vector.extract_strided_slice %177 {offsets = [0, 8], sizes = [16, 8], strides = [1, 1]} : vector<16x32xf32> to vector<16x8xf32>
    %201 = vector.shape_cast %200 : vector<16x8xf32> to vector<2x8x8xf32>
    %202 = vector.extract_strided_slice %177 {offsets = [0, 16], sizes = [16, 8], strides = [1, 1]} : vector<16x32xf32> to vector<16x8xf32>
    %203 = vector.shape_cast %202 : vector<16x8xf32> to vector<2x8x8xf32>
    %204 = vector.extract_strided_slice %177 {offsets = [0, 24], sizes = [16, 8], strides = [1, 1]} : vector<16x32xf32> to vector<16x8xf32>
    %205 = vector.shape_cast %204 : vector<16x8xf32> to vector<2x8x8xf32>
    %206 = tpu.concatenate %199, %201, %203, %205 in 0 : vector<2x8x8xf32>, vector<2x8x8xf32>, vector<2x8x8xf32>, vector<2x8x8xf32> -> vector<8x8x8xf32>
    %207 = arith.truncf %206 : vector<8x8x8xf32> to vector<8x8x8xbf16>
    "tpu.trace_start"() <{level = 10 : i32, message = "bqd,bkd->bqk"}> : () -> ()
    %cst_59 = arith.constant dense<0.000000e+00> : vector<8x8x8xf32>
    %208 = tpu.matmul %187, %197, %cst_59 {dimension_numbers = #tpu.dot_dimension_numbers<[2], [2], [1], [1], [0, 0, 0, 1, 1, 1], [0], [0]>} : vector<8x8x8xbf16>, vector<8x8x8xbf16>, vector<8x8x8xf32> -> vector<8x8x8xf32>
    "tpu.trace_stop"() : () -> ()
    %209 = vector.broadcast %27 : vector<8x1x8xf32> to vector<8x8x8xf32>
    %210 = arith.addf %208, %209 : vector<8x8x8xf32>
    %cst_60 = arith.constant dense<0xFF800000> : vector<8x8xf32>
    %211 = vector.multi_reduction <maximumf>, %210, %cst_60 [2] : vector<8x8x8xf32> to vector<8x8xf32>
    %212 = vector.shape_cast %211 : vector<8x8xf32> to vector<8x8x1xf32>
    %213 = vector.broadcast %212 : vector<8x8x1xf32> to vector<8x8x8xf32>
    %214 = arith.subf %210, %213 : vector<8x8x8xf32>
    %215 = math.exp %214 : vector<8x8x8xf32>
    %cst_61 = arith.constant dense<0.000000e+00> : vector<8x8xf32>
    %216 = vector.multi_reduction <add>, %215, %cst_61 [2] : vector<8x8x8xf32> to vector<8x8xf32>
    %217 = vector.shape_cast %216 : vector<8x8xf32> to vector<8x8x1xf32>
    %218 = vector.broadcast %217 : vector<8x8x1xf32> to vector<8x8x8xf32>
    %219 = arith.divf %215, %218 : vector<8x8x8xf32>
    %220 = arith.truncf %219 : vector<8x8x8xf32> to vector<8x8x8xbf16>
    "tpu.trace_start"() <{level = 10 : i32, message = "bqk,bkd->bqd"}> : () -> ()
    %cst_62 = arith.constant dense<0.000000e+00> : vector<8x8x8xf32>
    %221 = tpu.matmul %220, %207, %cst_62 {dimension_numbers = #tpu.dot_dimension_numbers<[2], [1], [1], [2], [0, 0, 0, 1, 1, 2], [0], [0]>} : vector<8x8x8xbf16>, vector<8x8x8xbf16>, vector<8x8x8xf32> -> vector<8x8x8xf32>
    "tpu.trace_stop"() : () -> ()
    %222 = vector.extract_strided_slice %221 {offsets = [0, 0, 0], sizes = [2, 8, 8], strides = [1, 1, 1]} : vector<8x8x8xf32> to vector<2x8x8xf32>
    %223 = vector.shape_cast %222 : vector<2x8x8xf32> to vector<16x8xf32>
    %224 = vector.extract_strided_slice %221 {offsets = [2, 0, 0], sizes = [2, 8, 8], strides = [1, 1, 1]} : vector<8x8x8xf32> to vector<2x8x8xf32>
    %225 = vector.shape_cast %224 : vector<2x8x8xf32> to vector<16x8xf32>
    %226 = vector.extract_strided_slice %221 {offsets = [4, 0, 0], sizes = [2, 8, 8], strides = [1, 1, 1]} : vector<8x8x8xf32> to vector<2x8x8xf32>
    %227 = vector.shape_cast %226 : vector<2x8x8xf32> to vector<16x8xf32>
    %228 = vector.extract_strided_slice %221 {offsets = [6, 0, 0], sizes = [2, 8, 8], strides = [1, 1, 1]} : vector<8x8x8xf32> to vector<2x8x8xf32>
    %229 = vector.shape_cast %228 : vector<2x8x8xf32> to vector<16x8xf32>
    %230 = tpu.concatenate %223, %225, %227, %229 in 1 : vector<16x8xf32>, vector<16x8xf32>, vector<16x8xf32>, vector<16x8xf32> -> vector<16x32xf32>
    %c0_63 = arith.constant 0 : index
    %c128_64 = arith.constant 128 : index
    %231 = vector.load %arg4[%c0_63, %c128_64] : memref<32x1280xbf16, #tpu.memory_space<vmem>>, vector<32x32xbf16>
    %232 = arith.truncf %230 : vector<16x32xf32> to vector<16x32xbf16>
    %cst_65 = arith.constant dense<0.000000e+00> : vector<16x32xf32>
    %233 = tpu.matmul %232, %231, %cst_65 {dimension_numbers = #tpu.dot_dimension_numbers<[1], [0], [0], [1], [0, 0, 1, 1], [], []>} : vector<16x32xbf16>, vector<32x32xbf16>, vector<16x32xf32> -> vector<16x32xf32>
    %234 = arith.addf %13, %233 : vector<16x32xf32>
    %c1_66 = arith.constant 1 : index
    %c0_67 = arith.constant 0 : index
    %235 = vector.load %arg3[%c1_66, %c0_67] : memref<7x32xf32, #tpu.memory_space<vmem>>, vector<1x32xf32>
    %236 = arith.mulf %234, %234 : vector<16x32xf32>
    %cst_68 = arith.constant dense<0.000000e+00> : vector<16xf32>
    %237 = vector.multi_reduction <add>, %236, %cst_68 [1] : vector<16x32xf32> to vector<16xf32>
    %238 = vector.shape_cast %237 : vector<16xf32> to vector<16x1xf32>
    %cst_69 = arith.constant 3.200000e+01 : f32
    %239 = vector.broadcast %cst_69 : f32 to vector<16x1xf32>
    %240 = arith.divf %238, %239 : vector<16x1xf32>
    %cst_70 = arith.constant 9.99999997E-7 : f32
    %241 = vector.broadcast %cst_70 : f32 to vector<16x1xf32>
    %242 = arith.addf %240, %241 : vector<16x1xf32>
    %243 = math.rsqrt %242 : vector<16x1xf32>
    %244 = vector.broadcast %243 : vector<16x1xf32> to vector<16x32xf32>
    %245 = arith.mulf %234, %244 : vector<16x32xf32>
    %246 = vector.broadcast %235 : vector<1x32xf32> to vector<16x32xf32>
    %247 = arith.mulf %245, %246 : vector<16x32xf32>
    %c0_71 = arith.constant 0 : index
    %c256_72 = arith.constant 256 : index
    %248 = vector.load %arg4[%c0_71, %c256_72] : memref<32x1280xbf16, #tpu.memory_space<vmem>>, vector<32x64xbf16>
    %249 = arith.truncf %247 : vector<16x32xf32> to vector<16x32xbf16>
    %cst_73 = arith.constant dense<0.000000e+00> : vector<16x64xf32>
    %250 = tpu.matmul %249, %248, %cst_73 {dimension_numbers = #tpu.dot_dimension_numbers<[1], [0], [0], [1], [0, 0, 1, 1], [], []>} : vector<16x32xbf16>, vector<32x64xbf16>, vector<16x64xf32> -> vector<16x64xf32>
    %cst_74 = arith.constant 0.000000e+00 : f32
    %251 = vector.broadcast %cst_74 : f32 to vector<16x64xf32>
    %252 = arith.maximumf %250, %251 : vector<16x64xf32>
    %c0_75 = arith.constant 0 : index
    %c0_76 = arith.constant 0 : index
    %253 = vector.load %arg5[%c0_75, %c0_76] : memref<64x256xbf16, #tpu.memory_space<vmem>>, vector<64x32xbf16>
    %254 = arith.truncf %252 : vector<16x64xf32> to vector<16x64xbf16>
    %cst_77 = arith.constant dense<0.000000e+00> : vector<16x32xf32>
    %255 = tpu.matmul %254, %253, %cst_77 {dimension_numbers = #tpu.dot_dimension_numbers<[1], [0], [0], [1], [0, 0, 1, 1], [], []>} : vector<16x64xbf16>, vector<64x32xbf16>, vector<16x32xf32> -> vector<16x32xf32>
    %256 = arith.addf %234, %255 : vector<16x32xf32>
    %c2_78 = arith.constant 2 : index
    %c0_79 = arith.constant 0 : index
    %257 = vector.load %arg3[%c2_78, %c0_79] : memref<7x32xf32, #tpu.memory_space<vmem>>, vector<1x32xf32>
    %258 = arith.mulf %256, %256 : vector<16x32xf32>
    %cst_80 = arith.constant dense<0.000000e+00> : vector<16xf32>
    %259 = vector.multi_reduction <add>, %258, %cst_80 [1] : vector<16x32xf32> to vector<16xf32>
    %260 = vector.shape_cast %259 : vector<16xf32> to vector<16x1xf32>
    %cst_81 = arith.constant 3.200000e+01 : f32
    %261 = vector.broadcast %cst_81 : f32 to vector<16x1xf32>
    %262 = arith.divf %260, %261 : vector<16x1xf32>
    %cst_82 = arith.constant 9.99999997E-7 : f32
    %263 = vector.broadcast %cst_82 : f32 to vector<16x1xf32>
    %264 = arith.addf %262, %263 : vector<16x1xf32>
    %265 = math.rsqrt %264 : vector<16x1xf32>
    %266 = vector.broadcast %265 : vector<16x1xf32> to vector<16x32xf32>
    %267 = arith.mulf %256, %266 : vector<16x32xf32>
    %268 = vector.broadcast %257 : vector<1x32xf32> to vector<16x32xf32>
    %269 = arith.mulf %267, %268 : vector<16x32xf32>
    %c0_83 = arith.constant 0 : index
    %c1152 = arith.constant 1152 : index
    %270 = vector.load %arg4[%c0_83, %c1152] : memref<32x1280xbf16, #tpu.memory_space<vmem>>, vector<32x64xbf16>
    %271 = arith.truncf %269 : vector<16x32xf32> to vector<16x32xbf16>
    %cst_84 = arith.constant dense<0.000000e+00> : vector<16x64xf32>
    %272 = tpu.matmul %271, %270, %cst_84 {dimension_numbers = #tpu.dot_dimension_numbers<[1], [0], [0], [1], [0, 0, 1, 1], [], []>} : vector<16x32xbf16>, vector<32x64xbf16>, vector<16x64xf32> -> vector<16x64xf32>
    %cst_85 = arith.constant dense<0xFF800000> : vector<16xf32>
    %273 = vector.multi_reduction <maximumf>, %272, %cst_85 [1] : vector<16x64xf32> to vector<16xf32>
    %274 = vector.shape_cast %273 : vector<16xf32> to vector<16x1xf32>
    %275 = arith.sitofp %1 : vector<16x64xi32> to vector<16x64xf32>
    %276 = vector.broadcast %274 : vector<16x1xf32> to vector<16x64xf32>
    %277 = arith.cmpf oge, %272, %276 : vector<16x64xf32>
    %cst_86 = arith.constant 6.400000e+01 : f32
    %278 = vector.broadcast %cst_86 : f32 to vector<16x64xf32>
    %279 = arith.select %277, %275, %278 : vector<16x64xi1>, vector<16x64xf32>
    %cst_87 = arith.constant dense<0x7F800000> : vector<16xf32>
    %280 = vector.multi_reduction <minimumf>, %279, %cst_87 [1] : vector<16x64xf32> to vector<16xf32>
    %281 = vector.shape_cast %280 : vector<16xf32> to vector<16x1xf32>
    %282 = vector.broadcast %281 : vector<16x1xf32> to vector<16x64xf32>
    %283 = arith.cmpf oeq, %275, %282 : vector<16x64xf32>
    %284 = arith.extui %283 : vector<16x64xi1> to vector<16x64xi32>
    %285 = arith.sitofp %284 : vector<16x64xi32> to vector<16x64xf32>
    %286 = tpu.iota {dimensions = array<i32: 0>} : vector<16x16xi32>
    %287 = tpu.iota {dimensions = array<i32: 1>} : vector<16x16xi32>
    %c2_i32 = arith.constant 2 : i32
    %288 = vector.broadcast %c2_i32 : i32 to vector<16x16xi32>
    %289 = arith.subi %286, %288 : vector<16x16xi32>
    %290 = arith.cmpi eq, %287, %289 : vector<16x16xi32>
    %c7_i32 = arith.constant 7 : i32
    %291 = vector.broadcast %c7_i32 : i32 to vector<16x16xi32>
    %292 = arith.andi %286, %291 : vector<16x16xi32>
    %c2_i32_88 = arith.constant 2 : i32
    %293 = vector.broadcast %c2_i32_88 : i32 to vector<16x16xi32>
    %294 = arith.cmpi sge, %292, %293 : vector<16x16xi32>
    %295 = arith.andi %290, %294 : vector<16x16xi1>
    %296 = arith.extui %295 : vector<16x16xi1> to vector<16x16xi32>
    %297 = arith.sitofp %296 : vector<16x16xi32> to vector<16x16xf32>
    %298 = tpu.iota {dimensions = array<i32: 0>} : vector<16x64xi32>
    %c7_i32_89 = arith.constant 7 : i32
    %299 = vector.broadcast %c7_i32_89 : i32 to vector<16x64xi32>
    %300 = arith.andi %298, %299 : vector<16x64xi32>
    %c0_i32 = arith.constant 0 : i32
    %301 = vector.broadcast %c0_i32 : i32 to vector<16x64xi32>
    %302 = arith.cmpi eq, %300, %301 : vector<16x64xi32>
    %c2_i32_90 = arith.constant 2 : i32
    %303 = vector.broadcast %c2_i32_90 : i32 to vector<16x64xi32>
    %304 = arith.cmpi eq, %1, %303 : vector<16x64xi32>
    %305 = arith.andi %302, %304 : vector<16x64xi1>
    %c1_i32 = arith.constant 1 : i32
    %306 = vector.broadcast %c1_i32 : i32 to vector<16x64xi32>
    %307 = arith.cmpi eq, %300, %306 : vector<16x64xi32>
    %c3_i32 = arith.constant 3 : i32
    %308 = vector.broadcast %c3_i32 : i32 to vector<16x64xi32>
    %309 = arith.cmpi eq, %1, %308 : vector<16x64xi32>
    %310 = arith.andi %307, %309 : vector<16x64xi1>
    %311 = arith.ori %305, %310 : vector<16x64xi1>
    %312 = arith.extui %311 : vector<16x64xi1> to vector<16x64xi32>
    %313 = arith.sitofp %312 : vector<16x64xi32> to vector<16x64xf32>
    %cst_91 = arith.constant dense<0.000000e+00> : vector<16x64xf32>
    %314 = tpu.matmul %297, %285, %cst_91 {dimension_numbers = #tpu.dot_dimension_numbers<[1], [0], [0], [1], [0, 0, 1, 1], [], []>} : vector<16x16xf32>, vector<16x64xf32>, vector<16x64xf32> -> vector<16x64xf32>
    %315 = arith.addf %314, %313 : vector<16x64xf32>
    %cst_92 = arith.constant dense<0.000000e+00> : vector<16x32xf32>
    %316 = tpu.matmul %315, %0, %cst_92 {dimension_numbers = #tpu.dot_dimension_numbers<[1], [0], [0], [1], [0, 0, 1, 1], [], []>} : vector<16x64xf32>, vector<64x32xf32>, vector<16x32xf32> -> vector<16x32xf32>
    %c0_93 = arith.constant 0 : index
    %c0_94 = arith.constant 0 : index
    %317 = vector.load %arg3[%c0_93, %c0_94] : memref<7x32xf32, #tpu.memory_space<vmem>>, vector<1x32xf32>
    %318 = arith.mulf %316, %316 : vector<16x32xf32>
    %cst_95 = arith.constant dense<0.000000e+00> : vector<16xf32>
    %319 = vector.multi_reduction <add>, %318, %cst_95 [1] : vector<16x32xf32> to vector<16xf32>
    %320 = vector.shape_cast %319 : vector<16xf32> to vector<16x1xf32>
    %cst_96 = arith.constant 3.200000e+01 : f32
    %321 = vector.broadcast %cst_96 : f32 to vector<16x1xf32>
    %322 = arith.divf %320, %321 : vector<16x1xf32>
    %cst_97 = arith.constant 9.99999997E-7 : f32
    %323 = vector.broadcast %cst_97 : f32 to vector<16x1xf32>
    %324 = arith.addf %322, %323 : vector<16x1xf32>
    %325 = math.rsqrt %324 : vector<16x1xf32>
    %326 = vector.broadcast %325 : vector<16x1xf32> to vector<16x32xf32>
    %327 = arith.mulf %316, %326 : vector<16x32xf32>
    %328 = vector.broadcast %317 : vector<1x32xf32> to vector<16x32xf32>
    %329 = arith.mulf %327, %328 : vector<16x32xf32>
    %c0_98 = arith.constant 0 : index
    %c0_99 = arith.constant 0 : index
    %330 = vector.load %arg4[%c0_98, %c0_99] : memref<32x1280xbf16, #tpu.memory_space<vmem>>, vector<32x96xbf16>
    %331 = arith.truncf %329 : vector<16x32xf32> to vector<16x32xbf16>
    %cst_100 = arith.constant dense<0.000000e+00> : vector<16x96xf32>
    %332 = tpu.matmul %331, %330, %cst_100 {dimension_numbers = #tpu.dot_dimension_numbers<[1], [0], [0], [1], [0, 0, 1, 1], [], []>} : vector<16x32xbf16>, vector<32x96xbf16>, vector<16x96xf32> -> vector<16x96xf32>
    %333 = vector.extract_strided_slice %332 {offsets = [0, 0], sizes = [16, 32], strides = [1, 1]} : vector<16x96xf32> to vector<16x32xf32>
    %334 = vector.extract_strided_slice %332 {offsets = [0, 32], sizes = [16, 32], strides = [1, 1]} : vector<16x96xf32> to vector<16x32xf32>
    %335 = vector.extract_strided_slice %332 {offsets = [0, 64], sizes = [16, 32], strides = [1, 1]} : vector<16x96xf32> to vector<16x32xf32>
    %336 = vector.extract_strided_slice %333 {offsets = [0, 0], sizes = [16, 8], strides = [1, 1]} : vector<16x32xf32> to vector<16x8xf32>
    %337 = vector.shape_cast %336 : vector<16x8xf32> to vector<2x8x8xf32>
    %338 = vector.extract_strided_slice %333 {offsets = [0, 8], sizes = [16, 8], strides = [1, 1]} : vector<16x32xf32> to vector<16x8xf32>
    %339 = vector.shape_cast %338 : vector<16x8xf32> to vector<2x8x8xf32>
    %340 = vector.extract_strided_slice %333 {offsets = [0, 16], sizes = [16, 8], strides = [1, 1]} : vector<16x32xf32> to vector<16x8xf32>
    %341 = vector.shape_cast %340 : vector<16x8xf32> to vector<2x8x8xf32>
    %342 = vector.extract_strided_slice %333 {offsets = [0, 24], sizes = [16, 8], strides = [1, 1]} : vector<16x32xf32> to vector<16x8xf32>
    %343 = vector.shape_cast %342 : vector<16x8xf32> to vector<2x8x8xf32>
    %344 = tpu.concatenate %337, %339, %341, %343 in 0 : vector<2x8x8xf32>, vector<2x8x8xf32>, vector<2x8x8xf32>, vector<2x8x8xf32> -> vector<8x8x8xf32>
    %345 = arith.truncf %344 : vector<8x8x8xf32> to vector<8x8x8xbf16>
    %346 = vector.extract_strided_slice %334 {offsets = [0, 0], sizes = [16, 8], strides = [1, 1]} : vector<16x32xf32> to vector<16x8xf32>
    %347 = vector.shape_cast %346 : vector<16x8xf32> to vector<2x8x8xf32>
    %348 = vector.extract_strided_slice %334 {offsets = [0, 8], sizes = [16, 8], strides = [1, 1]} : vector<16x32xf32> to vector<16x8xf32>
    %349 = vector.shape_cast %348 : vector<16x8xf32> to vector<2x8x8xf32>
    %350 = vector.extract_strided_slice %334 {offsets = [0, 16], sizes = [16, 8], strides = [1, 1]} : vector<16x32xf32> to vector<16x8xf32>
    %351 = vector.shape_cast %350 : vector<16x8xf32> to vector<2x8x8xf32>
    %352 = vector.extract_strided_slice %334 {offsets = [0, 24], sizes = [16, 8], strides = [1, 1]} : vector<16x32xf32> to vector<16x8xf32>
    %353 = vector.shape_cast %352 : vector<16x8xf32> to vector<2x8x8xf32>
    %354 = tpu.concatenate %347, %349, %351, %353 in 0 : vector<2x8x8xf32>, vector<2x8x8xf32>, vector<2x8x8xf32>, vector<2x8x8xf32> -> vector<8x8x8xf32>
    %355 = arith.truncf %354 : vector<8x8x8xf32> to vector<8x8x8xbf16>
    %356 = vector.extract_strided_slice %335 {offsets = [0, 0], sizes = [16, 8], strides = [1, 1]} : vector<16x32xf32> to vector<16x8xf32>
    %357 = vector.shape_cast %356 : vector<16x8xf32> to vector<2x8x8xf32>
    %358 = vector.extract_strided_slice %335 {offsets = [0, 8], sizes = [16, 8], strides = [1, 1]} : vector<16x32xf32> to vector<16x8xf32>
    %359 = vector.shape_cast %358 : vector<16x8xf32> to vector<2x8x8xf32>
    %360 = vector.extract_strided_slice %335 {offsets = [0, 16], sizes = [16, 8], strides = [1, 1]} : vector<16x32xf32> to vector<16x8xf32>
    %361 = vector.shape_cast %360 : vector<16x8xf32> to vector<2x8x8xf32>
    %362 = vector.extract_strided_slice %335 {offsets = [0, 24], sizes = [16, 8], strides = [1, 1]} : vector<16x32xf32> to vector<16x8xf32>
    %363 = vector.shape_cast %362 : vector<16x8xf32> to vector<2x8x8xf32>
    %364 = tpu.concatenate %357, %359, %361, %363 in 0 : vector<2x8x8xf32>, vector<2x8x8xf32>, vector<2x8x8xf32>, vector<2x8x8xf32> -> vector<8x8x8xf32>
    %365 = arith.truncf %364 : vector<8x8x8xf32> to vector<8x8x8xbf16>
    "tpu.trace_start"() <{level = 10 : i32, message = "bqd,bkd->bqk"}> : () -> ()
    %cst_101 = arith.constant dense<0.000000e+00> : vector<8x8x8xf32>
    %366 = tpu.matmul %345, %355, %cst_101 {dimension_numbers = #tpu.dot_dimension_numbers<[2], [2], [1], [1], [0, 0, 0, 1, 1, 1], [0], [0]>} : vector<8x8x8xbf16>, vector<8x8x8xbf16>, vector<8x8x8xf32> -> vector<8x8x8xf32>
    "tpu.trace_stop"() : () -> ()
    %cst_102 = arith.constant dense<0xFF800000> : vector<8x8xf32>
    %367 = vector.multi_reduction <maximumf>, %366, %cst_102 [2] : vector<8x8x8xf32> to vector<8x8xf32>
    %368 = vector.shape_cast %367 : vector<8x8xf32> to vector<8x8x1xf32>
    %369 = vector.broadcast %368 : vector<8x8x1xf32> to vector<8x8x8xf32>
    %370 = arith.subf %366, %369 : vector<8x8x8xf32>
    %371 = math.exp %370 : vector<8x8x8xf32>
    %cst_103 = arith.constant dense<0.000000e+00> : vector<8x8xf32>
    %372 = vector.multi_reduction <add>, %371, %cst_103 [2] : vector<8x8x8xf32> to vector<8x8xf32>
    %373 = vector.shape_cast %372 : vector<8x8xf32> to vector<8x8x1xf32>
    %374 = vector.broadcast %373 : vector<8x8x1xf32> to vector<8x8x8xf32>
    %375 = arith.divf %371, %374 : vector<8x8x8xf32>
    %376 = arith.truncf %375 : vector<8x8x8xf32> to vector<8x8x8xbf16>
    "tpu.trace_start"() <{level = 10 : i32, message = "bqk,bkd->bqd"}> : () -> ()
    %cst_104 = arith.constant dense<0.000000e+00> : vector<8x8x8xf32>
    %377 = tpu.matmul %376, %365, %cst_104 {dimension_numbers = #tpu.dot_dimension_numbers<[2], [1], [1], [2], [0, 0, 0, 1, 1, 2], [0], [0]>} : vector<8x8x8xbf16>, vector<8x8x8xbf16>, vector<8x8x8xf32> -> vector<8x8x8xf32>
    "tpu.trace_stop"() : () -> ()
    %378 = vector.extract_strided_slice %377 {offsets = [0, 0, 0], sizes = [2, 8, 8], strides = [1, 1, 1]} : vector<8x8x8xf32> to vector<2x8x8xf32>
    %379 = vector.shape_cast %378 : vector<2x8x8xf32> to vector<16x8xf32>
    %380 = vector.extract_strided_slice %377 {offsets = [2, 0, 0], sizes = [2, 8, 8], strides = [1, 1, 1]} : vector<8x8x8xf32> to vector<2x8x8xf32>
    %381 = vector.shape_cast %380 : vector<2x8x8xf32> to vector<16x8xf32>
    %382 = vector.extract_strided_slice %377 {offsets = [4, 0, 0], sizes = [2, 8, 8], strides = [1, 1, 1]} : vector<8x8x8xf32> to vector<2x8x8xf32>
    %383 = vector.shape_cast %382 : vector<2x8x8xf32> to vector<16x8xf32>
    %384 = vector.extract_strided_slice %377 {offsets = [6, 0, 0], sizes = [2, 8, 8], strides = [1, 1, 1]} : vector<8x8x8xf32> to vector<2x8x8xf32>
    %385 = vector.shape_cast %384 : vector<2x8x8xf32> to vector<16x8xf32>
    %386 = tpu.concatenate %379, %381, %383, %385 in 1 : vector<16x8xf32>, vector<16x8xf32>, vector<16x8xf32>, vector<16x8xf32> -> vector<16x32xf32>
    %c0_105 = arith.constant 0 : index
    %c128_106 = arith.constant 128 : index
    %387 = vector.load %arg4[%c0_105, %c128_106] : memref<32x1280xbf16, #tpu.memory_space<vmem>>, vector<32x32xbf16>
    %388 = arith.truncf %386 : vector<16x32xf32> to vector<16x32xbf16>
    %cst_107 = arith.constant dense<0.000000e+00> : vector<16x32xf32>
    %389 = tpu.matmul %388, %387, %cst_107 {dimension_numbers = #tpu.dot_dimension_numbers<[1], [0], [0], [1], [0, 0, 1, 1], [], []>} : vector<16x32xbf16>, vector<32x32xbf16>, vector<16x32xf32> -> vector<16x32xf32>
    %390 = arith.addf %316, %389 : vector<16x32xf32>
    %c1_108 = arith.constant 1 : index
    %c0_109 = arith.constant 0 : index
    %391 = vector.load %arg3[%c1_108, %c0_109] : memref<7x32xf32, #tpu.memory_space<vmem>>, vector<1x32xf32>
    %392 = arith.mulf %390, %390 : vector<16x32xf32>
    %cst_110 = arith.constant dense<0.000000e+00> : vector<16xf32>
    %393 = vector.multi_reduction <add>, %392, %cst_110 [1] : vector<16x32xf32> to vector<16xf32>
    %394 = vector.shape_cast %393 : vector<16xf32> to vector<16x1xf32>
    %cst_111 = arith.constant 3.200000e+01 : f32
    %395 = vector.broadcast %cst_111 : f32 to vector<16x1xf32>
    %396 = arith.divf %394, %395 : vector<16x1xf32>
    %cst_112 = arith.constant 9.99999997E-7 : f32
    %397 = vector.broadcast %cst_112 : f32 to vector<16x1xf32>
    %398 = arith.addf %396, %397 : vector<16x1xf32>
    %399 = math.rsqrt %398 : vector<16x1xf32>
    %400 = vector.broadcast %399 : vector<16x1xf32> to vector<16x32xf32>
    %401 = arith.mulf %390, %400 : vector<16x32xf32>
    %402 = vector.broadcast %391 : vector<1x32xf32> to vector<16x32xf32>
    %403 = arith.mulf %401, %402 : vector<16x32xf32>
    %c0_113 = arith.constant 0 : index
    %c256_114 = arith.constant 256 : index
    %404 = vector.load %arg4[%c0_113, %c256_114] : memref<32x1280xbf16, #tpu.memory_space<vmem>>, vector<32x64xbf16>
    %405 = arith.truncf %403 : vector<16x32xf32> to vector<16x32xbf16>
    %cst_115 = arith.constant dense<0.000000e+00> : vector<16x64xf32>
    %406 = tpu.matmul %405, %404, %cst_115 {dimension_numbers = #tpu.dot_dimension_numbers<[1], [0], [0], [1], [0, 0, 1, 1], [], []>} : vector<16x32xbf16>, vector<32x64xbf16>, vector<16x64xf32> -> vector<16x64xf32>
    %cst_116 = arith.constant 0.000000e+00 : f32
    %407 = vector.broadcast %cst_116 : f32 to vector<16x64xf32>
    %408 = arith.maximumf %406, %407 : vector<16x64xf32>
    %c0_117 = arith.constant 0 : index
    %c0_118 = arith.constant 0 : index
    %409 = vector.load %arg5[%c0_117, %c0_118] : memref<64x256xbf16, #tpu.memory_space<vmem>>, vector<64x32xbf16>
    %410 = arith.truncf %408 : vector<16x64xf32> to vector<16x64xbf16>
    %cst_119 = arith.constant dense<0.000000e+00> : vector<16x32xf32>
    %411 = tpu.matmul %410, %409, %cst_119 {dimension_numbers = #tpu.dot_dimension_numbers<[1], [0], [0], [1], [0, 0, 1, 1], [], []>} : vector<16x64xbf16>, vector<64x32xbf16>, vector<16x32xf32> -> vector<16x32xf32>
    %412 = arith.addf %390, %411 : vector<16x32xf32>
    %c2_120 = arith.constant 2 : index
    %c0_121 = arith.constant 0 : index
    %413 = vector.load %arg3[%c2_120, %c0_121] : memref<7x32xf32, #tpu.memory_space<vmem>>, vector<1x32xf32>
    %414 = arith.mulf %412, %412 : vector<16x32xf32>
    %cst_122 = arith.constant dense<0.000000e+00> : vector<16xf32>
    %415 = vector.multi_reduction <add>, %414, %cst_122 [1] : vector<16x32xf32> to vector<16xf32>
    %416 = vector.shape_cast %415 : vector<16xf32> to vector<16x1xf32>
    %cst_123 = arith.constant 3.200000e+01 : f32
    %417 = vector.broadcast %cst_123 : f32 to vector<16x1xf32>
    %418 = arith.divf %416, %417 : vector<16x1xf32>
    %cst_124 = arith.constant 9.99999997E-7 : f32
    %419 = vector.broadcast %cst_124 : f32 to vector<16x1xf32>
    %420 = arith.addf %418, %419 : vector<16x1xf32>
    %421 = math.rsqrt %420 : vector<16x1xf32>
    %422 = vector.broadcast %421 : vector<16x1xf32> to vector<16x32xf32>
    %423 = arith.mulf %412, %422 : vector<16x32xf32>
    %424 = vector.broadcast %413 : vector<1x32xf32> to vector<16x32xf32>
    %425 = arith.mulf %423, %424 : vector<16x32xf32>
    %426 = arith.addf %425, %158 : vector<16x32xf32>
    %c3 = arith.constant 3 : index
    %c0_125 = arith.constant 0 : index
    %427 = vector.load %arg3[%c3, %c0_125] : memref<7x32xf32, #tpu.memory_space<vmem>>, vector<1x32xf32>
    %428 = arith.mulf %13, %13 : vector<16x32xf32>
    %cst_126 = arith.constant dense<0.000000e+00> : vector<16xf32>
    %429 = vector.multi_reduction <add>, %428, %cst_126 [1] : vector<16x32xf32> to vector<16xf32>
    %430 = vector.shape_cast %429 : vector<16xf32> to vector<16x1xf32>
    %cst_127 = arith.constant 3.200000e+01 : f32
    %431 = vector.broadcast %cst_127 : f32 to vector<16x1xf32>
    %432 = arith.divf %430, %431 : vector<16x1xf32>
    %cst_128 = arith.constant 9.99999997E-7 : f32
    %433 = vector.broadcast %cst_128 : f32 to vector<16x1xf32>
    %434 = arith.addf %432, %433 : vector<16x1xf32>
    %435 = math.rsqrt %434 : vector<16x1xf32>
    %436 = vector.broadcast %435 : vector<16x1xf32> to vector<16x32xf32>
    %437 = arith.mulf %13, %436 : vector<16x32xf32>
    %438 = vector.broadcast %427 : vector<1x32xf32> to vector<16x32xf32>
    %439 = arith.mulf %437, %438 : vector<16x32xf32>
    %c0_129 = arith.constant 0 : index
    %c384 = arith.constant 384 : index
    %440 = vector.load %arg4[%c0_129, %c384] : memref<32x1280xbf16, #tpu.memory_space<vmem>>, vector<32x96xbf16>
    %441 = arith.truncf %439 : vector<16x32xf32> to vector<16x32xbf16>
    %cst_130 = arith.constant dense<0.000000e+00> : vector<16x96xf32>
    %442 = tpu.matmul %441, %440, %cst_130 {dimension_numbers = #tpu.dot_dimension_numbers<[1], [0], [0], [1], [0, 0, 1, 1], [], []>} : vector<16x32xbf16>, vector<32x96xbf16>, vector<16x96xf32> -> vector<16x96xf32>
    %443 = vector.extract_strided_slice %442 {offsets = [0, 0], sizes = [16, 32], strides = [1, 1]} : vector<16x96xf32> to vector<16x32xf32>
    %444 = vector.extract_strided_slice %442 {offsets = [0, 32], sizes = [16, 32], strides = [1, 1]} : vector<16x96xf32> to vector<16x32xf32>
    %445 = vector.extract_strided_slice %442 {offsets = [0, 64], sizes = [16, 32], strides = [1, 1]} : vector<16x96xf32> to vector<16x32xf32>
    %446 = vector.extract_strided_slice %443 {offsets = [0, 0], sizes = [16, 8], strides = [1, 1]} : vector<16x32xf32> to vector<16x8xf32>
    %447 = vector.shape_cast %446 : vector<16x8xf32> to vector<2x8x8xf32>
    %448 = vector.extract_strided_slice %443 {offsets = [0, 8], sizes = [16, 8], strides = [1, 1]} : vector<16x32xf32> to vector<16x8xf32>
    %449 = vector.shape_cast %448 : vector<16x8xf32> to vector<2x8x8xf32>
    %450 = vector.extract_strided_slice %443 {offsets = [0, 16], sizes = [16, 8], strides = [1, 1]} : vector<16x32xf32> to vector<16x8xf32>
    %451 = vector.shape_cast %450 : vector<16x8xf32> to vector<2x8x8xf32>
    %452 = vector.extract_strided_slice %443 {offsets = [0, 24], sizes = [16, 8], strides = [1, 1]} : vector<16x32xf32> to vector<16x8xf32>
    %453 = vector.shape_cast %452 : vector<16x8xf32> to vector<2x8x8xf32>
    %454 = tpu.concatenate %447, %449, %451, %453 in 0 : vector<2x8x8xf32>, vector<2x8x8xf32>, vector<2x8x8xf32>, vector<2x8x8xf32> -> vector<8x8x8xf32>
    %455 = arith.truncf %454 : vector<8x8x8xf32> to vector<8x8x8xbf16>
    %456 = vector.extract_strided_slice %444 {offsets = [0, 0], sizes = [16, 8], strides = [1, 1]} : vector<16x32xf32> to vector<16x8xf32>
    %457 = vector.shape_cast %456 : vector<16x8xf32> to vector<2x8x8xf32>
    %458 = vector.extract_strided_slice %444 {offsets = [0, 8], sizes = [16, 8], strides = [1, 1]} : vector<16x32xf32> to vector<16x8xf32>
    %459 = vector.shape_cast %458 : vector<16x8xf32> to vector<2x8x8xf32>
    %460 = vector.extract_strided_slice %444 {offsets = [0, 16], sizes = [16, 8], strides = [1, 1]} : vector<16x32xf32> to vector<16x8xf32>
    %461 = vector.shape_cast %460 : vector<16x8xf32> to vector<2x8x8xf32>
    %462 = vector.extract_strided_slice %444 {offsets = [0, 24], sizes = [16, 8], strides = [1, 1]} : vector<16x32xf32> to vector<16x8xf32>
    %463 = vector.shape_cast %462 : vector<16x8xf32> to vector<2x8x8xf32>
    %464 = tpu.concatenate %457, %459, %461, %463 in 0 : vector<2x8x8xf32>, vector<2x8x8xf32>, vector<2x8x8xf32>, vector<2x8x8xf32> -> vector<8x8x8xf32>
    %465 = arith.truncf %464 : vector<8x8x8xf32> to vector<8x8x8xbf16>
    %466 = vector.extract_strided_slice %445 {offsets = [0, 0], sizes = [16, 8], strides = [1, 1]} : vector<16x32xf32> to vector<16x8xf32>
    %467 = vector.shape_cast %466 : vector<16x8xf32> to vector<2x8x8xf32>
    %468 = vector.extract_strided_slice %445 {offsets = [0, 8], sizes = [16, 8], strides = [1, 1]} : vector<16x32xf32> to vector<16x8xf32>
    %469 = vector.shape_cast %468 : vector<16x8xf32> to vector<2x8x8xf32>
    %470 = vector.extract_strided_slice %445 {offsets = [0, 16], sizes = [16, 8], strides = [1, 1]} : vector<16x32xf32> to vector<16x8xf32>
    %471 = vector.shape_cast %470 : vector<16x8xf32> to vector<2x8x8xf32>
    %472 = vector.extract_strided_slice %445 {offsets = [0, 24], sizes = [16, 8], strides = [1, 1]} : vector<16x32xf32> to vector<16x8xf32>
    %473 = vector.shape_cast %472 : vector<16x8xf32> to vector<2x8x8xf32>
    %474 = tpu.concatenate %467, %469, %471, %473 in 0 : vector<2x8x8xf32>, vector<2x8x8xf32>, vector<2x8x8xf32>, vector<2x8x8xf32> -> vector<8x8x8xf32>
    %475 = arith.truncf %474 : vector<8x8x8xf32> to vector<8x8x8xbf16>
    "tpu.trace_start"() <{level = 10 : i32, message = "bqd,bkd->bqk"}> : () -> ()
    %cst_131 = arith.constant dense<0.000000e+00> : vector<8x8x8xf32>
    %476 = tpu.matmul %455, %465, %cst_131 {dimension_numbers = #tpu.dot_dimension_numbers<[2], [2], [1], [1], [0, 0, 0, 1, 1, 1], [0], [0]>} : vector<8x8x8xbf16>, vector<8x8x8xbf16>, vector<8x8x8xf32> -> vector<8x8x8xf32>
    "tpu.trace_stop"() : () -> ()
    %477 = arith.addf %476, %40 : vector<8x8x8xf32>
    %cst_132 = arith.constant dense<0xFF800000> : vector<8x8xf32>
    %478 = vector.multi_reduction <maximumf>, %477, %cst_132 [2] : vector<8x8x8xf32> to vector<8x8xf32>
    %479 = vector.shape_cast %478 : vector<8x8xf32> to vector<8x8x1xf32>
    %480 = vector.broadcast %479 : vector<8x8x1xf32> to vector<8x8x8xf32>
    %481 = arith.subf %477, %480 : vector<8x8x8xf32>
    %482 = math.exp %481 : vector<8x8x8xf32>
    %cst_133 = arith.constant dense<0.000000e+00> : vector<8x8xf32>
    %483 = vector.multi_reduction <add>, %482, %cst_133 [2] : vector<8x8x8xf32> to vector<8x8xf32>
    %484 = vector.shape_cast %483 : vector<8x8xf32> to vector<8x8x1xf32>
    %485 = vector.broadcast %484 : vector<8x8x1xf32> to vector<8x8x8xf32>
    %486 = arith.divf %482, %485 : vector<8x8x8xf32>
    %487 = arith.truncf %486 : vector<8x8x8xf32> to vector<8x8x8xbf16>
    "tpu.trace_start"() <{level = 10 : i32, message = "bqk,bkd->bqd"}> : () -> ()
    %cst_134 = arith.constant dense<0.000000e+00> : vector<8x8x8xf32>
    %488 = tpu.matmul %487, %475, %cst_134 {dimension_numbers = #tpu.dot_dimension_numbers<[2], [1], [1], [2], [0, 0, 0, 1, 1, 2], [0], [0]>} : vector<8x8x8xbf16>, vector<8x8x8xbf16>, vector<8x8x8xf32> -> vector<8x8x8xf32>
    "tpu.trace_stop"() : () -> ()
    %489 = vector.extract_strided_slice %488 {offsets = [0, 0, 0], sizes = [2, 8, 8], strides = [1, 1, 1]} : vector<8x8x8xf32> to vector<2x8x8xf32>
    %490 = vector.shape_cast %489 : vector<2x8x8xf32> to vector<16x8xf32>
    %491 = vector.extract_strided_slice %488 {offsets = [2, 0, 0], sizes = [2, 8, 8], strides = [1, 1, 1]} : vector<8x8x8xf32> to vector<2x8x8xf32>
    %492 = vector.shape_cast %491 : vector<2x8x8xf32> to vector<16x8xf32>
    %493 = vector.extract_strided_slice %488 {offsets = [4, 0, 0], sizes = [2, 8, 8], strides = [1, 1, 1]} : vector<8x8x8xf32> to vector<2x8x8xf32>
    %494 = vector.shape_cast %493 : vector<2x8x8xf32> to vector<16x8xf32>
    %495 = vector.extract_strided_slice %488 {offsets = [6, 0, 0], sizes = [2, 8, 8], strides = [1, 1, 1]} : vector<8x8x8xf32> to vector<2x8x8xf32>
    %496 = vector.shape_cast %495 : vector<2x8x8xf32> to vector<16x8xf32>
    %497 = tpu.concatenate %490, %492, %494, %496 in 1 : vector<16x8xf32>, vector<16x8xf32>, vector<16x8xf32>, vector<16x8xf32> -> vector<16x32xf32>
    %c0_135 = arith.constant 0 : index
    %c512 = arith.constant 512 : index
    %498 = vector.load %arg4[%c0_135, %c512] : memref<32x1280xbf16, #tpu.memory_space<vmem>>, vector<32x32xbf16>
    %499 = arith.truncf %497 : vector<16x32xf32> to vector<16x32xbf16>
    %cst_136 = arith.constant dense<0.000000e+00> : vector<16x32xf32>
    %500 = tpu.matmul %499, %498, %cst_136 {dimension_numbers = #tpu.dot_dimension_numbers<[1], [0], [0], [1], [0, 0, 1, 1], [], []>} : vector<16x32xbf16>, vector<32x32xbf16>, vector<16x32xf32> -> vector<16x32xf32>
    %501 = arith.addf %13, %500 : vector<16x32xf32>
    %c4_137 = arith.constant 4 : index
    %c0_138 = arith.constant 0 : index
    %502 = vector.load %arg3[%c4_137, %c0_138] : memref<7x32xf32, #tpu.memory_space<vmem>>, vector<1x32xf32>
    %503 = arith.mulf %501, %501 : vector<16x32xf32>
    %cst_139 = arith.constant dense<0.000000e+00> : vector<16xf32>
    %504 = vector.multi_reduction <add>, %503, %cst_139 [1] : vector<16x32xf32> to vector<16xf32>
    %505 = vector.shape_cast %504 : vector<16xf32> to vector<16x1xf32>
    %cst_140 = arith.constant 3.200000e+01 : f32
    %506 = vector.broadcast %cst_140 : f32 to vector<16x1xf32>
    %507 = arith.divf %505, %506 : vector<16x1xf32>
    %cst_141 = arith.constant 9.99999997E-7 : f32
    %508 = vector.broadcast %cst_141 : f32 to vector<16x1xf32>
    %509 = arith.addf %507, %508 : vector<16x1xf32>
    %510 = math.rsqrt %509 : vector<16x1xf32>
    %511 = vector.broadcast %510 : vector<16x1xf32> to vector<16x32xf32>
    %512 = arith.mulf %501, %511 : vector<16x32xf32>
    %513 = vector.broadcast %502 : vector<1x32xf32> to vector<16x32xf32>
    %514 = arith.mulf %512, %513 : vector<16x32xf32>
    %c0_142 = arith.constant 0 : index
    %c640 = arith.constant 640 : index
    %515 = vector.load %arg4[%c0_142, %c640] : memref<32x1280xbf16, #tpu.memory_space<vmem>>, vector<32x32xbf16>
    %516 = arith.truncf %514 : vector<16x32xf32> to vector<16x32xbf16>
    %cst_143 = arith.constant dense<0.000000e+00> : vector<16x32xf32>
    %517 = tpu.matmul %516, %515, %cst_143 {dimension_numbers = #tpu.dot_dimension_numbers<[1], [0], [0], [1], [0, 0, 1, 1], [], []>} : vector<16x32xbf16>, vector<32x32xbf16>, vector<16x32xf32> -> vector<16x32xf32>
    %c0_144 = arith.constant 0 : index
    %c768 = arith.constant 768 : index
    %518 = vector.load %arg4[%c0_144, %c768] : memref<32x1280xbf16, #tpu.memory_space<vmem>>, vector<32x64xbf16>
    %519 = arith.truncf %426 : vector<16x32xf32> to vector<16x32xbf16>
    %cst_145 = arith.constant dense<0.000000e+00> : vector<16x64xf32>
    %520 = tpu.matmul %519, %518, %cst_145 {dimension_numbers = #tpu.dot_dimension_numbers<[1], [0], [0], [1], [0, 0, 1, 1], [], []>} : vector<16x32xbf16>, vector<32x64xbf16>, vector<16x64xf32> -> vector<16x64xf32>
    %521 = vector.extract_strided_slice %520 {offsets = [0, 0], sizes = [16, 32], strides = [1, 1]} : vector<16x64xf32> to vector<16x32xf32>
    %522 = vector.extract_strided_slice %520 {offsets = [0, 32], sizes = [16, 32], strides = [1, 1]} : vector<16x64xf32> to vector<16x32xf32>
    %523 = vector.extract_strided_slice %517 {offsets = [0, 0], sizes = [16, 8], strides = [1, 1]} : vector<16x32xf32> to vector<16x8xf32>
    %524 = vector.shape_cast %523 : vector<16x8xf32> to vector<2x8x8xf32>
    %525 = vector.extract_strided_slice %517 {offsets = [0, 8], sizes = [16, 8], strides = [1, 1]} : vector<16x32xf32> to vector<16x8xf32>
    %526 = vector.shape_cast %525 : vector<16x8xf32> to vector<2x8x8xf32>
    %527 = vector.extract_strided_slice %517 {offsets = [0, 16], sizes = [16, 8], strides = [1, 1]} : vector<16x32xf32> to vector<16x8xf32>
    %528 = vector.shape_cast %527 : vector<16x8xf32> to vector<2x8x8xf32>
    %529 = vector.extract_strided_slice %517 {offsets = [0, 24], sizes = [16, 8], strides = [1, 1]} : vector<16x32xf32> to vector<16x8xf32>
    %530 = vector.shape_cast %529 : vector<16x8xf32> to vector<2x8x8xf32>
    %531 = tpu.concatenate %524, %526, %528, %530 in 0 : vector<2x8x8xf32>, vector<2x8x8xf32>, vector<2x8x8xf32>, vector<2x8x8xf32> -> vector<8x8x8xf32>
    %532 = arith.truncf %531 : vector<8x8x8xf32> to vector<8x8x8xbf16>
    %533 = vector.extract_strided_slice %521 {offsets = [0, 0], sizes = [16, 8], strides = [1, 1]} : vector<16x32xf32> to vector<16x8xf32>
    %534 = vector.shape_cast %533 : vector<16x8xf32> to vector<2x8x8xf32>
    %535 = vector.extract_strided_slice %521 {offsets = [0, 8], sizes = [16, 8], strides = [1, 1]} : vector<16x32xf32> to vector<16x8xf32>
    %536 = vector.shape_cast %535 : vector<16x8xf32> to vector<2x8x8xf32>
    %537 = vector.extract_strided_slice %521 {offsets = [0, 16], sizes = [16, 8], strides = [1, 1]} : vector<16x32xf32> to vector<16x8xf32>
    %538 = vector.shape_cast %537 : vector<16x8xf32> to vector<2x8x8xf32>
    %539 = vector.extract_strided_slice %521 {offsets = [0, 24], sizes = [16, 8], strides = [1, 1]} : vector<16x32xf32> to vector<16x8xf32>
    %540 = vector.shape_cast %539 : vector<16x8xf32> to vector<2x8x8xf32>
    %541 = tpu.concatenate %534, %536, %538, %540 in 0 : vector<2x8x8xf32>, vector<2x8x8xf32>, vector<2x8x8xf32>, vector<2x8x8xf32> -> vector<8x8x8xf32>
    %542 = arith.truncf %541 : vector<8x8x8xf32> to vector<8x8x8xbf16>
    %543 = vector.extract_strided_slice %522 {offsets = [0, 0], sizes = [16, 8], strides = [1, 1]} : vector<16x32xf32> to vector<16x8xf32>
    %544 = vector.shape_cast %543 : vector<16x8xf32> to vector<2x8x8xf32>
    %545 = vector.extract_strided_slice %522 {offsets = [0, 8], sizes = [16, 8], strides = [1, 1]} : vector<16x32xf32> to vector<16x8xf32>
    %546 = vector.shape_cast %545 : vector<16x8xf32> to vector<2x8x8xf32>
    %547 = vector.extract_strided_slice %522 {offsets = [0, 16], sizes = [16, 8], strides = [1, 1]} : vector<16x32xf32> to vector<16x8xf32>
    %548 = vector.shape_cast %547 : vector<16x8xf32> to vector<2x8x8xf32>
    %549 = vector.extract_strided_slice %522 {offsets = [0, 24], sizes = [16, 8], strides = [1, 1]} : vector<16x32xf32> to vector<16x8xf32>
    %550 = vector.shape_cast %549 : vector<16x8xf32> to vector<2x8x8xf32>
    %551 = tpu.concatenate %544, %546, %548, %550 in 0 : vector<2x8x8xf32>, vector<2x8x8xf32>, vector<2x8x8xf32>, vector<2x8x8xf32> -> vector<8x8x8xf32>
    %552 = arith.truncf %551 : vector<8x8x8xf32> to vector<8x8x8xbf16>
    "tpu.trace_start"() <{level = 10 : i32, message = "bqd,bkd->bqk"}> : () -> ()
    %cst_146 = arith.constant dense<0.000000e+00> : vector<8x8x8xf32>
    %553 = tpu.matmul %532, %542, %cst_146 {dimension_numbers = #tpu.dot_dimension_numbers<[2], [2], [1], [1], [0, 0, 0, 1, 1, 1], [0], [0]>} : vector<8x8x8xbf16>, vector<8x8x8xbf16>, vector<8x8x8xf32> -> vector<8x8x8xf32>
    "tpu.trace_stop"() : () -> ()
    %cst_147 = arith.constant dense<0xFF800000> : vector<8x8xf32>
    %554 = vector.multi_reduction <maximumf>, %553, %cst_147 [2] : vector<8x8x8xf32> to vector<8x8xf32>
    %555 = vector.shape_cast %554 : vector<8x8xf32> to vector<8x8x1xf32>
    %556 = vector.broadcast %555 : vector<8x8x1xf32> to vector<8x8x8xf32>
    %557 = arith.subf %553, %556 : vector<8x8x8xf32>
    %558 = math.exp %557 : vector<8x8x8xf32>
    %cst_148 = arith.constant dense<0.000000e+00> : vector<8x8xf32>
    %559 = vector.multi_reduction <add>, %558, %cst_148 [2] : vector<8x8x8xf32> to vector<8x8xf32>
    %560 = vector.shape_cast %559 : vector<8x8xf32> to vector<8x8x1xf32>
    %561 = vector.broadcast %560 : vector<8x8x1xf32> to vector<8x8x8xf32>
    %562 = arith.divf %558, %561 : vector<8x8x8xf32>
    %563 = arith.truncf %562 : vector<8x8x8xf32> to vector<8x8x8xbf16>
    "tpu.trace_start"() <{level = 10 : i32, message = "bqk,bkd->bqd"}> : () -> ()
    %cst_149 = arith.constant dense<0.000000e+00> : vector<8x8x8xf32>
    %564 = tpu.matmul %563, %552, %cst_149 {dimension_numbers = #tpu.dot_dimension_numbers<[2], [1], [1], [2], [0, 0, 0, 1, 1, 2], [0], [0]>} : vector<8x8x8xbf16>, vector<8x8x8xbf16>, vector<8x8x8xf32> -> vector<8x8x8xf32>
    "tpu.trace_stop"() : () -> ()
    %565 = vector.extract_strided_slice %564 {offsets = [0, 0, 0], sizes = [2, 8, 8], strides = [1, 1, 1]} : vector<8x8x8xf32> to vector<2x8x8xf32>
    %566 = vector.shape_cast %565 : vector<2x8x8xf32> to vector<16x8xf32>
    %567 = vector.extract_strided_slice %564 {offsets = [2, 0, 0], sizes = [2, 8, 8], strides = [1, 1, 1]} : vector<8x8x8xf32> to vector<2x8x8xf32>
    %568 = vector.shape_cast %567 : vector<2x8x8xf32> to vector<16x8xf32>
    %569 = vector.extract_strided_slice %564 {offsets = [4, 0, 0], sizes = [2, 8, 8], strides = [1, 1, 1]} : vector<8x8x8xf32> to vector<2x8x8xf32>
    %570 = vector.shape_cast %569 : vector<2x8x8xf32> to vector<16x8xf32>
    %571 = vector.extract_strided_slice %564 {offsets = [6, 0, 0], sizes = [2, 8, 8], strides = [1, 1, 1]} : vector<8x8x8xf32> to vector<2x8x8xf32>
    %572 = vector.shape_cast %571 : vector<2x8x8xf32> to vector<16x8xf32>
    %573 = tpu.concatenate %566, %568, %570, %572 in 1 : vector<16x8xf32>, vector<16x8xf32>, vector<16x8xf32>, vector<16x8xf32> -> vector<16x32xf32>
    %c0_150 = arith.constant 0 : index
    %c896 = arith.constant 896 : index
    %574 = vector.load %arg4[%c0_150, %c896] : memref<32x1280xbf16, #tpu.memory_space<vmem>>, vector<32x32xbf16>
    %575 = arith.truncf %573 : vector<16x32xf32> to vector<16x32xbf16>
    %cst_151 = arith.constant dense<0.000000e+00> : vector<16x32xf32>
    %576 = tpu.matmul %575, %574, %cst_151 {dimension_numbers = #tpu.dot_dimension_numbers<[1], [0], [0], [1], [0, 0, 1, 1], [], []>} : vector<16x32xbf16>, vector<32x32xbf16>, vector<16x32xf32> -> vector<16x32xf32>
    %577 = arith.addf %501, %576 : vector<16x32xf32>
    %c5 = arith.constant 5 : index
    %c0_152 = arith.constant 0 : index
    %578 = vector.load %arg3[%c5, %c0_152] : memref<7x32xf32, #tpu.memory_space<vmem>>, vector<1x32xf32>
    %579 = arith.mulf %577, %577 : vector<16x32xf32>
    %cst_153 = arith.constant dense<0.000000e+00> : vector<16xf32>
    %580 = vector.multi_reduction <add>, %579, %cst_153 [1] : vector<16x32xf32> to vector<16xf32>
    %581 = vector.shape_cast %580 : vector<16xf32> to vector<16x1xf32>
    %cst_154 = arith.constant 3.200000e+01 : f32
    %582 = vector.broadcast %cst_154 : f32 to vector<16x1xf32>
    %583 = arith.divf %581, %582 : vector<16x1xf32>
    %cst_155 = arith.constant 9.99999997E-7 : f32
    %584 = vector.broadcast %cst_155 : f32 to vector<16x1xf32>
    %585 = arith.addf %583, %584 : vector<16x1xf32>
    %586 = math.rsqrt %585 : vector<16x1xf32>
    %587 = vector.broadcast %586 : vector<16x1xf32> to vector<16x32xf32>
    %588 = arith.mulf %577, %587 : vector<16x32xf32>
    %589 = vector.broadcast %578 : vector<1x32xf32> to vector<16x32xf32>
    %590 = arith.mulf %588, %589 : vector<16x32xf32>
    %c0_156 = arith.constant 0 : index
    %c1024 = arith.constant 1024 : index
    %591 = vector.load %arg4[%c0_156, %c1024] : memref<32x1280xbf16, #tpu.memory_space<vmem>>, vector<32x64xbf16>
    %592 = arith.truncf %590 : vector<16x32xf32> to vector<16x32xbf16>
    %cst_157 = arith.constant dense<0.000000e+00> : vector<16x64xf32>
    %593 = tpu.matmul %592, %591, %cst_157 {dimension_numbers = #tpu.dot_dimension_numbers<[1], [0], [0], [1], [0, 0, 1, 1], [], []>} : vector<16x32xbf16>, vector<32x64xbf16>, vector<16x64xf32> -> vector<16x64xf32>
    %cst_158 = arith.constant 0.000000e+00 : f32
    %594 = vector.broadcast %cst_158 : f32 to vector<16x64xf32>
    %595 = arith.maximumf %593, %594 : vector<16x64xf32>
    %c0_159 = arith.constant 0 : index
    %c128_160 = arith.constant 128 : index
    %596 = vector.load %arg5[%c0_159, %c128_160] : memref<64x256xbf16, #tpu.memory_space<vmem>>, vector<64x32xbf16>
    %597 = arith.truncf %595 : vector<16x64xf32> to vector<16x64xbf16>
    %cst_161 = arith.constant dense<0.000000e+00> : vector<16x32xf32>
    %598 = tpu.matmul %597, %596, %cst_161 {dimension_numbers = #tpu.dot_dimension_numbers<[1], [0], [0], [1], [0, 0, 1, 1], [], []>} : vector<16x64xbf16>, vector<64x32xbf16>, vector<16x32xf32> -> vector<16x32xf32>
    %599 = arith.addf %577, %598 : vector<16x32xf32>
    %c6 = arith.constant 6 : index
    %c0_162 = arith.constant 0 : index
    %600 = vector.load %arg3[%c6, %c0_162] : memref<7x32xf32, #tpu.memory_space<vmem>>, vector<1x32xf32>
    %601 = arith.mulf %599, %599 : vector<16x32xf32>
    %cst_163 = arith.constant dense<0.000000e+00> : vector<16xf32>
    %602 = vector.multi_reduction <add>, %601, %cst_163 [1] : vector<16x32xf32> to vector<16xf32>
    %603 = vector.shape_cast %602 : vector<16xf32> to vector<16x1xf32>
    %cst_164 = arith.constant 3.200000e+01 : f32
    %604 = vector.broadcast %cst_164 : f32 to vector<16x1xf32>
    %605 = arith.divf %603, %604 : vector<16x1xf32>
    %cst_165 = arith.constant 9.99999997E-7 : f32
    %606 = vector.broadcast %cst_165 : f32 to vector<16x1xf32>
    %607 = arith.addf %605, %606 : vector<16x1xf32>
    %608 = math.rsqrt %607 : vector<16x1xf32>
    %609 = vector.broadcast %608 : vector<16x1xf32> to vector<16x32xf32>
    %610 = arith.mulf %599, %609 : vector<16x32xf32>
    %611 = vector.broadcast %600 : vector<1x32xf32> to vector<16x32xf32>
    %612 = arith.mulf %610, %611 : vector<16x32xf32>
    %c0_166 = arith.constant 0 : index
    %c0_167 = arith.constant 0 : index
    %613 = vector.load %arg6[%c0_166, %c0_167] : memref<16x32xf32, #tpu.memory_space<vmem>>, vector<16x32xf32>
    tpu.vector_store %arg6[%c0_166, %c0_167], %612 {strides = array<i32>} : memref<16x32xf32, #tpu.memory_space<vmem>>, vector<16x32xf32>,
    return
  }
}

</mosaic_0001>

<llo_original>
// kernel: forward.1
$region0: #{forward.1}
  #allocation0 [shape = 'u32[]', space=smem, size = 0x4, offset = 0x4, fixed_abs, tag = 'smem constant byte address 0x4 - core index']
  #allocation1 [shape = 'u32[144,128]{1,0:T(1,128)}', space=vmem, size = 0x12000, scoped, tag = 'internal scratch']
  %s0 = inlined_call_operand.vmem [shape: s32[16,2], index: 0, kind: input, shape index: {}]
  %s1 = inlined_call_operand.vmem [shape: f32[6,1,8], index: 1, kind: input, shape index: {}]
  %s2 = inlined_call_operand.vmem [shape: f32[64,32], index: 2, kind: input, shape index: {}]
  %s3 = inlined_call_operand.vmem [shape: f32[7,32], index: 3, kind: input, shape index: {}]
  %s4 = inlined_call_operand.hbm [shape: bf16[32,1280], index: 4, kind: input, shape index: {}]
  %s5 = inlined_call_operand.hbm [shape: bf16[64,256], index: 5, kind: input, shape index: {}]
  %s6 = inlined_call_operand.hbm [shape: f32[16,32], index: 6, kind: output, shape index: {}]
  %s7 = sld [smem:[#allocation0]]
  $region42: #{forward.1} parent=0
    _
  %s9 = ssub.s32 1, %s7
  %s10 = scalar_select 0, %s9, %s7
  $region1: #{forward.1} parent=0
    #allocation2 [shape = 'u8[81920]{0}', space=vmem, size = 0x14000, scoped, tag = 'input window, operand 4, single buffered']
    #allocation3 [shape = 's32[1]{0}', space=sflag, size = 0x4, scoped, tag = 'scoped memory for forward.1']
    #allocation4 [shape = 's32[1]{0}', space=sflag, size = 0x4, scoped, tag = 'scoped memory for forward.1']
    #allocation5 [shape = 'u8[32768]{0}', space=vmem, size = 0x8000, scoped, tag = 'input window, operand 5, single buffered']
    #allocation6 [shape = 's32[1]{0}', space=sflag, size = 0x4, scoped, tag = 'scoped memory for forward.1']
    #allocation7 [shape = 'u8[8192]{0}', space=vmem, size = 0x2000, scoped, tag = 'output window, operand 0, single buffered']
    %11 = vsyncpa [#allocation3], 0
    %12 = vsyncpa [#allocation6], 0
    %13 = vsyncpa [#allocation4], 0
    // Predicated region
    $region2: #{forward.1} parent=1 // pred_check
      _
    $region3: #{forward.1} parent=1 // pred_check_branch
      %15 = sbr.rel (0) target = $region5
    $region4: #{forward.1} parent=1 // pred_region
      _
    $region5: #{forward.1} parent=1 // pred_fallthru
      _
    // Predicated region
    $region6: #{forward.1} parent=1 // pred_check
      _
    $region7: #{forward.1} parent=1 // pred_check_branch
      %17 = sbr.rel (0) target = $region9
    $region8: #{forward.1} parent=1 // pred_region
      _
    $region9: #{forward.1} parent=1 // pred_fallthru
      _
    // Predicated region
    $region10: #{forward.1} parent=1 // pred_check
      _
    $region11: #{forward.1} parent=1 // pred_check_branch
      %19 = sbr.rel (0) target = $region13
    $region12: #{forward.1} parent=1 // pred_region
      _
    $region13: #{forward.1} parent=1 // pred_fallthru
      _
    // Predicated region
    $region14: #{forward.1} parent=1 // pred_check
      _
    $region15: #{forward.1} parent=1 // pred_check_branch
      %21 = sbr.rel (0) target = $region17
    $region16: #{forward.1} parent=1 // pred_region
      _
    $region17: #{forward.1} parent=1 // pred_fallthru
      _
    // Predicated region
    $region18: #{forward.1} parent=1 // pred_check
      _
    $region19: #{forward.1} parent=1 // pred_check_branch
      %23 = sbr.rel (0) target = $region21
    $region20: #{forward.1} parent=1 // pred_region
      %s25 = ssub.s32 2560, 2560
      %26 = vsyncadd [#allocation3], %s25
      %s27 = sshll.u32 [#allocation2], 4
      %s28 = int_to_ptr.vmem [resolvable:$true] %s27
      %33 = dma.hbm_to_vmem [thread:$0]  %s4, 2560, %s28, [#allocation3], 640, 640, 40
    $region21: #{forward.1} parent=1 // pred_fallthru
      _
    // Predicated region
    $region22: #{forward.1} parent=1 // pred_check
      _
    $region23: #{forward.1} parent=1 // pred_check_branch
      %35 = sbr.rel (0) target = $region25
    $region24: #{forward.1} parent=1 // pred_region
      %s37 = ssub.s32 1024, 1024
      %38 = vsyncadd [#allocation6], %s37
      %s39 = sshll.u32 [#allocation5], 4
      %s40 = int_to_ptr.vmem [resolvable:$true] %s39
      %45 = dma.hbm_to_vmem [thread:$0]  %s5, 1024, %s40, [#allocation6], 128, 128, 8
    $region25: #{forward.1} parent=1 // pred_fallthru
      _
    // Predicated region
    $region26: #{forward.1} parent=1 // pred_check
      _
    $region27: #{forward.1} parent=1 // pred_check_branch
      %47 = sbr.rel (0) target = $region29
    $region28: #{forward.1} parent=1 // pred_region
      %48 = dma.done [#allocation3], 2560
    $region29: #{forward.1} parent=1 // pred_fallthru
      _
    // Predicated region
    $region30: #{forward.1} parent=1 // pred_check
      _
    $region31: #{forward.1} parent=1 // pred_check_branch
      %50 = sbr.rel (0) target = $region33
    $region32: #{forward.1} parent=1 // pred_region
      %51 = dma.done [#allocation6], 1024
    $region33: #{forward.1} parent=1 // pred_fallthru
      _
    %v53 = vld [vmem:[%s2] sm:$0xff]
    %v54 = vld [vmem:[%s2 + $0x8] sm:$0xff]
    %v55 = vld [vmem:[%s2 + $0x10] sm:$0xff]
    %v56 = vld [vmem:[%s2 + $0x18] sm:$0xff]
    %v57 = vld [vmem:[%s2 + $0x20] sm:$0xff]
    %v58 = vld [vmem:[%s2 + $0x28] sm:$0xff]
    %v59 = vld [vmem:[%s2 + $0x30] sm:$0xff]
    %v60 = vld [vmem:[%s2 + $0x38] sm:$0xff]
    %v61 = vlaneseq
    %v62 = vand.u32 %v61, 127
    %v63 = vld [vmem:[%s0] sm:$0xff]
    %v64 = vld [vmem:[%s0 + $0x8] sm:$0xff]
    %65 = vset.pattern.permute.xlu0 0
    %66 = vperm.xlu0 %65, %v63
    %v67 = vpop.permute.xlu0 %66
    %68 = vset.pattern.permute.xlu0 0
    %69 = vperm.xlu0 %68, %v64
    %v70 = vpop.permute.xlu0 %69
    %vm71 = vcmp.eq.s32.totalorder %v67, %v62
    %vm72 = vcmp.eq.s32.totalorder %v70, %v62
    %v73 = vsel %vm71, 1, 0
    %v74 = vsel %vm72, 1, 0
    %v75 = vcvt.s32.f32 %v73
    %v76 = vcvt.s32.f32 %v74
    %vm77 = vcmask 523264
    %v79 = vsel %vm77, %v75, 0
    %v82 = vsel %vm77, %v76, 0
    %84 = vmatprep.subr.mxu0 0.0
    %85 = vmatpush1.msra.mxu0 0.0
    %86 = vmatprep.subr.mxu0 0.0
    %87 = vmatpush1.msra.mxu0 0.0
    %88 = vmatprep.subr.mxu0 0.0
    %89 = vmatpush1.msra.mxu0 0.0
    %90 = vmatprep.subr.mxu0 0.0
    %91 = vmatpush1.msra.mxu0 0.0
    %92 = vmatprep.subr.mxu0 0.0
    %93 = vmatpush1.msra.mxu0 0.0
    %94 = vmatprep.subr.mxu0 0.0
    %95 = vmatpush1.msra.mxu0 0.0
    %96 = vmatprep.subr.mxu0 0.0
    %97 = vmatpush1.msra.mxu0 0.0
    %98 = vmatprep.subr.mxu0 0.0
    %99 = vmatpush1.msra.mxu0 0.0
    %100 = vmatprep.subr.mxu0 0.0
    %101 = vmatpush1.msra.mxu0 %v60
    %102 = vmatprep.subr.mxu0 0.0
    %103 = vmatpush1.msra.mxu0 %v59
    %104 = vmatprep.subr.mxu0 0.0
    %105 = vmatpush1.msra.mxu0 %v58
    %106 = vmatprep.subr.mxu0 0.0
    %107 = vmatpush1.msra.mxu0 %v57
    %108 = vmatprep.subr.mxu0 0.0
    %109 = vmatpush1.msra.mxu0 %v56
    %110 = vmatprep.subr.mxu0 0.0
    %111 = vmatpush1.msra.mxu0 %v55
    %112 = vmatprep.subr.mxu0 0.0
    %113 = vmatpush1.msra.mxu0 %v54
    %114 = vmatprep.subr.mxu0 0.0
    %115 = vmatpush1.msra.mxu0 %v53
    %116 = vmatprep.subr.mxu0 0.0
    %117 = vmatpush2.msra.mxu0 0.0
    %118 = vmatprep.subr.mxu0 0.0
    %119 = vmatpush2.msra.mxu0 0.0
    %120 = vmatprep.subr.mxu0 0.0
    %121 = vmatpush2.msra.mxu0 0.0
    %122 = vmatprep.subr.mxu0 0.0
    %123 = vmatpush2.msra.mxu0 0.0
    %124 = vmatprep.subr.mxu0 0.0
    %125 = vmatpush2.msra.mxu0 0.0
    %126 = vmatprep.subr.mxu0 0.0
    %127 = vmatpush2.msra.mxu0 0.0
    %128 = vmatprep.subr.mxu0 0.0
    %129 = vmatpush2.msra.mxu0 0.0
    %130 = vmatprep.subr.mxu0 0.0
    %131 = vmatpush2.msra.mxu0 0.0
    %132 = vmatprep.subr.mxu0 0.0
    %133 = vmatpush2.msra.mxu0 0.0
    %134 = vmatprep.subr.mxu0 0.0
    %135 = vmatpush2.msra.mxu0 0.0
    %136 = vmatprep.subr.mxu0 0.0
    %137 = vmatpush2.msra.mxu0 0.0
    %138 = vmatprep.subr.mxu0 0.0
    %139 = vmatpush2.msra.mxu0 0.0
    %140 = vmatprep.subr.mxu0 0.0
    %141 = vmatpush2.msra.mxu0 0.0
    %142 = vmatprep.subr.mxu0 0.0
    %143 = vmatpush2.msra.mxu0 0.0
    %144 = vmatprep.subr.mxu0 0.0
    %145 = vmatpush2.msra.mxu0 0.0
    %146 = vmatprep.subr.mxu0 0.0
    %147 = vmatpush2.msra.mxu0 0.0
    %148 = vmatprep.mubr.f32.mxu0 0.0
    %149 = vmatmul.mubr.f32.gmra.mxu0 %v79
    %v150 = vpop.f32.mrf.mxu0
    %v151 = vadd.f32 0.0, %v150
    %v152 = vpop.f32.mrf.mxu0
    %153 = vmatprep.mubr.f32.mxu0 0.0
    %154 = vmatmul.mubr.f32.gmra.mxu0 %v82
    %v155 = vpop.f32.mrf.mxu0
    %v156 = vadd.f32 0.0, %v155
    %v157 = vpop.f32.mrf.mxu0
    %158 = vdwg.mxu0
    %159 = vset.pattern.permute.xlu0 1
    %160 = vperm.xlu0 %159, %v63
    %v161 = vpop.permute.xlu0 %160
    %162 = vset.pattern.permute.xlu0 1
    %163 = vperm.xlu0 %162, %v64
    %v164 = vpop.permute.xlu0 %163
    %vm165 = vcmp.eq.s32.totalorder %v161, %v62
    %vm166 = vcmp.eq.s32.totalorder %v164, %v62
    %v167 = vsel %vm165, 1, 0
    %v168 = vsel %vm166, 1, 0
    %v169 = vcvt.s32.f32 %v167
    %v170 = vcvt.s32.f32 %v168
    %v172 = vsel %vm77, %v169, 0
    %v175 = vsel %vm77, %v170, 0
    %177 = vmatprep.subr.mxu0 0.0
    %178 = vmatpush1.msra.mxu0 0.0
    %179 = vmatprep.subr.mxu0 0.0
    %180 = vmatpush1.msra.mxu0 0.0
    %181 = vmatprep.subr.mxu0 0.0
    %182 = vmatpush1.msra.mxu0 0.0
    %183 = vmatprep.subr.mxu0 0.0
    %184 = vmatpush1.msra.mxu0 0.0
    %185 = vmatprep.subr.mxu0 0.0
    %186 = vmatpush1.msra.mxu0 0.0
    %187 = vmatprep.subr.mxu0 0.0
    %188 = vmatpush1.msra.mxu0 0.0
    %189 = vmatprep.subr.mxu0 0.0
    %190 = vmatpush1.msra.mxu0 0.0
    %191 = vmatprep.subr.mxu0 0.0
    %192 = vmatpush1.msra.mxu0 0.0
    %193 = vmatprep.subr.mxu0 0.0
    %194 = vmatpush1.msra.mxu0 %v60
    %195 = vmatprep.subr.mxu0 0.0
    %196 = vmatpush1.msra.mxu0 %v59
    %197 = vmatprep.subr.mxu0 0.0
    %198 = vmatpush1.msra.mxu0 %v58
    %199 = vmatprep.subr.mxu0 0.0
    %200 = vmatpush1.msra.mxu0 %v57
    %201 = vmatprep.subr.mxu0 0.0
    %202 = vmatpush1.msra.mxu0 %v56
    %203 = vmatprep.subr.mxu0 0.0
    %204 = vmatpush1.msra.mxu0 %v55
    %205 = vmatprep.subr.mxu0 0.0
    %206 = vmatpush1.msra.mxu0 %v54
    %207 = vmatprep.subr.mxu0 0.0
    %208 = vmatpush1.msra.mxu0 %v53
    %209 = vmatprep.subr.mxu0 0.0
    %210 = vmatpush2.msra.mxu0 0.0
    %211 = vmatprep.subr.mxu0 0.0
    %212 = vmatpush2.msra.mxu0 0.0
    %213 = vmatprep.subr.mxu0 0.0
    %214 = vmatpush2.msra.mxu0 0.0
    %215 = vmatprep.subr.mxu0 0.0
    %216 = vmatpush2.msra.mxu0 0.0
    %217 = vmatprep.subr.mxu0 0.0
    %218 = vmatpush2.msra.mxu0 0.0
    %219 = vmatprep.subr.mxu0 0.0
    %220 = vmatpush2.msra.mxu0 0.0
    %221 = vmatprep.subr.mxu0 0.0
    %222 = vmatpush2.msra.mxu0 0.0
    %223 = vmatprep.subr.mxu0 0.0
    %224 = vmatpush2.msra.mxu0 0.0
    %225 = vmatprep.subr.mxu0 0.0
    %226 = vmatpush2.msra.mxu0 0.0
    %227 = vmatprep.subr.mxu0 0.0
    %228 = vmatpush2.msra.mxu0 0.0
    %229 = vmatprep.subr.mxu0 0.0
    %230 = vmatpush2.msra.mxu0 0.0
    %231 = vmatprep.subr.mxu0 0.0
    %232 = vmatpush2.msra.mxu0 0.0
    %233 = vmatprep.subr.mxu0 0.0
    %234 = vmatpush2.msra.mxu0 0.0
    %235 = vmatprep.subr.mxu0 0.0
    %236 = vmatpush2.msra.mxu0 0.0
    %237 = vmatprep.subr.mxu0 0.0
    %238 = vmatpush2.msra.mxu0 0.0
    %239 = vmatprep.subr.mxu0 0.0
    %240 = vmatpush2.msra.mxu0 0.0
    %241 = vmatprep.mubr.f32.mxu0 0.0
    %242 = vmatmul.mubr.f32.gmra.mxu0 %v172
    %v243 = vpop.f32.mrf.mxu0
    %v244 = vadd.f32 0.0, %v243
    %v245 = vpop.f32.mrf.mxu0
    %246 = vmatprep.mubr.f32.mxu0 0.0
    %247 = vmatmul.mubr.f32.gmra.mxu0 %v175
    %v248 = vpop.f32.mrf.mxu0
    %v249 = vadd.f32 0.0, %v248
    %v250 = vpop.f32.mrf.mxu0
    %251 = vdwg.mxu0
    %v252 = vld [vmem:[%s1] sm:$0x1]
    %v253 = vld [vmem:[%s1 + $0x1] sm:$0x1]
    %s254 = scalar_lea.vmem %s1, 2
    %v255 = vld [vmem:[%s254] sm:$0x1]
    %v256 = vld [vmem:[%s254 + $0x1] sm:$0x1]
    %s257 = scalar_lea.vmem %s1, 4
    %v258 = vld [vmem:[%s257] sm:$0x1]
    %v259 = vld [vmem:[%s257 + $0x1] sm:$0x1]
    %v260 = vsub.f32 1.0, %v252
    %v261 = vsub.f32 1.0, %v253
    %v262 = vmul.f32 %v260, -1e+09
    %v263 = vmul.f32 %v261, -1e+09
    %vm264 = vcmp.ne.f32.partialorder %v258, 0.0
    %vm265 = vcmp.ne.f32.partialorder %v259, 0.0
    %v266 = vsel %vm264, 0.0, -1e+09
    %v267 = vsel %vm265, 0.0, -1e+09
    %v268 = vlaneseq
    %v269 = vshrl.u32 %v268, 7
    %vm270 = vcmp.le.s32.totalorder %v62, %v269
    %v271 = vsel %vm270, 0.0, -1e+09
    %v272 = vsub.f32 1.0, %v255
    %v273 = vsub.f32 1.0, %v256
    %v274 = vmul.f32 %v272, -1e+09
    %v275 = vmul.f32 %v273, -1e+09
    %v278 = vlaneseq
    %v279 = vshrl.u32 %v278, 7
    %v280 = vsub.s32 0, %v279
    %v281 = vrot.slane %v274, %v280
    %v282 = vlaneseq
    %v283 = vshrl.u32 %v282, 7
    %v284 = vsub.s32 0, %v283
    %v285 = vrot.slane %v275, %v284
    %v288 = vadd.f32 %v271, %v281
    %v289 = vadd.f32 %v271, %v285
    %v290 = vld [vmem:[%s3] sm:$0x1]
    %v291 = vmul.f32 %v151, %v151
    %v292 = vmul.f32 %v156, %v156
    %vm293 = vcmask 261120
    %v294 = vsel %vm293, %v291, 0.0
    %295 = vadd.xlane.f32.xlu0 %v294
    %v296 = vpop.xlane.xlu0 %295
    %v297 = vsel %vm293, %v292, 0.0
    %298 = vadd.xlane.f32.xlu0 %v297
    %v299 = vpop.xlane.xlu0 %298
    %v300 = vrcp.pop 32.0
    %v301 = vmul.f32 %v296, %v300
    %v302 = vmul.f32 %v299, %v300
    %v303 = vadd.f32 %v301, 1e-06
    %v304 = vadd.f32 %v302, 1e-06
    %v305 = vrsqrt.pop %v303
    %v306 = vrsqrt.pop %v304
    %v307 = vmul.f32 %v151, %v305
    %v308 = vmul.f32 %v156, %v306
    %v309 = vlaneseq
    %v310 = vshrl.u32 %v309, 7
    %v311 = vsub.s32 0, %v310
    %v312 = vrot.slane %v290, %v311
    %v313 = vmul.f32 %v307, %v312
    %v314 = vmul.f32 %v308, %v312
    %v315 = vld [vmem:[#allocation2] sm:$0xf]
    %v316 = vld [vmem:[#allocation2 + $0x28] sm:$0xf]
    %v317 = vld [vmem:[#allocation2 + $0x50] sm:$0xf]
    %v318 = vld [vmem:[#allocation2 + $0x78] sm:$0xf]
    %v319 = vpack.c.bf16 %v314, %v313
    %v324 = vunpack.c.l.b16 %v315
    %v325 = vunpack.c.l.b16 %v316
    %v326 = vunpack.c.l.b16 %v317
    %v327 = vunpack.c.l.b16 %v318
    %v328 = vpack.c.b16 %v325, %v324
    %v329 = vpack.c.b16 %v327, %v326
    %v333 = vsel %vm293, %v319, 0
    %335 = vmatprep.subr.bf16.mxu0 0
    %336 = vmatpush1.bf16.msra.mxu0 0
    %337 = vmatprep.subr.bf16.mxu0 0
    %338 = vmatpush1.bf16.msra.mxu0 0
    %339 = vmatprep.subr.bf16.mxu0 0
    %340 = vmatpush1.bf16.msra.mxu0 0
    %341 = vmatprep.subr.bf16.mxu0 0
    %342 = vmatpush1.bf16.msra.mxu0 0
    %343 = vmatprep.subr.bf16.mxu0 0
    %344 = vmatpush1.bf16.msra.mxu0 0
    %345 = vmatprep.subr.bf16.mxu0 0
    %346 = vmatpush1.bf16.msra.mxu0 0
    %347 = vmatprep.subr.bf16.mxu0 0
    %348 = vmatpush1.bf16.msra.mxu0 %v329
    %349 = vmatprep.subr.bf16.mxu0 0
    %350 = vmatpush1.bf16.msra.mxu0 %v328
    %351 = vmatprep.subr.bf16.mxu0 0
    %352 = vmatpush2.bf16.msra.mxu0 0
    %353 = vmatprep.subr.bf16.mxu0 0
    %354 = vmatpush2.bf16.msra.mxu0 0
    %355 = vmatprep.subr.bf16.mxu0 0
    %356 = vmatpush2.bf16.msra.mxu0 0
    %357 = vmatprep.subr.bf16.mxu0 0
    %358 = vmatpush2.bf16.msra.mxu0 0
    %359 = vmatprep.subr.bf16.mxu0 0
    %360 = vmatpush2.bf16.msra.mxu0 0
    %361 = vmatprep.subr.bf16.mxu0 0
    %362 = vmatpush2.bf16.msra.mxu0 0
    %363 = vmatprep.subr.bf16.mxu0 0
    %364 = vmatpush2.bf16.msra.mxu0 0
    %365 = vmatprep.subr.bf16.mxu0 0
    %366 = vmatpush2.bf16.msra.mxu0 0
    %367 = vmatprep.mubr.bf16.mxu0 0
    %368 = vmatmul.mubr.bf16.gmra.mxu0 %v333
    %v369 = vpop.f32.mrf.mxu0
    %v370 = vadd.f32 0.0, %v369
    %v371 = vpop.f32.mrf.mxu0
    %v372 = vpop.f32.mrf.mxu0
    %v373 = vadd.f32 0.0, %v372
    %v374 = vpop.f32.mrf.mxu0
    %375 = vdwg.mxu0
    %378 = vrot.lane.b32.xlu0 %v370, 120
    %v379 = vpop.permute.xlu0 %378
    %380 = vrot.lane.b32.xlu0 %v373, 120
    %v381 = vpop.permute.xlu0 %380
    %384 = vrot.lane.b32.xlu0 %v370, 112
    %v385 = vpop.permute.xlu0 %384
    %386 = vrot.lane.b32.xlu0 %v373, 112
    %v387 = vpop.permute.xlu0 %386
    %390 = vrot.lane.b32.xlu0 %v370, 104
    %v391 = vpop.permute.xlu0 %390
    %392 = vrot.lane.b32.xlu0 %v373, 104
    %v393 = vpop.permute.xlu0 %392
    %v396 = vpack.c.bf16 %v370, %v370
    %v397 = vpack.c.bf16 %v373, %v373
    %v398 = vpack.c.bf16 %v379, %v379
    %v399 = vpack.c.bf16 %v381, %v381
    %v400 = vpack.c.bf16 %v385, %v385
    %v401 = vpack.c.bf16 %v387, %v387
    %v402 = vpack.c.bf16 %v391, %v391
    %v403 = vpack.c.bf16 %v393, %v393
    %v406 = vlaneseq
    %v407 = vshrl.u32 %v406, 7
    %v408 = vsub.s32 0, %v407
    %v409 = vrot.slane %v262, %v408
    %v410 = vlaneseq
    %v411 = vshrl.u32 %v410, 7
    %v412 = vsub.s32 0, %v411
    %v413 = vrot.slane %v263, %v412
    %417 = vrot.lane.b32.xlu0 %v396, 96
    %v418 = vpop.permute.xlu0 %417
    %vm419 = vcmask 64512
    %v421 = vsel %vm419, %v396, 0
    %v424 = vsel %vm419, %v418, 0
    %426 = vmatprep.subr.bf16.mxu0 0
    %427 = vmatpush1.bf16.xpose.msra.mxu0 0
    %428 = vmatprep.subr.bf16.mxu0 0
    %429 = vmatpush1.bf16.xpose.msra.mxu0 0
    %430 = vmatprep.subr.bf16.mxu0 0
    %431 = vmatpush1.bf16.xpose.msra.mxu0 0
    %432 = vmatprep.subr.bf16.mxu0 0
    %433 = vmatpush1.bf16.xpose.msra.mxu0 0
    %434 = vmatprep.subr.bf16.mxu0 0
    %435 = vmatpush1.bf16.xpose.msra.mxu0 0
    %436 = vmatprep.subr.bf16.mxu0 0
    %437 = vmatpush1.bf16.xpose.msra.mxu0 0
    %438 = vmatprep.subr.bf16.mxu0 0
    %439 = vmatpush1.bf16.xpose.msra.mxu0 0
    %440 = vmatprep.subr.bf16.mxu0 0
    %441 = vmatpush1.bf16.xpose.msra.mxu0 %v424
    %442 = vmatprep.subr.bf16.mxu0 0
    %443 = vmatpush2.bf16.xpose.msra.mxu0 0
    %444 = vmatprep.subr.bf16.mxu0 0
    %445 = vmatpush2.bf16.xpose.msra.mxu0 0
    %446 = vmatprep.subr.bf16.mxu0 0
    %447 = vmatpush2.bf16.xpose.msra.mxu0 0
    %448 = vmatprep.subr.bf16.mxu0 0
    %449 = vmatpush2.bf16.xpose.msra.mxu0 0
    %450 = vmatprep.subr.bf16.mxu0 0
    %451 = vmatpush2.bf16.xpose.msra.mxu0 0
    %452 = vmatprep.subr.bf16.mxu0 0
    %453 = vmatpush2.bf16.xpose.msra.mxu0 0
    %454 = vmatprep.subr.bf16.mxu0 0
    %455 = vmatpush2.bf16.xpose.msra.mxu0 0
    %456 = vmatprep.subr.bf16.mxu0 0
    %457 = vmatpush2.bf16.xpose.msra.mxu0 0
    %458 = vmatprep.mubr.bf16.mxu0 0
    %459 = vmatmul.mubr.bf16.gmra.mxu0 %v421
    %v460 = vpop.f32.mrf.mxu0
    %v461 = vadd.f32 %v409, %v460
    %v462 = vpop.f32.mrf.mxu0
    %v463 = vpop.f32.mrf.mxu0
    %v464 = vpop.f32.mrf.mxu0
    %465 = vdwg.mxu0
    %467 = vrot.lane.b32.xlu0 %v397, 96
    %v468 = vpop.permute.xlu0 %467
    %v470 = vsel %vm419, %v397, 0
    %v473 = vsel %vm419, %v468, 0
    %475 = vmatprep.subr.bf16.mxu0 0
    %476 = vmatpush1.bf16.xpose.msra.mxu0 0
    %477 = vmatprep.subr.bf16.mxu0 0
    %478 = vmatpush1.bf16.xpose.msra.mxu0 0
    %479 = vmatprep.subr.bf16.mxu0 0
    %480 = vmatpush1.bf16.xpose.msra.mxu0 0
    %481 = vmatprep.subr.bf16.mxu0 0
    %482 = vmatpush1.bf16.xpose.msra.mxu0 0
    %483 = vmatprep.subr.bf16.mxu0 0
    %484 = vmatpush1.bf16.xpose.msra.mxu0 0
    %485 = vmatprep.subr.bf16.mxu0 0
    %486 = vmatpush1.bf16.xpose.msra.mxu0 0
    %487 = vmatprep.subr.bf16.mxu0 0
    %488 = vmatpush1.bf16.xpose.msra.mxu0 0
    %489 = vmatprep.subr.bf16.mxu0 0
    %490 = vmatpush1.bf16.xpose.msra.mxu0 %v473
    %491 = vmatprep.subr.bf16.mxu0 0
    %492 = vmatpush2.bf16.xpose.msra.mxu0 0
    %493 = vmatprep.subr.bf16.mxu0 0
    %494 = vmatpush2.bf16.xpose.msra.mxu0 0
    %495 = vmatprep.subr.bf16.mxu0 0
    %496 = vmatpush2.bf16.xpose.msra.mxu0 0
    %497 = vmatprep.subr.bf16.mxu0 0
    %498 = vmatpush2.bf16.xpose.msra.mxu0 0
    %499 = vmatprep.subr.bf16.mxu0 0
    %500 = vmatpush2.bf16.xpose.msra.mxu0 0
    %501 = vmatprep.subr.bf16.mxu0 0
    %502 = vmatpush2.bf16.xpose.msra.mxu0 0
    %503 = vmatprep.subr.bf16.mxu0 0
    %504 = vmatpush2.bf16.xpose.msra.mxu0 0
    %505 = vmatprep.subr.bf16.mxu0 0
    %506 = vmatpush2.bf16.xpose.msra.mxu0 0
    %507 = vmatprep.mubr.bf16.mxu0 0
    %508 = vmatmul.mubr.bf16.gmra.mxu0 %v470
    %v509 = vpop.f32.mrf.mxu0
    %v510 = vadd.f32 %v413, %v509
    %v511 = vpop.f32.mrf.mxu0
    %v512 = vpop.f32.mrf.mxu0
    %v513 = vpop.f32.mrf.mxu0
    %514 = vdwg.mxu0
    %516 = vrot.lane.b32.xlu0 %v398, 96
    %v517 = vpop.permute.xlu0 %516
    %v519 = vsel %vm419, %v398, 0
    %v522 = vsel %vm419, %v517, 0
    %524 = vmatprep.subr.bf16.mxu0 0
    %525 = vmatpush1.bf16.xpose.msra.mxu0 0
    %526 = vmatprep.subr.bf16.mxu0 0
    %527 = vmatpush1.bf16.xpose.msra.mxu0 0
    %528 = vmatprep.subr.bf16.mxu0 0
    %529 = vmatpush1.bf16.xpose.msra.mxu0 0
    %530 = vmatprep.subr.bf16.mxu0 0
    %531 = vmatpush1.bf16.xpose.msra.mxu0 0
    %532 = vmatprep.subr.bf16.mxu0 0
    %533 = vmatpush1.bf16.xpose.msra.mxu0 0
    %534 = vmatprep.subr.bf16.mxu0 0
    %535 = vmatpush1.bf16.xpose.msra.mxu0 0
    %536 = vmatprep.subr.bf16.mxu0 0
    %537 = vmatpush1.bf16.xpose.msra.mxu0 0
    %538 = vmatprep.subr.bf16.mxu0 0
    %539 = vmatpush1.bf16.xpose.msra.mxu0 %v522
    %540 = vmatprep.subr.bf16.mxu0 0
    %541 = vmatpush2.bf16.xpose.msra.mxu0 0
    %542 = vmatprep.subr.bf16.mxu0 0
    %543 = vmatpush2.bf16.xpose.msra.mxu0 0
    %544 = vmatprep.subr.bf16.mxu0 0
    %545 = vmatpush2.bf16.xpose.msra.mxu0 0
    %546 = vmatprep.subr.bf16.mxu0 0
    %547 = vmatpush2.bf16.xpose.msra.mxu0 0
    %548 = vmatprep.subr.bf16.mxu0 0
    %549 = vmatpush2.bf16.xpose.msra.mxu0 0
    %550 = vmatprep.subr.bf16.mxu0 0
    %551 = vmatpush2.bf16.xpose.msra.mxu0 0
    %552 = vmatprep.subr.bf16.mxu0 0
    %553 = vmatpush2.bf16.xpose.msra.mxu0 0
    %554 = vmatprep.subr.bf16.mxu0 0
    %555 = vmatpush2.bf16.xpose.msra.mxu0 0
    %556 = vmatprep.mubr.bf16.mxu0 0
    %557 = vmatmul.mubr.bf16.gmra.mxu0 %v519
    %v558 = vpop.f32.mrf.mxu0
    %v559 = vadd.f32 %v409, %v558
    %v560 = vpop.f32.mrf.mxu0
    %v561 = vpop.f32.mrf.mxu0
    %v562 = vpop.f32.mrf.mxu0
    %563 = vdwg.mxu0
    %565 = vrot.lane.b32.xlu0 %v399, 96
    %v566 = vpop.permute.xlu0 %565
    %v568 = vsel %vm419, %v399, 0
    %v571 = vsel %vm419, %v566, 0
    %573 = vmatprep.subr.bf16.mxu0 0
    %574 = vmatpush1.bf16.xpose.msra.mxu0 0
    %575 = vmatprep.subr.bf16.mxu0 0
    %576 = vmatpush1.bf16.xpose.msra.mxu0 0
    %577 = vmatprep.subr.bf16.mxu0 0
    %578 = vmatpush1.bf16.xpose.msra.mxu0 0
    %579 = vmatprep.subr.bf16.mxu0 0
    %580 = vmatpush1.bf16.xpose.msra.mxu0 0
    %581 = vmatprep.subr.bf16.mxu0 0
    %582 = vmatpush1.bf16.xpose.msra.mxu0 0
    %583 = vmatprep.subr.bf16.mxu0 0
    %584 = vmatpush1.bf16.xpose.msra.mxu0 0
    %585 = vmatprep.subr.bf16.mxu0 0
    %586 = vmatpush1.bf16.xpose.msra.mxu0 0
    %587 = vmatprep.subr.bf16.mxu0 0
    %588 = vmatpush1.bf16.xpose.msra.mxu0 %v571
    %589 = vmatprep.subr.bf16.mxu0 0
    %590 = vmatpush2.bf16.xpose.msra.mxu0 0
    %591 = vmatprep.subr.bf16.mxu0 0
    %592 = vmatpush2.bf16.xpose.msra.mxu0 0
    %593 = vmatprep.subr.bf16.mxu0 0
    %594 = vmatpush2.bf16.xpose.msra.mxu0 0
    %595 = vmatprep.subr.bf16.mxu0 0
    %596 = vmatpush2.bf16.xpose.msra.mxu0 0
    %597 = vmatprep.subr.bf16.mxu0 0
    %598 = vmatpush2.bf16.xpose.msra.mxu0 0
    %599 = vmatprep.subr.bf16.mxu0 0
    %600 = vmatpush2.bf16.xpose.msra.mxu0 0
    %601 = vmatprep.subr.bf16.mxu0 0
    %602 = vmatpush2.bf16.xpose.msra.mxu0 0
    %603 = vmatprep.subr.bf16.mxu0 0
    %604 = vmatpush2.bf16.xpose.msra.mxu0 0
    %605 = vmatprep.mubr.bf16.mxu0 0
    %606 = vmatmul.mubr.bf16.gmra.mxu0 %v568
    %v607 = vpop.f32.mrf.mxu0
    %v608 = vadd.f32 %v413, %v607
    %v609 = vpop.f32.mrf.mxu0
    %v610 = vpop.f32.mrf.mxu0
    %v611 = vpop.f32.mrf.mxu0
    %612 = vdwg.mxu0
    %614 = vrot.lane.b32.xlu0 %v400, 96
    %v615 = vpop.permute.xlu0 %614
    %v617 = vsel %vm419, %v400, 0
    %v620 = vsel %vm419, %v615, 0
    %622 = vmatprep.subr.bf16.mxu0 0
    %623 = vmatpush1.bf16.xpose.msra.mxu0 0
    %624 = vmatprep.subr.bf16.mxu0 0
    %625 = vmatpush1.bf16.xpose.msra.mxu0 0
    %626 = vmatprep.subr.bf16.mxu0 0
    %627 = vmatpush1.bf16.xpose.msra.mxu0 0
    %628 = vmatprep.subr.bf16.mxu0 0
    %629 = vmatpush1.bf16.xpose.msra.mxu0 0
    %630 = vmatprep.subr.bf16.mxu0 0
    %631 = vmatpush1.bf16.xpose.msra.mxu0 0
    %632 = vmatprep.subr.bf16.mxu0 0
    %633 = vmatpush1.bf16.xpose.msra.mxu0 0
    %634 = vmatprep.subr.bf16.mxu0 0
    %635 = vmatpush1.bf16.xpose.msra.mxu0 0
    %636 = vmatprep.subr.bf16.mxu0 0
    %637 = vmatpush1.bf16.xpose.msra.mxu0 %v620
    %638 = vmatprep.subr.bf16.mxu0 0
    %639 = vmatpush2.bf16.xpose.msra.mxu0 0
    %640 = vmatprep.subr.bf16.mxu0 0
    %641 = vmatpush2.bf16.xpose.msra.mxu0 0
    %642 = vmatprep.subr.bf16.mxu0 0
    %643 = vmatpush2.bf16.xpose.msra.mxu0 0
    %644 = vmatprep.subr.bf16.mxu0 0
    %645 = vmatpush2.bf16.xpose.msra.mxu0 0
    %646 = vmatprep.subr.bf16.mxu0 0
    %647 = vmatpush2.bf16.xpose.msra.mxu0 0
    %648 = vmatprep.subr.bf16.mxu0 0
    %649 = vmatpush2.bf16.xpose.msra.mxu0 0
    %650 = vmatprep.subr.bf16.mxu0 0
    %651 = vmatpush2.bf16.xpose.msra.mxu0 0
    %652 = vmatprep.subr.bf16.mxu0 0
    %653 = vmatpush2.bf16.xpose.msra.mxu0 0
    %654 = vmatprep.mubr.bf16.mxu0 0
    %655 = vmatmul.mubr.bf16.gmra.mxu0 %v617
    %v656 = vpop.f32.mrf.mxu0
    %v657 = vadd.f32 %v409, %v656
    %v658 = vpop.f32.mrf.mxu0
    %v659 = vpop.f32.mrf.mxu0
    %v660 = vpop.f32.mrf.mxu0
    %661 = vdwg.mxu0
    %663 = vrot.lane.b32.xlu0 %v401, 96
    %v664 = vpop.permute.xlu0 %663
    %v666 = vsel %vm419, %v401, 0
    %v669 = vsel %vm419, %v664, 0
    %671 = vmatprep.subr.bf16.mxu0 0
    %672 = vmatpush1.bf16.xpose.msra.mxu0 0
    %673 = vmatprep.subr.bf16.mxu0 0
    %674 = vmatpush1.bf16.xpose.msra.mxu0 0
    %675 = vmatprep.subr.bf16.mxu0 0
    %676 = vmatpush1.bf16.xpose.msra.mxu0 0
    %677 = vmatprep.subr.bf16.mxu0 0
    %678 = vmatpush1.bf16.xpose.msra.mxu0 0
    %679 = vmatprep.subr.bf16.mxu0 0
    %680 = vmatpush1.bf16.xpose.msra.mxu0 0
    %681 = vmatprep.subr.bf16.mxu0 0
    %682 = vmatpush1.bf16.xpose.msra.mxu0 0
    %683 = vmatprep.subr.bf16.mxu0 0
    %684 = vmatpush1.bf16.xpose.msra.mxu0 0
    %685 = vmatprep.subr.bf16.mxu0 0
    %686 = vmatpush1.bf16.xpose.msra.mxu0 %v669
    %687 = vmatprep.subr.bf16.mxu0 0
    %688 = vmatpush2.bf16.xpose.msra.mxu0 0
    %689 = vmatprep.subr.bf16.mxu0 0
    %690 = vmatpush2.bf16.xpose.msra.mxu0 0
    %691 = vmatprep.subr.bf16.mxu0 0
    %692 = vmatpush2.bf16.xpose.msra.mxu0 0
    %693 = vmatprep.subr.bf16.mxu0 0
    %694 = vmatpush2.bf16.xpose.msra.mxu0 0
    %695 = vmatprep.subr.bf16.mxu0 0
    %696 = vmatpush2.bf16.xpose.msra.mxu0 0
    %697 = vmatprep.subr.bf16.mxu0 0
    %698 = vmatpush2.bf16.xpose.msra.mxu0 0
    %699 = vmatprep.subr.bf16.mxu0 0
    %700 = vmatpush2.bf16.xpose.msra.mxu0 0
    %701 = vmatprep.subr.bf16.mxu0 0
    %702 = vmatpush2.bf16.xpose.msra.mxu0 0
    %703 = vmatprep.mubr.bf16.mxu0 0
    %704 = vmatmul.mubr.bf16.gmra.mxu0 %v666
    %v705 = vpop.f32.mrf.mxu0
    %v706 = vadd.f32 %v413, %v705
    %v707 = vpop.f32.mrf.mxu0
    %v708 = vpop.f32.mrf.mxu0
    %v709 = vpop.f32.mrf.mxu0
    %710 = vdwg.mxu0
    %712 = vrot.lane.b32.xlu0 %v402, 96
    %v713 = vpop.permute.xlu0 %712
    %v715 = vsel %vm419, %v402, 0
    %v718 = vsel %vm419, %v713, 0
    %720 = vmatprep.subr.bf16.mxu0 0
    %721 = vmatpush1.bf16.xpose.msra.mxu0 0
    %722 = vmatprep.subr.bf16.mxu0 0
    %723 = vmatpush1.bf16.xpose.msra.mxu0 0
    %724 = vmatprep.subr.bf16.mxu0 0
    %725 = vmatpush1.bf16.xpose.msra.mxu0 0
    %726 = vmatprep.subr.bf16.mxu0 0
    %727 = vmatpush1.bf16.xpose.msra.mxu0 0
    %728 = vmatprep.subr.bf16.mxu0 0
    %729 = vmatpush1.bf16.xpose.msra.mxu0 0
    %730 = vmatprep.subr.bf16.mxu0 0
    %731 = vmatpush1.bf16.xpose.msra.mxu0 0
    %732 = vmatprep.subr.bf16.mxu0 0
    %733 = vmatpush1.bf16.xpose.msra.mxu0 0
    %734 = vmatprep.subr.bf16.mxu0 0
    %735 = vmatpush1.bf16.xpose.msra.mxu0 %v718
    %736 = vmatprep.subr.bf16.mxu0 0
    %737 = vmatpush2.bf16.xpose.msra.mxu0 0
    %738 = vmatprep.subr.bf16.mxu0 0
    %739 = vmatpush2.bf16.xpose.msra.mxu0 0
    %740 = vmatprep.subr.bf16.mxu0 0
    %741 = vmatpush2.bf16.xpose.msra.mxu0 0
    %742 = vmatprep.subr.bf16.mxu0 0
    %743 = vmatpush2.bf16.xpose.msra.mxu0 0
    %744 = vmatprep.subr.bf16.mxu0 0
    %745 = vmatpush2.bf16.xpose.msra.mxu0 0
    %746 = vmatprep.subr.bf16.mxu0 0
    %747 = vmatpush2.bf16.xpose.msra.mxu0 0
    %748 = vmatprep.subr.bf16.mxu0 0
    %749 = vmatpush2.bf16.xpose.msra.mxu0 0
    %750 = vmatprep.subr.bf16.mxu0 0
    %751 = vmatpush2.bf16.xpose.msra.mxu0 0
    %752 = vmatprep.mubr.bf16.mxu0 0
    %753 = vmatmul.mubr.bf16.gmra.mxu0 %v715
    %v754 = vpop.f32.mrf.mxu0
    %v755 = vadd.f32 %v409, %v754
    %v756 = vpop.f32.mrf.mxu0
    %v757 = vpop.f32.mrf.mxu0
    %v758 = vpop.f32.mrf.mxu0
    %759 = vdwg.mxu0
    %761 = vrot.lane.b32.xlu0 %v403, 96
    %v762 = vpop.permute.xlu0 %761
    %v764 = vsel %vm419, %v403, 0
    %v767 = vsel %vm419, %v762, 0
    %769 = vmatprep.subr.bf16.mxu0 0
    %770 = vmatpush1.bf16.xpose.msra.mxu0 0
    %771 = vmatprep.subr.bf16.mxu0 0
    %772 = vmatpush1.bf16.xpose.msra.mxu0 0
    %773 = vmatprep.subr.bf16.mxu0 0
    %774 = vmatpush1.bf16.xpose.msra.mxu0 0
    %775 = vmatprep.subr.bf16.mxu0 0
    %776 = vmatpush1.bf16.xpose.msra.mxu0 0
    %777 = vmatprep.subr.bf16.mxu0 0
    %778 = vmatpush1.bf16.xpose.msra.mxu0 0
    %779 = vmatprep.subr.bf16.mxu0 0
    %780 = vmatpush1.bf16.xpose.msra.mxu0 0
    %781 = vmatprep.subr.bf16.mxu0 0
    %782 = vmatpush1.bf16.xpose.msra.mxu0 0
    %783 = vmatprep.subr.bf16.mxu0 0
    %784 = vmatpush1.bf16.xpose.msra.mxu0 %v767
    %785 = vmatprep.subr.bf16.mxu0 0
    %786 = vmatpush2.bf16.xpose.msra.mxu0 0
    %787 = vmatprep.subr.bf16.mxu0 0
    %788 = vmatpush2.bf16.xpose.msra.mxu0 0
    %789 = vmatprep.subr.bf16.mxu0 0
    %790 = vmatpush2.bf16.xpose.msra.mxu0 0
    %791 = vmatprep.subr.bf16.mxu0 0
    %792 = vmatpush2.bf16.xpose.msra.mxu0 0
    %793 = vmatprep.subr.bf16.mxu0 0
    %794 = vmatpush2.bf16.xpose.msra.mxu0 0
    %795 = vmatprep.subr.bf16.mxu0 0
    %796 = vmatpush2.bf16.xpose.msra.mxu0 0
    %797 = vmatprep.subr.bf16.mxu0 0
    %798 = vmatpush2.bf16.xpose.msra.mxu0 0
    %799 = vmatprep.subr.bf16.mxu0 0
    %800 = vmatpush2.bf16.xpose.msra.mxu0 0
    %801 = vmatprep.mubr.bf16.mxu0 0
    %802 = vmatmul.mubr.bf16.gmra.mxu0 %v764
    %v803 = vpop.f32.mrf.mxu0
    %v804 = vadd.f32 %v413, %v803
    %v805 = vpop.f32.mrf.mxu0
    %v806 = vpop.f32.mrf.mxu0
    %v807 = vpop.f32.mrf.mxu0
    %808 = vdwg.mxu0
    %v809 = vsel %vm419, %v461, -inf
    %810 = vmax.xlane.f32.xlu0 %v809
    %v811 = vpop.xlane.xlu0 %810
    %v812 = vsel %vm419, %v510, -inf
    %813 = vmax.xlane.f32.xlu0 %v812
    %v814 = vpop.xlane.xlu0 %813
    %v815 = vsel %vm419, %v559, -inf
    %816 = vmax.xlane.f32.xlu0 %v815
    %v817 = vpop.xlane.xlu0 %816
    %v818 = vsel %vm419, %v608, -inf
    %819 = vmax.xlane.f32.xlu0 %v818
    %v820 = vpop.xlane.xlu0 %819
    %v821 = vsel %vm419, %v657, -inf
    %822 = vmax.xlane.f32.xlu0 %v821
    %v823 = vpop.xlane.xlu0 %822
    %v824 = vsel %vm419, %v706, -inf
    %825 = vmax.xlane.f32.xlu0 %v824
    %v826 = vpop.xlane.xlu0 %825
    %v827 = vsel %vm419, %v755, -inf
    %828 = vmax.xlane.f32.xlu0 %v827
    %v829 = vpop.xlane.xlu0 %828
    %v830 = vsel %vm419, %v804, -inf
    %831 = vmax.xlane.f32.xlu0 %v830
    %v832 = vpop.xlane.xlu0 %831
    %v833 = vsub.f32 %v461, %v811
    %v834 = vsub.f32 %v510, %v814
    %v835 = vsub.f32 %v559, %v817
    %v836 = vsub.f32 %v608, %v820
    %v837 = vsub.f32 %v657, %v823
    %v838 = vsub.f32 %v706, %v826
    %v839 = vsub.f32 %v755, %v829
    %v840 = vsub.f32 %v804, %v832
    %v841 = vmul.f32 %v833, 1.442695
    %v842 = vpow.pop %v841
    %v843 = vmul.f32 %v834, 1.442695
    %v844 = vpow.pop %v843
    %v845 = vmul.f32 %v835, 1.442695
    %v846 = vpow.pop %v845
    %v847 = vmul.f32 %v836, 1.442695
    %v848 = vpow.pop %v847
    %v849 = vmul.f32 %v837, 1.442695
    %v850 = vpow.pop %v849
    %v851 = vmul.f32 %v838, 1.442695
    %v852 = vpow.pop %v851
    %v853 = vmul.f32 %v839, 1.442695
    %v854 = vpow.pop %v853
    %v855 = vmul.f32 %v840, 1.442695
    %v856 = vpow.pop %v855
    %v857 = vsel %vm419, %v842, 0.0
    %858 = vadd.xlane.f32.xlu0 %v857
    %v859 = vpop.xlane.xlu0 %858
    %v860 = vsel %vm419, %v844, 0.0
    %861 = vadd.xlane.f32.xlu0 %v860
    %v862 = vpop.xlane.xlu0 %861
    %v863 = vsel %vm419, %v846, 0.0
    %864 = vadd.xlane.f32.xlu0 %v863
    %v865 = vpop.xlane.xlu0 %864
    %v866 = vsel %vm419, %v848, 0.0
    %867 = vadd.xlane.f32.xlu0 %v866
    %v868 = vpop.xlane.xlu0 %867
    %v869 = vsel %vm419, %v850, 0.0
    %870 = vadd.xlane.f32.xlu0 %v869
    %v871 = vpop.xlane.xlu0 %870
    %v872 = vsel %vm419, %v852, 0.0
    %873 = vadd.xlane.f32.xlu0 %v872
    %v874 = vpop.xlane.xlu0 %873
    %v875 = vsel %vm419, %v854, 0.0
    %876 = vadd.xlane.f32.xlu0 %v875
    %v877 = vpop.xlane.xlu0 %876
    %v878 = vsel %vm419, %v856, 0.0
    %879 = vadd.xlane.f32.xlu0 %v878
    %v880 = vpop.xlane.xlu0 %879
    %v881 = vrcp.pop %v859
    %v882 = vmul.f32 %v842, %v881
    %v883 = vrcp.pop %v862
    %v884 = vmul.f32 %v844, %v883
    %v885 = vrcp.pop %v865
    %v886 = vmul.f32 %v846, %v885
    %v887 = vrcp.pop %v868
    %v888 = vmul.f32 %v848, %v887
    %v889 = vrcp.pop %v871
    %v890 = vmul.f32 %v850, %v889
    %v891 = vrcp.pop %v874
    %v892 = vmul.f32 %v852, %v891
    %v893 = vrcp.pop %v877
    %v894 = vmul.f32 %v854, %v893
    %v895 = vrcp.pop %v880
    %v896 = vmul.f32 %v856, %v895
    %v897 = vpack.c.bf16 %v882, %v882
    %v898 = vpack.c.bf16 %v884, %v884
    %v899 = vpack.c.bf16 %v886, %v886
    %v900 = vpack.c.bf16 %v888, %v888
    %v901 = vpack.c.bf16 %v890, %v890
    %v902 = vpack.c.bf16 %v892, %v892
    %v903 = vpack.c.bf16 %v894, %v894
    %v904 = vpack.c.bf16 %v896, %v896
    %905 = vrot.lane.b32.xlu0 %v396, 64
    %v906 = vpop.permute.xlu0 %905
    %v908 = vsel %vm419, %v897, 0
    %vm910 = vcmask 1043456
    %v912 = vsel %vm910, %v906, 0
    %914 = vmatprep.subr.bf16.mxu0 0
    %915 = vmatpush1.bf16.msra.mxu0 0
    %916 = vmatprep.subr.bf16.mxu0 0
    %917 = vmatpush1.bf16.msra.mxu0 0
    %918 = vmatprep.subr.bf16.mxu0 0
    %919 = vmatpush1.bf16.msra.mxu0 0
    %920 = vmatprep.subr.bf16.mxu0 0
    %921 = vmatpush1.bf16.msra.mxu0 0
    %922 = vmatprep.subr.bf16.mxu0 0
    %923 = vmatpush1.bf16.msra.mxu0 0
    %924 = vmatprep.subr.bf16.mxu0 0
    %925 = vmatpush1.bf16.msra.mxu0 0
    %926 = vmatprep.subr.bf16.mxu0 0
    %927 = vmatpush1.bf16.msra.mxu0 0
    %928 = vmatprep.subr.bf16.mxu0 0
    %929 = vmatpush1.bf16.msra.mxu0 %v912
    %930 = vmatprep.subr.bf16.mxu0 0
    %931 = vmatpush2.bf16.msra.mxu0 0
    %932 = vmatprep.subr.bf16.mxu0 0
    %933 = vmatpush2.bf16.msra.mxu0 0
    %934 = vmatprep.subr.bf16.mxu0 0
    %935 = vmatpush2.bf16.msra.mxu0 0
    %936 = vmatprep.subr.bf16.mxu0 0
    %937 = vmatpush2.bf16.msra.mxu0 0
    %938 = vmatprep.subr.bf16.mxu0 0
    %939 = vmatpush2.bf16.msra.mxu0 0
    %940 = vmatprep.subr.bf16.mxu0 0
    %941 = vmatpush2.bf16.msra.mxu0 0
    %942 = vmatprep.subr.bf16.mxu0 0
    %943 = vmatpush2.bf16.msra.mxu0 0
    %944 = vmatprep.subr.bf16.mxu0 0
    %945 = vmatpush2.bf16.msra.mxu0 0
    %946 = vmatprep.mubr.bf16.mxu0 0
    %947 = vmatmul.mubr.bf16.gmra.mxu0 %v908
    %v948 = vpop.f32.mrf.mxu0
    %v949 = vadd.f32 0.0, %v948
    %v950 = vpop.f32.mrf.mxu0
    %v951 = vpop.f32.mrf.mxu0
    %v952 = vpop.f32.mrf.mxu0
    %953 = vdwg.mxu0
    %954 = vrot.lane.b32.xlu0 %v397, 64
    %v955 = vpop.permute.xlu0 %954
    %v957 = vsel %vm419, %v898, 0
    %v960 = vsel %vm910, %v955, 0
    %962 = vmatprep.subr.bf16.mxu0 0
    %963 = vmatpush1.bf16.msra.mxu0 0
    %964 = vmatprep.subr.bf16.mxu0 0
    %965 = vmatpush1.bf16.msra.mxu0 0
    %966 = vmatprep.subr.bf16.mxu0 0
    %967 = vmatpush1.bf16.msra.mxu0 0
    %968 = vmatprep.subr.bf16.mxu0 0
    %969 = vmatpush1.bf16.msra.mxu0 0
    %970 = vmatprep.subr.bf16.mxu0 0
    %971 = vmatpush1.bf16.msra.mxu0 0
    %972 = vmatprep.subr.bf16.mxu0 0
    %973 = vmatpush1.bf16.msra.mxu0 0
    %974 = vmatprep.subr.bf16.mxu0 0
    %975 = vmatpush1.bf16.msra.mxu0 0
    %976 = vmatprep.subr.bf16.mxu0 0
    %977 = vmatpush1.bf16.msra.mxu0 %v960
    %978 = vmatprep.subr.bf16.mxu0 0
    %979 = vmatpush2.bf16.msra.mxu0 0
    %980 = vmatprep.subr.bf16.mxu0 0
    %981 = vmatpush2.bf16.msra.mxu0 0
    %982 = vmatprep.subr.bf16.mxu0 0
    %983 = vmatpush2.bf16.msra.mxu0 0
    %984 = vmatprep.subr.bf16.mxu0 0
    %985 = vmatpush2.bf16.msra.mxu0 0
    %986 = vmatprep.subr.bf16.mxu0 0
    %987 = vmatpush2.bf16.msra.mxu0 0
    %988 = vmatprep.subr.bf16.mxu0 0
    %989 = vmatpush2.bf16.msra.mxu0 0
    %990 = vmatprep.subr.bf16.mxu0 0
    %991 = vmatpush2.bf16.msra.mxu0 0
    %992 = vmatprep.subr.bf16.mxu0 0
    %993 = vmatpush2.bf16.msra.mxu0 0
    %994 = vmatprep.mubr.bf16.mxu0 0
    %995 = vmatmul.mubr.bf16.gmra.mxu0 %v957
    %v996 = vpop.f32.mrf.mxu0
    %v997 = vadd.f32 0.0, %v996
    %v998 = vpop.f32.mrf.mxu0
    %v999 = vpop.f32.mrf.mxu0
    %v1000 = vpop.f32.mrf.mxu0
    %1001 = vdwg.mxu0
    %1002 = vrot.lane.b32.xlu0 %v398, 64
    %v1003 = vpop.permute.xlu0 %1002
    %v1005 = vsel %vm419, %v899, 0
    %v1008 = vsel %vm910, %v1003, 0
    %1010 = vmatprep.subr.bf16.mxu0 0
    %1011 = vmatpush1.bf16.msra.mxu0 0
    %1012 = vmatprep.subr.bf16.mxu0 0
    %1013 = vmatpush1.bf16.msra.mxu0 0
    %1014 = vmatprep.subr.bf16.mxu0 0
    %1015 = vmatpush1.bf16.msra.mxu0 0
    %1016 = vmatprep.subr.bf16.mxu0 0
    %1017 = vmatpush1.bf16.msra.mxu0 0
    %1018 = vmatprep.subr.bf16.mxu0 0
    %1019 = vmatpush1.bf16.msra.mxu0 0
    %1020 = vmatprep.subr.bf16.mxu0 0
    %1021 = vmatpush1.bf16.msra.mxu0 0
    %1022 = vmatprep.subr.bf16.mxu0 0
    %1023 = vmatpush1.bf16.msra.mxu0 0
    %1024 = vmatprep.subr.bf16.mxu0 0
    %1025 = vmatpush1.bf16.msra.mxu0 %v1008
    %1026 = vmatprep.subr.bf16.mxu0 0
    %1027 = vmatpush2.bf16.msra.mxu0 0
    %1028 = vmatprep.subr.bf16.mxu0 0
    %1029 = vmatpush2.bf16.msra.mxu0 0
    %1030 = vmatprep.subr.bf16.mxu0 0
    %1031 = vmatpush2.bf16.msra.mxu0 0
    %1032 = vmatprep.subr.bf16.mxu0 0
    %1033 = vmatpush2.bf16.msra.mxu0 0
    %1034 = vmatprep.subr.bf16.mxu0 0
    %1035 = vmatpush2.bf16.msra.mxu0 0
    %1036 = vmatprep.subr.bf16.mxu0 0
    %1037 = vmatpush2.bf16.msra.mxu0 0
    %1038 = vmatprep.subr.bf16.mxu0 0
    %1039 = vmatpush2.bf16.msra.mxu0 0
    %1040 = vmatprep.subr.bf16.mxu0 0
    %1041 = vmatpush2.bf16.msra.mxu0 0
    %1042 = vmatprep.mubr.bf16.mxu0 0
    %1043 = vmatmul.mubr.bf16.gmra.mxu0 %v1005
    %v1044 = vpop.f32.mrf.mxu0
    %v1045 = vadd.f32 0.0, %v1044
    %v1046 = vpop.f32.mrf.mxu0
    %v1047 = vpop.f32.mrf.mxu0
    %v1048 = vpop.f32.mrf.mxu0
    %1049 = vdwg.mxu0
    %1050 = vrot.lane.b32.xlu0 %v399, 64
    %v1051 = vpop.permute.xlu0 %1050
    %v1053 = vsel %vm419, %v900, 0
    %v1056 = vsel %vm910, %v1051, 0
    %1058 = vmatprep.subr.bf16.mxu0 0
    %1059 = vmatpush1.bf16.msra.mxu0 0
    %1060 = vmatprep.subr.bf16.mxu0 0
    %1061 = vmatpush1.bf16.msra.mxu0 0
    %1062 = vmatprep.subr.bf16.mxu0 0
    %1063 = vmatpush1.bf16.msra.mxu0 0
    %1064 = vmatprep.subr.bf16.mxu0 0
    %1065 = vmatpush1.bf16.msra.mxu0 0
    %1066 = vmatprep.subr.bf16.mxu0 0
    %1067 = vmatpush1.bf16.msra.mxu0 0
    %1068 = vmatprep.subr.bf16.mxu0 0
    %1069 = vmatpush1.bf16.msra.mxu0 0
    %1070 = vmatprep.subr.bf16.mxu0 0
    %1071 = vmatpush1.bf16.msra.mxu0 0
    %1072 = vmatprep.subr.bf16.mxu0 0
    %1073 = vmatpush1.bf16.msra.mxu0 %v1056
    %1074 = vmatprep.subr.bf16.mxu0 0
    %1075 = vmatpush2.bf16.msra.mxu0 0
    %1076 = vmatprep.subr.bf16.mxu0 0
    %1077 = vmatpush2.bf16.msra.mxu0 0
    %1078 = vmatprep.subr.bf16.mxu0 0
    %1079 = vmatpush2.bf16.msra.mxu0 0
    %1080 = vmatprep.subr.bf16.mxu0 0
    %1081 = vmatpush2.bf16.msra.mxu0 0
    %1082 = vmatprep.subr.bf16.mxu0 0
    %1083 = vmatpush2.bf16.msra.mxu0 0
    %1084 = vmatprep.subr.bf16.mxu0 0
    %1085 = vmatpush2.bf16.msra.mxu0 0
    %1086 = vmatprep.subr.bf16.mxu0 0
    %1087 = vmatpush2.bf16.msra.mxu0 0
    %1088 = vmatprep.subr.bf16.mxu0 0
    %1089 = vmatpush2.bf16.msra.mxu0 0
    %1090 = vmatprep.mubr.bf16.mxu0 0
    %1091 = vmatmul.mubr.bf16.gmra.mxu0 %v1053
    %v1092 = vpop.f32.mrf.mxu0
    %v1093 = vadd.f32 0.0, %v1092
    %v1094 = vpop.f32.mrf.mxu0
    %v1095 = vpop.f32.mrf.mxu0
    %v1096 = vpop.f32.mrf.mxu0
    %1097 = vdwg.mxu0
    %1098 = vrot.lane.b32.xlu0 %v400, 64
    %v1099 = vpop.permute.xlu0 %1098
    %v1101 = vsel %vm419, %v901, 0
    %v1104 = vsel %vm910, %v1099, 0
    %1106 = vmatprep.subr.bf16.mxu0 0
    %1107 = vmatpush1.bf16.msra.mxu0 0
    %1108 = vmatprep.subr.bf16.mxu0 0
    %1109 = vmatpush1.bf16.msra.mxu0 0
    %1110 = vmatprep.subr.bf16.mxu0 0
    %1111 = vmatpush1.bf16.msra.mxu0 0
    %1112 = vmatprep.subr.bf16.mxu0 0
    %1113 = vmatpush1.bf16.msra.mxu0 0
    %1114 = vmatprep.subr.bf16.mxu0 0
    %1115 = vmatpush1.bf16.msra.mxu0 0
    %1116 = vmatprep.subr.bf16.mxu0 0
    %1117 = vmatpush1.bf16.msra.mxu0 0
    %1118 = vmatprep.subr.bf16.mxu0 0
    %1119 = vmatpush1.bf16.msra.mxu0 0
    %1120 = vmatprep.subr.bf16.mxu0 0
    %1121 = vmatpush1.bf16.msra.mxu0 %v1104
    %1122 = vmatprep.subr.bf16.mxu0 0
    %1123 = vmatpush2.bf16.msra.mxu0 0
    %1124 = vmatprep.subr.bf16.mxu0 0
    %1125 = vmatpush2.bf16.msra.mxu0 0
    %1126 = vmatprep.subr.bf16.mxu0 0
    %1127 = vmatpush2.bf16.msra.mxu0 0
    %1128 = vmatprep.subr.bf16.mxu0 0
    %1129 = vmatpush2.bf16.msra.mxu0 0
    %1130 = vmatprep.subr.bf16.mxu0 0
    %1131 = vmatpush2.bf16.msra.mxu0 0
    %1132 = vmatprep.subr.bf16.mxu0 0
    %1133 = vmatpush2.bf16.msra.mxu0 0
    %1134 = vmatprep.subr.bf16.mxu0 0
    %1135 = vmatpush2.bf16.msra.mxu0 0
    %1136 = vmatprep.subr.bf16.mxu0 0
    %1137 = vmatpush2.bf16.msra.mxu0 0
    %1138 = vmatprep.mubr.bf16.mxu0 0
    %1139 = vmatmul.mubr.bf16.gmra.mxu0 %v1101
    %v1140 = vpop.f32.mrf.mxu0
    %v1141 = vadd.f32 0.0, %v1140
    %v1142 = vpop.f32.mrf.mxu0
    %v1143 = vpop.f32.mrf.mxu0
    %v1144 = vpop.f32.mrf.mxu0
    %1145 = vdwg.mxu0
    %1146 = vrot.lane.b32.xlu0 %v401, 64
    %v1147 = vpop.permute.xlu0 %1146
    %v1149 = vsel %vm419, %v902, 0
    %v1152 = vsel %vm910, %v1147, 0
    %1154 = vmatprep.subr.bf16.mxu0 0
    %1155 = vmatpush1.bf16.msra.mxu0 0
    %1156 = vmatprep.subr.bf16.mxu0 0
    %1157 = vmatpush1.bf16.msra.mxu0 0
    %1158 = vmatprep.subr.bf16.mxu0 0
    %1159 = vmatpush1.bf16.msra.mxu0 0
    %1160 = vmatprep.subr.bf16.mxu0 0
    %1161 = vmatpush1.bf16.msra.mxu0 0
    %1162 = vmatprep.subr.bf16.mxu0 0
    %1163 = vmatpush1.bf16.msra.mxu0 0
    %1164 = vmatprep.subr.bf16.mxu0 0
    %1165 = vmatpush1.bf16.msra.mxu0 0
    %1166 = vmatprep.subr.bf16.mxu0 0
    %1167 = vmatpush1.bf16.msra.mxu0 0
    %1168 = vmatprep.subr.bf16.mxu0 0
    %1169 = vmatpush1.bf16.msra.mxu0 %v1152
    %1170 = vmatprep.subr.bf16.mxu0 0
    %1171 = vmatpush2.bf16.msra.mxu0 0
    %1172 = vmatprep.subr.bf16.mxu0 0
    %1173 = vmatpush2.bf16.msra.mxu0 0
    %1174 = vmatprep.subr.bf16.mxu0 0
    %1175 = vmatpush2.bf16.msra.mxu0 0
    %1176 = vmatprep.subr.bf16.mxu0 0
    %1177 = vmatpush2.bf16.msra.mxu0 0
    %1178 = vmatprep.subr.bf16.mxu0 0
    %1179 = vmatpush2.bf16.msra.mxu0 0
    %1180 = vmatprep.subr.bf16.mxu0 0
    %1181 = vmatpush2.bf16.msra.mxu0 0
    %1182 = vmatprep.subr.bf16.mxu0 0
    %1183 = vmatpush2.bf16.msra.mxu0 0
    %1184 = vmatprep.subr.bf16.mxu0 0
    %1185 = vmatpush2.bf16.msra.mxu0 0
    %1186 = vmatprep.mubr.bf16.mxu0 0
    %1187 = vmatmul.mubr.bf16.gmra.mxu0 %v1149
    %v1188 = vpop.f32.mrf.mxu0
    %v1189 = vadd.f32 0.0, %v1188
    %v1190 = vpop.f32.mrf.mxu0
    %v1191 = vpop.f32.mrf.mxu0
    %v1192 = vpop.f32.mrf.mxu0
    %1193 = vdwg.mxu0
    %1194 = vrot.lane.b32.xlu0 %v402, 64
    %v1195 = vpop.permute.xlu0 %1194
    %v1197 = vsel %vm419, %v903, 0
    %v1200 = vsel %vm910, %v1195, 0
    %1202 = vmatprep.subr.bf16.mxu0 0
    %1203 = vmatpush1.bf16.msra.mxu0 0
    %1204 = vmatprep.subr.bf16.mxu0 0
    %1205 = vmatpush1.bf16.msra.mxu0 0
    %1206 = vmatprep.subr.bf16.mxu0 0
    %1207 = vmatpush1.bf16.msra.mxu0 0
    %1208 = vmatprep.subr.bf16.mxu0 0
    %1209 = vmatpush1.bf16.msra.mxu0 0
    %1210 = vmatprep.subr.bf16.mxu0 0
    %1211 = vmatpush1.bf16.msra.mxu0 0
    %1212 = vmatprep.subr.bf16.mxu0 0
    %1213 = vmatpush1.bf16.msra.mxu0 0
    %1214 = vmatprep.subr.bf16.mxu0 0
    %1215 = vmatpush1.bf16.msra.mxu0 0
    %1216 = vmatprep.subr.bf16.mxu0 0
    %1217 = vmatpush1.bf16.msra.mxu0 %v1200
    %1218 = vmatprep.subr.bf16.mxu0 0
    %1219 = vmatpush2.bf16.msra.mxu0 0
    %1220 = vmatprep.subr.bf16.mxu0 0
    %1221 = vmatpush2.bf16.msra.mxu0 0
    %1222 = vmatprep.subr.bf16.mxu0 0
    %1223 = vmatpush2.bf16.msra.mxu0 0
    %1224 = vmatprep.subr.bf16.mxu0 0
    %1225 = vmatpush2.bf16.msra.mxu0 0
    %1226 = vmatprep.subr.bf16.mxu0 0
    %1227 = vmatpush2.bf16.msra.mxu0 0
    %1228 = vmatprep.subr.bf16.mxu0 0
    %1229 = vmatpush2.bf16.msra.mxu0 0
    %1230 = vmatprep.subr.bf16.mxu0 0
    %1231 = vmatpush2.bf16.msra.mxu0 0
    %1232 = vmatprep.subr.bf16.mxu0 0
    %1233 = vmatpush2.bf16.msra.mxu0 0
    %1234 = vmatprep.mubr.bf16.mxu0 0
    %1235 = vmatmul.mubr.bf16.gmra.mxu0 %v1197
    %v1236 = vpop.f32.mrf.mxu0
    %v1237 = vadd.f32 0.0, %v1236
    %v1238 = vpop.f32.mrf.mxu0
    %v1239 = vpop.f32.mrf.mxu0
    %v1240 = vpop.f32.mrf.mxu0
    %1241 = vdwg.mxu0
    %1242 = vrot.lane.b32.xlu0 %v403, 64
    %v1243 = vpop.permute.xlu0 %1242
    %v1245 = vsel %vm419, %v904, 0
    %v1248 = vsel %vm910, %v1243, 0
    %1250 = vmatprep.subr.bf16.mxu0 0
    %1251 = vmatpush1.bf16.msra.mxu0 0
    %1252 = vmatprep.subr.bf16.mxu0 0
    %1253 = vmatpush1.bf16.msra.mxu0 0
    %1254 = vmatprep.subr.bf16.mxu0 0
    %1255 = vmatpush1.bf16.msra.mxu0 0
    %1256 = vmatprep.subr.bf16.mxu0 0
    %1257 = vmatpush1.bf16.msra.mxu0 0
    %1258 = vmatprep.subr.bf16.mxu0 0
    %1259 = vmatpush1.bf16.msra.mxu0 0
    %1260 = vmatprep.subr.bf16.mxu0 0
    %1261 = vmatpush1.bf16.msra.mxu0 0
    %1262 = vmatprep.subr.bf16.mxu0 0
    %1263 = vmatpush1.bf16.msra.mxu0 0
    %1264 = vmatprep.subr.bf16.mxu0 0
    %1265 = vmatpush1.bf16.msra.mxu0 %v1248
    %1266 = vmatprep.subr.bf16.mxu0 0
    %1267 = vmatpush2.bf16.msra.mxu0 0
    %1268 = vmatprep.subr.bf16.mxu0 0
    %1269 = vmatpush2.bf16.msra.mxu0 0
    %1270 = vmatprep.subr.bf16.mxu0 0
    %1271 = vmatpush2.bf16.msra.mxu0 0
    %1272 = vmatprep.subr.bf16.mxu0 0
    %1273 = vmatpush2.bf16.msra.mxu0 0
    %1274 = vmatprep.subr.bf16.mxu0 0
    %1275 = vmatpush2.bf16.msra.mxu0 0
    %1276 = vmatprep.subr.bf16.mxu0 0
    %1277 = vmatpush2.bf16.msra.mxu0 0
    %1278 = vmatprep.subr.bf16.mxu0 0
    %1279 = vmatpush2.bf16.msra.mxu0 0
    %1280 = vmatprep.subr.bf16.mxu0 0
    %1281 = vmatpush2.bf16.msra.mxu0 0
    %1282 = vmatprep.mubr.bf16.mxu0 0
    %1283 = vmatmul.mubr.bf16.gmra.mxu0 %v1245
    %v1284 = vpop.f32.mrf.mxu0
    %v1285 = vadd.f32 0.0, %v1284
    %v1286 = vpop.f32.mrf.mxu0
    %v1287 = vpop.f32.mrf.mxu0
    %v1288 = vpop.f32.mrf.mxu0
    %1289 = vdwg.mxu0
    %1292 = vrot.lane.b32.xlu0 %v1045, 8
    %v1293 = vpop.permute.xlu0 %1292
    %1294 = vrot.lane.b32.xlu0 %v1093, 8
    %v1295 = vpop.permute.xlu0 %1294
    %1300 = vrot.lane.b32.xlu0 %v1141, 16
    %v1301 = vpop.permute.xlu0 %1300
    %1302 = vrot.lane.b32.xlu0 %v1189, 16
    %v1303 = vpop.permute.xlu0 %1302
    %1308 = vrot.lane.b32.xlu0 %v1237, 24
    %v1309 = vpop.permute.xlu0 %1308
    %1310 = vrot.lane.b32.xlu0 %v1285, 24
    %v1311 = vpop.permute.xlu0 %1310
    %v1314 = vsel %vm419, %v949, %v1293
    %v1315 = vsel %vm419, %v997, %v1295
    %vm1316 = vcmask 130048
    %v1317 = vsel %vm1316, %v1314, %v1301
    %v1318 = vsel %vm1316, %v1315, %v1303
    %vm1319 = vcmask 195584
    %v1320 = vsel %vm1319, %v1317, %v1309
    %v1321 = vsel %vm1319, %v1318, %v1311
    %v1322 = vld [vmem:[#allocation2 + $0x4] sm:$0xf]
    %v1323 = vld [vmem:[#allocation2 + $0x2c] sm:$0xf]
    %v1324 = vld [vmem:[#allocation2 + $0x54] sm:$0xf]
    %v1325 = vld [vmem:[#allocation2 + $0x7c] sm:$0xf]
    %v1326 = vpack.c.bf16 %v1321, %v1320
    %v1331 = vunpack.c.l.b16 %v1322
    %v1332 = vunpack.c.l.b16 %v1323
    %v1333 = vunpack.c.l.b16 %v1324
    %v1334 = vunpack.c.l.b16 %v1325
    %v1335 = vpack.c.b16 %v1332, %v1331
    %v1336 = vpack.c.b16 %v1334, %v1333
    %v1340 = vsel %vm293, %v1326, 0
    %1342 = vmatprep.subr.bf16.mxu0 0
    %1343 = vmatpush1.bf16.msra.mxu0 0
    %1344 = vmatprep.subr.bf16.mxu0 0
    %1345 = vmatpush1.bf16.msra.mxu0 0
    %1346 = vmatprep.subr.bf16.mxu0 0
    %1347 = vmatpush1.bf16.msra.mxu0 0
    %1348 = vmatprep.subr.bf16.mxu0 0
    %1349 = vmatpush1.bf16.msra.mxu0 0
    %1350 = vmatprep.subr.bf16.mxu0 0
    %1351 = vmatpush1.bf16.msra.mxu0 0
    %1352 = vmatprep.subr.bf16.mxu0 0
    %1353 = vmatpush1.bf16.msra.mxu0 0
    %1354 = vmatprep.subr.bf16.mxu0 0
    %1355 = vmatpush1.bf16.msra.mxu0 %v1336
    %1356 = vmatprep.subr.bf16.mxu0 0
    %1357 = vmatpush1.bf16.msra.mxu0 %v1335
    %1358 = vmatprep.subr.bf16.mxu0 0
    %1359 = vmatpush2.bf16.msra.mxu0 0
    %1360 = vmatprep.subr.bf16.mxu0 0
    %1361 = vmatpush2.bf16.msra.mxu0 0
    %1362 = vmatprep.subr.bf16.mxu0 0
    %1363 = vmatpush2.bf16.msra.mxu0 0
    %1364 = vmatprep.subr.bf16.mxu0 0
    %1365 = vmatpush2.bf16.msra.mxu0 0
    %1366 = vmatprep.subr.bf16.mxu0 0
    %1367 = vmatpush2.bf16.msra.mxu0 0
    %1368 = vmatprep.subr.bf16.mxu0 0
    %1369 = vmatpush2.bf16.msra.mxu0 0
    %1370 = vmatprep.subr.bf16.mxu0 0
    %1371 = vmatpush2.bf16.msra.mxu0 0
    %1372 = vmatprep.subr.bf16.mxu0 0
    %1373 = vmatpush2.bf16.msra.mxu0 0
    %1374 = vmatprep.mubr.bf16.mxu0 0
    %1375 = vmatmul.mubr.bf16.gmra.mxu0 %v1340
    %v1376 = vpop.f32.mrf.mxu0
    %v1377 = vadd.f32 0.0, %v1376
    %v1378 = vpop.f32.mrf.mxu0
    %v1379 = vpop.f32.mrf.mxu0
    %v1380 = vadd.f32 0.0, %v1379
    %v1381 = vpop.f32.mrf.mxu0
    %1382 = vdwg.mxu0
    %v1383 = vadd.f32 %v151, %v1377
    %v1384 = vadd.f32 %v156, %v1380
    %v1385 = vld [vmem:[%s3 + $0x1] sm:$0x1]
    %v1386 = vmul.f32 %v1383, %v1383
    %v1387 = vmul.f32 %v1384, %v1384
    %v1388 = vsel %vm293, %v1386, 0.0
    %1389 = vadd.xlane.f32.xlu0 %v1388
    %v1390 = vpop.xlane.xlu0 %1389
    %v1391 = vsel %vm293, %v1387, 0.0
    %1392 = vadd.xlane.f32.xlu0 %v1391
    %v1393 = vpop.xlane.xlu0 %1392
    %v1394 = vmul.f32 %v1390, %v300
    %v1395 = vmul.f32 %v1393, %v300
    %v1396 = vadd.f32 %v1394, 1e-06
    %v1397 = vadd.f32 %v1395, 1e-06
    %v1398 = vrsqrt.pop %v1396
    %v1399 = vrsqrt.pop %v1397
    %v1400 = vmul.f32 %v1383, %v1398
    %v1401 = vmul.f32 %v1384, %v1399
    %v1402 = vlaneseq
    %v1403 = vshrl.u32 %v1402, 7
    %v1404 = vsub.s32 0, %v1403
    %v1405 = vrot.slane %v1385, %v1404
    %v1406 = vmul.f32 %v1400, %v1405
    %v1407 = vmul.f32 %v1401, %v1405
    %v1408 = vld [vmem:[#allocation2 + $0x8] sm:$0xf]
    %v1409 = vld [vmem:[#allocation2 + $0x30] sm:$0xf]
    %v1410 = vld [vmem:[#allocation2 + $0x58] sm:$0xf]
    %v1411 = vld [vmem:[#allocation2 + $0x80] sm:$0xf]
    %v1412 = vpack.c.bf16 %v1407, %v1406
    %v1417 = vunpack.c.l.b16 %v1408
    %v1418 = vunpack.c.l.b16 %v1409
    %v1419 = vunpack.c.l.b16 %v1410
    %v1420 = vunpack.c.l.b16 %v1411
    %v1421 = vpack.c.b16 %v1418, %v1417
    %v1422 = vpack.c.b16 %v1420, %v1419
    %v1426 = vsel %vm293, %v1412, 0
    %1428 = vmatprep.subr.bf16.mxu0 0
    %1429 = vmatpush1.bf16.msra.mxu0 0
    %1430 = vmatprep.subr.bf16.mxu0 0
    %1431 = vmatpush1.bf16.msra.mxu0 0
    %1432 = vmatprep.subr.bf16.mxu0 0
    %1433 = vmatpush1.bf16.msra.mxu0 0
    %1434 = vmatprep.subr.bf16.mxu0 0
    %1435 = vmatpush1.bf16.msra.mxu0 0
    %1436 = vmatprep.subr.bf16.mxu0 0
    %1437 = vmatpush1.bf16.msra.mxu0 0
    %1438 = vmatprep.subr.bf16.mxu0 0
    %1439 = vmatpush1.bf16.msra.mxu0 0
    %1440 = vmatprep.subr.bf16.mxu0 0
    %1441 = vmatpush1.bf16.msra.mxu0 %v1422
    %1442 = vmatprep.subr.bf16.mxu0 0
    %1443 = vmatpush1.bf16.msra.mxu0 %v1421
    %1444 = vmatprep.subr.bf16.mxu0 0
    %1445 = vmatpush2.bf16.msra.mxu0 0
    %1446 = vmatprep.subr.bf16.mxu0 0
    %1447 = vmatpush2.bf16.msra.mxu0 0
    %1448 = vmatprep.subr.bf16.mxu0 0
    %1449 = vmatpush2.bf16.msra.mxu0 0
    %1450 = vmatprep.subr.bf16.mxu0 0
    %1451 = vmatpush2.bf16.msra.mxu0 0
    %1452 = vmatprep.subr.bf16.mxu0 0
    %1453 = vmatpush2.bf16.msra.mxu0 0
    %1454 = vmatprep.subr.bf16.mxu0 0
    %1455 = vmatpush2.bf16.msra.mxu0 0
    %1456 = vmatprep.subr.bf16.mxu0 0
    %1457 = vmatpush2.bf16.msra.mxu0 0
    %1458 = vmatprep.subr.bf16.mxu0 0
    %1459 = vmatpush2.bf16.msra.mxu0 0
    %1460 = vmatprep.mubr.bf16.mxu0 0
    %1461 = vmatmul.mubr.bf16.gmra.mxu0 %v1426
    %v1462 = vpop.f32.mrf.mxu0
    %v1463 = vadd.f32 0.0, %v1462
    %v1464 = vpop.f32.mrf.mxu0
    %v1465 = vpop.f32.mrf.mxu0
    %v1466 = vadd.f32 0.0, %v1465
    %v1467 = vpop.f32.mrf.mxu0
    %1468 = vdwg.mxu0
    %v1469 = vmax.f32 %v1463, 0.0
    %v1470 = vmax.f32 %v1466, 0.0
    %v1471 = vld [vmem:[#allocation5] sm:$0xf]
    %v1472 = vld [vmem:[#allocation5 + $0x8] sm:$0xf]
    %v1473 = vld [vmem:[#allocation5 + $0x10] sm:$0xf]
    %v1474 = vld [vmem:[#allocation5 + $0x18] sm:$0xf]
    %v1475 = vld [vmem:[#allocation5 + $0x20] sm:$0xf]
    %v1476 = vld [vmem:[#allocation5 + $0x28] sm:$0xf]
    %v1477 = vld [vmem:[#allocation5 + $0x30] sm:$0xf]
    %v1478 = vld [vmem:[#allocation5 + $0x38] sm:$0xf]
    %v1479 = vpack.c.bf16 %v1470, %v1469
    %v1488 = vunpack.c.l.b16 %v1471
    %v1489 = vunpack.c.l.b16 %v1472
    %v1490 = vunpack.c.l.b16 %v1473
    %v1491 = vunpack.c.l.b16 %v1474
    %v1492 = vunpack.c.l.b16 %v1475
    %v1493 = vunpack.c.l.b16 %v1476
    %v1494 = vunpack.c.l.b16 %v1477
    %v1495 = vunpack.c.l.b16 %v1478
    %v1496 = vpack.c.b16 %v1489, %v1488
    %v1497 = vpack.c.b16 %v1491, %v1490
    %v1498 = vpack.c.b16 %v1493, %v1492
    %v1499 = vpack.c.b16 %v1495, %v1494
    %v1505 = vsel %vm77, %v1479, 0
    %1507 = vmatprep.subr.bf16.mxu0 0
    %1508 = vmatpush1.bf16.msra.mxu0 0
    %1509 = vmatprep.subr.bf16.mxu0 0
    %1510 = vmatpush1.bf16.msra.mxu0 0
    %1511 = vmatprep.subr.bf16.mxu0 0
    %1512 = vmatpush1.bf16.msra.mxu0 0
    %1513 = vmatprep.subr.bf16.mxu0 0
    %1514 = vmatpush1.bf16.msra.mxu0 0
    %1515 = vmatprep.subr.bf16.mxu0 0
    %1516 = vmatpush1.bf16.msra.mxu0 %v1499
    %1517 = vmatprep.subr.bf16.mxu0 0
    %1518 = vmatpush1.bf16.msra.mxu0 %v1498
    %1519 = vmatprep.subr.bf16.mxu0 0
    %1520 = vmatpush1.bf16.msra.mxu0 %v1497
    %1521 = vmatprep.subr.bf16.mxu0 0
    %1522 = vmatpush1.bf16.msra.mxu0 %v1496
    %1523 = vmatprep.subr.bf16.mxu0 0
    %1524 = vmatpush2.bf16.msra.mxu0 0
    %1525 = vmatprep.subr.bf16.mxu0 0
    %1526 = vmatpush2.bf16.msra.mxu0 0
    %1527 = vmatprep.subr.bf16.mxu0 0
    %1528 = vmatpush2.bf16.msra.mxu0 0
    %1529 = vmatprep.subr.bf16.mxu0 0
    %1530 = vmatpush2.bf16.msra.mxu0 0
    %1531 = vmatprep.subr.bf16.mxu0 0
    %1532 = vmatpush2.bf16.msra.mxu0 0
    %1533 = vmatprep.subr.bf16.mxu0 0
    %1534 = vmatpush2.bf16.msra.mxu0 0
    %1535 = vmatprep.subr.bf16.mxu0 0
    %1536 = vmatpush2.bf16.msra.mxu0 0
    %1537 = vmatprep.subr.bf16.mxu0 0
    %1538 = vmatpush2.bf16.msra.mxu0 0
    %1539 = vmatprep.mubr.bf16.mxu0 0
    %1540 = vmatmul.mubr.bf16.gmra.mxu0 %v1505
    %v1541 = vpop.f32.mrf.mxu0
    %v1542 = vadd.f32 0.0, %v1541
    %v1543 = vpop.f32.mrf.mxu0
    %v1544 = vpop.f32.mrf.mxu0
    %v1545 = vadd.f32 0.0, %v1544
    %v1546 = vpop.f32.mrf.mxu0
    %1547 = vdwg.mxu0
    %v1548 = vadd.f32 %v1383, %v1542
    %v1549 = vadd.f32 %v1384, %v1545
    %v1550 = vld [vmem:[%s3 + $0x2] sm:$0x1]
    %v1551 = vmul.f32 %v1548, %v1548
    %v1552 = vmul.f32 %v1549, %v1549
    %v1553 = vsel %vm293, %v1551, 0.0
    %1554 = vadd.xlane.f32.xlu0 %v1553
    %v1555 = vpop.xlane.xlu0 %1554
    %v1556 = vsel %vm293, %v1552, 0.0
    %1557 = vadd.xlane.f32.xlu0 %v1556
    %v1558 = vpop.xlane.xlu0 %1557
    %v1559 = vmul.f32 %v1555, %v300
    %v1560 = vmul.f32 %v1558, %v300
    %v1561 = vadd.f32 %v1559, 1e-06
    %v1562 = vadd.f32 %v1560, 1e-06
    %v1563 = vrsqrt.pop %v1561
    %v1564 = vrsqrt.pop %v1562
    %v1565 = vmul.f32 %v1548, %v1563
    %v1566 = vmul.f32 %v1549, %v1564
    %v1567 = vlaneseq
    %v1568 = vshrl.u32 %v1567, 7
    %v1569 = vsub.s32 0, %v1568
    %v1570 = vrot.slane %v1550, %v1569
    %v1571 = vmul.f32 %v1565, %v1570
    %v1572 = vmul.f32 %v1566, %v1570
    %v1573 = vlaneseq
    %v1574 = vshrl.u32 %v1573, 7
    %v1575 = vsub.s32 0, %v1574
    %v1576 = vrot.slane %v1571, %v1575
    %v1577 = vlaneseq
    %v1578 = vshrl.u32 %v1577, 7
    %v1579 = vsub.s32 0, %v1578
    %v1580 = vrot.slane %v1572, %v1579
    %v1581 = vld [vmem:[%s3] sm:$0x1]
    %v1582 = vmul.f32 %v244, %v244
    %v1583 = vmul.f32 %v249, %v249
    %v1584 = vsel %vm293, %v1582, 0.0
    %1585 = vadd.xlane.f32.xlu0 %v1584
    %v1586 = vpop.xlane.xlu0 %1585
    %v1587 = vsel %vm293, %v1583, 0.0
    %1588 = vadd.xlane.f32.xlu0 %v1587
    %v1589 = vpop.xlane.xlu0 %1588
    %v1590 = vmul.f32 %v1586, %v300
    %v1591 = vmul.f32 %v1589, %v300
    %v1592 = vadd.f32 %v1590, 1e-06
    %v1593 = vadd.f32 %v1591, 1e-06
    %v1594 = vrsqrt.pop %v1592
    %v1595 = vrsqrt.pop %v1593
    %v1596 = vmul.f32 %v244, %v1594
    %v1597 = vmul.f32 %v249, %v1595
    %v1598 = vlaneseq
    %v1599 = vshrl.u32 %v1598, 7
    %v1600 = vsub.s32 0, %v1599
    %v1601 = vrot.slane %v1581, %v1600
    %v1602 = vmul.f32 %v1596, %v1601
    %v1603 = vmul.f32 %v1597, %v1601
    %v1604 = vld [vmem:[#allocation2] sm:$0xf]
    %v1605 = vld [vmem:[#allocation2 + $0x28] sm:$0xf]
    %v1606 = vld [vmem:[#allocation2 + $0x50] sm:$0xf]
    %v1607 = vld [vmem:[#allocation2 + $0x78] sm:$0xf]
    %v1608 = vpack.c.bf16 %v1603, %v1602
    %v1613 = vunpack.c.l.b16 %v1604
    %v1614 = vunpack.c.l.b16 %v1605
    %v1615 = vunpack.c.l.b16 %v1606
    %v1616 = vunpack.c.l.b16 %v1607
    %v1617 = vpack.c.b16 %v1614, %v1613
    %v1618 = vpack.c.b16 %v1616, %v1615
    %v1622 = vsel %vm293, %v1608, 0
    %1624 = vmatprep.subr.bf16.mxu0 0
    %1625 = vmatpush1.bf16.msra.mxu0 0
    %1626 = vmatprep.subr.bf16.mxu0 0
    %1627 = vmatpush1.bf16.msra.mxu0 0
    %1628 = vmatprep.subr.bf16.mxu0 0
    %1629 = vmatpush1.bf16.msra.mxu0 0
    %1630 = vmatprep.subr.bf16.mxu0 0
    %1631 = vmatpush1.bf16.msra.mxu0 0
    %1632 = vmatprep.subr.bf16.mxu0 0
    %1633 = vmatpush1.bf16.msra.mxu0 0
    %1634 = vmatprep.subr.bf16.mxu0 0
    %1635 = vmatpush1.bf16.msra.mxu0 0
    %1636 = vmatprep.subr.bf16.mxu0 0
    %1637 = vmatpush1.bf16.msra.mxu0 %v1618
    %1638 = vmatprep.subr.bf16.mxu0 0
    %1639 = vmatpush1.bf16.msra.mxu0 %v1617
    %1640 = vmatprep.subr.bf16.mxu0 0
    %1641 = vmatpush2.bf16.msra.mxu0 0
    %1642 = vmatprep.subr.bf16.mxu0 0
    %1643 = vmatpush2.bf16.msra.mxu0 0
    %1644 = vmatprep.subr.bf16.mxu0 0
    %1645 = vmatpush2.bf16.msra.mxu0 0
    %1646 = vmatprep.subr.bf16.mxu0 0
    %1647 = vmatpush2.bf16.msra.mxu0 0
    %1648 = vmatprep.subr.bf16.mxu0 0
    %1649 = vmatpush2.bf16.msra.mxu0 0
    %1650 = vmatprep.subr.bf16.mxu0 0
    %1651 = vmatpush2.bf16.msra.mxu0 0
    %1652 = vmatprep.subr.bf16.mxu0 0
    %1653 = vmatpush2.bf16.msra.mxu0 0
    %1654 = vmatprep.subr.bf16.mxu0 0
    %1655 = vmatpush2.bf16.msra.mxu0 0
    %1656 = vmatprep.mubr.bf16.mxu0 0
    %1657 = vmatmul.mubr.bf16.gmra.mxu0 %v1622
    %v1658 = vpop.f32.mrf.mxu0
    %v1659 = vadd.f32 0.0, %v1658
    %v1660 = vpop.f32.mrf.mxu0
    %v1661 = vpop.f32.mrf.mxu0
    %v1662 = vadd.f32 0.0, %v1661
    %v1663 = vpop.f32.mrf.mxu0
    %1664 = vdwg.mxu0
    %1667 = vrot.lane.b32.xlu0 %v1659, 120
    %v1668 = vpop.permute.xlu0 %1667
    %1669 = vrot.lane.b32.xlu0 %v1662, 120
    %v1670 = vpop.permute.xlu0 %1669
    %1673 = vrot.lane.b32.xlu0 %v1659, 112
    %v1674 = vpop.permute.xlu0 %1673
    %1675 = vrot.lane.b32.xlu0 %v1662, 112
    %v1676 = vpop.permute.xlu0 %1675
    %1679 = vrot.lane.b32.xlu0 %v1659, 104
    %v1680 = vpop.permute.xlu0 %1679
    %1681 = vrot.lane.b32.xlu0 %v1662, 104
    %v1682 = vpop.permute.xlu0 %1681
    %v1685 = vpack.c.bf16 %v1659, %v1659
    %v1686 = vpack.c.bf16 %v1662, %v1662
    %v1687 = vpack.c.bf16 %v1668, %v1668
    %v1688 = vpack.c.bf16 %v1670, %v1670
    %v1689 = vpack.c.bf16 %v1674, %v1674
    %v1690 = vpack.c.bf16 %v1676, %v1676
    %v1691 = vpack.c.bf16 %v1680, %v1680
    %v1692 = vpack.c.bf16 %v1682, %v1682
    %v1695 = vlaneseq
    %v1696 = vshrl.u32 %v1695, 7
    %v1697 = vsub.s32 0, %v1696
    %v1698 = vrot.slane %v266, %v1697
    %v1699 = vlaneseq
    %v1700 = vshrl.u32 %v1699, 7
    %v1701 = vsub.s32 0, %v1700
    %v1702 = vrot.slane %v267, %v1701
    %1706 = vrot.lane.b32.xlu0 %v1685, 96
    %v1707 = vpop.permute.xlu0 %1706
    %v1709 = vsel %vm419, %v1685, 0
    %v1712 = vsel %vm419, %v1707, 0
    %1714 = vmatprep.subr.bf16.mxu0 0
    %1715 = vmatpush1.bf16.xpose.msra.mxu0 0
    %1716 = vmatprep.subr.bf16.mxu0 0
    %1717 = vmatpush1.bf16.xpose.msra.mxu0 0
    %1718 = vmatprep.subr.bf16.mxu0 0
    %1719 = vmatpush1.bf16.xpose.msra.mxu0 0
    %1720 = vmatprep.subr.bf16.mxu0 0
    %1721 = vmatpush1.bf16.xpose.msra.mxu0 0
    %1722 = vmatprep.subr.bf16.mxu0 0
    %1723 = vmatpush1.bf16.xpose.msra.mxu0 0
    %1724 = vmatprep.subr.bf16.mxu0 0
    %1725 = vmatpush1.bf16.xpose.msra.mxu0 0
    %1726 = vmatprep.subr.bf16.mxu0 0
    %1727 = vmatpush1.bf16.xpose.msra.mxu0 0
    %1728 = vmatprep.subr.bf16.mxu0 0
    %1729 = vmatpush1.bf16.xpose.msra.mxu0 %v1712
    %1730 = vmatprep.subr.bf16.mxu0 0
    %1731 = vmatpush2.bf16.xpose.msra.mxu0 0
    %1732 = vmatprep.subr.bf16.mxu0 0
    %1733 = vmatpush2.bf16.xpose.msra.mxu0 0
    %1734 = vmatprep.subr.bf16.mxu0 0
    %1735 = vmatpush2.bf16.xpose.msra.mxu0 0
    %1736 = vmatprep.subr.bf16.mxu0 0
    %1737 = vmatpush2.bf16.xpose.msra.mxu0 0
    %1738 = vmatprep.subr.bf16.mxu0 0
    %1739 = vmatpush2.bf16.xpose.msra.mxu0 0
    %1740 = vmatprep.subr.bf16.mxu0 0
    %1741 = vmatpush2.bf16.xpose.msra.mxu0 0
    %1742 = vmatprep.subr.bf16.mxu0 0
    %1743 = vmatpush2.bf16.xpose.msra.mxu0 0
    %1744 = vmatprep.subr.bf16.mxu0 0
    %1745 = vmatpush2.bf16.xpose.msra.mxu0 0
    %1746 = vmatprep.mubr.bf16.mxu0 0
    %1747 = vmatmul.mubr.bf16.gmra.mxu0 %v1709
    %v1748 = vpop.f32.mrf.mxu0
    %v1749 = vadd.f32 %v1698, %v1748
    %v1750 = vpop.f32.mrf.mxu0
    %v1751 = vpop.f32.mrf.mxu0
    %v1752 = vpop.f32.mrf.mxu0
    %1753 = vdwg.mxu0
    %1755 = vrot.lane.b32.xlu0 %v1686, 96
    %v1756 = vpop.permute.xlu0 %1755
    %v1758 = vsel %vm419, %v1686, 0
    %v1761 = vsel %vm419, %v1756, 0
    %1763 = vmatprep.subr.bf16.mxu0 0
    %1764 = vmatpush1.bf16.xpose.msra.mxu0 0
    %1765 = vmatprep.subr.bf16.mxu0 0
    %1766 = vmatpush1.bf16.xpose.msra.mxu0 0
    %1767 = vmatprep.subr.bf16.mxu0 0
    %1768 = vmatpush1.bf16.xpose.msra.mxu0 0
    %1769 = vmatprep.subr.bf16.mxu0 0
    %1770 = vmatpush1.bf16.xpose.msra.mxu0 0
    %1771 = vmatprep.subr.bf16.mxu0 0
    %1772 = vmatpush1.bf16.xpose.msra.mxu0 0
    %1773 = vmatprep.subr.bf16.mxu0 0
    %1774 = vmatpush1.bf16.xpose.msra.mxu0 0
    %1775 = vmatprep.subr.bf16.mxu0 0
    %1776 = vmatpush1.bf16.xpose.msra.mxu0 0
    %1777 = vmatprep.subr.bf16.mxu0 0
    %1778 = vmatpush1.bf16.xpose.msra.mxu0 %v1761
    %1779 = vmatprep.subr.bf16.mxu0 0
    %1780 = vmatpush2.bf16.xpose.msra.mxu0 0
    %1781 = vmatprep.subr.bf16.mxu0 0
    %1782 = vmatpush2.bf16.xpose.msra.mxu0 0
    %1783 = vmatprep.subr.bf16.mxu0 0
    %1784 = vmatpush2.bf16.xpose.msra.mxu0 0
    %1785 = vmatprep.subr.bf16.mxu0 0
    %1786 = vmatpush2.bf16.xpose.msra.mxu0 0
    %1787 = vmatprep.subr.bf16.mxu0 0
    %1788 = vmatpush2.bf16.xpose.msra.mxu0 0
    %1789 = vmatprep.subr.bf16.mxu0 0
    %1790 = vmatpush2.bf16.xpose.msra.mxu0 0
    %1791 = vmatprep.subr.bf16.mxu0 0
    %1792 = vmatpush2.bf16.xpose.msra.mxu0 0
    %1793 = vmatprep.subr.bf16.mxu0 0
    %1794 = vmatpush2.bf16.xpose.msra.mxu0 0
    %1795 = vmatprep.mubr.bf16.mxu0 0
    %1796 = vmatmul.mubr.bf16.gmra.mxu0 %v1758
    %v1797 = vpop.f32.mrf.mxu0
    %v1798 = vadd.f32 %v1702, %v1797
    %v1799 = vpop.f32.mrf.mxu0
    %v1800 = vpop.f32.mrf.mxu0
    %v1801 = vpop.f32.mrf.mxu0
    %1802 = vdwg.mxu0
    %1804 = vrot.lane.b32.xlu0 %v1687, 96
    %v1805 = vpop.permute.xlu0 %1804
    %v1807 = vsel %vm419, %v1687, 0
    %v1810 = vsel %vm419, %v1805, 0
    %1812 = vmatprep.subr.bf16.mxu0 0
    %1813 = vmatpush1.bf16.xpose.msra.mxu0 0
    %1814 = vmatprep.subr.bf16.mxu0 0
    %1815 = vmatpush1.bf16.xpose.msra.mxu0 0
    %1816 = vmatprep.subr.bf16.mxu0 0
    %1817 = vmatpush1.bf16.xpose.msra.mxu0 0
    %1818 = vmatprep.subr.bf16.mxu0 0
    %1819 = vmatpush1.bf16.xpose.msra.mxu0 0
    %1820 = vmatprep.subr.bf16.mxu0 0
    %1821 = vmatpush1.bf16.xpose.msra.mxu0 0
    %1822 = vmatprep.subr.bf16.mxu0 0
    %1823 = vmatpush1.bf16.xpose.msra.mxu0 0
    %1824 = vmatprep.subr.bf16.mxu0 0
    %1825 = vmatpush1.bf16.xpose.msra.mxu0 0
    %1826 = vmatprep.subr.bf16.mxu0 0
    %1827 = vmatpush1.bf16.xpose.msra.mxu0 %v1810
    %1828 = vmatprep.subr.bf16.mxu0 0
    %1829 = vmatpush2.bf16.xpose.msra.mxu0 0
    %1830 = vmatprep.subr.bf16.mxu0 0
    %1831 = vmatpush2.bf16.xpose.msra.mxu0 0
    %1832 = vmatprep.subr.bf16.mxu0 0
    %1833 = vmatpush2.bf16.xpose.msra.mxu0 0
    %1834 = vmatprep.subr.bf16.mxu0 0
    %1835 = vmatpush2.bf16.xpose.msra.mxu0 0
    %1836 = vmatprep.subr.bf16.mxu0 0
    %1837 = vmatpush2.bf16.xpose.msra.mxu0 0
    %1838 = vmatprep.subr.bf16.mxu0 0
    %1839 = vmatpush2.bf16.xpose.msra.mxu0 0
    %1840 = vmatprep.subr.bf16.mxu0 0
    %1841 = vmatpush2.bf16.xpose.msra.mxu0 0
    %1842 = vmatprep.subr.bf16.mxu0 0
    %1843 = vmatpush2.bf16.xpose.msra.mxu0 0
    %1844 = vmatprep.mubr.bf16.mxu0 0
    %1845 = vmatmul.mubr.bf16.gmra.mxu0 %v1807
    %v1846 = vpop.f32.mrf.mxu0
    %v1847 = vadd.f32 %v1698, %v1846
    %v1848 = vpop.f32.mrf.mxu0
    %v1849 = vpop.f32.mrf.mxu0
    %v1850 = vpop.f32.mrf.mxu0
    %1851 = vdwg.mxu0
    %1853 = vrot.lane.b32.xlu0 %v1688, 96
    %v1854 = vpop.permute.xlu0 %1853
    %v1856 = vsel %vm419, %v1688, 0
    %v1859 = vsel %vm419, %v1854, 0
    %1861 = vmatprep.subr.bf16.mxu0 0
    %1862 = vmatpush1.bf16.xpose.msra.mxu0 0
    %1863 = vmatprep.subr.bf16.mxu0 0
    %1864 = vmatpush1.bf16.xpose.msra.mxu0 0
    %1865 = vmatprep.subr.bf16.mxu0 0
    %1866 = vmatpush1.bf16.xpose.msra.mxu0 0
    %1867 = vmatprep.subr.bf16.mxu0 0
    %1868 = vmatpush1.bf16.xpose.msra.mxu0 0
    %1869 = vmatprep.subr.bf16.mxu0 0
    %1870 = vmatpush1.bf16.xpose.msra.mxu0 0
    %1871 = vmatprep.subr.bf16.mxu0 0
    %1872 = vmatpush1.bf16.xpose.msra.mxu0 0
    %1873 = vmatprep.subr.bf16.mxu0 0
    %1874 = vmatpush1.bf16.xpose.msra.mxu0 0
    %1875 = vmatprep.subr.bf16.mxu0 0
    %1876 = vmatpush1.bf16.xpose.msra.mxu0 %v1859
    %1877 = vmatprep.subr.bf16.mxu0 0
    %1878 = vmatpush2.bf16.xpose.msra.mxu0 0
    %1879 = vmatprep.subr.bf16.mxu0 0
    %1880 = vmatpush2.bf16.xpose.msra.mxu0 0
    %1881 = vmatprep.subr.bf16.mxu0 0
    %1882 = vmatpush2.bf16.xpose.msra.mxu0 0
    %1883 = vmatprep.subr.bf16.mxu0 0
    %1884 = vmatpush2.bf16.xpose.msra.mxu0 0
    %1885 = vmatprep.subr.bf16.mxu0 0
    %1886 = vmatpush2.bf16.xpose.msra.mxu0 0
    %1887 = vmatprep.subr.bf16.mxu0 0
    %1888 = vmatpush2.bf16.xpose.msra.mxu0 0
    %1889 = vmatprep.subr.bf16.mxu0 0
    %1890 = vmatpush2.bf16.xpose.msra.mxu0 0
    %1891 = vmatprep.subr.bf16.mxu0 0
    %1892 = vmatpush2.bf16.xpose.msra.mxu0 0
    %1893 = vmatprep.mubr.bf16.mxu0 0
    %1894 = vmatmul.mubr.bf16.gmra.mxu0 %v1856
    %v1895 = vpop.f32.mrf.mxu0
    %v1896 = vadd.f32 %v1702, %v1895
    %v1897 = vpop.f32.mrf.mxu0
    %v1898 = vpop.f32.mrf.mxu0
    %v1899 = vpop.f32.mrf.mxu0
    %1900 = vdwg.mxu0
    %1902 = vrot.lane.b32.xlu0 %v1689, 96
    %v1903 = vpop.permute.xlu0 %1902
    %v1905 = vsel %vm419, %v1689, 0
    %v1908 = vsel %vm419, %v1903, 0
    %1910 = vmatprep.subr.bf16.mxu0 0
    %1911 = vmatpush1.bf16.xpose.msra.mxu0 0
    %1912 = vmatprep.subr.bf16.mxu0 0
    %1913 = vmatpush1.bf16.xpose.msra.mxu0 0
    %1914 = vmatprep.subr.bf16.mxu0 0
    %1915 = vmatpush1.bf16.xpose.msra.mxu0 0
    %1916 = vmatprep.subr.bf16.mxu0 0
    %1917 = vmatpush1.bf16.xpose.msra.mxu0 0
    %1918 = vmatprep.subr.bf16.mxu0 0
    %1919 = vmatpush1.bf16.xpose.msra.mxu0 0
    %1920 = vmatprep.subr.bf16.mxu0 0
    %1921 = vmatpush1.bf16.xpose.msra.mxu0 0
    %1922 = vmatprep.subr.bf16.mxu0 0
    %1923 = vmatpush1.bf16.xpose.msra.mxu0 0
    %1924 = vmatprep.subr.bf16.mxu0 0
    %1925 = vmatpush1.bf16.xpose.msra.mxu0 %v1908
    %1926 = vmatprep.subr.bf16.mxu0 0
    %1927 = vmatpush2.bf16.xpose.msra.mxu0 0
    %1928 = vmatprep.subr.bf16.mxu0 0
    %1929 = vmatpush2.bf16.xpose.msra.mxu0 0
    %1930 = vmatprep.subr.bf16.mxu0 0
    %1931 = vmatpush2.bf16.xpose.msra.mxu0 0
    %1932 = vmatprep.subr.bf16.mxu0 0
    %1933 = vmatpush2.bf16.xpose.msra.mxu0 0
    %1934 = vmatprep.subr.bf16.mxu0 0
    %1935 = vmatpush2.bf16.xpose.msra.mxu0 0
    %1936 = vmatprep.subr.bf16.mxu0 0
    %1937 = vmatpush2.bf16.xpose.msra.mxu0 0
    %1938 = vmatprep.subr.bf16.mxu0 0
    %1939 = vmatpush2.bf16.xpose.msra.mxu0 0
    %1940 = vmatprep.subr.bf16.mxu0 0
    %1941 = vmatpush2.bf16.xpose.msra.mxu0 0
    %1942 = vmatprep.mubr.bf16.mxu0 0
    %1943 = vmatmul.mubr.bf16.gmra.mxu0 %v1905
    %v1944 = vpop.f32.mrf.mxu0
    %v1945 = vadd.f32 %v1698, %v1944
    %v1946 = vpop.f32.mrf.mxu0
    %v1947 = vpop.f32.mrf.mxu0
    %v1948 = vpop.f32.mrf.mxu0
    %1949 = vdwg.mxu0
    %1951 = vrot.lane.b32.xlu0 %v1690, 96
    %v1952 = vpop.permute.xlu0 %1951
    %v1954 = vsel %vm419, %v1690, 0
    %v1957 = vsel %vm419, %v1952, 0
    %1959 = vmatprep.subr.bf16.mxu0 0
    %1960 = vmatpush1.bf16.xpose.msra.mxu0 0
    %1961 = vmatprep.subr.bf16.mxu0 0
    %1962 = vmatpush1.bf16.xpose.msra.mxu0 0
    %1963 = vmatprep.subr.bf16.mxu0 0
    %1964 = vmatpush1.bf16.xpose.msra.mxu0 0
    %1965 = vmatprep.subr.bf16.mxu0 0
    %1966 = vmatpush1.bf16.xpose.msra.mxu0 0
    %1967 = vmatprep.subr.bf16.mxu0 0
    %1968 = vmatpush1.bf16.xpose.msra.mxu0 0
    %1969 = vmatprep.subr.bf16.mxu0 0
    %1970 = vmatpush1.bf16.xpose.msra.mxu0 0
    %1971 = vmatprep.subr.bf16.mxu0 0
    %1972 = vmatpush1.bf16.xpose.msra.mxu0 0
    %1973 = vmatprep.subr.bf16.mxu0 0
    %1974 = vmatpush1.bf16.xpose.msra.mxu0 %v1957
    %1975 = vmatprep.subr.bf16.mxu0 0
    %1976 = vmatpush2.bf16.xpose.msra.mxu0 0
    %1977 = vmatprep.subr.bf16.mxu0 0
    %1978 = vmatpush2.bf16.xpose.msra.mxu0 0
    %1979 = vmatprep.subr.bf16.mxu0 0
    %1980 = vmatpush2.bf16.xpose.msra.mxu0 0
    %1981 = vmatprep.subr.bf16.mxu0 0
    %1982 = vmatpush2.bf16.xpose.msra.mxu0 0
    %1983 = vmatprep.subr.bf16.mxu0 0
    %1984 = vmatpush2.bf16.xpose.msra.mxu0 0
    %1985 = vmatprep.subr.bf16.mxu0 0
    %1986 = vmatpush2.bf16.xpose.msra.mxu0 0
    %1987 = vmatprep.subr.bf16.mxu0 0
    %1988 = vmatpush2.bf16.xpose.msra.mxu0 0
    %1989 = vmatprep.subr.bf16.mxu0 0
    %1990 = vmatpush2.bf16.xpose.msra.mxu0 0
    %1991 = vmatprep.mubr.bf16.mxu0 0
    %1992 = vmatmul.mubr.bf16.gmra.mxu0 %v1954
    %v1993 = vpop.f32.mrf.mxu0
    %v1994 = vadd.f32 %v1702, %v1993
    %v1995 = vpop.f32.mrf.mxu0
    %v1996 = vpop.f32.mrf.mxu0
    %v1997 = vpop.f32.mrf.mxu0
    %1998 = vdwg.mxu0
    %2000 = vrot.lane.b32.xlu0 %v1691, 96
    %v2001 = vpop.permute.xlu0 %2000
    %v2003 = vsel %vm419, %v1691, 0
    %v2006 = vsel %vm419, %v2001, 0
    %2008 = vmatprep.subr.bf16.mxu0 0
    %2009 = vmatpush1.bf16.xpose.msra.mxu0 0
    %2010 = vmatprep.subr.bf16.mxu0 0
    %2011 = vmatpush1.bf16.xpose.msra.mxu0 0
    %2012 = vmatprep.subr.bf16.mxu0 0
    %2013 = vmatpush1.bf16.xpose.msra.mxu0 0
    %2014 = vmatprep.subr.bf16.mxu0 0
    %2015 = vmatpush1.bf16.xpose.msra.mxu0 0
    %2016 = vmatprep.subr.bf16.mxu0 0
    %2017 = vmatpush1.bf16.xpose.msra.mxu0 0
    %2018 = vmatprep.subr.bf16.mxu0 0
    %2019 = vmatpush1.bf16.xpose.msra.mxu0 0
    %2020 = vmatprep.subr.bf16.mxu0 0
    %2021 = vmatpush1.bf16.xpose.msra.mxu0 0
    %2022 = vmatprep.subr.bf16.mxu0 0
    %2023 = vmatpush1.bf16.xpose.msra.mxu0 %v2006
    %2024 = vmatprep.subr.bf16.mxu0 0
    %2025 = vmatpush2.bf16.xpose.msra.mxu0 0
    %2026 = vmatprep.subr.bf16.mxu0 0
    %2027 = vmatpush2.bf16.xpose.msra.mxu0 0
    %2028 = vmatprep.subr.bf16.mxu0 0
    %2029 = vmatpush2.bf16.xpose.msra.mxu0 0
    %2030 = vmatprep.subr.bf16.mxu0 0
    %2031 = vmatpush2.bf16.xpose.msra.mxu0 0
    %2032 = vmatprep.subr.bf16.mxu0 0
    %2033 = vmatpush2.bf16.xpose.msra.mxu0 0
    %2034 = vmatprep.subr.bf16.mxu0 0
    %2035 = vmatpush2.bf16.xpose.msra.mxu0 0
    %2036 = vmatprep.subr.bf16.mxu0 0
    %2037 = vmatpush2.bf16.xpose.msra.mxu0 0
    %2038 = vmatprep.subr.bf16.mxu0 0
    %2039 = vmatpush2.bf16.xpose.msra.mxu0 0
    %2040 = vmatprep.mubr.bf16.mxu0 0
    %2041 = vmatmul.mubr.bf16.gmra.mxu0 %v2003
    %v2042 = vpop.f32.mrf.mxu0
    %v2043 = vadd.f32 %v1698, %v2042
    %v2044 = vpop.f32.mrf.mxu0
    %v2045 = vpop.f32.mrf.mxu0
    %v2046 = vpop.f32.mrf.mxu0
    %2047 = vdwg.mxu0
    %2049 = vrot.lane.b32.xlu0 %v1692, 96
    %v2050 = vpop.permute.xlu0 %2049
    %v2052 = vsel %vm419, %v1692, 0
    %v2055 = vsel %vm419, %v2050, 0
    %2057 = vmatprep.subr.bf16.mxu0 0
    %2058 = vmatpush1.bf16.xpose.msra.mxu0 0
    %2059 = vmatprep.subr.bf16.mxu0 0
    %2060 = vmatpush1.bf16.xpose.msra.mxu0 0
    %2061 = vmatprep.subr.bf16.mxu0 0
    %2062 = vmatpush1.bf16.xpose.msra.mxu0 0
    %2063 = vmatprep.subr.bf16.mxu0 0
    %2064 = vmatpush1.bf16.xpose.msra.mxu0 0
    %2065 = vmatprep.subr.bf16.mxu0 0
    %2066 = vmatpush1.bf16.xpose.msra.mxu0 0
    %2067 = vmatprep.subr.bf16.mxu0 0
    %2068 = vmatpush1.bf16.xpose.msra.mxu0 0
    %2069 = vmatprep.subr.bf16.mxu0 0
    %2070 = vmatpush1.bf16.xpose.msra.mxu0 0
    %2071 = vmatprep.subr.bf16.mxu0 0
    %2072 = vmatpush1.bf16.xpose.msra.mxu0 %v2055
    %2073 = vmatprep.subr.bf16.mxu0 0
    %2074 = vmatpush2.bf16.xpose.msra.mxu0 0
    %2075 = vmatprep.subr.bf16.mxu0 0
    %2076 = vmatpush2.bf16.xpose.msra.mxu0 0
    %2077 = vmatprep.subr.bf16.mxu0 0
    %2078 = vmatpush2.bf16.xpose.msra.mxu0 0
    %2079 = vmatprep.subr.bf16.mxu0 0
    %2080 = vmatpush2.bf16.xpose.msra.mxu0 0
    %2081 = vmatprep.subr.bf16.mxu0 0
    %2082 = vmatpush2.bf16.xpose.msra.mxu0 0
    %2083 = vmatprep.subr.bf16.mxu0 0
    %2084 = vmatpush2.bf16.xpose.msra.mxu0 0
    %2085 = vmatprep.subr.bf16.mxu0 0
    %2086 = vmatpush2.bf16.xpose.msra.mxu0 0
    %2087 = vmatprep.subr.bf16.mxu0 0
    %2088 = vmatpush2.bf16.xpose.msra.mxu0 0
    %2089 = vmatprep.mubr.bf16.mxu0 0
    %2090 = vmatmul.mubr.bf16.gmra.mxu0 %v2052
    %v2091 = vpop.f32.mrf.mxu0
    %v2092 = vadd.f32 %v1702, %v2091
    %v2093 = vpop.f32.mrf.mxu0
    %v2094 = vpop.f32.mrf.mxu0
    %v2095 = vpop.f32.mrf.mxu0
    %2096 = vdwg.mxu0
    %v2097 = vsel %vm419, %v1749, -inf
    %2098 = vmax.xlane.f32.xlu0 %v2097
    %v2099 = vpop.xlane.xlu0 %2098
    %v2100 = vsel %vm419, %v1798, -inf
    %2101 = vmax.xlane.f32.xlu0 %v2100
    %v2102 = vpop.xlane.xlu0 %2101
    %v2103 = vsel %vm419, %v1847, -inf
    %2104 = vmax.xlane.f32.xlu0 %v2103
    %v2105 = vpop.xlane.xlu0 %2104
    %v2106 = vsel %vm419, %v1896, -inf
    %2107 = vmax.xlane.f32.xlu0 %v2106
    %v2108 = vpop.xlane.xlu0 %2107
    %v2109 = vsel %vm419, %v1945, -inf
    %2110 = vmax.xlane.f32.xlu0 %v2109
    %v2111 = vpop.xlane.xlu0 %2110
    %v2112 = vsel %vm419, %v1994, -inf
    %2113 = vmax.xlane.f32.xlu0 %v2112
    %v2114 = vpop.xlane.xlu0 %2113
    %v2115 = vsel %vm419, %v2043, -inf
    %2116 = vmax.xlane.f32.xlu0 %v2115
    %v2117 = vpop.xlane.xlu0 %2116
    %v2118 = vsel %vm419, %v2092, -inf
    %2119 = vmax.xlane.f32.xlu0 %v2118
    %v2120 = vpop.xlane.xlu0 %2119
    %v2121 = vsub.f32 %v1749, %v2099
    %v2122 = vsub.f32 %v1798, %v2102
    %v2123 = vsub.f32 %v1847, %v2105
    %v2124 = vsub.f32 %v1896, %v2108
    %v2125 = vsub.f32 %v1945, %v2111
    %v2126 = vsub.f32 %v1994, %v2114
    %v2127 = vsub.f32 %v2043, %v2117
    %v2128 = vsub.f32 %v2092, %v2120
    %v2129 = vmul.f32 %v2121, 1.442695
    %v2130 = vpow.pop %v2129
    %v2131 = vmul.f32 %v2122, 1.442695
    %v2132 = vpow.pop %v2131
    %v2133 = vmul.f32 %v2123, 1.442695
    %v2134 = vpow.pop %v2133
    %v2135 = vmul.f32 %v2124, 1.442695
    %v2136 = vpow.pop %v2135
    %v2137 = vmul.f32 %v2125, 1.442695
    %v2138 = vpow.pop %v2137
    %v2139 = vmul.f32 %v2126, 1.442695
    %v2140 = vpow.pop %v2139
    %v2141 = vmul.f32 %v2127, 1.442695
    %v2142 = vpow.pop %v2141
    %v2143 = vmul.f32 %v2128, 1.442695
    %v2144 = vpow.pop %v2143
    %v2145 = vsel %vm419, %v2130, 0.0
    %2146 = vadd.xlane.f32.xlu0 %v2145
    %v2147 = vpop.xlane.xlu0 %2146
    %v2148 = vsel %vm419, %v2132, 0.0
    %2149 = vadd.xlane.f32.xlu0 %v2148
    %v2150 = vpop.xlane.xlu0 %2149
    %v2151 = vsel %vm419, %v2134, 0.0
    %2152 = vadd.xlane.f32.xlu0 %v2151
    %v2153 = vpop.xlane.xlu0 %2152
    %v2154 = vsel %vm419, %v2136, 0.0
    %2155 = vadd.xlane.f32.xlu0 %v2154
    %v2156 = vpop.xlane.xlu0 %2155
    %v2157 = vsel %vm419, %v2138, 0.0
    %2158 = vadd.xlane.f32.xlu0 %v2157
    %v2159 = vpop.xlane.xlu0 %2158
    %v2160 = vsel %vm419, %v2140, 0.0
    %2161 = vadd.xlane.f32.xlu0 %v2160
    %v2162 = vpop.xlane.xlu0 %2161
    %v2163 = vsel %vm419, %v2142, 0.0
    %2164 = vadd.xlane.f32.xlu0 %v2163
    %v2165 = vpop.xlane.xlu0 %2164
    %v2166 = vsel %vm419, %v2144, 0.0
    %2167 = vadd.xlane.f32.xlu0 %v2166
    %v2168 = vpop.xlane.xlu0 %2167
    %v2169 = vrcp.pop %v2147
    %v2170 = vmul.f32 %v2130, %v2169
    %v2171 = vrcp.pop %v2150
    %v2172 = vmul.f32 %v2132, %v2171
    %v2173 = vrcp.pop %v2153
    %v2174 = vmul.f32 %v2134, %v2173
    %v2175 = vrcp.pop %v2156
    %v2176 = vmul.f32 %v2136, %v2175
    %v2177 = vrcp.pop %v2159
    %v2178 = vmul.f32 %v2138, %v2177
    %v2179 = vrcp.pop %v2162
    %v2180 = vmul.f32 %v2140, %v2179
    %v2181 = vrcp.pop %v2165
    %v2182 = vmul.f32 %v2142, %v2181
    %v2183 = vrcp.pop %v2168
    %v2184 = vmul.f32 %v2144, %v2183
    %v2185 = vpack.c.bf16 %v2170, %v2170
    %v2186 = vpack.c.bf16 %v2172, %v2172
    %v2187 = vpack.c.bf16 %v2174, %v2174
    %v2188 = vpack.c.bf16 %v2176, %v2176
    %v2189 = vpack.c.bf16 %v2178, %v2178
    %v2190 = vpack.c.bf16 %v2180, %v2180
    %v2191 = vpack.c.bf16 %v2182, %v2182
    %v2192 = vpack.c.bf16 %v2184, %v2184
    %2193 = vrot.lane.b32.xlu0 %v1685, 64
    %v2194 = vpop.permute.xlu0 %2193
    %v2196 = vsel %vm419, %v2185, 0
    %v2199 = vsel %vm910, %v2194, 0
    %2201 = vmatprep.subr.bf16.mxu0 0
    %2202 = vmatpush1.bf16.msra.mxu0 0
    %2203 = vmatprep.subr.bf16.mxu0 0
    %2204 = vmatpush1.bf16.msra.mxu0 0
    %2205 = vmatprep.subr.bf16.mxu0 0
    %2206 = vmatpush1.bf16.msra.mxu0 0
    %2207 = vmatprep.subr.bf16.mxu0 0
    %2208 = vmatpush1.bf16.msra.mxu0 0
    %2209 = vmatprep.subr.bf16.mxu0 0
    %2210 = vmatpush1.bf16.msra.mxu0 0
    %2211 = vmatprep.subr.bf16.mxu0 0
    %2212 = vmatpush1.bf16.msra.mxu0 0
    %2213 = vmatprep.subr.bf16.mxu0 0
    %2214 = vmatpush1.bf16.msra.mxu0 0
    %2215 = vmatprep.subr.bf16.mxu0 0
    %2216 = vmatpush1.bf16.msra.mxu0 %v2199
    %2217 = vmatprep.subr.bf16.mxu0 0
    %2218 = vmatpush2.bf16.msra.mxu0 0
    %2219 = vmatprep.subr.bf16.mxu0 0
    %2220 = vmatpush2.bf16.msra.mxu0 0
    %2221 = vmatprep.subr.bf16.mxu0 0
    %2222 = vmatpush2.bf16.msra.mxu0 0
    %2223 = vmatprep.subr.bf16.mxu0 0
    %2224 = vmatpush2.bf16.msra.mxu0 0
    %2225 = vmatprep.subr.bf16.mxu0 0
    %2226 = vmatpush2.bf16.msra.mxu0 0
    %2227 = vmatprep.subr.bf16.mxu0 0
    %2228 = vmatpush2.bf16.msra.mxu0 0
    %2229 = vmatprep.subr.bf16.mxu0 0
    %2230 = vmatpush2.bf16.msra.mxu0 0
    %2231 = vmatprep.subr.bf16.mxu0 0
    %2232 = vmatpush2.bf16.msra.mxu0 0
    %2233 = vmatprep.mubr.bf16.mxu0 0
    %2234 = vmatmul.mubr.bf16.gmra.mxu0 %v2196
    %v2235 = vpop.f32.mrf.mxu0
    %v2236 = vadd.f32 0.0, %v2235
    %v2237 = vpop.f32.mrf.mxu0
    %v2238 = vpop.f32.mrf.mxu0
    %v2239 = vpop.f32.mrf.mxu0
    %2240 = vdwg.mxu0
    %2241 = vrot.lane.b32.xlu0 %v1686, 64
    %v2242 = vpop.permute.xlu0 %2241
    %v2244 = vsel %vm419, %v2186, 0
    %v2247 = vsel %vm910, %v2242, 0
    %2249 = vmatprep.subr.bf16.mxu0 0
    %2250 = vmatpush1.bf16.msra.mxu0 0
    %2251 = vmatprep.subr.bf16.mxu0 0
    %2252 = vmatpush1.bf16.msra.mxu0 0
    %2253 = vmatprep.subr.bf16.mxu0 0
    %2254 = vmatpush1.bf16.msra.mxu0 0
    %2255 = vmatprep.subr.bf16.mxu0 0
    %2256 = vmatpush1.bf16.msra.mxu0 0
    %2257 = vmatprep.subr.bf16.mxu0 0
    %2258 = vmatpush1.bf16.msra.mxu0 0
    %2259 = vmatprep.subr.bf16.mxu0 0
    %2260 = vmatpush1.bf16.msra.mxu0 0
    %2261 = vmatprep.subr.bf16.mxu0 0
    %2262 = vmatpush1.bf16.msra.mxu0 0
    %2263 = vmatprep.subr.bf16.mxu0 0
    %2264 = vmatpush1.bf16.msra.mxu0 %v2247
    %2265 = vmatprep.subr.bf16.mxu0 0
    %2266 = vmatpush2.bf16.msra.mxu0 0
    %2267 = vmatprep.subr.bf16.mxu0 0
    %2268 = vmatpush2.bf16.msra.mxu0 0
    %2269 = vmatprep.subr.bf16.mxu0 0
    %2270 = vmatpush2.bf16.msra.mxu0 0
    %2271 = vmatprep.subr.bf16.mxu0 0
    %2272 = vmatpush2.bf16.msra.mxu0 0
    %2273 = vmatprep.subr.bf16.mxu0 0
    %2274 = vmatpush2.bf16.msra.mxu0 0
    %2275 = vmatprep.subr.bf16.mxu0 0
    %2276 = vmatpush2.bf16.msra.mxu0 0
    %2277 = vmatprep.subr.bf16.mxu0 0
    %2278 = vmatpush2.bf16.msra.mxu0 0
    %2279 = vmatprep.subr.bf16.mxu0 0
    %2280 = vmatpush2.bf16.msra.mxu0 0
    %2281 = vmatprep.mubr.bf16.mxu0 0
    %2282 = vmatmul.mubr.bf16.gmra.mxu0 %v2244
    %v2283 = vpop.f32.mrf.mxu0
    %v2284 = vadd.f32 0.0, %v2283
    %v2285 = vpop.f32.mrf.mxu0
    %v2286 = vpop.f32.mrf.mxu0
    %v2287 = vpop.f32.mrf.mxu0
    %2288 = vdwg.mxu0
    %2289 = vrot.lane.b32.xlu0 %v1687, 64
    %v2290 = vpop.permute.xlu0 %2289
    %v2292 = vsel %vm419, %v2187, 0
    %v2295 = vsel %vm910, %v2290, 0
    %2297 = vmatprep.subr.bf16.mxu0 0
    %2298 = vmatpush1.bf16.msra.mxu0 0
    %2299 = vmatprep.subr.bf16.mxu0 0
    %2300 = vmatpush1.bf16.msra.mxu0 0
    %2301 = vmatprep.subr.bf16.mxu0 0
    %2302 = vmatpush1.bf16.msra.mxu0 0
    %2303 = vmatprep.subr.bf16.mxu0 0
    %2304 = vmatpush1.bf16.msra.mxu0 0
    %2305 = vmatprep.subr.bf16.mxu0 0
    %2306 = vmatpush1.bf16.msra.mxu0 0
    %2307 = vmatprep.subr.bf16.mxu0 0
    %2308 = vmatpush1.bf16.msra.mxu0 0
    %2309 = vmatprep.subr.bf16.mxu0 0
    %2310 = vmatpush1.bf16.msra.mxu0 0
    %2311 = vmatprep.subr.bf16.mxu0 0
    %2312 = vmatpush1.bf16.msra.mxu0 %v2295
    %2313 = vmatprep.subr.bf16.mxu0 0
    %2314 = vmatpush2.bf16.msra.mxu0 0
    %2315 = vmatprep.subr.bf16.mxu0 0
    %2316 = vmatpush2.bf16.msra.mxu0 0
    %2317 = vmatprep.subr.bf16.mxu0 0
    %2318 = vmatpush2.bf16.msra.mxu0 0
    %2319 = vmatprep.subr.bf16.mxu0 0
    %2320 = vmatpush2.bf16.msra.mxu0 0
    %2321 = vmatprep.subr.bf16.mxu0 0
    %2322 = vmatpush2.bf16.msra.mxu0 0
    %2323 = vmatprep.subr.bf16.mxu0 0
    %2324 = vmatpush2.bf16.msra.mxu0 0
    %2325 = vmatprep.subr.bf16.mxu0 0
    %2326 = vmatpush2.bf16.msra.mxu0 0
    %2327 = vmatprep.subr.bf16.mxu0 0
    %2328 = vmatpush2.bf16.msra.mxu0 0
    %2329 = vmatprep.mubr.bf16.mxu0 0
    %2330 = vmatmul.mubr.bf16.gmra.mxu0 %v2292
    %v2331 = vpop.f32.mrf.mxu0
    %v2332 = vadd.f32 0.0, %v2331
    %v2333 = vpop.f32.mrf.mxu0
    %v2334 = vpop.f32.mrf.mxu0
    %v2335 = vpop.f32.mrf.mxu0
    %2336 = vdwg.mxu0
    %2337 = vrot.lane.b32.xlu0 %v1688, 64
    %v2338 = vpop.permute.xlu0 %2337
    %v2340 = vsel %vm419, %v2188, 0
    %v2343 = vsel %vm910, %v2338, 0
    %2345 = vmatprep.subr.bf16.mxu0 0
    %2346 = vmatpush1.bf16.msra.mxu0 0
    %2347 = vmatprep.subr.bf16.mxu0 0
    %2348 = vmatpush1.bf16.msra.mxu0 0
    %2349 = vmatprep.subr.bf16.mxu0 0
    %2350 = vmatpush1.bf16.msra.mxu0 0
    %2351 = vmatprep.subr.bf16.mxu0 0
    %2352 = vmatpush1.bf16.msra.mxu0 0
    %2353 = vmatprep.subr.bf16.mxu0 0
    %2354 = vmatpush1.bf16.msra.mxu0 0
    %2355 = vmatprep.subr.bf16.mxu0 0
    %2356 = vmatpush1.bf16.msra.mxu0 0
    %2357 = vmatprep.subr.bf16.mxu0 0
    %2358 = vmatpush1.bf16.msra.mxu0 0
    %2359 = vmatprep.subr.bf16.mxu0 0
    %2360 = vmatpush1.bf16.msra.mxu0 %v2343
    %2361 = vmatprep.subr.bf16.mxu0 0
    %2362 = vmatpush2.bf16.msra.mxu0 0
    %2363 = vmatprep.subr.bf16.mxu0 0
    %2364 = vmatpush2.bf16.msra.mxu0 0
    %2365 = vmatprep.subr.bf16.mxu0 0
    %2366 = vmatpush2.bf16.msra.mxu0 0
    %2367 = vmatprep.subr.bf16.mxu0 0
    %2368 = vmatpush2.bf16.msra.mxu0 0
    %2369 = vmatprep.subr.bf16.mxu0 0
    %2370 = vmatpush2.bf16.msra.mxu0 0
    %2371 = vmatprep.subr.bf16.mxu0 0
    %2372 = vmatpush2.bf16.msra.mxu0 0
    %2373 = vmatprep.subr.bf16.mxu0 0
    %2374 = vmatpush2.bf16.msra.mxu0 0
    %2375 = vmatprep.subr.bf16.mxu0 0
    %2376 = vmatpush2.bf16.msra.mxu0 0
    %2377 = vmatprep.mubr.bf16.mxu0 0
    %2378 = vmatmul.mubr.bf16.gmra.mxu0 %v2340
    %v2379 = vpop.f32.mrf.mxu0
    %v2380 = vadd.f32 0.0, %v2379
    %v2381 = vpop.f32.mrf.mxu0
    %v2382 = vpop.f32.mrf.mxu0
    %v2383 = vpop.f32.mrf.mxu0
    %2384 = vdwg.mxu0
    %2385 = vrot.lane.b32.xlu0 %v1689, 64
    %v2386 = vpop.permute.xlu0 %2385
    %v2388 = vsel %vm419, %v2189, 0
    %v2391 = vsel %vm910, %v2386, 0
    %2393 = vmatprep.subr.bf16.mxu0 0
    %2394 = vmatpush1.bf16.msra.mxu0 0
    %2395 = vmatprep.subr.bf16.mxu0 0
    %2396 = vmatpush1.bf16.msra.mxu0 0
    %2397 = vmatprep.subr.bf16.mxu0 0
    %2398 = vmatpush1.bf16.msra.mxu0 0
    %2399 = vmatprep.subr.bf16.mxu0 0
    %2400 = vmatpush1.bf16.msra.mxu0 0
    %2401 = vmatprep.subr.bf16.mxu0 0
    %2402 = vmatpush1.bf16.msra.mxu0 0
    %2403 = vmatprep.subr.bf16.mxu0 0
    %2404 = vmatpush1.bf16.msra.mxu0 0
    %2405 = vmatprep.subr.bf16.mxu0 0
    %2406 = vmatpush1.bf16.msra.mxu0 0
    %2407 = vmatprep.subr.bf16.mxu0 0
    %2408 = vmatpush1.bf16.msra.mxu0 %v2391
    %2409 = vmatprep.subr.bf16.mxu0 0
    %2410 = vmatpush2.bf16.msra.mxu0 0
    %2411 = vmatprep.subr.bf16.mxu0 0
    %2412 = vmatpush2.bf16.msra.mxu0 0
    %2413 = vmatprep.subr.bf16.mxu0 0
    %2414 = vmatpush2.bf16.msra.mxu0 0
    %2415 = vmatprep.subr.bf16.mxu0 0
    %2416 = vmatpush2.bf16.msra.mxu0 0
    %2417 = vmatprep.subr.bf16.mxu0 0
    %2418 = vmatpush2.bf16.msra.mxu0 0
    %2419 = vmatprep.subr.bf16.mxu0 0
    %2420 = vmatpush2.bf16.msra.mxu0 0
    %2421 = vmatprep.subr.bf16.mxu0 0
    %2422 = vmatpush2.bf16.msra.mxu0 0
    %2423 = vmatprep.subr.bf16.mxu0 0
    %2424 = vmatpush2.bf16.msra.mxu0 0
    %2425 = vmatprep.mubr.bf16.mxu0 0
    %2426 = vmatmul.mubr.bf16.gmra.mxu0 %v2388
    %v2427 = vpop.f32.mrf.mxu0
    %v2428 = vadd.f32 0.0, %v2427
    %v2429 = vpop.f32.mrf.mxu0
    %v2430 = vpop.f32.mrf.mxu0
    %v2431 = vpop.f32.mrf.mxu0
    %2432 = vdwg.mxu0
    %2433 = vrot.lane.b32.xlu0 %v1690, 64
    %v2434 = vpop.permute.xlu0 %2433
    %v2436 = vsel %vm419, %v2190, 0
    %v2439 = vsel %vm910, %v2434, 0
    %2441 = vmatprep.subr.bf16.mxu0 0
    %2442 = vmatpush1.bf16.msra.mxu0 0
    %2443 = vmatprep.subr.bf16.mxu0 0
    %2444 = vmatpush1.bf16.msra.mxu0 0
    %2445 = vmatprep.subr.bf16.mxu0 0
    %2446 = vmatpush1.bf16.msra.mxu0 0
    %2447 = vmatprep.subr.bf16.mxu0 0
    %2448 = vmatpush1.bf16.msra.mxu0 0
    %2449 = vmatprep.subr.bf16.mxu0 0
    %2450 = vmatpush1.bf16.msra.mxu0 0
    %2451 = vmatprep.subr.bf16.mxu0 0
    %2452 = vmatpush1.bf16.msra.mxu0 0
    %2453 = vmatprep.subr.bf16.mxu0 0
    %2454 = vmatpush1.bf16.msra.mxu0 0
    %2455 = vmatprep.subr.bf16.mxu0 0
    %2456 = vmatpush1.bf16.msra.mxu0 %v2439
    %2457 = vmatprep.subr.bf16.mxu0 0
    %2458 = vmatpush2.bf16.msra.mxu0 0
    %2459 = vmatprep.subr.bf16.mxu0 0
    %2460 = vmatpush2.bf16.msra.mxu0 0
    %2461 = vmatprep.subr.bf16.mxu0 0
    %2462 = vmatpush2.bf16.msra.mxu0 0
    %2463 = vmatprep.subr.bf16.mxu0 0
    %2464 = vmatpush2.bf16.msra.mxu0 0
    %2465 = vmatprep.subr.bf16.mxu0 0
    %2466 = vmatpush2.bf16.msra.mxu0 0
    %2467 = vmatprep.subr.bf16.mxu0 0
    %2468 = vmatpush2.bf16.msra.mxu0 0
    %2469 = vmatprep.subr.bf16.mxu0 0
    %2470 = vmatpush2.bf16.msra.mxu0 0
    %2471 = vmatprep.subr.bf16.mxu0 0
    %2472 = vmatpush2.bf16.msra.mxu0 0
    %2473 = vmatprep.mubr.bf16.mxu0 0
    %2474 = vmatmul.mubr.bf16.gmra.mxu0 %v2436
    %v2475 = vpop.f32.mrf.mxu0
    %v2476 = vadd.f32 0.0, %v2475
    %v2477 = vpop.f32.mrf.mxu0
    %v2478 = vpop.f32.mrf.mxu0
    %v2479 = vpop.f32.mrf.mxu0
    %2480 = vdwg.mxu0
    %2481 = vrot.lane.b32.xlu0 %v1691, 64
    %v2482 = vpop.permute.xlu0 %2481
    %v2484 = vsel %vm419, %v2191, 0
    %v2487 = vsel %vm910, %v2482, 0
    %2489 = vmatprep.subr.bf16.mxu0 0
    %2490 = vmatpush1.bf16.msra.mxu0 0
    %2491 = vmatprep.subr.bf16.mxu0 0
    %2492 = vmatpush1.bf16.msra.mxu0 0
    %2493 = vmatprep.subr.bf16.mxu0 0
    %2494 = vmatpush1.bf16.msra.mxu0 0
    %2495 = vmatprep.subr.bf16.mxu0 0
    %2496 = vmatpush1.bf16.msra.mxu0 0
    %2497 = vmatprep.subr.bf16.mxu0 0
    %2498 = vmatpush1.bf16.msra.mxu0 0
    %2499 = vmatprep.subr.bf16.mxu0 0
    %2500 = vmatpush1.bf16.msra.mxu0 0
    %2501 = vmatprep.subr.bf16.mxu0 0
    %2502 = vmatpush1.bf16.msra.mxu0 0
    %2503 = vmatprep.subr.bf16.mxu0 0
    %2504 = vmatpush1.bf16.msra.mxu0 %v2487
    %2505 = vmatprep.subr.bf16.mxu0 0
    %2506 = vmatpush2.bf16.msra.mxu0 0
    %2507 = vmatprep.subr.bf16.mxu0 0
    %2508 = vmatpush2.bf16.msra.mxu0 0
    %2509 = vmatprep.subr.bf16.mxu0 0
    %2510 = vmatpush2.bf16.msra.mxu0 0
    %2511 = vmatprep.subr.bf16.mxu0 0
    %2512 = vmatpush2.bf16.msra.mxu0 0
    %2513 = vmatprep.subr.bf16.mxu0 0
    %2514 = vmatpush2.bf16.msra.mxu0 0
    %2515 = vmatprep.subr.bf16.mxu0 0
    %2516 = vmatpush2.bf16.msra.mxu0 0
    %2517 = vmatprep.subr.bf16.mxu0 0
    %2518 = vmatpush2.bf16.msra.mxu0 0
    %2519 = vmatprep.subr.bf16.mxu0 0
    %2520 = vmatpush2.bf16.msra.mxu0 0
    %2521 = vmatprep.mubr.bf16.mxu0 0
    %2522 = vmatmul.mubr.bf16.gmra.mxu0 %v2484
    %v2523 = vpop.f32.mrf.mxu0
    %v2524 = vadd.f32 0.0, %v2523
    %v2525 = vpop.f32.mrf.mxu0
    %v2526 = vpop.f32.mrf.mxu0
    %v2527 = vpop.f32.mrf.mxu0
    %2528 = vdwg.mxu0
    %2529 = vrot.lane.b32.xlu0 %v1692, 64
    %v2530 = vpop.permute.xlu0 %2529
    %v2532 = vsel %vm419, %v2192, 0
    %v2535 = vsel %vm910, %v2530, 0
    %2537 = vmatprep.subr.bf16.mxu0 0
    %2538 = vmatpush1.bf16.msra.mxu0 0
    %2539 = vmatprep.subr.bf16.mxu0 0
    %2540 = vmatpush1.bf16.msra.mxu0 0
    %2541 = vmatprep.subr.bf16.mxu0 0
    %2542 = vmatpush1.bf16.msra.mxu0 0
    %2543 = vmatprep.subr.bf16.mxu0 0
    %2544 = vmatpush1.bf16.msra.mxu0 0
    %2545 = vmatprep.subr.bf16.mxu0 0
    %2546 = vmatpush1.bf16.msra.mxu0 0
    %2547 = vmatprep.subr.bf16.mxu0 0
    %2548 = vmatpush1.bf16.msra.mxu0 0
    %2549 = vmatprep.subr.bf16.mxu0 0
    %2550 = vmatpush1.bf16.msra.mxu0 0
    %2551 = vmatprep.subr.bf16.mxu0 0
    %2552 = vmatpush1.bf16.msra.mxu0 %v2535
    %2553 = vmatprep.subr.bf16.mxu0 0
    %2554 = vmatpush2.bf16.msra.mxu0 0
    %2555 = vmatprep.subr.bf16.mxu0 0
    %2556 = vmatpush2.bf16.msra.mxu0 0
    %2557 = vmatprep.subr.bf16.mxu0 0
    %2558 = vmatpush2.bf16.msra.mxu0 0
    %2559 = vmatprep.subr.bf16.mxu0 0
    %2560 = vmatpush2.bf16.msra.mxu0 0
    %2561 = vmatprep.subr.bf16.mxu0 0
    %2562 = vmatpush2.bf16.msra.mxu0 0
    %2563 = vmatprep.subr.bf16.mxu0 0
    %2564 = vmatpush2.bf16.msra.mxu0 0
    %2565 = vmatprep.subr.bf16.mxu0 0
    %2566 = vmatpush2.bf16.msra.mxu0 0
    %2567 = vmatprep.subr.bf16.mxu0 0
    %2568 = vmatpush2.bf16.msra.mxu0 0
    %2569 = vmatprep.mubr.bf16.mxu0 0
    %2570 = vmatmul.mubr.bf16.gmra.mxu0 %v2532
    %v2571 = vpop.f32.mrf.mxu0
    %v2572 = vadd.f32 0.0, %v2571
    %v2573 = vpop.f32.mrf.mxu0
    %v2574 = vpop.f32.mrf.mxu0
    %v2575 = vpop.f32.mrf.mxu0
    %2576 = vdwg.mxu0
    %2579 = vrot.lane.b32.xlu0 %v2332, 8
    %v2580 = vpop.permute.xlu0 %2579
    %2581 = vrot.lane.b32.xlu0 %v2380, 8
    %v2582 = vpop.permute.xlu0 %2581
    %2587 = vrot.lane.b32.xlu0 %v2428, 16
    %v2588 = vpop.permute.xlu0 %2587
    %2589 = vrot.lane.b32.xlu0 %v2476, 16
    %v2590 = vpop.permute.xlu0 %2589
    %2595 = vrot.lane.b32.xlu0 %v2524, 24
    %v2596 = vpop.permute.xlu0 %2595
    %2597 = vrot.lane.b32.xlu0 %v2572, 24
    %v2598 = vpop.permute.xlu0 %2597
    %v2601 = vsel %vm419, %v2236, %v2580
    %v2602 = vsel %vm419, %v2284, %v2582
    %v2603 = vsel %vm1316, %v2601, %v2588
    %v2604 = vsel %vm1316, %v2602, %v2590
    %v2605 = vsel %vm1319, %v2603, %v2596
    %v2606 = vsel %vm1319, %v2604, %v2598
    %v2607 = vld [vmem:[#allocation2 + $0x4] sm:$0xf]
    %v2608 = vld [vmem:[#allocation2 + $0x2c] sm:$0xf]
    %v2609 = vld [vmem:[#allocation2 + $0x54] sm:$0xf]
    %v2610 = vld [vmem:[#allocation2 + $0x7c] sm:$0xf]
    %v2611 = vpack.c.bf16 %v2606, %v2605
    %v2616 = vunpack.c.l.b16 %v2607
    %v2617 = vunpack.c.l.b16 %v2608
    %v2618 = vunpack.c.l.b16 %v2609
    %v2619 = vunpack.c.l.b16 %v2610
    %v2620 = vpack.c.b16 %v2617, %v2616
    %v2621 = vpack.c.b16 %v2619, %v2618
    %v2625 = vsel %vm293, %v2611, 0
    %2627 = vmatprep.subr.bf16.mxu0 0
    %2628 = vmatpush1.bf16.msra.mxu0 0
    %2629 = vmatprep.subr.bf16.mxu0 0
    %2630 = vmatpush1.bf16.msra.mxu0 0
    %2631 = vmatprep.subr.bf16.mxu0 0
    %2632 = vmatpush1.bf16.msra.mxu0 0
    %2633 = vmatprep.subr.bf16.mxu0 0
    %2634 = vmatpush1.bf16.msra.mxu0 0
    %2635 = vmatprep.subr.bf16.mxu0 0
    %2636 = vmatpush1.bf16.msra.mxu0 0
    %2637 = vmatprep.subr.bf16.mxu0 0
    %2638 = vmatpush1.bf16.msra.mxu0 0
    %2639 = vmatprep.subr.bf16.mxu0 0
    %2640 = vmatpush1.bf16.msra.mxu0 %v2621
    %2641 = vmatprep.subr.bf16.mxu0 0
    %2642 = vmatpush1.bf16.msra.mxu0 %v2620
    %2643 = vmatprep.subr.bf16.mxu0 0
    %2644 = vmatpush2.bf16.msra.mxu0 0
    %2645 = vmatprep.subr.bf16.mxu0 0
    %2646 = vmatpush2.bf16.msra.mxu0 0
    %2647 = vmatprep.subr.bf16.mxu0 0
    %2648 = vmatpush2.bf16.msra.mxu0 0
    %2649 = vmatprep.subr.bf16.mxu0 0
    %2650 = vmatpush2.bf16.msra.mxu0 0
    %2651 = vmatprep.subr.bf16.mxu0 0
    %2652 = vmatpush2.bf16.msra.mxu0 0
    %2653 = vmatprep.subr.bf16.mxu0 0
    %2654 = vmatpush2.bf16.msra.mxu0 0
    %2655 = vmatprep.subr.bf16.mxu0 0
    %2656 = vmatpush2.bf16.msra.mxu0 0
    %2657 = vmatprep.subr.bf16.mxu0 0
    %2658 = vmatpush2.bf16.msra.mxu0 0
    %2659 = vmatprep.mubr.bf16.mxu0 0
    %2660 = vmatmul.mubr.bf16.gmra.mxu0 %v2625
    %v2661 = vpop.f32.mrf.mxu0
    %v2662 = vadd.f32 0.0, %v2661
    %v2663 = vpop.f32.mrf.mxu0
    %v2664 = vpop.f32.mrf.mxu0
    %v2665 = vadd.f32 0.0, %v2664
    %v2666 = vpop.f32.mrf.mxu0
    %2667 = vdwg.mxu0
    %v2668 = vadd.f32 %v244, %v2662
    %v2669 = vadd.f32 %v249, %v2665
    %v2670 = vld [vmem:[%s3 + $0x1] sm:$0x1]
    %v2671 = vmul.f32 %v2668, %v2668
    %v2672 = vmul.f32 %v2669, %v2669
    %v2673 = vsel %vm293, %v2671, 0.0
    %2674 = vadd.xlane.f32.xlu0 %v2673
    %v2675 = vpop.xlane.xlu0 %2674
    %v2676 = vsel %vm293, %v2672, 0.0
    %2677 = vadd.xlane.f32.xlu0 %v2676
    %v2678 = vpop.xlane.xlu0 %2677
    %v2679 = vmul.f32 %v2675, %v300
    %v2680 = vmul.f32 %v2678, %v300
    %v2681 = vadd.f32 %v2679, 1e-06
    %v2682 = vadd.f32 %v2680, 1e-06
    %v2683 = vrsqrt.pop %v2681
    %v2684 = vrsqrt.pop %v2682
    %v2685 = vmul.f32 %v2668, %v2683
    %v2686 = vmul.f32 %v2669, %v2684
    %v2687 = vlaneseq
    %v2688 = vshrl.u32 %v2687, 7
    %v2689 = vsub.s32 0, %v2688
    %v2690 = vrot.slane %v2670, %v2689
    %v2691 = vmul.f32 %v2685, %v2690
    %v2692 = vmul.f32 %v2686, %v2690
    %v2693 = vld [vmem:[#allocation2 + $0x8] sm:$0xf]
    %v2694 = vld [vmem:[#allocation2 + $0x30] sm:$0xf]
    %v2695 = vld [vmem:[#allocation2 + $0x58] sm:$0xf]
    %v2696 = vld [vmem:[#allocation2 + $0x80] sm:$0xf]
    %v2697 = vpack.c.bf16 %v2692, %v2691
    %v2702 = vunpack.c.l.b16 %v2693
    %v2703 = vunpack.c.l.b16 %v2694
    %v2704 = vunpack.c.l.b16 %v2695
    %v2705 = vunpack.c.l.b16 %v2696
    %v2706 = vpack.c.b16 %v2703, %v2702
    %v2707 = vpack.c.b16 %v2705, %v2704
    %v2711 = vsel %vm293, %v2697, 0
    %2713 = vmatprep.subr.bf16.mxu0 0
    %2714 = vmatpush1.bf16.msra.mxu0 0
    %2715 = vmatprep.subr.bf16.mxu0 0
    %2716 = vmatpush1.bf16.msra.mxu0 0
    %2717 = vmatprep.subr.bf16.mxu0 0
    %2718 = vmatpush1.bf16.msra.mxu0 0
    %2719 = vmatprep.subr.bf16.mxu0 0
    %2720 = vmatpush1.bf16.msra.mxu0 0
    %2721 = vmatprep.subr.bf16.mxu0 0
    %2722 = vmatpush1.bf16.msra.mxu0 0
    %2723 = vmatprep.subr.bf16.mxu0 0
    %2724 = vmatpush1.bf16.msra.mxu0 0
    %2725 = vmatprep.subr.bf16.mxu0 0
    %2726 = vmatpush1.bf16.msra.mxu0 %v2707
    %2727 = vmatprep.subr.bf16.mxu0 0
    %2728 = vmatpush1.bf16.msra.mxu0 %v2706
    %2729 = vmatprep.subr.bf16.mxu0 0
    %2730 = vmatpush2.bf16.msra.mxu0 0
    %2731 = vmatprep.subr.bf16.mxu0 0
    %2732 = vmatpush2.bf16.msra.mxu0 0
    %2733 = vmatprep.subr.bf16.mxu0 0
    %2734 = vmatpush2.bf16.msra.mxu0 0
    %2735 = vmatprep.subr.bf16.mxu0 0
    %2736 = vmatpush2.bf16.msra.mxu0 0
    %2737 = vmatprep.subr.bf16.mxu0 0
    %2738 = vmatpush2.bf16.msra.mxu0 0
    %2739 = vmatprep.subr.bf16.mxu0 0
    %2740 = vmatpush2.bf16.msra.mxu0 0
    %2741 = vmatprep.subr.bf16.mxu0 0
    %2742 = vmatpush2.bf16.msra.mxu0 0
    %2743 = vmatprep.subr.bf16.mxu0 0
    %2744 = vmatpush2.bf16.msra.mxu0 0
    %2745 = vmatprep.mubr.bf16.mxu0 0
    %2746 = vmatmul.mubr.bf16.gmra.mxu0 %v2711
    %v2747 = vpop.f32.mrf.mxu0
    %v2748 = vadd.f32 0.0, %v2747
    %v2749 = vpop.f32.mrf.mxu0
    %v2750 = vpop.f32.mrf.mxu0
    %v2751 = vadd.f32 0.0, %v2750
    %v2752 = vpop.f32.mrf.mxu0
    %2753 = vdwg.mxu0
    %v2754 = vmax.f32 %v2748, 0.0
    %v2755 = vmax.f32 %v2751, 0.0
    %v2756 = vld [vmem:[#allocation5] sm:$0xf]
    %v2757 = vld [vmem:[#allocation5 + $0x8] sm:$0xf]
    %v2758 = vld [vmem:[#allocation5 + $0x10] sm:$0xf]
    %v2759 = vld [vmem:[#allocation5 + $0x18] sm:$0xf]
    %v2760 = vld [vmem:[#allocation5 + $0x20] sm:$0xf]
    %v2761 = vld [vmem:[#allocation5 + $0x28] sm:$0xf]
    %v2762 = vld [vmem:[#allocation5 + $0x30] sm:$0xf]
    %v2763 = vld [vmem:[#allocation5 + $0x38] sm:$0xf]
    %v2764 = vpack.c.bf16 %v2755, %v2754
    %v2773 = vunpack.c.l.b16 %v2756
    %v2774 = vunpack.c.l.b16 %v2757
    %v2775 = vunpack.c.l.b16 %v2758
    %v2776 = vunpack.c.l.b16 %v2759
    %v2777 = vunpack.c.l.b16 %v2760
    %v2778 = vunpack.c.l.b16 %v2761
    %v2779 = vunpack.c.l.b16 %v2762
    %v2780 = vunpack.c.l.b16 %v2763
    %v2781 = vpack.c.b16 %v2774, %v2773
    %v2782 = vpack.c.b16 %v2776, %v2775
    %v2783 = vpack.c.b16 %v2778, %v2777
    %v2784 = vpack.c.b16 %v2780, %v2779
    %v2790 = vsel %vm77, %v2764, 0
    %2792 = vmatprep.subr.bf16.mxu0 0
    %2793 = vmatpush1.bf16.msra.mxu0 0
    %2794 = vmatprep.subr.bf16.mxu0 0
    %2795 = vmatpush1.bf16.msra.mxu0 0
    %2796 = vmatprep.subr.bf16.mxu0 0
    %2797 = vmatpush1.bf16.msra.mxu0 0
    %2798 = vmatprep.subr.bf16.mxu0 0
    %2799 = vmatpush1.bf16.msra.mxu0 0
    %2800 = vmatprep.subr.bf16.mxu0 0
    %2801 = vmatpush1.bf16.msra.mxu0 %v2784
    %2802 = vmatprep.subr.bf16.mxu0 0
    %2803 = vmatpush1.bf16.msra.mxu0 %v2783
    %2804 = vmatprep.subr.bf16.mxu0 0
    %2805 = vmatpush1.bf16.msra.mxu0 %v2782
    %2806 = vmatprep.subr.bf16.mxu0 0
    %2807 = vmatpush1.bf16.msra.mxu0 %v2781
    %2808 = vmatprep.subr.bf16.mxu0 0
    %2809 = vmatpush2.bf16.msra.mxu0 0
    %2810 = vmatprep.subr.bf16.mxu0 0
    %2811 = vmatpush2.bf16.msra.mxu0 0
    %2812 = vmatprep.subr.bf16.mxu0 0
    %2813 = vmatpush2.bf16.msra.mxu0 0
    %2814 = vmatprep.subr.bf16.mxu0 0
    %2815 = vmatpush2.bf16.msra.mxu0 0
    %2816 = vmatprep.subr.bf16.mxu0 0
    %2817 = vmatpush2.bf16.msra.mxu0 0
    %2818 = vmatprep.subr.bf16.mxu0 0
    %2819 = vmatpush2.bf16.msra.mxu0 0
    %2820 = vmatprep.subr.bf16.mxu0 0
    %2821 = vmatpush2.bf16.msra.mxu0 0
    %2822 = vmatprep.subr.bf16.mxu0 0
    %2823 = vmatpush2.bf16.msra.mxu0 0
    %2824 = vmatprep.mubr.bf16.mxu0 0
    %2825 = vmatmul.mubr.bf16.gmra.mxu0 %v2790
    %v2826 = vpop.f32.mrf.mxu0
    %v2827 = vadd.f32 0.0, %v2826
    %v2828 = vpop.f32.mrf.mxu0
    %v2829 = vpop.f32.mrf.mxu0
    %v2830 = vadd.f32 0.0, %v2829
    %v2831 = vpop.f32.mrf.mxu0
    %2832 = vdwg.mxu0
    %v2833 = vadd.f32 %v2668, %v2827
    %v2834 = vadd.f32 %v2669, %v2830
    %v2835 = vld [vmem:[%s3 + $0x2] sm:$0x1]
    %v2836 = vmul.f32 %v2833, %v2833
    %v2837 = vmul.f32 %v2834, %v2834
    %v2838 = vsel %vm293, %v2836, 0.0
    %2839 = vadd.xlane.f32.xlu0 %v2838
    %v2840 = vpop.xlane.xlu0 %2839
    %v2841 = vsel %vm293, %v2837, 0.0
    %2842 = vadd.xlane.f32.xlu0 %v2841
    %v2843 = vpop.xlane.xlu0 %2842
    %v2844 = vmul.f32 %v2840, %v300
    %v2845 = vmul.f32 %v2843, %v300
    %v2846 = vadd.f32 %v2844, 1e-06
    %v2847 = vadd.f32 %v2845, 1e-06
    %v2848 = vrsqrt.pop %v2846
    %v2849 = vrsqrt.pop %v2847
    %v2850 = vmul.f32 %v2833, %v2848
    %v2851 = vmul.f32 %v2834, %v2849
    %v2852 = vlaneseq
    %v2853 = vshrl.u32 %v2852, 7
    %v2854 = vsub.s32 0, %v2853
    %v2855 = vrot.slane %v2835, %v2854
    %v2856 = vmul.f32 %v2850, %v2855
    %v2857 = vmul.f32 %v2851, %v2855
    %v2858 = vld [vmem:[#allocation2 + $0x24] sm:$0xf]
    %v2859 = vld [vmem:[#allocation2 + $0x4c] sm:$0xf]
    %v2860 = vld [vmem:[#allocation2 + $0x74] sm:$0xf]
    %v2861 = vld [vmem:[#allocation2 + $0x9c] sm:$0xf]
    %v2862 = vpack.c.bf16 %v2857, %v2856
    %v2867 = vunpack.c.l.b16 %v2858
    %v2868 = vunpack.c.l.b16 %v2859
    %v2869 = vunpack.c.l.b16 %v2860
    %v2870 = vunpack.c.l.b16 %v2861
    %v2871 = vpack.c.b16 %v2868, %v2867
    %v2872 = vpack.c.b16 %v2870, %v2869
    %v2876 = vsel %vm293, %v2862, 0
    %2878 = vmatprep.subr.bf16.mxu0 0
    %2879 = vmatpush1.bf16.msra.mxu0 0
    %2880 = vmatprep.subr.bf16.mxu0 0
    %2881 = vmatpush1.bf16.msra.mxu0 0
    %2882 = vmatprep.subr.bf16.mxu0 0
    %2883 = vmatpush1.bf16.msra.mxu0 0
    %2884 = vmatprep.subr.bf16.mxu0 0
    %2885 = vmatpush1.bf16.msra.mxu0 0
    %2886 = vmatprep.subr.bf16.mxu0 0
    %2887 = vmatpush1.bf16.msra.mxu0 0
    %2888 = vmatprep.subr.bf16.mxu0 0
    %2889 = vmatpush1.bf16.msra.mxu0 0
    %2890 = vmatprep.subr.bf16.mxu0 0
    %2891 = vmatpush1.bf16.msra.mxu0 %v2872
    %2892 = vmatprep.subr.bf16.mxu0 0
    %2893 = vmatpush1.bf16.msra.mxu0 %v2871
    %2894 = vmatprep.subr.bf16.mxu0 0
    %2895 = vmatpush2.bf16.msra.mxu0 0
    %2896 = vmatprep.subr.bf16.mxu0 0
    %2897 = vmatpush2.bf16.msra.mxu0 0
    %2898 = vmatprep.subr.bf16.mxu0 0
    %2899 = vmatpush2.bf16.msra.mxu0 0
    %2900 = vmatprep.subr.bf16.mxu0 0
    %2901 = vmatpush2.bf16.msra.mxu0 0
    %2902 = vmatprep.subr.bf16.mxu0 0
    %2903 = vmatpush2.bf16.msra.mxu0 0
    %2904 = vmatprep.subr.bf16.mxu0 0
    %2905 = vmatpush2.bf16.msra.mxu0 0
    %2906 = vmatprep.subr.bf16.mxu0 0
    %2907 = vmatpush2.bf16.msra.mxu0 0
    %2908 = vmatprep.subr.bf16.mxu0 0
    %2909 = vmatpush2.bf16.msra.mxu0 0
    %2910 = vmatprep.mubr.bf16.mxu0 0
    %2911 = vmatmul.mubr.bf16.gmra.mxu0 %v2876
    %v2912 = vpop.f32.mrf.mxu0
    %v2913 = vadd.f32 0.0, %v2912
    %v2914 = vpop.f32.mrf.mxu0
    %v2915 = vpop.f32.mrf.mxu0
    %v2916 = vadd.f32 0.0, %v2915
    %v2917 = vpop.f32.mrf.mxu0
    %2918 = vdwg.mxu0
    %v2919 = vsel %vm77, %v2913, -inf
    %2920 = vmax.xlane.f32.xlu0 %v2919
    %v2921 = vpop.xlane.xlu0 %2920
    %v2922 = vsel %vm77, %v2916, -inf
    %2923 = vmax.xlane.f32.xlu0 %v2922
    %v2924 = vpop.xlane.xlu0 %2923
    %v2925 = vcvt.s32.f32 %v62
    %vm2926 = vcmp.ge.f32.partialorder %v2913, %v2921
    %vm2927 = vcmp.ge.f32.partialorder %v2916, %v2924
    %v2928 = vsel %vm2926, %v2925, 64.0
    %v2929 = vsel %vm2927, %v2925, 64.0
    %v2930 = vsel %vm77, %v2928, inf
    %2931 = vmin.xlane.f32.xlu0 %v2930
    %v2932 = vpop.xlane.xlu0 %2931
    %v2933 = vsel %vm77, %v2929, inf
    %2934 = vmin.xlane.f32.xlu0 %v2933
    %v2935 = vpop.xlane.xlu0 %2934
    %vm2936 = vcmp.eq.f32.partialorder %v2925, %v2932
    %vm2937 = vcmp.eq.f32.partialorder %v2925, %v2935
    %v2938 = vsel %vm2936, 1, 0
    %v2939 = vsel %vm2937, 1, 0
    %v2940 = vcvt.s32.f32 %v2938
    %v2941 = vcvt.s32.f32 %v2939
    %v2942 = vadd.s32 %v269, 8
    %v2943 = vsub.s32 %v269, 2
    %v2944 = vsub.s32 %v2942, 2
    %vm2945 = vcmp.eq.s32.totalorder %v62, %v2943
    %vm2946 = vcmp.eq.s32.totalorder %v62, %v2944
    %v2947 = vand.u32 %v269, 7
    %v2948 = vand.u32 %v2942, 7
    %vm2949 = vcmp.ge.s32.totalorder %v2947, 2
    %vm2950 = vcmp.ge.s32.totalorder %v2948, 2
    %vm2951 = vmand %vm2945, %vm2949
    %vm2952 = vmand %vm2946, %vm2950
    %v2953 = vsel %vm2951, 1, 0
    %v2954 = vsel %vm2952, 1, 0
    %v2955 = vcvt.s32.f32 %v2953
    %v2956 = vcvt.s32.f32 %v2954
    %vm2957 = vcmp.eq.s32.totalorder %v2947, 0
    %vm2958 = vcmp.eq.s32.totalorder %v2948, 0
    %vm2959 = vcmp.eq.s32.totalorder %v62, 2
    %vm2960 = vmand %vm2957, %vm2959
    %vm2961 = vmand %vm2958, %vm2959
    %vm2962 = vcmp.eq.s32.totalorder %v2947, 1
    %vm2963 = vcmp.eq.s32.totalorder %v2948, 1
    %vm2964 = vcmp.eq.s32.totalorder %v62, 3
    %vm2965 = vmand %vm2962, %vm2964
    %vm2966 = vmand %vm2963, %vm2964
    %vm2967 = vmor %vm2960, %vm2965
    %vm2968 = vmor %vm2961, %vm2966
    %v2969 = vsel %vm2967, 1, 0
    %v2970 = vsel %vm2968, 1, 0
    %v2971 = vcvt.s32.f32 %v2969
    %v2972 = vcvt.s32.f32 %v2970
    %v2974 = vsel %vm1316, %v2955, 0
    %v2977 = vsel %vm1316, %v2956, 0
    %2979 = vmatprep.subr.mxu0 0.0
    %2980 = vmatpush1.msra.mxu0 0.0
    %2981 = vmatprep.subr.mxu0 0.0
    %2982 = vmatpush1.msra.mxu0 0.0
    %2983 = vmatprep.subr.mxu0 0.0
    %2984 = vmatpush1.msra.mxu0 0.0
    %2985 = vmatprep.subr.mxu0 0.0
    %2986 = vmatpush1.msra.mxu0 0.0
    %2987 = vmatprep.subr.mxu0 0.0
    %2988 = vmatpush1.msra.mxu0 0.0
    %2989 = vmatprep.subr.mxu0 0.0
    %2990 = vmatpush1.msra.mxu0 0.0
    %2991 = vmatprep.subr.mxu0 0.0
    %2992 = vmatpush1.msra.mxu0 0.0
    %2993 = vmatprep.subr.mxu0 0.0
    %2994 = vmatpush1.msra.mxu0 0.0
    %2995 = vmatprep.subr.mxu0 0.0
    %2996 = vmatpush1.msra.mxu0 0.0
    %2997 = vmatprep.subr.mxu0 0.0
    %2998 = vmatpush1.msra.mxu0 0.0
    %2999 = vmatprep.subr.mxu0 0.0
    %3000 = vmatpush1.msra.mxu0 0.0
    %3001 = vmatprep.subr.mxu0 0.0
    %3002 = vmatpush1.msra.mxu0 0.0
    %3003 = vmatprep.subr.mxu0 0.0
    %3004 = vmatpush1.msra.mxu0 0.0
    %3005 = vmatprep.subr.mxu0 0.0
    %3006 = vmatpush1.msra.mxu0 0.0
    %3007 = vmatprep.subr.mxu0 0.0
    %3008 = vmatpush1.msra.mxu0 %v2941
    %3009 = vmatprep.subr.mxu0 0.0
    %3010 = vmatpush1.msra.mxu0 %v2940
    %3011 = vmatprep.subr.mxu0 0.0
    %3012 = vmatpush2.msra.mxu0 0.0
    %3013 = vmatprep.subr.mxu0 0.0
    %3014 = vmatpush2.msra.mxu0 0.0
    %3015 = vmatprep.subr.mxu0 0.0
    %3016 = vmatpush2.msra.mxu0 0.0
    %3017 = vmatprep.subr.mxu0 0.0
    %3018 = vmatpush2.msra.mxu0 0.0
    %3019 = vmatprep.subr.mxu0 0.0
    %3020 = vmatpush2.msra.mxu0 0.0
    %3021 = vmatprep.subr.mxu0 0.0
    %3022 = vmatpush2.msra.mxu0 0.0
    %3023 = vmatprep.subr.mxu0 0.0
    %3024 = vmatpush2.msra.mxu0 0.0
    %3025 = vmatprep.subr.mxu0 0.0
    %3026 = vmatpush2.msra.mxu0 0.0
    %3027 = vmatprep.subr.mxu0 0.0
    %3028 = vmatpush2.msra.mxu0 0.0
    %3029 = vmatprep.subr.mxu0 0.0
    %3030 = vmatpush2.msra.mxu0 0.0
    %3031 = vmatprep.subr.mxu0 0.0
    %3032 = vmatpush2.msra.mxu0 0.0
    %3033 = vmatprep.subr.mxu0 0.0
    %3034 = vmatpush2.msra.mxu0 0.0
    %3035 = vmatprep.subr.mxu0 0.0
    %3036 = vmatpush2.msra.mxu0 0.0
    %3037 = vmatprep.subr.mxu0 0.0
    %3038 = vmatpush2.msra.mxu0 0.0
    %3039 = vmatprep.subr.mxu0 0.0
    %3040 = vmatpush2.msra.mxu0 0.0
    %3041 = vmatprep.subr.mxu0 0.0
    %3042 = vmatpush2.msra.mxu0 0.0
    %3043 = vmatprep.mubr.f32.mxu0 0.0
    %3044 = vmatmul.mubr.f32.gmra.mxu0 %v2974
    %v3045 = vpop.f32.mrf.mxu0
    %v3046 = vadd.f32 %v2971, %v3045
    %v3047 = vpop.f32.mrf.mxu0
    %3048 = vmatprep.mubr.f32.mxu0 0.0
    %3049 = vmatmul.mubr.f32.gmra.mxu0 %v2977
    %v3050 = vpop.f32.mrf.mxu0
    %v3051 = vadd.f32 %v2972, %v3050
    %v3052 = vpop.f32.mrf.mxu0
    %3053 = vdwg.mxu0
    %v3055 = vsel %vm77, %v3046, 0
    %v3058 = vsel %vm77, %v3051, 0
    %3060 = vmatprep.subr.mxu0 0.0
    %3061 = vmatpush1.msra.mxu0 0.0
    %3062 = vmatprep.subr.mxu0 0.0
    %3063 = vmatpush1.msra.mxu0 0.0
    %3064 = vmatprep.subr.mxu0 0.0
    %3065 = vmatpush1.msra.mxu0 0.0
    %3066 = vmatprep.subr.mxu0 0.0
    %3067 = vmatpush1.msra.mxu0 0.0
    %3068 = vmatprep.subr.mxu0 0.0
    %3069 = vmatpush1.msra.mxu0 0.0
    %3070 = vmatprep.subr.mxu0 0.0
    %3071 = vmatpush1.msra.mxu0 0.0
    %3072 = vmatprep.subr.mxu0 0.0
    %3073 = vmatpush1.msra.mxu0 0.0
    %3074 = vmatprep.subr.mxu0 0.0
    %3075 = vmatpush1.msra.mxu0 0.0
    %3076 = vmatprep.subr.mxu0 0.0
    %3077 = vmatpush1.msra.mxu0 %v60
    %3078 = vmatprep.subr.mxu0 0.0
    %3079 = vmatpush1.msra.mxu0 %v59
    %3080 = vmatprep.subr.mxu0 0.0
    %3081 = vmatpush1.msra.mxu0 %v58
    %3082 = vmatprep.subr.mxu0 0.0
    %3083 = vmatpush1.msra.mxu0 %v57
    %3084 = vmatprep.subr.mxu0 0.0
    %3085 = vmatpush1.msra.mxu0 %v56
    %3086 = vmatprep.subr.mxu0 0.0
    %3087 = vmatpush1.msra.mxu0 %v55
    %3088 = vmatprep.subr.mxu0 0.0
    %3089 = vmatpush1.msra.mxu0 %v54
    %3090 = vmatprep.subr.mxu0 0.0
    %3091 = vmatpush1.msra.mxu0 %v53
    %3092 = vmatprep.subr.mxu0 0.0
    %3093 = vmatpush2.msra.mxu0 0.0
    %3094 = vmatprep.subr.mxu0 0.0
    %3095 = vmatpush2.msra.mxu0 0.0
    %3096 = vmatprep.subr.mxu0 0.0
    %3097 = vmatpush2.msra.mxu0 0.0
    %3098 = vmatprep.subr.mxu0 0.0
    %3099 = vmatpush2.msra.mxu0 0.0
    %3100 = vmatprep.subr.mxu0 0.0
    %3101 = vmatpush2.msra.mxu0 0.0
    %3102 = vmatprep.subr.mxu0 0.0
    %3103 = vmatpush2.msra.mxu0 0.0
    %3104 = vmatprep.subr.mxu0 0.0
    %3105 = vmatpush2.msra.mxu0 0.0
    %3106 = vmatprep.subr.mxu0 0.0
    %3107 = vmatpush2.msra.mxu0 0.0
    %3108 = vmatprep.subr.mxu0 0.0
    %3109 = vmatpush2.msra.mxu0 0.0
    %3110 = vmatprep.subr.mxu0 0.0
    %3111 = vmatpush2.msra.mxu0 0.0
    %3112 = vmatprep.subr.mxu0 0.0
    %3113 = vmatpush2.msra.mxu0 0.0
    %3114 = vmatprep.subr.mxu0 0.0
    %3115 = vmatpush2.msra.mxu0 0.0
    %3116 = vmatprep.subr.mxu0 0.0
    %3117 = vmatpush2.msra.mxu0 0.0
    %3118 = vmatprep.subr.mxu0 0.0
    %3119 = vmatpush2.msra.mxu0 0.0
    %3120 = vmatprep.subr.mxu0 0.0
    %3121 = vmatpush2.msra.mxu0 0.0
    %3122 = vmatprep.subr.mxu0 0.0
    %3123 = vmatpush2.msra.mxu0 0.0
    %3124 = vmatprep.mubr.f32.mxu0 0.0
    %3125 = vmatmul.mubr.f32.gmra.mxu0 %v3055
    %v3126 = vpop.f32.mrf.mxu0
    %v3127 = vadd.f32 0.0, %v3126
    %v3128 = vpop.f32.mrf.mxu0
    %3129 = vmatprep.mubr.f32.mxu0 0.0
    %3130 = vmatmul.mubr.f32.gmra.mxu0 %v3058
    %v3131 = vpop.f32.mrf.mxu0
    %v3132 = vadd.f32 0.0, %v3131
    %v3133 = vpop.f32.mrf.mxu0
    %3134 = vdwg.mxu0
    %v3135 = vld [vmem:[%s3] sm:$0x1]
    %v3136 = vmul.f32 %v3127, %v3127
    %v3137 = vmul.f32 %v3132, %v3132
    %v3138 = vsel %vm293, %v3136, 0.0
    %3139 = vadd.xlane.f32.xlu0 %v3138
    %v3140 = vpop.xlane.xlu0 %3139
    %v3141 = vsel %vm293, %v3137, 0.0
    %3142 = vadd.xlane.f32.xlu0 %v3141
    %v3143 = vpop.xlane.xlu0 %3142
    %v3144 = vmul.f32 %v3140, %v300
    %v3145 = vmul.f32 %v3143, %v300
    %v3146 = vadd.f32 %v3144, 1e-06
    %v3147 = vadd.f32 %v3145, 1e-06
    %v3148 = vrsqrt.pop %v3146
    %v3149 = vrsqrt.pop %v3147
    %v3150 = vmul.f32 %v3127, %v3148
    %v3151 = vmul.f32 %v3132, %v3149
    %v3152 = vlaneseq
    %v3153 = vshrl.u32 %v3152, 7
    %v3154 = vsub.s32 0, %v3153
    %v3155 = vrot.slane %v3135, %v3154
    %v3156 = vmul.f32 %v3150, %v3155
    %v3157 = vmul.f32 %v3151, %v3155
    %v3158 = vld [vmem:[#allocation2] sm:$0xf]
    %v3159 = vld [vmem:[#allocation2 + $0x28] sm:$0xf]
    %v3160 = vld [vmem:[#allocation2 + $0x50] sm:$0xf]
    %v3161 = vld [vmem:[#allocation2 + $0x78] sm:$0xf]
    %v3162 = vpack.c.bf16 %v3157, %v3156
    %v3167 = vunpack.c.l.b16 %v3158
    %v3168 = vunpack.c.l.b16 %v3159
    %v3169 = vunpack.c.l.b16 %v3160
    %v3170 = vunpack.c.l.b16 %v3161
    %v3171 = vpack.c.b16 %v3168, %v3167
    %v3172 = vpack.c.b16 %v3170, %v3169
    %v3176 = vsel %vm293, %v3162, 0
    %3178 = vmatprep.subr.bf16.mxu0 0
    %3179 = vmatpush1.bf16.msra.mxu0 0
    %3180 = vmatprep.subr.bf16.mxu0 0
    %3181 = vmatpush1.bf16.msra.mxu0 0
    %3182 = vmatprep.subr.bf16.mxu0 0
    %3183 = vmatpush1.bf16.msra.mxu0 0
    %3184 = vmatprep.subr.bf16.mxu0 0
    %3185 = vmatpush1.bf16.msra.mxu0 0
    %3186 = vmatprep.subr.bf16.mxu0 0
    %3187 = vmatpush1.bf16.msra.mxu0 0
    %3188 = vmatprep.subr.bf16.mxu0 0
    %3189 = vmatpush1.bf16.msra.mxu0 0
    %3190 = vmatprep.subr.bf16.mxu0 0
    %3191 = vmatpush1.bf16.msra.mxu0 %v3172
    %3192 = vmatprep.subr.bf16.mxu0 0
    %3193 = vmatpush1.bf16.msra.mxu0 %v3171
    %3194 = vmatprep.subr.bf16.mxu0 0
    %3195 = vmatpush2.bf16.msra.mxu0 0
    %3196 = vmatprep.subr.bf16.mxu0 0
    %3197 = vmatpush2.bf16.msra.mxu0 0
    %3198 = vmatprep.subr.bf16.mxu0 0
    %3199 = vmatpush2.bf16.msra.mxu0 0
    %3200 = vmatprep.subr.bf16.mxu0 0
    %3201 = vmatpush2.bf16.msra.mxu0 0
    %3202 = vmatprep.subr.bf16.mxu0 0
    %3203 = vmatpush2.bf16.msra.mxu0 0
    %3204 = vmatprep.subr.bf16.mxu0 0
    %3205 = vmatpush2.bf16.msra.mxu0 0
    %3206 = vmatprep.subr.bf16.mxu0 0
    %3207 = vmatpush2.bf16.msra.mxu0 0
    %3208 = vmatprep.subr.bf16.mxu0 0
    %3209 = vmatpush2.bf16.msra.mxu0 0
    %3210 = vmatprep.mubr.bf16.mxu0 0
    %3211 = vmatmul.mubr.bf16.gmra.mxu0 %v3176
    %v3212 = vpop.f32.mrf.mxu0
    %v3213 = vadd.f32 0.0, %v3212
    %v3214 = vpop.f32.mrf.mxu0
    %v3215 = vpop.f32.mrf.mxu0
    %v3216 = vadd.f32 0.0, %v3215
    %v3217 = vpop.f32.mrf.mxu0
    %3218 = vdwg.mxu0
    %3221 = vrot.lane.b32.xlu0 %v3213, 120
    %v3222 = vpop.permute.xlu0 %3221
    %3223 = vrot.lane.b32.xlu0 %v3216, 120
    %v3224 = vpop.permute.xlu0 %3223
    %3227 = vrot.lane.b32.xlu0 %v3213, 112
    %v3228 = vpop.permute.xlu0 %3227
    %3229 = vrot.lane.b32.xlu0 %v3216, 112
    %v3230 = vpop.permute.xlu0 %3229
    %3233 = vrot.lane.b32.xlu0 %v3213, 104
    %v3234 = vpop.permute.xlu0 %3233
    %3235 = vrot.lane.b32.xlu0 %v3216, 104
    %v3236 = vpop.permute.xlu0 %3235
    %v3239 = vpack.c.bf16 %v3213, %v3213
    %v3240 = vpack.c.bf16 %v3216, %v3216
    %v3241 = vpack.c.bf16 %v3222, %v3222
    %v3242 = vpack.c.bf16 %v3224, %v3224
    %v3243 = vpack.c.bf16 %v3228, %v3228
    %v3244 = vpack.c.bf16 %v3230, %v3230
    %v3245 = vpack.c.bf16 %v3234, %v3234
    %v3246 = vpack.c.bf16 %v3236, %v3236
    %3248 = vrot.lane.b32.xlu0 %v3239, 96
    %v3249 = vpop.permute.xlu0 %3248
    %v3251 = vsel %vm419, %v3239, 0
    %v3254 = vsel %vm419, %v3249, 0
    %3256 = vmatprep.subr.bf16.mxu0 0
    %3257 = vmatpush1.bf16.xpose.msra.mxu0 0
    %3258 = vmatprep.subr.bf16.mxu0 0
    %3259 = vmatpush1.bf16.xpose.msra.mxu0 0
    %3260 = vmatprep.subr.bf16.mxu0 0
    %3261 = vmatpush1.bf16.xpose.msra.mxu0 0
    %3262 = vmatprep.subr.bf16.mxu0 0
    %3263 = vmatpush1.bf16.xpose.msra.mxu0 0
    %3264 = vmatprep.subr.bf16.mxu0 0
    %3265 = vmatpush1.bf16.xpose.msra.mxu0 0
    %3266 = vmatprep.subr.bf16.mxu0 0
    %3267 = vmatpush1.bf16.xpose.msra.mxu0 0
    %3268 = vmatprep.subr.bf16.mxu0 0
    %3269 = vmatpush1.bf16.xpose.msra.mxu0 0
    %3270 = vmatprep.subr.bf16.mxu0 0
    %3271 = vmatpush1.bf16.xpose.msra.mxu0 %v3254
    %3272 = vmatprep.subr.bf16.mxu0 0
    %3273 = vmatpush2.bf16.xpose.msra.mxu0 0
    %3274 = vmatprep.subr.bf16.mxu0 0
    %3275 = vmatpush2.bf16.xpose.msra.mxu0 0
    %3276 = vmatprep.subr.bf16.mxu0 0
    %3277 = vmatpush2.bf16.xpose.msra.mxu0 0
    %3278 = vmatprep.subr.bf16.mxu0 0
    %3279 = vmatpush2.bf16.xpose.msra.mxu0 0
    %3280 = vmatprep.subr.bf16.mxu0 0
    %3281 = vmatpush2.bf16.xpose.msra.mxu0 0
    %3282 = vmatprep.subr.bf16.mxu0 0
    %3283 = vmatpush2.bf16.xpose.msra.mxu0 0
    %3284 = vmatprep.subr.bf16.mxu0 0
    %3285 = vmatpush2.bf16.xpose.msra.mxu0 0
    %3286 = vmatprep.subr.bf16.mxu0 0
    %3287 = vmatpush2.bf16.xpose.msra.mxu0 0
    %3288 = vmatprep.mubr.bf16.mxu0 0
    %3289 = vmatmul.mubr.bf16.gmra.mxu0 %v3251
    %v3290 = vpop.f32.mrf.mxu0
    %v3291 = vadd.f32 0.0, %v3290
    %v3292 = vpop.f32.mrf.mxu0
    %v3293 = vpop.f32.mrf.mxu0
    %v3294 = vpop.f32.mrf.mxu0
    %3295 = vdwg.mxu0
    %3297 = vrot.lane.b32.xlu0 %v3240, 96
    %v3298 = vpop.permute.xlu0 %3297
    %v3300 = vsel %vm419, %v3240, 0
    %v3303 = vsel %vm419, %v3298, 0
    %3305 = vmatprep.subr.bf16.mxu0 0
    %3306 = vmatpush1.bf16.xpose.msra.mxu0 0
    %3307 = vmatprep.subr.bf16.mxu0 0
    %3308 = vmatpush1.bf16.xpose.msra.mxu0 0
    %3309 = vmatprep.subr.bf16.mxu0 0
    %3310 = vmatpush1.bf16.xpose.msra.mxu0 0
    %3311 = vmatprep.subr.bf16.mxu0 0
    %3312 = vmatpush1.bf16.xpose.msra.mxu0 0
    %3313 = vmatprep.subr.bf16.mxu0 0
    %3314 = vmatpush1.bf16.xpose.msra.mxu0 0
    %3315 = vmatprep.subr.bf16.mxu0 0
    %3316 = vmatpush1.bf16.xpose.msra.mxu0 0
    %3317 = vmatprep.subr.bf16.mxu0 0
    %3318 = vmatpush1.bf16.xpose.msra.mxu0 0
    %3319 = vmatprep.subr.bf16.mxu0 0
    %3320 = vmatpush1.bf16.xpose.msra.mxu0 %v3303
    %3321 = vmatprep.subr.bf16.mxu0 0
    %3322 = vmatpush2.bf16.xpose.msra.mxu0 0
    %3323 = vmatprep.subr.bf16.mxu0 0
    %3324 = vmatpush2.bf16.xpose.msra.mxu0 0
    %3325 = vmatprep.subr.bf16.mxu0 0
    %3326 = vmatpush2.bf16.xpose.msra.mxu0 0
    %3327 = vmatprep.subr.bf16.mxu0 0
    %3328 = vmatpush2.bf16.xpose.msra.mxu0 0
    %3329 = vmatprep.subr.bf16.mxu0 0
    %3330 = vmatpush2.bf16.xpose.msra.mxu0 0
    %3331 = vmatprep.subr.bf16.mxu0 0
    %3332 = vmatpush2.bf16.xpose.msra.mxu0 0
    %3333 = vmatprep.subr.bf16.mxu0 0
    %3334 = vmatpush2.bf16.xpose.msra.mxu0 0
    %3335 = vmatprep.subr.bf16.mxu0 0
    %3336 = vmatpush2.bf16.xpose.msra.mxu0 0
    %3337 = vmatprep.mubr.bf16.mxu0 0
    %3338 = vmatmul.mubr.bf16.gmra.mxu0 %v3300
    %v3339 = vpop.f32.mrf.mxu0
    %v3340 = vadd.f32 0.0, %v3339
    %v3341 = vpop.f32.mrf.mxu0
    %v3342 = vpop.f32.mrf.mxu0
    %v3343 = vpop.f32.mrf.mxu0
    %3344 = vdwg.mxu0
    %3346 = vrot.lane.b32.xlu0 %v3241, 96
    %v3347 = vpop.permute.xlu0 %3346
    %v3349 = vsel %vm419, %v3241, 0
    %v3352 = vsel %vm419, %v3347, 0
    %3354 = vmatprep.subr.bf16.mxu0 0
    %3355 = vmatpush1.bf16.xpose.msra.mxu0 0
    %3356 = vmatprep.subr.bf16.mxu0 0
    %3357 = vmatpush1.bf16.xpose.msra.mxu0 0
    %3358 = vmatprep.subr.bf16.mxu0 0
    %3359 = vmatpush1.bf16.xpose.msra.mxu0 0
    %3360 = vmatprep.subr.bf16.mxu0 0
    %3361 = vmatpush1.bf16.xpose.msra.mxu0 0
    %3362 = vmatprep.subr.bf16.mxu0 0
    %3363 = vmatpush1.bf16.xpose.msra.mxu0 0
    %3364 = vmatprep.subr.bf16.mxu0 0
    %3365 = vmatpush1.bf16.xpose.msra.mxu0 0
    %3366 = vmatprep.subr.bf16.mxu0 0
    %3367 = vmatpush1.bf16.xpose.msra.mxu0 0
    %3368 = vmatprep.subr.bf16.mxu0 0
    %3369 = vmatpush1.bf16.xpose.msra.mxu0 %v3352
    %3370 = vmatprep.subr.bf16.mxu0 0
    %3371 = vmatpush2.bf16.xpose.msra.mxu0 0
    %3372 = vmatprep.subr.bf16.mxu0 0
    %3373 = vmatpush2.bf16.xpose.msra.mxu0 0
    %3374 = vmatprep.subr.bf16.mxu0 0
    %3375 = vmatpush2.bf16.xpose.msra.mxu0 0
    %3376 = vmatprep.subr.bf16.mxu0 0
    %3377 = vmatpush2.bf16.xpose.msra.mxu0 0
    %3378 = vmatprep.subr.bf16.mxu0 0
    %3379 = vmatpush2.bf16.xpose.msra.mxu0 0
    %3380 = vmatprep.subr.bf16.mxu0 0
    %3381 = vmatpush2.bf16.xpose.msra.mxu0 0
    %3382 = vmatprep.subr.bf16.mxu0 0
    %3383 = vmatpush2.bf16.xpose.msra.mxu0 0
    %3384 = vmatprep.subr.bf16.mxu0 0
    %3385 = vmatpush2.bf16.xpose.msra.mxu0 0
    %3386 = vmatprep.mubr.bf16.mxu0 0
    %3387 = vmatmul.mubr.bf16.gmra.mxu0 %v3349
    %v3388 = vpop.f32.mrf.mxu0
    %v3389 = vadd.f32 0.0, %v3388
    %v3390 = vpop.f32.mrf.mxu0
    %v3391 = vpop.f32.mrf.mxu0
    %v3392 = vpop.f32.mrf.mxu0
    %3393 = vdwg.mxu0
    %3395 = vrot.lane.b32.xlu0 %v3242, 96
    %v3396 = vpop.permute.xlu0 %3395
    %v3398 = vsel %vm419, %v3242, 0
    %v3401 = vsel %vm419, %v3396, 0
    %3403 = vmatprep.subr.bf16.mxu0 0
    %3404 = vmatpush1.bf16.xpose.msra.mxu0 0
    %3405 = vmatprep.subr.bf16.mxu0 0
    %3406 = vmatpush1.bf16.xpose.msra.mxu0 0
    %3407 = vmatprep.subr.bf16.mxu0 0
    %3408 = vmatpush1.bf16.xpose.msra.mxu0 0
    %3409 = vmatprep.subr.bf16.mxu0 0
    %3410 = vmatpush1.bf16.xpose.msra.mxu0 0
    %3411 = vmatprep.subr.bf16.mxu0 0
    %3412 = vmatpush1.bf16.xpose.msra.mxu0 0
    %3413 = vmatprep.subr.bf16.mxu0 0
    %3414 = vmatpush1.bf16.xpose.msra.mxu0 0
    %3415 = vmatprep.subr.bf16.mxu0 0
    %3416 = vmatpush1.bf16.xpose.msra.mxu0 0
    %3417 = vmatprep.subr.bf16.mxu0 0
    %3418 = vmatpush1.bf16.xpose.msra.mxu0 %v3401
    %3419 = vmatprep.subr.bf16.mxu0 0
    %3420 = vmatpush2.bf16.xpose.msra.mxu0 0
    %3421 = vmatprep.subr.bf16.mxu0 0
    %3422 = vmatpush2.bf16.xpose.msra.mxu0 0
    %3423 = vmatprep.subr.bf16.mxu0 0
    %3424 = vmatpush2.bf16.xpose.msra.mxu0 0
    %3425 = vmatprep.subr.bf16.mxu0 0
    %3426 = vmatpush2.bf16.xpose.msra.mxu0 0
    %3427 = vmatprep.subr.bf16.mxu0 0
    %3428 = vmatpush2.bf16.xpose.msra.mxu0 0
    %3429 = vmatprep.subr.bf16.mxu0 0
    %3430 = vmatpush2.bf16.xpose.msra.mxu0 0
    %3431 = vmatprep.subr.bf16.mxu0 0
    %3432 = vmatpush2.bf16.xpose.msra.mxu0 0
    %3433 = vmatprep.subr.bf16.mxu0 0
    %3434 = vmatpush2.bf16.xpose.msra.mxu0 0
    %3435 = vmatprep.mubr.bf16.mxu0 0
    %3436 = vmatmul.mubr.bf16.gmra.mxu0 %v3398
    %v3437 = vpop.f32.mrf.mxu0
    %v3438 = vadd.f32 0.0, %v3437
    %v3439 = vpop.f32.mrf.mxu0
    %v3440 = vpop.f32.mrf.mxu0
    %v3441 = vpop.f32.mrf.mxu0
    %3442 = vdwg.mxu0
    %3444 = vrot.lane.b32.xlu0 %v3243, 96
    %v3445 = vpop.permute.xlu0 %3444
    %v3447 = vsel %vm419, %v3243, 0
    %v3450 = vsel %vm419, %v3445, 0
    %3452 = vmatprep.subr.bf16.mxu0 0
    %3453 = vmatpush1.bf16.xpose.msra.mxu0 0
    %3454 = vmatprep.subr.bf16.mxu0 0
    %3455 = vmatpush1.bf16.xpose.msra.mxu0 0
    %3456 = vmatprep.subr.bf16.mxu0 0
    %3457 = vmatpush1.bf16.xpose.msra.mxu0 0
    %3458 = vmatprep.subr.bf16.mxu0 0
    %3459 = vmatpush1.bf16.xpose.msra.mxu0 0
    %3460 = vmatprep.subr.bf16.mxu0 0
    %3461 = vmatpush1.bf16.xpose.msra.mxu0 0
    %3462 = vmatprep.subr.bf16.mxu0 0
    %3463 = vmatpush1.bf16.xpose.msra.mxu0 0
    %3464 = vmatprep.subr.bf16.mxu0 0
    %3465 = vmatpush1.bf16.xpose.msra.mxu0 0
    %3466 = vmatprep.subr.bf16.mxu0 0
    %3467 = vmatpush1.bf16.xpose.msra.mxu0 %v3450
    %3468 = vmatprep.subr.bf16.mxu0 0
    %3469 = vmatpush2.bf16.xpose.msra.mxu0 0
    %3470 = vmatprep.subr.bf16.mxu0 0
    %3471 = vmatpush2.bf16.xpose.msra.mxu0 0
    %3472 = vmatprep.subr.bf16.mxu0 0
    %3473 = vmatpush2.bf16.xpose.msra.mxu0 0
    %3474 = vmatprep.subr.bf16.mxu0 0
    %3475 = vmatpush2.bf16.xpose.msra.mxu0 0
    %3476 = vmatprep.subr.bf16.mxu0 0
    %3477 = vmatpush2.bf16.xpose.msra.mxu0 0
    %3478 = vmatprep.subr.bf16.mxu0 0
    %3479 = vmatpush2.bf16.xpose.msra.mxu0 0
    %3480 = vmatprep.subr.bf16.mxu0 0
    %3481 = vmatpush2.bf16.xpose.msra.mxu0 0
    %3482 = vmatprep.subr.bf16.mxu0 0
    %3483 = vmatpush2.bf16.xpose.msra.mxu0 0
    %3484 = vmatprep.mubr.bf16.mxu0 0
    %3485 = vmatmul.mubr.bf16.gmra.mxu0 %v3447
    %v3486 = vpop.f32.mrf.mxu0
    %v3487 = vadd.f32 0.0, %v3486
    %v3488 = vpop.f32.mrf.mxu0
    %v3489 = vpop.f32.mrf.mxu0
    %v3490 = vpop.f32.mrf.mxu0
    %3491 = vdwg.mxu0
    %3493 = vrot.lane.b32.xlu0 %v3244, 96
    %v3494 = vpop.permute.xlu0 %3493
    %v3496 = vsel %vm419, %v3244, 0
    %v3499 = vsel %vm419, %v3494, 0
    %3501 = vmatprep.subr.bf16.mxu0 0
    %3502 = vmatpush1.bf16.xpose.msra.mxu0 0
    %3503 = vmatprep.subr.bf16.mxu0 0
    %3504 = vmatpush1.bf16.xpose.msra.mxu0 0
    %3505 = vmatprep.subr.bf16.mxu0 0
    %3506 = vmatpush1.bf16.xpose.msra.mxu0 0
    %3507 = vmatprep.subr.bf16.mxu0 0
    %3508 = vmatpush1.bf16.xpose.msra.mxu0 0
    %3509 = vmatprep.subr.bf16.mxu0 0
    %3510 = vmatpush1.bf16.xpose.msra.mxu0 0
    %3511 = vmatprep.subr.bf16.mxu0 0
    %3512 = vmatpush1.bf16.xpose.msra.mxu0 0
    %3513 = vmatprep.subr.bf16.mxu0 0
    %3514 = vmatpush1.bf16.xpose.msra.mxu0 0
    %3515 = vmatprep.subr.bf16.mxu0 0
    %3516 = vmatpush1.bf16.xpose.msra.mxu0 %v3499
    %3517 = vmatprep.subr.bf16.mxu0 0
    %3518 = vmatpush2.bf16.xpose.msra.mxu0 0
    %3519 = vmatprep.subr.bf16.mxu0 0
    %3520 = vmatpush2.bf16.xpose.msra.mxu0 0
    %3521 = vmatprep.subr.bf16.mxu0 0
    %3522 = vmatpush2.bf16.xpose.msra.mxu0 0
    %3523 = vmatprep.subr.bf16.mxu0 0
    %3524 = vmatpush2.bf16.xpose.msra.mxu0 0
    %3525 = vmatprep.subr.bf16.mxu0 0
    %3526 = vmatpush2.bf16.xpose.msra.mxu0 0
    %3527 = vmatprep.subr.bf16.mxu0 0
    %3528 = vmatpush2.bf16.xpose.msra.mxu0 0
    %3529 = vmatprep.subr.bf16.mxu0 0
    %3530 = vmatpush2.bf16.xpose.msra.mxu0 0
    %3531 = vmatprep.subr.bf16.mxu0 0
    %3532 = vmatpush2.bf16.xpose.msra.mxu0 0
    %3533 = vmatprep.mubr.bf16.mxu0 0
    %3534 = vmatmul.mubr.bf16.gmra.mxu0 %v3496
    %v3535 = vpop.f32.mrf.mxu0
    %v3536 = vadd.f32 0.0, %v3535
    %v3537 = vpop.f32.mrf.mxu0
    %v3538 = vpop.f32.mrf.mxu0
    %v3539 = vpop.f32.mrf.mxu0
    %3540 = vdwg.mxu0
    %3542 = vrot.lane.b32.xlu0 %v3245, 96
    %v3543 = vpop.permute.xlu0 %3542
    %v3545 = vsel %vm419, %v3245, 0
    %v3548 = vsel %vm419, %v3543, 0
    %3550 = vmatprep.subr.bf16.mxu0 0
    %3551 = vmatpush1.bf16.xpose.msra.mxu0 0
    %3552 = vmatprep.subr.bf16.mxu0 0
    %3553 = vmatpush1.bf16.xpose.msra.mxu0 0
    %3554 = vmatprep.subr.bf16.mxu0 0
    %3555 = vmatpush1.bf16.xpose.msra.mxu0 0
    %3556 = vmatprep.subr.bf16.mxu0 0
    %3557 = vmatpush1.bf16.xpose.msra.mxu0 0
    %3558 = vmatprep.subr.bf16.mxu0 0
    %3559 = vmatpush1.bf16.xpose.msra.mxu0 0
    %3560 = vmatprep.subr.bf16.mxu0 0
    %3561 = vmatpush1.bf16.xpose.msra.mxu0 0
    %3562 = vmatprep.subr.bf16.mxu0 0
    %3563 = vmatpush1.bf16.xpose.msra.mxu0 0
    %3564 = vmatprep.subr.bf16.mxu0 0
    %3565 = vmatpush1.bf16.xpose.msra.mxu0 %v3548
    %3566 = vmatprep.subr.bf16.mxu0 0
    %3567 = vmatpush2.bf16.xpose.msra.mxu0 0
    %3568 = vmatprep.subr.bf16.mxu0 0
    %3569 = vmatpush2.bf16.xpose.msra.mxu0 0
    %3570 = vmatprep.subr.bf16.mxu0 0
    %3571 = vmatpush2.bf16.xpose.msra.mxu0 0
    %3572 = vmatprep.subr.bf16.mxu0 0
    %3573 = vmatpush2.bf16.xpose.msra.mxu0 0
    %3574 = vmatprep.subr.bf16.mxu0 0
    %3575 = vmatpush2.bf16.xpose.msra.mxu0 0
    %3576 = vmatprep.subr.bf16.mxu0 0
    %3577 = vmatpush2.bf16.xpose.msra.mxu0 0
    %3578 = vmatprep.subr.bf16.mxu0 0
    %3579 = vmatpush2.bf16.xpose.msra.mxu0 0
    %3580 = vmatprep.subr.bf16.mxu0 0
    %3581 = vmatpush2.bf16.xpose.msra.mxu0 0
    %3582 = vmatprep.mubr.bf16.mxu0 0
    %3583 = vmatmul.mubr.bf16.gmra.mxu0 %v3545
    %v3584 = vpop.f32.mrf.mxu0
    %v3585 = vadd.f32 0.0, %v3584
    %v3586 = vpop.f32.mrf.mxu0
    %v3587 = vpop.f32.mrf.mxu0
    %v3588 = vpop.f32.mrf.mxu0
    %3589 = vdwg.mxu0
    %3591 = vrot.lane.b32.xlu0 %v3246, 96
    %v3592 = vpop.permute.xlu0 %3591
    %v3594 = vsel %vm419, %v3246, 0
    %v3597 = vsel %vm419, %v3592, 0
    %3599 = vmatprep.subr.bf16.mxu0 0
    %3600 = vmatpush1.bf16.xpose.msra.mxu0 0
    %3601 = vmatprep.subr.bf16.mxu0 0
    %3602 = vmatpush1.bf16.xpose.msra.mxu0 0
    %3603 = vmatprep.subr.bf16.mxu0 0
    %3604 = vmatpush1.bf16.xpose.msra.mxu0 0
    %3605 = vmatprep.subr.bf16.mxu0 0
    %3606 = vmatpush1.bf16.xpose.msra.mxu0 0
    %3607 = vmatprep.subr.bf16.mxu0 0
    %3608 = vmatpush1.bf16.xpose.msra.mxu0 0
    %3609 = vmatprep.subr.bf16.mxu0 0
    %3610 = vmatpush1.bf16.xpose.msra.mxu0 0
    %3611 = vmatprep.subr.bf16.mxu0 0
    %3612 = vmatpush1.bf16.xpose.msra.mxu0 0
    %3613 = vmatprep.subr.bf16.mxu0 0
    %3614 = vmatpush1.bf16.xpose.msra.mxu0 %v3597
    %3615 = vmatprep.subr.bf16.mxu0 0
    %3616 = vmatpush2.bf16.xpose.msra.mxu0 0
    %3617 = vmatprep.subr.bf16.mxu0 0
    %3618 = vmatpush2.bf16.xpose.msra.mxu0 0
    %3619 = vmatprep.subr.bf16.mxu0 0
    %3620 = vmatpush2.bf16.xpose.msra.mxu0 0
    %3621 = vmatprep.subr.bf16.mxu0 0
    %3622 = vmatpush2.bf16.xpose.msra.mxu0 0
    %3623 = vmatprep.subr.bf16.mxu0 0
    %3624 = vmatpush2.bf16.xpose.msra.mxu0 0
    %3625 = vmatprep.subr.bf16.mxu0 0
    %3626 = vmatpush2.bf16.xpose.msra.mxu0 0
    %3627 = vmatprep.subr.bf16.mxu0 0
    %3628 = vmatpush2.bf16.xpose.msra.mxu0 0
    %3629 = vmatprep.subr.bf16.mxu0 0
    %3630 = vmatpush2.bf16.xpose.msra.mxu0 0
    %3631 = vmatprep.mubr.bf16.mxu0 0
    %3632 = vmatmul.mubr.bf16.gmra.mxu0 %v3594
    %v3633 = vpop.f32.mrf.mxu0
    %v3634 = vadd.f32 0.0, %v3633
    %v3635 = vpop.f32.mrf.mxu0
    %v3636 = vpop.f32.mrf.mxu0
    %v3637 = vpop.f32.mrf.mxu0
    %3638 = vdwg.mxu0
    %v3639 = vsel %vm419, %v3291, -inf
    %3640 = vmax.xlane.f32.xlu0 %v3639
    %v3641 = vpop.xlane.xlu0 %3640
    %v3642 = vsel %vm419, %v3340, -inf
    %3643 = vmax.xlane.f32.xlu0 %v3642
    %v3644 = vpop.xlane.xlu0 %3643
    %v3645 = vsel %vm419, %v3389, -inf
    %3646 = vmax.xlane.f32.xlu0 %v3645
    %v3647 = vpop.xlane.xlu0 %3646
    %v3648 = vsel %vm419, %v3438, -inf
    %3649 = vmax.xlane.f32.xlu0 %v3648
    %v3650 = vpop.xlane.xlu0 %3649
    %v3651 = vsel %vm419, %v3487, -inf
    %3652 = vmax.xlane.f32.xlu0 %v3651
    %v3653 = vpop.xlane.xlu0 %3652
    %v3654 = vsel %vm419, %v3536, -inf
    %3655 = vmax.xlane.f32.xlu0 %v3654
    %v3656 = vpop.xlane.xlu0 %3655
    %v3657 = vsel %vm419, %v3585, -inf
    %3658 = vmax.xlane.f32.xlu0 %v3657
    %v3659 = vpop.xlane.xlu0 %3658
    %v3660 = vsel %vm419, %v3634, -inf
    %3661 = vmax.xlane.f32.xlu0 %v3660
    %v3662 = vpop.xlane.xlu0 %3661
    %v3663 = vsub.f32 %v3291, %v3641
    %v3664 = vsub.f32 %v3340, %v3644
    %v3665 = vsub.f32 %v3389, %v3647
    %v3666 = vsub.f32 %v3438, %v3650
    %v3667 = vsub.f32 %v3487, %v3653
    %v3668 = vsub.f32 %v3536, %v3656
    %v3669 = vsub.f32 %v3585, %v3659
    %v3670 = vsub.f32 %v3634, %v3662
    %v3671 = vmul.f32 %v3663, 1.442695
    %v3672 = vpow.pop %v3671
    %v3673 = vmul.f32 %v3664, 1.442695
    %v3674 = vpow.pop %v3673
    %v3675 = vmul.f32 %v3665, 1.442695
    %v3676 = vpow.pop %v3675
    %v3677 = vmul.f32 %v3666, 1.442695
    %v3678 = vpow.pop %v3677
    %v3679 = vmul.f32 %v3667, 1.442695
    %v3680 = vpow.pop %v3679
    %v3681 = vmul.f32 %v3668, 1.442695
    %v3682 = vpow.pop %v3681
    %v3683 = vmul.f32 %v3669, 1.442695
    %v3684 = vpow.pop %v3683
    %v3685 = vmul.f32 %v3670, 1.442695
    %v3686 = vpow.pop %v3685
    %v3687 = vsel %vm419, %v3672, 0.0
    %3688 = vadd.xlane.f32.xlu0 %v3687
    %v3689 = vpop.xlane.xlu0 %3688
    %v3690 = vsel %vm419, %v3674, 0.0
    %3691 = vadd.xlane.f32.xlu0 %v3690
    %v3692 = vpop.xlane.xlu0 %3691
    %v3693 = vsel %vm419, %v3676, 0.0
    %3694 = vadd.xlane.f32.xlu0 %v3693
    %v3695 = vpop.xlane.xlu0 %3694
    %v3696 = vsel %vm419, %v3678, 0.0
    %3697 = vadd.xlane.f32.xlu0 %v3696
    %v3698 = vpop.xlane.xlu0 %3697
    %v3699 = vsel %vm419, %v3680, 0.0
    %3700 = vadd.xlane.f32.xlu0 %v3699
    %v3701 = vpop.xlane.xlu0 %3700
    %v3702 = vsel %vm419, %v3682, 0.0
    %3703 = vadd.xlane.f32.xlu0 %v3702
    %v3704 = vpop.xlane.xlu0 %3703
    %v3705 = vsel %vm419, %v3684, 0.0
    %3706 = vadd.xlane.f32.xlu0 %v3705
    %v3707 = vpop.xlane.xlu0 %3706
    %v3708 = vsel %vm419, %v3686, 0.0
    %3709 = vadd.xlane.f32.xlu0 %v3708
    %v3710 = vpop.xlane.xlu0 %3709
    %v3711 = vrcp.pop %v3689
    %v3712 = vmul.f32 %v3672, %v3711
    %v3713 = vrcp.pop %v3692
    %v3714 = vmul.f32 %v3674, %v3713
    %v3715 = vrcp.pop %v3695
    %v3716 = vmul.f32 %v3676, %v3715
    %v3717 = vrcp.pop %v3698
    %v3718 = vmul.f32 %v3678, %v3717
    %v3719 = vrcp.pop %v3701
    %v3720 = vmul.f32 %v3680, %v3719
    %v3721 = vrcp.pop %v3704
    %v3722 = vmul.f32 %v3682, %v3721
    %v3723 = vrcp.pop %v3707
    %v3724 = vmul.f32 %v3684, %v3723
    %v3725 = vrcp.pop %v3710
    %v3726 = vmul.f32 %v3686, %v3725
    %v3727 = vpack.c.bf16 %v3712, %v3712
    %v3728 = vpack.c.bf16 %v3714, %v3714
    %v3729 = vpack.c.bf16 %v3716, %v3716
    %v3730 = vpack.c.bf16 %v3718, %v3718
    %v3731 = vpack.c.bf16 %v3720, %v3720
    %v3732 = vpack.c.bf16 %v3722, %v3722
    %v3733 = vpack.c.bf16 %v3724, %v3724
    %v3734 = vpack.c.bf16 %v3726, %v3726
    %3735 = vrot.lane.b32.xlu0 %v3239, 64
    %v3736 = vpop.permute.xlu0 %3735
    %v3738 = vsel %vm419, %v3727, 0
    %v3741 = vsel %vm910, %v3736, 0
    %3743 = vmatprep.subr.bf16.mxu0 0
    %3744 = vmatpush1.bf16.msra.mxu0 0
    %3745 = vmatprep.subr.bf16.mxu0 0
    %3746 = vmatpush1.bf16.msra.mxu0 0
    %3747 = vmatprep.subr.bf16.mxu0 0
    %3748 = vmatpush1.bf16.msra.mxu0 0
    %3749 = vmatprep.subr.bf16.mxu0 0
    %3750 = vmatpush1.bf16.msra.mxu0 0
    %3751 = vmatprep.subr.bf16.mxu0 0
    %3752 = vmatpush1.bf16.msra.mxu0 0
    %3753 = vmatprep.subr.bf16.mxu0 0
    %3754 = vmatpush1.bf16.msra.mxu0 0
    %3755 = vmatprep.subr.bf16.mxu0 0
    %3756 = vmatpush1.bf16.msra.mxu0 0
    %3757 = vmatprep.subr.bf16.mxu0 0
    %3758 = vmatpush1.bf16.msra.mxu0 %v3741
    %3759 = vmatprep.subr.bf16.mxu0 0
    %3760 = vmatpush2.bf16.msra.mxu0 0
    %3761 = vmatprep.subr.bf16.mxu0 0
    %3762 = vmatpush2.bf16.msra.mxu0 0
    %3763 = vmatprep.subr.bf16.mxu0 0
    %3764 = vmatpush2.bf16.msra.mxu0 0
    %3765 = vmatprep.subr.bf16.mxu0 0
    %3766 = vmatpush2.bf16.msra.mxu0 0
    %3767 = vmatprep.subr.bf16.mxu0 0
    %3768 = vmatpush2.bf16.msra.mxu0 0
    %3769 = vmatprep.subr.bf16.mxu0 0
    %3770 = vmatpush2.bf16.msra.mxu0 0
    %3771 = vmatprep.subr.bf16.mxu0 0
    %3772 = vmatpush2.bf16.msra.mxu0 0
    %3773 = vmatprep.subr.bf16.mxu0 0
    %3774 = vmatpush2.bf16.msra.mxu0 0
    %3775 = vmatprep.mubr.bf16.mxu0 0
    %3776 = vmatmul.mubr.bf16.gmra.mxu0 %v3738
    %v3777 = vpop.f32.mrf.mxu0
    %v3778 = vadd.f32 0.0, %v3777
    %v3779 = vpop.f32.mrf.mxu0
    %v3780 = vpop.f32.mrf.mxu0
    %v3781 = vpop.f32.mrf.mxu0
    %3782 = vdwg.mxu0
    %3783 = vrot.lane.b32.xlu0 %v3240, 64
    %v3784 = vpop.permute.xlu0 %3783
    %v3786 = vsel %vm419, %v3728, 0
    %v3789 = vsel %vm910, %v3784, 0
    %3791 = vmatprep.subr.bf16.mxu0 0
    %3792 = vmatpush1.bf16.msra.mxu0 0
    %3793 = vmatprep.subr.bf16.mxu0 0
    %3794 = vmatpush1.bf16.msra.mxu0 0
    %3795 = vmatprep.subr.bf16.mxu0 0
    %3796 = vmatpush1.bf16.msra.mxu0 0
    %3797 = vmatprep.subr.bf16.mxu0 0
    %3798 = vmatpush1.bf16.msra.mxu0 0
    %3799 = vmatprep.subr.bf16.mxu0 0
    %3800 = vmatpush1.bf16.msra.mxu0 0
    %3801 = vmatprep.subr.bf16.mxu0 0
    %3802 = vmatpush1.bf16.msra.mxu0 0
    %3803 = vmatprep.subr.bf16.mxu0 0
    %3804 = vmatpush1.bf16.msra.mxu0 0
    %3805 = vmatprep.subr.bf16.mxu0 0
    %3806 = vmatpush1.bf16.msra.mxu0 %v3789
    %3807 = vmatprep.subr.bf16.mxu0 0
    %3808 = vmatpush2.bf16.msra.mxu0 0
    %3809 = vmatprep.subr.bf16.mxu0 0
    %3810 = vmatpush2.bf16.msra.mxu0 0
    %3811 = vmatprep.subr.bf16.mxu0 0
    %3812 = vmatpush2.bf16.msra.mxu0 0
    %3813 = vmatprep.subr.bf16.mxu0 0
    %3814 = vmatpush2.bf16.msra.mxu0 0
    %3815 = vmatprep.subr.bf16.mxu0 0
    %3816 = vmatpush2.bf16.msra.mxu0 0
    %3817 = vmatprep.subr.bf16.mxu0 0
    %3818 = vmatpush2.bf16.msra.mxu0 0
    %3819 = vmatprep.subr.bf16.mxu0 0
    %3820 = vmatpush2.bf16.msra.mxu0 0
    %3821 = vmatprep.subr.bf16.mxu0 0
    %3822 = vmatpush2.bf16.msra.mxu0 0
    %3823 = vmatprep.mubr.bf16.mxu0 0
    %3824 = vmatmul.mubr.bf16.gmra.mxu0 %v3786
    %v3825 = vpop.f32.mrf.mxu0
    %v3826 = vadd.f32 0.0, %v3825
    %v3827 = vpop.f32.mrf.mxu0
    %v3828 = vpop.f32.mrf.mxu0
    %v3829 = vpop.f32.mrf.mxu0
    %3830 = vdwg.mxu0
    %3831 = vrot.lane.b32.xlu0 %v3241, 64
    %v3832 = vpop.permute.xlu0 %3831
    %v3834 = vsel %vm419, %v3729, 0
    %v3837 = vsel %vm910, %v3832, 0
    %3839 = vmatprep.subr.bf16.mxu0 0
    %3840 = vmatpush1.bf16.msra.mxu0 0
    %3841 = vmatprep.subr.bf16.mxu0 0
    %3842 = vmatpush1.bf16.msra.mxu0 0
    %3843 = vmatprep.subr.bf16.mxu0 0
    %3844 = vmatpush1.bf16.msra.mxu0 0
    %3845 = vmatprep.subr.bf16.mxu0 0
    %3846 = vmatpush1.bf16.msra.mxu0 0
    %3847 = vmatprep.subr.bf16.mxu0 0
    %3848 = vmatpush1.bf16.msra.mxu0 0
    %3849 = vmatprep.subr.bf16.mxu0 0
    %3850 = vmatpush1.bf16.msra.mxu0 0
    %3851 = vmatprep.subr.bf16.mxu0 0
    %3852 = vmatpush1.bf16.msra.mxu0 0
    %3853 = vmatprep.subr.bf16.mxu0 0
    %3854 = vmatpush1.bf16.msra.mxu0 %v3837
    %3855 = vmatprep.subr.bf16.mxu0 0
    %3856 = vmatpush2.bf16.msra.mxu0 0
    %3857 = vmatprep.subr.bf16.mxu0 0
    %3858 = vmatpush2.bf16.msra.mxu0 0
    %3859 = vmatprep.subr.bf16.mxu0 0
    %3860 = vmatpush2.bf16.msra.mxu0 0
    %3861 = vmatprep.subr.bf16.mxu0 0
    %3862 = vmatpush2.bf16.msra.mxu0 0
    %3863 = vmatprep.subr.bf16.mxu0 0
    %3864 = vmatpush2.bf16.msra.mxu0 0
    %3865 = vmatprep.subr.bf16.mxu0 0
    %3866 = vmatpush2.bf16.msra.mxu0 0
    %3867 = vmatprep.subr.bf16.mxu0 0
    %3868 = vmatpush2.bf16.msra.mxu0 0
    %3869 = vmatprep.subr.bf16.mxu0 0
    %3870 = vmatpush2.bf16.msra.mxu0 0
    %3871 = vmatprep.mubr.bf16.mxu0 0
    %3872 = vmatmul.mubr.bf16.gmra.mxu0 %v3834
    %v3873 = vpop.f32.mrf.mxu0
    %v3874 = vadd.f32 0.0, %v3873
    %v3875 = vpop.f32.mrf.mxu0
    %v3876 = vpop.f32.mrf.mxu0
    %v3877 = vpop.f32.mrf.mxu0
    %3878 = vdwg.mxu0
    %3879 = vrot.lane.b32.xlu0 %v3242, 64
    %v3880 = vpop.permute.xlu0 %3879
    %v3882 = vsel %vm419, %v3730, 0
    %v3885 = vsel %vm910, %v3880, 0
    %3887 = vmatprep.subr.bf16.mxu0 0
    %3888 = vmatpush1.bf16.msra.mxu0 0
    %3889 = vmatprep.subr.bf16.mxu0 0
    %3890 = vmatpush1.bf16.msra.mxu0 0
    %3891 = vmatprep.subr.bf16.mxu0 0
    %3892 = vmatpush1.bf16.msra.mxu0 0
    %3893 = vmatprep.subr.bf16.mxu0 0
    %3894 = vmatpush1.bf16.msra.mxu0 0
    %3895 = vmatprep.subr.bf16.mxu0 0
    %3896 = vmatpush1.bf16.msra.mxu0 0
    %3897 = vmatprep.subr.bf16.mxu0 0
    %3898 = vmatpush1.bf16.msra.mxu0 0
    %3899 = vmatprep.subr.bf16.mxu0 0
    %3900 = vmatpush1.bf16.msra.mxu0 0
    %3901 = vmatprep.subr.bf16.mxu0 0
    %3902 = vmatpush1.bf16.msra.mxu0 %v3885
    %3903 = vmatprep.subr.bf16.mxu0 0
    %3904 = vmatpush2.bf16.msra.mxu0 0
    %3905 = vmatprep.subr.bf16.mxu0 0
    %3906 = vmatpush2.bf16.msra.mxu0 0
    %3907 = vmatprep.subr.bf16.mxu0 0
    %3908 = vmatpush2.bf16.msra.mxu0 0
    %3909 = vmatprep.subr.bf16.mxu0 0
    %3910 = vmatpush2.bf16.msra.mxu0 0
    %3911 = vmatprep.subr.bf16.mxu0 0
    %3912 = vmatpush2.bf16.msra.mxu0 0
    %3913 = vmatprep.subr.bf16.mxu0 0
    %3914 = vmatpush2.bf16.msra.mxu0 0
    %3915 = vmatprep.subr.bf16.mxu0 0
    %3916 = vmatpush2.bf16.msra.mxu0 0
    %3917 = vmatprep.subr.bf16.mxu0 0
    %3918 = vmatpush2.bf16.msra.mxu0 0
    %3919 = vmatprep.mubr.bf16.mxu0 0
    %3920 = vmatmul.mubr.bf16.gmra.mxu0 %v3882
    %v3921 = vpop.f32.mrf.mxu0
    %v3922 = vadd.f32 0.0, %v3921
    %v3923 = vpop.f32.mrf.mxu0
    %v3924 = vpop.f32.mrf.mxu0
    %v3925 = vpop.f32.mrf.mxu0
    %3926 = vdwg.mxu0
    %3927 = vrot.lane.b32.xlu0 %v3243, 64
    %v3928 = vpop.permute.xlu0 %3927
    %v3930 = vsel %vm419, %v3731, 0
    %v3933 = vsel %vm910, %v3928, 0
    %3935 = vmatprep.subr.bf16.mxu0 0
    %3936 = vmatpush1.bf16.msra.mxu0 0
    %3937 = vmatprep.subr.bf16.mxu0 0
    %3938 = vmatpush1.bf16.msra.mxu0 0
    %3939 = vmatprep.subr.bf16.mxu0 0
    %3940 = vmatpush1.bf16.msra.mxu0 0
    %3941 = vmatprep.subr.bf16.mxu0 0
    %3942 = vmatpush1.bf16.msra.mxu0 0
    %3943 = vmatprep.subr.bf16.mxu0 0
    %3944 = vmatpush1.bf16.msra.mxu0 0
    %3945 = vmatprep.subr.bf16.mxu0 0
    %3946 = vmatpush1.bf16.msra.mxu0 0
    %3947 = vmatprep.subr.bf16.mxu0 0
    %3948 = vmatpush1.bf16.msra.mxu0 0
    %3949 = vmatprep.subr.bf16.mxu0 0
    %3950 = vmatpush1.bf16.msra.mxu0 %v3933
    %3951 = vmatprep.subr.bf16.mxu0 0
    %3952 = vmatpush2.bf16.msra.mxu0 0
    %3953 = vmatprep.subr.bf16.mxu0 0
    %3954 = vmatpush2.bf16.msra.mxu0 0
    %3955 = vmatprep.subr.bf16.mxu0 0
    %3956 = vmatpush2.bf16.msra.mxu0 0
    %3957 = vmatprep.subr.bf16.mxu0 0
    %3958 = vmatpush2.bf16.msra.mxu0 0
    %3959 = vmatprep.subr.bf16.mxu0 0
    %3960 = vmatpush2.bf16.msra.mxu0 0
    %3961 = vmatprep.subr.bf16.mxu0 0
    %3962 = vmatpush2.bf16.msra.mxu0 0
    %3963 = vmatprep.subr.bf16.mxu0 0
    %3964 = vmatpush2.bf16.msra.mxu0 0
    %3965 = vmatprep.subr.bf16.mxu0 0
    %3966 = vmatpush2.bf16.msra.mxu0 0
    %3967 = vmatprep.mubr.bf16.mxu0 0
    %3968 = vmatmul.mubr.bf16.gmra.mxu0 %v3930
    %v3969 = vpop.f32.mrf.mxu0
    %v3970 = vadd.f32 0.0, %v3969
    %v3971 = vpop.f32.mrf.mxu0
    %v3972 = vpop.f32.mrf.mxu0
    %v3973 = vpop.f32.mrf.mxu0
    %3974 = vdwg.mxu0
    %3975 = vrot.lane.b32.xlu0 %v3244, 64
    %v3976 = vpop.permute.xlu0 %3975
    %v3978 = vsel %vm419, %v3732, 0
    %v3981 = vsel %vm910, %v3976, 0
    %3983 = vmatprep.subr.bf16.mxu0 0
    %3984 = vmatpush1.bf16.msra.mxu0 0
    %3985 = vmatprep.subr.bf16.mxu0 0
    %3986 = vmatpush1.bf16.msra.mxu0 0
    %3987 = vmatprep.subr.bf16.mxu0 0
    %3988 = vmatpush1.bf16.msra.mxu0 0
    %3989 = vmatprep.subr.bf16.mxu0 0
    %3990 = vmatpush1.bf16.msra.mxu0 0
    %3991 = vmatprep.subr.bf16.mxu0 0
    %3992 = vmatpush1.bf16.msra.mxu0 0
    %3993 = vmatprep.subr.bf16.mxu0 0
    %3994 = vmatpush1.bf16.msra.mxu0 0
    %3995 = vmatprep.subr.bf16.mxu0 0
    %3996 = vmatpush1.bf16.msra.mxu0 0
    %3997 = vmatprep.subr.bf16.mxu0 0
    %3998 = vmatpush1.bf16.msra.mxu0 %v3981
    %3999 = vmatprep.subr.bf16.mxu0 0
    %4000 = vmatpush2.bf16.msra.mxu0 0
    %4001 = vmatprep.subr.bf16.mxu0 0
    %4002 = vmatpush2.bf16.msra.mxu0 0
    %4003 = vmatprep.subr.bf16.mxu0 0
    %4004 = vmatpush2.bf16.msra.mxu0 0
    %4005 = vmatprep.subr.bf16.mxu0 0
    %4006 = vmatpush2.bf16.msra.mxu0 0
    %4007 = vmatprep.subr.bf16.mxu0 0
    %4008 = vmatpush2.bf16.msra.mxu0 0
    %4009 = vmatprep.subr.bf16.mxu0 0
    %4010 = vmatpush2.bf16.msra.mxu0 0
    %4011 = vmatprep.subr.bf16.mxu0 0
    %4012 = vmatpush2.bf16.msra.mxu0 0
    %4013 = vmatprep.subr.bf16.mxu0 0
    %4014 = vmatpush2.bf16.msra.mxu0 0
    %4015 = vmatprep.mubr.bf16.mxu0 0
    %4016 = vmatmul.mubr.bf16.gmra.mxu0 %v3978
    %v4017 = vpop.f32.mrf.mxu0
    %v4018 = vadd.f32 0.0, %v4017
    %v4019 = vpop.f32.mrf.mxu0
    %v4020 = vpop.f32.mrf.mxu0
    %v4021 = vpop.f32.mrf.mxu0
    %4022 = vdwg.mxu0
    %4023 = vrot.lane.b32.xlu0 %v3245, 64
    %v4024 = vpop.permute.xlu0 %4023
    %v4026 = vsel %vm419, %v3733, 0
    %v4029 = vsel %vm910, %v4024, 0
    %4031 = vmatprep.subr.bf16.mxu0 0
    %4032 = vmatpush1.bf16.msra.mxu0 0
    %4033 = vmatprep.subr.bf16.mxu0 0
    %4034 = vmatpush1.bf16.msra.mxu0 0
    %4035 = vmatprep.subr.bf16.mxu0 0
    %4036 = vmatpush1.bf16.msra.mxu0 0
    %4037 = vmatprep.subr.bf16.mxu0 0
    %4038 = vmatpush1.bf16.msra.mxu0 0
    %4039 = vmatprep.subr.bf16.mxu0 0
    %4040 = vmatpush1.bf16.msra.mxu0 0
    %4041 = vmatprep.subr.bf16.mxu0 0
    %4042 = vmatpush1.bf16.msra.mxu0 0
    %4043 = vmatprep.subr.bf16.mxu0 0
    %4044 = vmatpush1.bf16.msra.mxu0 0
    %4045 = vmatprep.subr.bf16.mxu0 0
    %4046 = vmatpush1.bf16.msra.mxu0 %v4029
    %4047 = vmatprep.subr.bf16.mxu0 0
    %4048 = vmatpush2.bf16.msra.mxu0 0
    %4049 = vmatprep.subr.bf16.mxu0 0
    %4050 = vmatpush2.bf16.msra.mxu0 0
    %4051 = vmatprep.subr.bf16.mxu0 0
    %4052 = vmatpush2.bf16.msra.mxu0 0
    %4053 = vmatprep.subr.bf16.mxu0 0
    %4054 = vmatpush2.bf16.msra.mxu0 0
    %4055 = vmatprep.subr.bf16.mxu0 0
    %4056 = vmatpush2.bf16.msra.mxu0 0
    %4057 = vmatprep.subr.bf16.mxu0 0
    %4058 = vmatpush2.bf16.msra.mxu0 0
    %4059 = vmatprep.subr.bf16.mxu0 0
    %4060 = vmatpush2.bf16.msra.mxu0 0
    %4061 = vmatprep.subr.bf16.mxu0 0
    %4062 = vmatpush2.bf16.msra.mxu0 0
    %4063 = vmatprep.mubr.bf16.mxu0 0
    %4064 = vmatmul.mubr.bf16.gmra.mxu0 %v4026
    %v4065 = vpop.f32.mrf.mxu0
    %v4066 = vadd.f32 0.0, %v4065
    %v4067 = vpop.f32.mrf.mxu0
    %v4068 = vpop.f32.mrf.mxu0
    %v4069 = vpop.f32.mrf.mxu0
    %4070 = vdwg.mxu0
    %4071 = vrot.lane.b32.xlu0 %v3246, 64
    %v4072 = vpop.permute.xlu0 %4071
    %v4074 = vsel %vm419, %v3734, 0
    %v4077 = vsel %vm910, %v4072, 0
    %4079 = vmatprep.subr.bf16.mxu0 0
    %4080 = vmatpush1.bf16.msra.mxu0 0
    %4081 = vmatprep.subr.bf16.mxu0 0
    %4082 = vmatpush1.bf16.msra.mxu0 0
    %4083 = vmatprep.subr.bf16.mxu0 0
    %4084 = vmatpush1.bf16.msra.mxu0 0
    %4085 = vmatprep.subr.bf16.mxu0 0
    %4086 = vmatpush1.bf16.msra.mxu0 0
    %4087 = vmatprep.subr.bf16.mxu0 0
    %4088 = vmatpush1.bf16.msra.mxu0 0
    %4089 = vmatprep.subr.bf16.mxu0 0
    %4090 = vmatpush1.bf16.msra.mxu0 0
    %4091 = vmatprep.subr.bf16.mxu0 0
    %4092 = vmatpush1.bf16.msra.mxu0 0
    %4093 = vmatprep.subr.bf16.mxu0 0
    %4094 = vmatpush1.bf16.msra.mxu0 %v4077
    %4095 = vmatprep.subr.bf16.mxu0 0
    %4096 = vmatpush2.bf16.msra.mxu0 0
    %4097 = vmatprep.subr.bf16.mxu0 0
    %4098 = vmatpush2.bf16.msra.mxu0 0
    %4099 = vmatprep.subr.bf16.mxu0 0
    %4100 = vmatpush2.bf16.msra.mxu0 0
    %4101 = vmatprep.subr.bf16.mxu0 0
    %4102 = vmatpush2.bf16.msra.mxu0 0
    %4103 = vmatprep.subr.bf16.mxu0 0
    %4104 = vmatpush2.bf16.msra.mxu0 0
    %4105 = vmatprep.subr.bf16.mxu0 0
    %4106 = vmatpush2.bf16.msra.mxu0 0
    %4107 = vmatprep.subr.bf16.mxu0 0
    %4108 = vmatpush2.bf16.msra.mxu0 0
    %4109 = vmatprep.subr.bf16.mxu0 0
    %4110 = vmatpush2.bf16.msra.mxu0 0
    %4111 = vmatprep.mubr.bf16.mxu0 0
    %4112 = vmatmul.mubr.bf16.gmra.mxu0 %v4074
    %v4113 = vpop.f32.mrf.mxu0
    %v4114 = vadd.f32 0.0, %v4113
    %v4115 = vpop.f32.mrf.mxu0
    %v4116 = vpop.f32.mrf.mxu0
    %v4117 = vpop.f32.mrf.mxu0
    %4118 = vdwg.mxu0
    %4121 = vrot.lane.b32.xlu0 %v3874, 8
    %v4122 = vpop.permute.xlu0 %4121
    %4123 = vrot.lane.b32.xlu0 %v3922, 8
    %v4124 = vpop.permute.xlu0 %4123
    %4129 = vrot.lane.b32.xlu0 %v3970, 16
    %v4130 = vpop.permute.xlu0 %4129
    %4131 = vrot.lane.b32.xlu0 %v4018, 16
    %v4132 = vpop.permute.xlu0 %4131
    %4137 = vrot.lane.b32.xlu0 %v4066, 24
    %v4138 = vpop.permute.xlu0 %4137
    %4139 = vrot.lane.b32.xlu0 %v4114, 24
    %v4140 = vpop.permute.xlu0 %4139
    %v4143 = vsel %vm419, %v3778, %v4122
    %v4144 = vsel %vm419, %v3826, %v4124
    %v4145 = vsel %vm1316, %v4143, %v4130
    %v4146 = vsel %vm1316, %v4144, %v4132
    %v4147 = vsel %vm1319, %v4145, %v4138
    %v4148 = vsel %vm1319, %v4146, %v4140
    %v4149 = vld [vmem:[#allocation2 + $0x4] sm:$0xf]
    %v4150 = vld [vmem:[#allocation2 + $0x2c] sm:$0xf]
    %v4151 = vld [vmem:[#allocation2 + $0x54] sm:$0xf]
    %v4152 = vld [vmem:[#allocation2 + $0x7c] sm:$0xf]
    %v4153 = vpack.c.bf16 %v4148, %v4147
    %v4158 = vunpack.c.l.b16 %v4149
    %v4159 = vunpack.c.l.b16 %v4150
    %v4160 = vunpack.c.l.b16 %v4151
    %v4161 = vunpack.c.l.b16 %v4152
    %v4162 = vpack.c.b16 %v4159, %v4158
    %v4163 = vpack.c.b16 %v4161, %v4160
    %v4167 = vsel %vm293, %v4153, 0
    %4169 = vmatprep.subr.bf16.mxu0 0
    %4170 = vmatpush1.bf16.msra.mxu0 0
    %4171 = vmatprep.subr.bf16.mxu0 0
    %4172 = vmatpush1.bf16.msra.mxu0 0
    %4173 = vmatprep.subr.bf16.mxu0 0
    %4174 = vmatpush1.bf16.msra.mxu0 0
    %4175 = vmatprep.subr.bf16.mxu0 0
    %4176 = vmatpush1.bf16.msra.mxu0 0
    %4177 = vmatprep.subr.bf16.mxu0 0
    %4178 = vmatpush1.bf16.msra.mxu0 0
    %4179 = vmatprep.subr.bf16.mxu0 0
    %4180 = vmatpush1.bf16.msra.mxu0 0
    %4181 = vmatprep.subr.bf16.mxu0 0
    %4182 = vmatpush1.bf16.msra.mxu0 %v4163
    %4183 = vmatprep.subr.bf16.mxu0 0
    %4184 = vmatpush1.bf16.msra.mxu0 %v4162
    %4185 = vmatprep.subr.bf16.mxu0 0
    %4186 = vmatpush2.bf16.msra.mxu0 0
    %4187 = vmatprep.subr.bf16.mxu0 0
    %4188 = vmatpush2.bf16.msra.mxu0 0
    %4189 = vmatprep.subr.bf16.mxu0 0
    %4190 = vmatpush2.bf16.msra.mxu0 0
    %4191 = vmatprep.subr.bf16.mxu0 0
    %4192 = vmatpush2.bf16.msra.mxu0 0
    %4193 = vmatprep.subr.bf16.mxu0 0
    %4194 = vmatpush2.bf16.msra.mxu0 0
    %4195 = vmatprep.subr.bf16.mxu0 0
    %4196 = vmatpush2.bf16.msra.mxu0 0
    %4197 = vmatprep.subr.bf16.mxu0 0
    %4198 = vmatpush2.bf16.msra.mxu0 0
    %4199 = vmatprep.subr.bf16.mxu0 0
    %4200 = vmatpush2.bf16.msra.mxu0 0
    %4201 = vmatprep.mubr.bf16.mxu0 0
    %4202 = vmatmul.mubr.bf16.gmra.mxu0 %v4167
    %v4203 = vpop.f32.mrf.mxu0
    %v4204 = vadd.f32 0.0, %v4203
    %v4205 = vpop.f32.mrf.mxu0
    %v4206 = vpop.f32.mrf.mxu0
    %v4207 = vadd.f32 0.0, %v4206
    %v4208 = vpop.f32.mrf.mxu0
    %4209 = vdwg.mxu0
    %v4210 = vadd.f32 %v3127, %v4204
    %v4211 = vadd.f32 %v3132, %v4207
    %v4212 = vld [vmem:[%s3 + $0x1] sm:$0x1]
    %v4213 = vmul.f32 %v4210, %v4210
    %v4214 = vmul.f32 %v4211, %v4211
    %v4215 = vsel %vm293, %v4213, 0.0
    %4216 = vadd.xlane.f32.xlu0 %v4215
    %v4217 = vpop.xlane.xlu0 %4216
    %v4218 = vsel %vm293, %v4214, 0.0
    %4219 = vadd.xlane.f32.xlu0 %v4218
    %v4220 = vpop.xlane.xlu0 %4219
    %v4221 = vmul.f32 %v4217, %v300
    %v4222 = vmul.f32 %v4220, %v300
    %v4223 = vadd.f32 %v4221, 1e-06
    %v4224 = vadd.f32 %v4222, 1e-06
    %v4225 = vrsqrt.pop %v4223
    %v4226 = vrsqrt.pop %v4224
    %v4227 = vmul.f32 %v4210, %v4225
    %v4228 = vmul.f32 %v4211, %v4226
    %v4229 = vlaneseq
    %v4230 = vshrl.u32 %v4229, 7
    %v4231 = vsub.s32 0, %v4230
    %v4232 = vrot.slane %v4212, %v4231
    %v4233 = vmul.f32 %v4227, %v4232
    %v4234 = vmul.f32 %v4228, %v4232
    %v4235 = vld [vmem:[#allocation2 + $0x8] sm:$0xf]
    %v4236 = vld [vmem:[#allocation2 + $0x30] sm:$0xf]
    %v4237 = vld [vmem:[#allocation2 + $0x58] sm:$0xf]
    %v4238 = vld [vmem:[#allocation2 + $0x80] sm:$0xf]
    %v4239 = vpack.c.bf16 %v4234, %v4233
    %v4244 = vunpack.c.l.b16 %v4235
    %v4245 = vunpack.c.l.b16 %v4236
    %v4246 = vunpack.c.l.b16 %v4237
    %v4247 = vunpack.c.l.b16 %v4238
    %v4248 = vpack.c.b16 %v4245, %v4244
    %v4249 = vpack.c.b16 %v4247, %v4246
    %v4253 = vsel %vm293, %v4239, 0
    %4255 = vmatprep.subr.bf16.mxu0 0
    %4256 = vmatpush1.bf16.msra.mxu0 0
    %4257 = vmatprep.subr.bf16.mxu0 0
    %4258 = vmatpush1.bf16.msra.mxu0 0
    %4259 = vmatprep.subr.bf16.mxu0 0
    %4260 = vmatpush1.bf16.msra.mxu0 0
    %4261 = vmatprep.subr.bf16.mxu0 0
    %4262 = vmatpush1.bf16.msra.mxu0 0
    %4263 = vmatprep.subr.bf16.mxu0 0
    %4264 = vmatpush1.bf16.msra.mxu0 0
    %4265 = vmatprep.subr.bf16.mxu0 0
    %4266 = vmatpush1.bf16.msra.mxu0 0
    %4267 = vmatprep.subr.bf16.mxu0 0
    %4268 = vmatpush1.bf16.msra.mxu0 %v4249
    %4269 = vmatprep.subr.bf16.mxu0 0
    %4270 = vmatpush1.bf16.msra.mxu0 %v4248
    %4271 = vmatprep.subr.bf16.mxu0 0
    %4272 = vmatpush2.bf16.msra.mxu0 0
    %4273 = vmatprep.subr.bf16.mxu0 0
    %4274 = vmatpush2.bf16.msra.mxu0 0
    %4275 = vmatprep.subr.bf16.mxu0 0
    %4276 = vmatpush2.bf16.msra.mxu0 0
    %4277 = vmatprep.subr.bf16.mxu0 0
    %4278 = vmatpush2.bf16.msra.mxu0 0
    %4279 = vmatprep.subr.bf16.mxu0 0
    %4280 = vmatpush2.bf16.msra.mxu0 0
    %4281 = vmatprep.subr.bf16.mxu0 0
    %4282 = vmatpush2.bf16.msra.mxu0 0
    %4283 = vmatprep.subr.bf16.mxu0 0
    %4284 = vmatpush2.bf16.msra.mxu0 0
    %4285 = vmatprep.subr.bf16.mxu0 0
    %4286 = vmatpush2.bf16.msra.mxu0 0
    %4287 = vmatprep.mubr.bf16.mxu0 0
    %4288 = vmatmul.mubr.bf16.gmra.mxu0 %v4253
    %v4289 = vpop.f32.mrf.mxu0
    %v4290 = vadd.f32 0.0, %v4289
    %v4291 = vpop.f32.mrf.mxu0
    %v4292 = vpop.f32.mrf.mxu0
    %v4293 = vadd.f32 0.0, %v4292
    %v4294 = vpop.f32.mrf.mxu0
    %4295 = vdwg.mxu0
    %v4296 = vmax.f32 %v4290, 0.0
    %v4297 = vmax.f32 %v4293, 0.0
    %v4298 = vld [vmem:[#allocation5] sm:$0xf]
    %v4299 = vld [vmem:[#allocation5 + $0x8] sm:$0xf]
    %v4300 = vld [vmem:[#allocation5 + $0x10] sm:$0xf]
    %v4301 = vld [vmem:[#allocation5 + $0x18] sm:$0xf]
    %v4302 = vld [vmem:[#allocation5 + $0x20] sm:$0xf]
    %v4303 = vld [vmem:[#allocation5 + $0x28] sm:$0xf]
    %v4304 = vld [vmem:[#allocation5 + $0x30] sm:$0xf]
    %v4305 = vld [vmem:[#allocation5 + $0x38] sm:$0xf]
    %v4306 = vpack.c.bf16 %v4297, %v4296
    %v4315 = vunpack.c.l.b16 %v4298
    %v4316 = vunpack.c.l.b16 %v4299
    %v4317 = vunpack.c.l.b16 %v4300
    %v4318 = vunpack.c.l.b16 %v4301
    %v4319 = vunpack.c.l.b16 %v4302
    %v4320 = vunpack.c.l.b16 %v4303
    %v4321 = vunpack.c.l.b16 %v4304
    %v4322 = vunpack.c.l.b16 %v4305
    %v4323 = vpack.c.b16 %v4316, %v4315
    %v4324 = vpack.c.b16 %v4318, %v4317
    %v4325 = vpack.c.b16 %v4320, %v4319
    %v4326 = vpack.c.b16 %v4322, %v4321
    %v4332 = vsel %vm77, %v4306, 0
    %4334 = vmatprep.subr.bf16.mxu0 0
    %4335 = vmatpush1.bf16.msra.mxu0 0
    %4336 = vmatprep.subr.bf16.mxu0 0
    %4337 = vmatpush1.bf16.msra.mxu0 0
    %4338 = vmatprep.subr.bf16.mxu0 0
    %4339 = vmatpush1.bf16.msra.mxu0 0
    %4340 = vmatprep.subr.bf16.mxu0 0
    %4341 = vmatpush1.bf16.msra.mxu0 0
    %4342 = vmatprep.subr.bf16.mxu0 0
    %4343 = vmatpush1.bf16.msra.mxu0 %v4326
    %4344 = vmatprep.subr.bf16.mxu0 0
    %4345 = vmatpush1.bf16.msra.mxu0 %v4325
    %4346 = vmatprep.subr.bf16.mxu0 0
    %4347 = vmatpush1.bf16.msra.mxu0 %v4324
    %4348 = vmatprep.subr.bf16.mxu0 0
    %4349 = vmatpush1.bf16.msra.mxu0 %v4323
    %4350 = vmatprep.subr.bf16.mxu0 0
    %4351 = vmatpush2.bf16.msra.mxu0 0
    %4352 = vmatprep.subr.bf16.mxu0 0
    %4353 = vmatpush2.bf16.msra.mxu0 0
    %4354 = vmatprep.subr.bf16.mxu0 0
    %4355 = vmatpush2.bf16.msra.mxu0 0
    %4356 = vmatprep.subr.bf16.mxu0 0
    %4357 = vmatpush2.bf16.msra.mxu0 0
    %4358 = vmatprep.subr.bf16.mxu0 0
    %4359 = vmatpush2.bf16.msra.mxu0 0
    %4360 = vmatprep.subr.bf16.mxu0 0
    %4361 = vmatpush2.bf16.msra.mxu0 0
    %4362 = vmatprep.subr.bf16.mxu0 0
    %4363 = vmatpush2.bf16.msra.mxu0 0
    %4364 = vmatprep.subr.bf16.mxu0 0
    %4365 = vmatpush2.bf16.msra.mxu0 0
    %4366 = vmatprep.mubr.bf16.mxu0 0
    %4367 = vmatmul.mubr.bf16.gmra.mxu0 %v4332
    %v4368 = vpop.f32.mrf.mxu0
    %v4369 = vadd.f32 0.0, %v4368
    %v4370 = vpop.f32.mrf.mxu0
    %v4371 = vpop.f32.mrf.mxu0
    %v4372 = vadd.f32 0.0, %v4371
    %v4373 = vpop.f32.mrf.mxu0
    %4374 = vdwg.mxu0
    %v4375 = vadd.f32 %v4210, %v4369
    %v4376 = vadd.f32 %v4211, %v4372
    %v4377 = vld [vmem:[%s3 + $0x2] sm:$0x1]
    %v4378 = vmul.f32 %v4375, %v4375
    %v4379 = vmul.f32 %v4376, %v4376
    %v4380 = vsel %vm293, %v4378, 0.0
    %4381 = vadd.xlane.f32.xlu0 %v4380
    %v4382 = vpop.xlane.xlu0 %4381
    %v4383 = vsel %vm293, %v4379, 0.0
    %4384 = vadd.xlane.f32.xlu0 %v4383
    %v4385 = vpop.xlane.xlu0 %4384
    %v4386 = vmul.f32 %v4382, %v300
    %v4387 = vmul.f32 %v4385, %v300
    %v4388 = vadd.f32 %v4386, 1e-06
    %v4389 = vadd.f32 %v4387, 1e-06
    %v4390 = vrsqrt.pop %v4388
    %v4391 = vrsqrt.pop %v4389
    %v4392 = vmul.f32 %v4375, %v4390
    %v4393 = vmul.f32 %v4376, %v4391
    %v4394 = vlaneseq
    %v4395 = vshrl.u32 %v4394, 7
    %v4396 = vsub.s32 0, %v4395
    %v4397 = vrot.slane %v4377, %v4396
    %v4398 = vmul.f32 %v4392, %v4397
    %v4399 = vmul.f32 %v4393, %v4397
    %v4400 = vadd.f32 %v4398, %v1576
    %v4401 = vadd.f32 %v4399, %v1580
    %v4402 = vld [vmem:[%s3 + $0x3] sm:$0x1]
    %v4403 = vlaneseq
    %v4404 = vshrl.u32 %v4403, 7
    %v4405 = vsub.s32 0, %v4404
    %v4406 = vrot.slane %v4402, %v4405
    %v4407 = vmul.f32 %v1596, %v4406
    %v4408 = vmul.f32 %v1597, %v4406
    %v4409 = vld [vmem:[#allocation2 + $0xc] sm:$0xf]
    %v4410 = vld [vmem:[#allocation2 + $0x34] sm:$0xf]
    %v4411 = vld [vmem:[#allocation2 + $0x5c] sm:$0xf]
    %v4412 = vld [vmem:[#allocation2 + $0x84] sm:$0xf]
    %v4413 = vpack.c.bf16 %v4408, %v4407
    %v4418 = vunpack.c.l.b16 %v4409
    %v4419 = vunpack.c.l.b16 %v4410
    %v4420 = vunpack.c.l.b16 %v4411
    %v4421 = vunpack.c.l.b16 %v4412
    %v4422 = vpack.c.b16 %v4419, %v4418
    %v4423 = vpack.c.b16 %v4421, %v4420
    %v4427 = vsel %vm293, %v4413, 0
    %4429 = vmatprep.subr.bf16.mxu0 0
    %4430 = vmatpush1.bf16.msra.mxu0 0
    %4431 = vmatprep.subr.bf16.mxu0 0
    %4432 = vmatpush1.bf16.msra.mxu0 0
    %4433 = vmatprep.subr.bf16.mxu0 0
    %4434 = vmatpush1.bf16.msra.mxu0 0
    %4435 = vmatprep.subr.bf16.mxu0 0
    %4436 = vmatpush1.bf16.msra.mxu0 0
    %4437 = vmatprep.subr.bf16.mxu0 0
    %4438 = vmatpush1.bf16.msra.mxu0 0
    %4439 = vmatprep.subr.bf16.mxu0 0
    %4440 = vmatpush1.bf16.msra.mxu0 0
    %4441 = vmatprep.subr.bf16.mxu0 0
    %4442 = vmatpush1.bf16.msra.mxu0 %v4423
    %4443 = vmatprep.subr.bf16.mxu0 0
    %4444 = vmatpush1.bf16.msra.mxu0 %v4422
    %4445 = vmatprep.subr.bf16.mxu0 0
    %4446 = vmatpush2.bf16.msra.mxu0 0
    %4447 = vmatprep.subr.bf16.mxu0 0
    %4448 = vmatpush2.bf16.msra.mxu0 0
    %4449 = vmatprep.subr.bf16.mxu0 0
    %4450 = vmatpush2.bf16.msra.mxu0 0
    %4451 = vmatprep.subr.bf16.mxu0 0
    %4452 = vmatpush2.bf16.msra.mxu0 0
    %4453 = vmatprep.subr.bf16.mxu0 0
    %4454 = vmatpush2.bf16.msra.mxu0 0
    %4455 = vmatprep.subr.bf16.mxu0 0
    %4456 = vmatpush2.bf16.msra.mxu0 0
    %4457 = vmatprep.subr.bf16.mxu0 0
    %4458 = vmatpush2.bf16.msra.mxu0 0
    %4459 = vmatprep.subr.bf16.mxu0 0
    %4460 = vmatpush2.bf16.msra.mxu0 0
    %4461 = vmatprep.mubr.bf16.mxu0 0
    %4462 = vmatmul.mubr.bf16.gmra.mxu0 %v4427
    %v4463 = vpop.f32.mrf.mxu0
    %v4464 = vadd.f32 0.0, %v4463
    %v4465 = vpop.f32.mrf.mxu0
    %v4466 = vpop.f32.mrf.mxu0
    %v4467 = vadd.f32 0.0, %v4466
    %v4468 = vpop.f32.mrf.mxu0
    %4469 = vdwg.mxu0
    %4472 = vrot.lane.b32.xlu0 %v4464, 120
    %v4473 = vpop.permute.xlu0 %4472
    %4474 = vrot.lane.b32.xlu0 %v4467, 120
    %v4475 = vpop.permute.xlu0 %4474
    %4478 = vrot.lane.b32.xlu0 %v4464, 112
    %v4479 = vpop.permute.xlu0 %4478
    %4480 = vrot.lane.b32.xlu0 %v4467, 112
    %v4481 = vpop.permute.xlu0 %4480
    %4484 = vrot.lane.b32.xlu0 %v4464, 104
    %v4485 = vpop.permute.xlu0 %4484
    %4486 = vrot.lane.b32.xlu0 %v4467, 104
    %v4487 = vpop.permute.xlu0 %4486
    %v4490 = vpack.c.bf16 %v4464, %v4464
    %v4491 = vpack.c.bf16 %v4467, %v4467
    %v4492 = vpack.c.bf16 %v4473, %v4473
    %v4493 = vpack.c.bf16 %v4475, %v4475
    %v4494 = vpack.c.bf16 %v4479, %v4479
    %v4495 = vpack.c.bf16 %v4481, %v4481
    %v4496 = vpack.c.bf16 %v4485, %v4485
    %v4497 = vpack.c.bf16 %v4487, %v4487
    %4499 = vrot.lane.b32.xlu0 %v4490, 96
    %v4500 = vpop.permute.xlu0 %4499
    %v4502 = vsel %vm419, %v4490, 0
    %v4505 = vsel %vm419, %v4500, 0
    %4507 = vmatprep.subr.bf16.mxu0 0
    %4508 = vmatpush1.bf16.xpose.msra.mxu0 0
    %4509 = vmatprep.subr.bf16.mxu0 0
    %4510 = vmatpush1.bf16.xpose.msra.mxu0 0
    %4511 = vmatprep.subr.bf16.mxu0 0
    %4512 = vmatpush1.bf16.xpose.msra.mxu0 0
    %4513 = vmatprep.subr.bf16.mxu0 0
    %4514 = vmatpush1.bf16.xpose.msra.mxu0 0
    %4515 = vmatprep.subr.bf16.mxu0 0
    %4516 = vmatpush1.bf16.xpose.msra.mxu0 0
    %4517 = vmatprep.subr.bf16.mxu0 0
    %4518 = vmatpush1.bf16.xpose.msra.mxu0 0
    %4519 = vmatprep.subr.bf16.mxu0 0
    %4520 = vmatpush1.bf16.xpose.msra.mxu0 0
    %4521 = vmatprep.subr.bf16.mxu0 0
    %4522 = vmatpush1.bf16.xpose.msra.mxu0 %v4505
    %4523 = vmatprep.subr.bf16.mxu0 0
    %4524 = vmatpush2.bf16.xpose.msra.mxu0 0
    %4525 = vmatprep.subr.bf16.mxu0 0
    %4526 = vmatpush2.bf16.xpose.msra.mxu0 0
    %4527 = vmatprep.subr.bf16.mxu0 0
    %4528 = vmatpush2.bf16.xpose.msra.mxu0 0
    %4529 = vmatprep.subr.bf16.mxu0 0
    %4530 = vmatpush2.bf16.xpose.msra.mxu0 0
    %4531 = vmatprep.subr.bf16.mxu0 0
    %4532 = vmatpush2.bf16.xpose.msra.mxu0 0
    %4533 = vmatprep.subr.bf16.mxu0 0
    %4534 = vmatpush2.bf16.xpose.msra.mxu0 0
    %4535 = vmatprep.subr.bf16.mxu0 0
    %4536 = vmatpush2.bf16.xpose.msra.mxu0 0
    %4537 = vmatprep.subr.bf16.mxu0 0
    %4538 = vmatpush2.bf16.xpose.msra.mxu0 0
    %4539 = vmatprep.mubr.bf16.mxu0 0
    %4540 = vmatmul.mubr.bf16.gmra.mxu0 %v4502
    %v4541 = vpop.f32.mrf.mxu0
    %v4542 = vadd.f32 %v288, %v4541
    %v4543 = vpop.f32.mrf.mxu0
    %v4544 = vpop.f32.mrf.mxu0
    %v4545 = vpop.f32.mrf.mxu0
    %4546 = vdwg.mxu0
    %4548 = vrot.lane.b32.xlu0 %v4491, 96
    %v4549 = vpop.permute.xlu0 %4548
    %v4551 = vsel %vm419, %v4491, 0
    %v4554 = vsel %vm419, %v4549, 0
    %4556 = vmatprep.subr.bf16.mxu0 0
    %4557 = vmatpush1.bf16.xpose.msra.mxu0 0
    %4558 = vmatprep.subr.bf16.mxu0 0
    %4559 = vmatpush1.bf16.xpose.msra.mxu0 0
    %4560 = vmatprep.subr.bf16.mxu0 0
    %4561 = vmatpush1.bf16.xpose.msra.mxu0 0
    %4562 = vmatprep.subr.bf16.mxu0 0
    %4563 = vmatpush1.bf16.xpose.msra.mxu0 0
    %4564 = vmatprep.subr.bf16.mxu0 0
    %4565 = vmatpush1.bf16.xpose.msra.mxu0 0
    %4566 = vmatprep.subr.bf16.mxu0 0
    %4567 = vmatpush1.bf16.xpose.msra.mxu0 0
    %4568 = vmatprep.subr.bf16.mxu0 0
    %4569 = vmatpush1.bf16.xpose.msra.mxu0 0
    %4570 = vmatprep.subr.bf16.mxu0 0
    %4571 = vmatpush1.bf16.xpose.msra.mxu0 %v4554
    %4572 = vmatprep.subr.bf16.mxu0 0
    %4573 = vmatpush2.bf16.xpose.msra.mxu0 0
    %4574 = vmatprep.subr.bf16.mxu0 0
    %4575 = vmatpush2.bf16.xpose.msra.mxu0 0
    %4576 = vmatprep.subr.bf16.mxu0 0
    %4577 = vmatpush2.bf16.xpose.msra.mxu0 0
    %4578 = vmatprep.subr.bf16.mxu0 0
    %4579 = vmatpush2.bf16.xpose.msra.mxu0 0
    %4580 = vmatprep.subr.bf16.mxu0 0
    %4581 = vmatpush2.bf16.xpose.msra.mxu0 0
    %4582 = vmatprep.subr.bf16.mxu0 0
    %4583 = vmatpush2.bf16.xpose.msra.mxu0 0
    %4584 = vmatprep.subr.bf16.mxu0 0
    %4585 = vmatpush2.bf16.xpose.msra.mxu0 0
    %4586 = vmatprep.subr.bf16.mxu0 0
    %4587 = vmatpush2.bf16.xpose.msra.mxu0 0
    %4588 = vmatprep.mubr.bf16.mxu0 0
    %4589 = vmatmul.mubr.bf16.gmra.mxu0 %v4551
    %v4590 = vpop.f32.mrf.mxu0
    %v4591 = vadd.f32 %v289, %v4590
    %v4592 = vpop.f32.mrf.mxu0
    %v4593 = vpop.f32.mrf.mxu0
    %v4594 = vpop.f32.mrf.mxu0
    %4595 = vdwg.mxu0
    %4597 = vrot.lane.b32.xlu0 %v4492, 96
    %v4598 = vpop.permute.xlu0 %4597
    %v4600 = vsel %vm419, %v4492, 0
    %v4603 = vsel %vm419, %v4598, 0
    %4605 = vmatprep.subr.bf16.mxu0 0
    %4606 = vmatpush1.bf16.xpose.msra.mxu0 0
    %4607 = vmatprep.subr.bf16.mxu0 0
    %4608 = vmatpush1.bf16.xpose.msra.mxu0 0
    %4609 = vmatprep.subr.bf16.mxu0 0
    %4610 = vmatpush1.bf16.xpose.msra.mxu0 0
    %4611 = vmatprep.subr.bf16.mxu0 0
    %4612 = vmatpush1.bf16.xpose.msra.mxu0 0
    %4613 = vmatprep.subr.bf16.mxu0 0
    %4614 = vmatpush1.bf16.xpose.msra.mxu0 0
    %4615 = vmatprep.subr.bf16.mxu0 0
    %4616 = vmatpush1.bf16.xpose.msra.mxu0 0
    %4617 = vmatprep.subr.bf16.mxu0 0
    %4618 = vmatpush1.bf16.xpose.msra.mxu0 0
    %4619 = vmatprep.subr.bf16.mxu0 0
    %4620 = vmatpush1.bf16.xpose.msra.mxu0 %v4603
    %4621 = vmatprep.subr.bf16.mxu0 0
    %4622 = vmatpush2.bf16.xpose.msra.mxu0 0
    %4623 = vmatprep.subr.bf16.mxu0 0
    %4624 = vmatpush2.bf16.xpose.msra.mxu0 0
    %4625 = vmatprep.subr.bf16.mxu0 0
    %4626 = vmatpush2.bf16.xpose.msra.mxu0 0
    %4627 = vmatprep.subr.bf16.mxu0 0
    %4628 = vmatpush2.bf16.xpose.msra.mxu0 0
    %4629 = vmatprep.subr.bf16.mxu0 0
    %4630 = vmatpush2.bf16.xpose.msra.mxu0 0
    %4631 = vmatprep.subr.bf16.mxu0 0
    %4632 = vmatpush2.bf16.xpose.msra.mxu0 0
    %4633 = vmatprep.subr.bf16.mxu0 0
    %4634 = vmatpush2.bf16.xpose.msra.mxu0 0
    %4635 = vmatprep.subr.bf16.mxu0 0
    %4636 = vmatpush2.bf16.xpose.msra.mxu0 0
    %4637 = vmatprep.mubr.bf16.mxu0 0
    %4638 = vmatmul.mubr.bf16.gmra.mxu0 %v4600
    %v4639 = vpop.f32.mrf.mxu0
    %v4640 = vadd.f32 %v288, %v4639
    %v4641 = vpop.f32.mrf.mxu0
    %v4642 = vpop.f32.mrf.mxu0
    %v4643 = vpop.f32.mrf.mxu0
    %4644 = vdwg.mxu0
    %4646 = vrot.lane.b32.xlu0 %v4493, 96
    %v4647 = vpop.permute.xlu0 %4646
    %v4649 = vsel %vm419, %v4493, 0
    %v4652 = vsel %vm419, %v4647, 0
    %4654 = vmatprep.subr.bf16.mxu0 0
    %4655 = vmatpush1.bf16.xpose.msra.mxu0 0
    %4656 = vmatprep.subr.bf16.mxu0 0
    %4657 = vmatpush1.bf16.xpose.msra.mxu0 0
    %4658 = vmatprep.subr.bf16.mxu0 0
    %4659 = vmatpush1.bf16.xpose.msra.mxu0 0
    %4660 = vmatprep.subr.bf16.mxu0 0
    %4661 = vmatpush1.bf16.xpose.msra.mxu0 0
    %4662 = vmatprep.subr.bf16.mxu0 0
    %4663 = vmatpush1.bf16.xpose.msra.mxu0 0
    %4664 = vmatprep.subr.bf16.mxu0 0
    %4665 = vmatpush1.bf16.xpose.msra.mxu0 0
    %4666 = vmatprep.subr.bf16.mxu0 0
    %4667 = vmatpush1.bf16.xpose.msra.mxu0 0
    %4668 = vmatprep.subr.bf16.mxu0 0
    %4669 = vmatpush1.bf16.xpose.msra.mxu0 %v4652
    %4670 = vmatprep.subr.bf16.mxu0 0
    %4671 = vmatpush2.bf16.xpose.msra.mxu0 0
    %4672 = vmatprep.subr.bf16.mxu0 0
    %4673 = vmatpush2.bf16.xpose.msra.mxu0 0
    %4674 = vmatprep.subr.bf16.mxu0 0
    %4675 = vmatpush2.bf16.xpose.msra.mxu0 0
    %4676 = vmatprep.subr.bf16.mxu0 0
    %4677 = vmatpush2.bf16.xpose.msra.mxu0 0
    %4678 = vmatprep.subr.bf16.mxu0 0
    %4679 = vmatpush2.bf16.xpose.msra.mxu0 0
    %4680 = vmatprep.subr.bf16.mxu0 0
    %4681 = vmatpush2.bf16.xpose.msra.mxu0 0
    %4682 = vmatprep.subr.bf16.mxu0 0
    %4683 = vmatpush2.bf16.xpose.msra.mxu0 0
    %4684 = vmatprep.subr.bf16.mxu0 0
    %4685 = vmatpush2.bf16.xpose.msra.mxu0 0
    %4686 = vmatprep.mubr.bf16.mxu0 0
    %4687 = vmatmul.mubr.bf16.gmra.mxu0 %v4649
    %v4688 = vpop.f32.mrf.mxu0
    %v4689 = vadd.f32 %v289, %v4688
    %v4690 = vpop.f32.mrf.mxu0
    %v4691 = vpop.f32.mrf.mxu0
    %v4692 = vpop.f32.mrf.mxu0
    %4693 = vdwg.mxu0
    %4695 = vrot.lane.b32.xlu0 %v4494, 96
    %v4696 = vpop.permute.xlu0 %4695
    %v4698 = vsel %vm419, %v4494, 0
    %v4701 = vsel %vm419, %v4696, 0
    %4703 = vmatprep.subr.bf16.mxu0 0
    %4704 = vmatpush1.bf16.xpose.msra.mxu0 0
    %4705 = vmatprep.subr.bf16.mxu0 0
    %4706 = vmatpush1.bf16.xpose.msra.mxu0 0
    %4707 = vmatprep.subr.bf16.mxu0 0
    %4708 = vmatpush1.bf16.xpose.msra.mxu0 0
    %4709 = vmatprep.subr.bf16.mxu0 0
    %4710 = vmatpush1.bf16.xpose.msra.mxu0 0
    %4711 = vmatprep.subr.bf16.mxu0 0
    %4712 = vmatpush1.bf16.xpose.msra.mxu0 0
    %4713 = vmatprep.subr.bf16.mxu0 0
    %4714 = vmatpush1.bf16.xpose.msra.mxu0 0
    %4715 = vmatprep.subr.bf16.mxu0 0
    %4716 = vmatpush1.bf16.xpose.msra.mxu0 0
    %4717 = vmatprep.subr.bf16.mxu0 0
    %4718 = vmatpush1.bf16.xpose.msra.mxu0 %v4701
    %4719 = vmatprep.subr.bf16.mxu0 0
    %4720 = vmatpush2.bf16.xpose.msra.mxu0 0
    %4721 = vmatprep.subr.bf16.mxu0 0
    %4722 = vmatpush2.bf16.xpose.msra.mxu0 0
    %4723 = vmatprep.subr.bf16.mxu0 0
    %4724 = vmatpush2.bf16.xpose.msra.mxu0 0
    %4725 = vmatprep.subr.bf16.mxu0 0
    %4726 = vmatpush2.bf16.xpose.msra.mxu0 0
    %4727 = vmatprep.subr.bf16.mxu0 0
    %4728 = vmatpush2.bf16.xpose.msra.mxu0 0
    %4729 = vmatprep.subr.bf16.mxu0 0
    %4730 = vmatpush2.bf16.xpose.msra.mxu0 0
    %4731 = vmatprep.subr.bf16.mxu0 0
    %4732 = vmatpush2.bf16.xpose.msra.mxu0 0
    %4733 = vmatprep.subr.bf16.mxu0 0
    %4734 = vmatpush2.bf16.xpose.msra.mxu0 0
    %4735 = vmatprep.mubr.bf16.mxu0 0
    %4736 = vmatmul.mubr.bf16.gmra.mxu0 %v4698
    %v4737 = vpop.f32.mrf.mxu0
    %v4738 = vadd.f32 %v288, %v4737
    %v4739 = vpop.f32.mrf.mxu0
    %v4740 = vpop.f32.mrf.mxu0
    %v4741 = vpop.f32.mrf.mxu0
    %4742 = vdwg.mxu0
    %4744 = vrot.lane.b32.xlu0 %v4495, 96
    %v4745 = vpop.permute.xlu0 %4744
    %v4747 = vsel %vm419, %v4495, 0
    %v4750 = vsel %vm419, %v4745, 0
    %4752 = vmatprep.subr.bf16.mxu0 0
    %4753 = vmatpush1.bf16.xpose.msra.mxu0 0
    %4754 = vmatprep.subr.bf16.mxu0 0
    %4755 = vmatpush1.bf16.xpose.msra.mxu0 0
    %4756 = vmatprep.subr.bf16.mxu0 0
    %4757 = vmatpush1.bf16.xpose.msra.mxu0 0
    %4758 = vmatprep.subr.bf16.mxu0 0
    %4759 = vmatpush1.bf16.xpose.msra.mxu0 0
    %4760 = vmatprep.subr.bf16.mxu0 0
    %4761 = vmatpush1.bf16.xpose.msra.mxu0 0
    %4762 = vmatprep.subr.bf16.mxu0 0
    %4763 = vmatpush1.bf16.xpose.msra.mxu0 0
    %4764 = vmatprep.subr.bf16.mxu0 0
    %4765 = vmatpush1.bf16.xpose.msra.mxu0 0
    %4766 = vmatprep.subr.bf16.mxu0 0
    %4767 = vmatpush1.bf16.xpose.msra.mxu0 %v4750
    %4768 = vmatprep.subr.bf16.mxu0 0
    %4769 = vmatpush2.bf16.xpose.msra.mxu0 0
    %4770 = vmatprep.subr.bf16.mxu0 0
    %4771 = vmatpush2.bf16.xpose.msra.mxu0 0
    %4772 = vmatprep.subr.bf16.mxu0 0
    %4773 = vmatpush2.bf16.xpose.msra.mxu0 0
    %4774 = vmatprep.subr.bf16.mxu0 0
    %4775 = vmatpush2.bf16.xpose.msra.mxu0 0
    %4776 = vmatprep.subr.bf16.mxu0 0
    %4777 = vmatpush2.bf16.xpose.msra.mxu0 0
    %4778 = vmatprep.subr.bf16.mxu0 0
    %4779 = vmatpush2.bf16.xpose.msra.mxu0 0
    %4780 = vmatprep.subr.bf16.mxu0 0
    %4781 = vmatpush2.bf16.xpose.msra.mxu0 0
    %4782 = vmatprep.subr.bf16.mxu0 0
    %4783 = vmatpush2.bf16.xpose.msra.mxu0 0
    %4784 = vmatprep.mubr.bf16.mxu0 0
    %4785 = vmatmul.mubr.bf16.gmra.mxu0 %v4747
    %v4786 = vpop.f32.mrf.mxu0
    %v4787 = vadd.f32 %v289, %v4786
    %v4788 = vpop.f32.mrf.mxu0
    %v4789 = vpop.f32.mrf.mxu0
    %v4790 = vpop.f32.mrf.mxu0
    %4791 = vdwg.mxu0
    %4793 = vrot.lane.b32.xlu0 %v4496, 96
    %v4794 = vpop.permute.xlu0 %4793
    %v4796 = vsel %vm419, %v4496, 0
    %v4799 = vsel %vm419, %v4794, 0
    %4801 = vmatprep.subr.bf16.mxu0 0
    %4802 = vmatpush1.bf16.xpose.msra.mxu0 0
    %4803 = vmatprep.subr.bf16.mxu0 0
    %4804 = vmatpush1.bf16.xpose.msra.mxu0 0
    %4805 = vmatprep.subr.bf16.mxu0 0
    %4806 = vmatpush1.bf16.xpose.msra.mxu0 0
    %4807 = vmatprep.subr.bf16.mxu0 0
    %4808 = vmatpush1.bf16.xpose.msra.mxu0 0
    %4809 = vmatprep.subr.bf16.mxu0 0
    %4810 = vmatpush1.bf16.xpose.msra.mxu0 0
    %4811 = vmatprep.subr.bf16.mxu0 0
    %4812 = vmatpush1.bf16.xpose.msra.mxu0 0
    %4813 = vmatprep.subr.bf16.mxu0 0
    %4814 = vmatpush1.bf16.xpose.msra.mxu0 0
    %4815 = vmatprep.subr.bf16.mxu0 0
    %4816 = vmatpush1.bf16.xpose.msra.mxu0 %v4799
    %4817 = vmatprep.subr.bf16.mxu0 0
    %4818 = vmatpush2.bf16.xpose.msra.mxu0 0
    %4819 = vmatprep.subr.bf16.mxu0 0
    %4820 = vmatpush2.bf16.xpose.msra.mxu0 0
    %4821 = vmatprep.subr.bf16.mxu0 0
    %4822 = vmatpush2.bf16.xpose.msra.mxu0 0
    %4823 = vmatprep.subr.bf16.mxu0 0
    %4824 = vmatpush2.bf16.xpose.msra.mxu0 0
    %4825 = vmatprep.subr.bf16.mxu0 0
    %4826 = vmatpush2.bf16.xpose.msra.mxu0 0
    %4827 = vmatprep.subr.bf16.mxu0 0
    %4828 = vmatpush2.bf16.xpose.msra.mxu0 0
    %4829 = vmatprep.subr.bf16.mxu0 0
    %4830 = vmatpush2.bf16.xpose.msra.mxu0 0
    %4831 = vmatprep.subr.bf16.mxu0 0
    %4832 = vmatpush2.bf16.xpose.msra.mxu0 0
    %4833 = vmatprep.mubr.bf16.mxu0 0
    %4834 = vmatmul.mubr.bf16.gmra.mxu0 %v4796
    %v4835 = vpop.f32.mrf.mxu0
    %v4836 = vadd.f32 %v288, %v4835
    %v4837 = vpop.f32.mrf.mxu0
    %v4838 = vpop.f32.mrf.mxu0
    %v4839 = vpop.f32.mrf.mxu0
    %4840 = vdwg.mxu0
    %4842 = vrot.lane.b32.xlu0 %v4497, 96
    %v4843 = vpop.permute.xlu0 %4842
    %v4845 = vsel %vm419, %v4497, 0
    %v4848 = vsel %vm419, %v4843, 0
    %4850 = vmatprep.subr.bf16.mxu0 0
    %4851 = vmatpush1.bf16.xpose.msra.mxu0 0
    %4852 = vmatprep.subr.bf16.mxu0 0
    %4853 = vmatpush1.bf16.xpose.msra.mxu0 0
    %4854 = vmatprep.subr.bf16.mxu0 0
    %4855 = vmatpush1.bf16.xpose.msra.mxu0 0
    %4856 = vmatprep.subr.bf16.mxu0 0
    %4857 = vmatpush1.bf16.xpose.msra.mxu0 0
    %4858 = vmatprep.subr.bf16.mxu0 0
    %4859 = vmatpush1.bf16.xpose.msra.mxu0 0
    %4860 = vmatprep.subr.bf16.mxu0 0
    %4861 = vmatpush1.bf16.xpose.msra.mxu0 0
    %4862 = vmatprep.subr.bf16.mxu0 0
    %4863 = vmatpush1.bf16.xpose.msra.mxu0 0
    %4864 = vmatprep.subr.bf16.mxu0 0
    %4865 = vmatpush1.bf16.xpose.msra.mxu0 %v4848
    %4866 = vmatprep.subr.bf16.mxu0 0
    %4867 = vmatpush2.bf16.xpose.msra.mxu0 0
    %4868 = vmatprep.subr.bf16.mxu0 0
    %4869 = vmatpush2.bf16.xpose.msra.mxu0 0
    %4870 = vmatprep.subr.bf16.mxu0 0
    %4871 = vmatpush2.bf16.xpose.msra.mxu0 0
    %4872 = vmatprep.subr.bf16.mxu0 0
    %4873 = vmatpush2.bf16.xpose.msra.mxu0 0
    %4874 = vmatprep.subr.bf16.mxu0 0
    %4875 = vmatpush2.bf16.xpose.msra.mxu0 0
    %4876 = vmatprep.subr.bf16.mxu0 0
    %4877 = vmatpush2.bf16.xpose.msra.mxu0 0
    %4878 = vmatprep.subr.bf16.mxu0 0
    %4879 = vmatpush2.bf16.xpose.msra.mxu0 0
    %4880 = vmatprep.subr.bf16.mxu0 0
    %4881 = vmatpush2.bf16.xpose.msra.mxu0 0
    %4882 = vmatprep.mubr.bf16.mxu0 0
    %4883 = vmatmul.mubr.bf16.gmra.mxu0 %v4845
    %v4884 = vpop.f32.mrf.mxu0
    %v4885 = vadd.f32 %v289, %v4884
    %v4886 = vpop.f32.mrf.mxu0
    %v4887 = vpop.f32.mrf.mxu0
    %v4888 = vpop.f32.mrf.mxu0
    %4889 = vdwg.mxu0
    %v4890 = vsel %vm419, %v4542, -inf
    %4891 = vmax.xlane.f32.xlu0 %v4890
    %v4892 = vpop.xlane.xlu0 %4891
    %v4893 = vsel %vm419, %v4591, -inf
    %4894 = vmax.xlane.f32.xlu0 %v4893
    %v4895 = vpop.xlane.xlu0 %4894
    %v4896 = vsel %vm419, %v4640, -inf
    %4897 = vmax.xlane.f32.xlu0 %v4896
    %v4898 = vpop.xlane.xlu0 %4897
    %v4899 = vsel %vm419, %v4689, -inf
    %4900 = vmax.xlane.f32.xlu0 %v4899
    %v4901 = vpop.xlane.xlu0 %4900
    %v4902 = vsel %vm419, %v4738, -inf
    %4903 = vmax.xlane.f32.xlu0 %v4902
    %v4904 = vpop.xlane.xlu0 %4903
    %v4905 = vsel %vm419, %v4787, -inf
    %4906 = vmax.xlane.f32.xlu0 %v4905
    %v4907 = vpop.xlane.xlu0 %4906
    %v4908 = vsel %vm419, %v4836, -inf
    %4909 = vmax.xlane.f32.xlu0 %v4908
    %v4910 = vpop.xlane.xlu0 %4909
    %v4911 = vsel %vm419, %v4885, -inf
    %4912 = vmax.xlane.f32.xlu0 %v4911
    %v4913 = vpop.xlane.xlu0 %4912
    %v4914 = vsub.f32 %v4542, %v4892
    %v4915 = vsub.f32 %v4591, %v4895
    %v4916 = vsub.f32 %v4640, %v4898
    %v4917 = vsub.f32 %v4689, %v4901
    %v4918 = vsub.f32 %v4738, %v4904
    %v4919 = vsub.f32 %v4787, %v4907
    %v4920 = vsub.f32 %v4836, %v4910
    %v4921 = vsub.f32 %v4885, %v4913
    %v4922 = vmul.f32 %v4914, 1.442695
    %v4923 = vpow.pop %v4922
    %v4924 = vmul.f32 %v4915, 1.442695
    %v4925 = vpow.pop %v4924
    %v4926 = vmul.f32 %v4916, 1.442695
    %v4927 = vpow.pop %v4926
    %v4928 = vmul.f32 %v4917, 1.442695
    %v4929 = vpow.pop %v4928
    %v4930 = vmul.f32 %v4918, 1.442695
    %v4931 = vpow.pop %v4930
    %v4932 = vmul.f32 %v4919, 1.442695
    %v4933 = vpow.pop %v4932
    %v4934 = vmul.f32 %v4920, 1.442695
    %v4935 = vpow.pop %v4934
    %v4936 = vmul.f32 %v4921, 1.442695
    %v4937 = vpow.pop %v4936
    %v4938 = vsel %vm419, %v4923, 0.0
    %4939 = vadd.xlane.f32.xlu0 %v4938
    %v4940 = vpop.xlane.xlu0 %4939
    %v4941 = vsel %vm419, %v4925, 0.0
    %4942 = vadd.xlane.f32.xlu0 %v4941
    %v4943 = vpop.xlane.xlu0 %4942
    %v4944 = vsel %vm419, %v4927, 0.0
    %4945 = vadd.xlane.f32.xlu0 %v4944
    %v4946 = vpop.xlane.xlu0 %4945
    %v4947 = vsel %vm419, %v4929, 0.0
    %4948 = vadd.xlane.f32.xlu0 %v4947
    %v4949 = vpop.xlane.xlu0 %4948
    %v4950 = vsel %vm419, %v4931, 0.0
    %4951 = vadd.xlane.f32.xlu0 %v4950
    %v4952 = vpop.xlane.xlu0 %4951
    %v4953 = vsel %vm419, %v4933, 0.0
    %4954 = vadd.xlane.f32.xlu0 %v4953
    %v4955 = vpop.xlane.xlu0 %4954
    %v4956 = vsel %vm419, %v4935, 0.0
    %4957 = vadd.xlane.f32.xlu0 %v4956
    %v4958 = vpop.xlane.xlu0 %4957
    %v4959 = vsel %vm419, %v4937, 0.0
    %4960 = vadd.xlane.f32.xlu0 %v4959
    %v4961 = vpop.xlane.xlu0 %4960
    %v4962 = vrcp.pop %v4940
    %v4963 = vmul.f32 %v4923, %v4962
    %v4964 = vrcp.pop %v4943
    %v4965 = vmul.f32 %v4925, %v4964
    %v4966 = vrcp.pop %v4946
    %v4967 = vmul.f32 %v4927, %v4966
    %v4968 = vrcp.pop %v4949
    %v4969 = vmul.f32 %v4929, %v4968
    %v4970 = vrcp.pop %v4952
    %v4971 = vmul.f32 %v4931, %v4970
    %v4972 = vrcp.pop %v4955
    %v4973 = vmul.f32 %v4933, %v4972
    %v4974 = vrcp.pop %v4958
    %v4975 = vmul.f32 %v4935, %v4974
    %v4976 = vrcp.pop %v4961
    %v4977 = vmul.f32 %v4937, %v4976
    %v4978 = vpack.c.bf16 %v4963, %v4963
    %v4979 = vpack.c.bf16 %v4965, %v4965
    %v4980 = vpack.c.bf16 %v4967, %v4967
    %v4981 = vpack.c.bf16 %v4969, %v4969
    %v4982 = vpack.c.bf16 %v4971, %v4971
    %v4983 = vpack.c.bf16 %v4973, %v4973
    %v4984 = vpack.c.bf16 %v4975, %v4975
    %v4985 = vpack.c.bf16 %v4977, %v4977
    %4986 = vrot.lane.b32.xlu0 %v4490, 64
    %v4987 = vpop.permute.xlu0 %4986
    %v4989 = vsel %vm419, %v4978, 0
    %v4992 = vsel %vm910, %v4987, 0
    %4994 = vmatprep.subr.bf16.mxu0 0
    %4995 = vmatpush1.bf16.msra.mxu0 0
    %4996 = vmatprep.subr.bf16.mxu0 0
    %4997 = vmatpush1.bf16.msra.mxu0 0
    %4998 = vmatprep.subr.bf16.mxu0 0
    %4999 = vmatpush1.bf16.msra.mxu0 0
    %5000 = vmatprep.subr.bf16.mxu0 0
    %5001 = vmatpush1.bf16.msra.mxu0 0
    %5002 = vmatprep.subr.bf16.mxu0 0
    %5003 = vmatpush1.bf16.msra.mxu0 0
    %5004 = vmatprep.subr.bf16.mxu0 0
    %5005 = vmatpush1.bf16.msra.mxu0 0
    %5006 = vmatprep.subr.bf16.mxu0 0
    %5007 = vmatpush1.bf16.msra.mxu0 0
    %5008 = vmatprep.subr.bf16.mxu0 0
    %5009 = vmatpush1.bf16.msra.mxu0 %v4992
    %5010 = vmatprep.subr.bf16.mxu0 0
    %5011 = vmatpush2.bf16.msra.mxu0 0
    %5012 = vmatprep.subr.bf16.mxu0 0
    %5013 = vmatpush2.bf16.msra.mxu0 0
    %5014 = vmatprep.subr.bf16.mxu0 0
    %5015 = vmatpush2.bf16.msra.mxu0 0
    %5016 = vmatprep.subr.bf16.mxu0 0
    %5017 = vmatpush2.bf16.msra.mxu0 0
    %5018 = vmatprep.subr.bf16.mxu0 0
    %5019 = vmatpush2.bf16.msra.mxu0 0
    %5020 = vmatprep.subr.bf16.mxu0 0
    %5021 = vmatpush2.bf16.msra.mxu0 0
    %5022 = vmatprep.subr.bf16.mxu0 0
    %5023 = vmatpush2.bf16.msra.mxu0 0
    %5024 = vmatprep.subr.bf16.mxu0 0
    %5025 = vmatpush2.bf16.msra.mxu0 0
    %5026 = vmatprep.mubr.bf16.mxu0 0
    %5027 = vmatmul.mubr.bf16.gmra.mxu0 %v4989
    %v5028 = vpop.f32.mrf.mxu0
    %v5029 = vadd.f32 0.0, %v5028
    %v5030 = vpop.f32.mrf.mxu0
    %v5031 = vpop.f32.mrf.mxu0
    %v5032 = vpop.f32.mrf.mxu0
    %5033 = vdwg.mxu0
    %5034 = vrot.lane.b32.xlu0 %v4491, 64
    %v5035 = vpop.permute.xlu0 %5034
    %v5037 = vsel %vm419, %v4979, 0
    %v5040 = vsel %vm910, %v5035, 0
    %5042 = vmatprep.subr.bf16.mxu0 0
    %5043 = vmatpush1.bf16.msra.mxu0 0
    %5044 = vmatprep.subr.bf16.mxu0 0
    %5045 = vmatpush1.bf16.msra.mxu0 0
    %5046 = vmatprep.subr.bf16.mxu0 0
    %5047 = vmatpush1.bf16.msra.mxu0 0
    %5048 = vmatprep.subr.bf16.mxu0 0
    %5049 = vmatpush1.bf16.msra.mxu0 0
    %5050 = vmatprep.subr.bf16.mxu0 0
    %5051 = vmatpush1.bf16.msra.mxu0 0
    %5052 = vmatprep.subr.bf16.mxu0 0
    %5053 = vmatpush1.bf16.msra.mxu0 0
    %5054 = vmatprep.subr.bf16.mxu0 0
    %5055 = vmatpush1.bf16.msra.mxu0 0
    %5056 = vmatprep.subr.bf16.mxu0 0
    %5057 = vmatpush1.bf16.msra.mxu0 %v5040
    %5058 = vmatprep.subr.bf16.mxu0 0
    %5059 = vmatpush2.bf16.msra.mxu0 0
    %5060 = vmatprep.subr.bf16.mxu0 0
    %5061 = vmatpush2.bf16.msra.mxu0 0
    %5062 = vmatprep.subr.bf16.mxu0 0
    %5063 = vmatpush2.bf16.msra.mxu0 0
    %5064 = vmatprep.subr.bf16.mxu0 0
    %5065 = vmatpush2.bf16.msra.mxu0 0
    %5066 = vmatprep.subr.bf16.mxu0 0
    %5067 = vmatpush2.bf16.msra.mxu0 0
    %5068 = vmatprep.subr.bf16.mxu0 0
    %5069 = vmatpush2.bf16.msra.mxu0 0
    %5070 = vmatprep.subr.bf16.mxu0 0
    %5071 = vmatpush2.bf16.msra.mxu0 0
    %5072 = vmatprep.subr.bf16.mxu0 0
    %5073 = vmatpush2.bf16.msra.mxu0 0
    %5074 = vmatprep.mubr.bf16.mxu0 0
    %5075 = vmatmul.mubr.bf16.gmra.mxu0 %v5037
    %v5076 = vpop.f32.mrf.mxu0
    %v5077 = vadd.f32 0.0, %v5076
    %v5078 = vpop.f32.mrf.mxu0
    %v5079 = vpop.f32.mrf.mxu0
    %v5080 = vpop.f32.mrf.mxu0
    %5081 = vdwg.mxu0
    %5082 = vrot.lane.b32.xlu0 %v4492, 64
    %v5083 = vpop.permute.xlu0 %5082
    %v5085 = vsel %vm419, %v4980, 0
    %v5088 = vsel %vm910, %v5083, 0
    %5090 = vmatprep.subr.bf16.mxu0 0
    %5091 = vmatpush1.bf16.msra.mxu0 0
    %5092 = vmatprep.subr.bf16.mxu0 0
    %5093 = vmatpush1.bf16.msra.mxu0 0
    %5094 = vmatprep.subr.bf16.mxu0 0
    %5095 = vmatpush1.bf16.msra.mxu0 0
    %5096 = vmatprep.subr.bf16.mxu0 0
    %5097 = vmatpush1.bf16.msra.mxu0 0
    %5098 = vmatprep.subr.bf16.mxu0 0
    %5099 = vmatpush1.bf16.msra.mxu0 0
    %5100 = vmatprep.subr.bf16.mxu0 0
    %5101 = vmatpush1.bf16.msra.mxu0 0
    %5102 = vmatprep.subr.bf16.mxu0 0
    %5103 = vmatpush1.bf16.msra.mxu0 0
    %5104 = vmatprep.subr.bf16.mxu0 0
    %5105 = vmatpush1.bf16.msra.mxu0 %v5088
    %5106 = vmatprep.subr.bf16.mxu0 0
    %5107 = vmatpush2.bf16.msra.mxu0 0
    %5108 = vmatprep.subr.bf16.mxu0 0
    %5109 = vmatpush2.bf16.msra.mxu0 0
    %5110 = vmatprep.subr.bf16.mxu0 0
    %5111 = vmatpush2.bf16.msra.mxu0 0
    %5112 = vmatprep.subr.bf16.mxu0 0
    %5113 = vmatpush2.bf16.msra.mxu0 0
    %5114 = vmatprep.subr.bf16.mxu0 0
    %5115 = vmatpush2.bf16.msra.mxu0 0
    %5116 = vmatprep.subr.bf16.mxu0 0
    %5117 = vmatpush2.bf16.msra.mxu0 0
    %5118 = vmatprep.subr.bf16.mxu0 0
    %5119 = vmatpush2.bf16.msra.mxu0 0
    %5120 = vmatprep.subr.bf16.mxu0 0
    %5121 = vmatpush2.bf16.msra.mxu0 0
    %5122 = vmatprep.mubr.bf16.mxu0 0
    %5123 = vmatmul.mubr.bf16.gmra.mxu0 %v5085
    %v5124 = vpop.f32.mrf.mxu0
    %v5125 = vadd.f32 0.0, %v5124
    %v5126 = vpop.f32.mrf.mxu0
    %v5127 = vpop.f32.mrf.mxu0
    %v5128 = vpop.f32.mrf.mxu0
    %5129 = vdwg.mxu0
    %5130 = vrot.lane.b32.xlu0 %v4493, 64
    %v5131 = vpop.permute.xlu0 %5130
    %v5133 = vsel %vm419, %v4981, 0
    %v5136 = vsel %vm910, %v5131, 0
    %5138 = vmatprep.subr.bf16.mxu0 0
    %5139 = vmatpush1.bf16.msra.mxu0 0
    %5140 = vmatprep.subr.bf16.mxu0 0
    %5141 = vmatpush1.bf16.msra.mxu0 0
    %5142 = vmatprep.subr.bf16.mxu0 0
    %5143 = vmatpush1.bf16.msra.mxu0 0
    %5144 = vmatprep.subr.bf16.mxu0 0
    %5145 = vmatpush1.bf16.msra.mxu0 0
    %5146 = vmatprep.subr.bf16.mxu0 0
    %5147 = vmatpush1.bf16.msra.mxu0 0
    %5148 = vmatprep.subr.bf16.mxu0 0
    %5149 = vmatpush1.bf16.msra.mxu0 0
    %5150 = vmatprep.subr.bf16.mxu0 0
    %5151 = vmatpush1.bf16.msra.mxu0 0
    %5152 = vmatprep.subr.bf16.mxu0 0
    %5153 = vmatpush1.bf16.msra.mxu0 %v5136
    %5154 = vmatprep.subr.bf16.mxu0 0
    %5155 = vmatpush2.bf16.msra.mxu0 0
    %5156 = vmatprep.subr.bf16.mxu0 0
    %5157 = vmatpush2.bf16.msra.mxu0 0
    %5158 = vmatprep.subr.bf16.mxu0 0
    %5159 = vmatpush2.bf16.msra.mxu0 0
    %5160 = vmatprep.subr.bf16.mxu0 0
    %5161 = vmatpush2.bf16.msra.mxu0 0
    %5162 = vmatprep.subr.bf16.mxu0 0
    %5163 = vmatpush2.bf16.msra.mxu0 0
    %5164 = vmatprep.subr.bf16.mxu0 0
    %5165 = vmatpush2.bf16.msra.mxu0 0
    %5166 = vmatprep.subr.bf16.mxu0 0
    %5167 = vmatpush2.bf16.msra.mxu0 0
    %5168 = vmatprep.subr.bf16.mxu0 0
    %5169 = vmatpush2.bf16.msra.mxu0 0
    %5170 = vmatprep.mubr.bf16.mxu0 0
    %5171 = vmatmul.mubr.bf16.gmra.mxu0 %v5133
    %v5172 = vpop.f32.mrf.mxu0
    %v5173 = vadd.f32 0.0, %v5172
    %v5174 = vpop.f32.mrf.mxu0
    %v5175 = vpop.f32.mrf.mxu0
    %v5176 = vpop.f32.mrf.mxu0
    %5177 = vdwg.mxu0
    %5178 = vrot.lane.b32.xlu0 %v4494, 64
    %v5179 = vpop.permute.xlu0 %5178
    %v5181 = vsel %vm419, %v4982, 0
    %v5184 = vsel %vm910, %v5179, 0
    %5186 = vmatprep.subr.bf16.mxu0 0
    %5187 = vmatpush1.bf16.msra.mxu0 0
    %5188 = vmatprep.subr.bf16.mxu0 0
    %5189 = vmatpush1.bf16.msra.mxu0 0
    %5190 = vmatprep.subr.bf16.mxu0 0
    %5191 = vmatpush1.bf16.msra.mxu0 0
    %5192 = vmatprep.subr.bf16.mxu0 0
    %5193 = vmatpush1.bf16.msra.mxu0 0
    %5194 = vmatprep.subr.bf16.mxu0 0
    %5195 = vmatpush1.bf16.msra.mxu0 0
    %5196 = vmatprep.subr.bf16.mxu0 0
    %5197 = vmatpush1.bf16.msra.mxu0 0
    %5198 = vmatprep.subr.bf16.mxu0 0
    %5199 = vmatpush1.bf16.msra.mxu0 0
    %5200 = vmatprep.subr.bf16.mxu0 0
    %5201 = vmatpush1.bf16.msra.mxu0 %v5184
    %5202 = vmatprep.subr.bf16.mxu0 0
    %5203 = vmatpush2.bf16.msra.mxu0 0
    %5204 = vmatprep.subr.bf16.mxu0 0
    %5205 = vmatpush2.bf16.msra.mxu0 0
    %5206 = vmatprep.subr.bf16.mxu0 0
    %5207 = vmatpush2.bf16.msra.mxu0 0
    %5208 = vmatprep.subr.bf16.mxu0 0
    %5209 = vmatpush2.bf16.msra.mxu0 0
    %5210 = vmatprep.subr.bf16.mxu0 0
    %5211 = vmatpush2.bf16.msra.mxu0 0
    %5212 = vmatprep.subr.bf16.mxu0 0
    %5213 = vmatpush2.bf16.msra.mxu0 0
    %5214 = vmatprep.subr.bf16.mxu0 0
    %5215 = vmatpush2.bf16.msra.mxu0 0
    %5216 = vmatprep.subr.bf16.mxu0 0
    %5217 = vmatpush2.bf16.msra.mxu0 0
    %5218 = vmatprep.mubr.bf16.mxu0 0
    %5219 = vmatmul.mubr.bf16.gmra.mxu0 %v5181
    %v5220 = vpop.f32.mrf.mxu0
    %v5221 = vadd.f32 0.0, %v5220
    %v5222 = vpop.f32.mrf.mxu0
    %v5223 = vpop.f32.mrf.mxu0
    %v5224 = vpop.f32.mrf.mxu0
    %5225 = vdwg.mxu0
    %5226 = vrot.lane.b32.xlu0 %v4495, 64
    %v5227 = vpop.permute.xlu0 %5226
    %v5229 = vsel %vm419, %v4983, 0
    %v5232 = vsel %vm910, %v5227, 0
    %5234 = vmatprep.subr.bf16.mxu0 0
    %5235 = vmatpush1.bf16.msra.mxu0 0
    %5236 = vmatprep.subr.bf16.mxu0 0
    %5237 = vmatpush1.bf16.msra.mxu0 0
    %5238 = vmatprep.subr.bf16.mxu0 0
    %5239 = vmatpush1.bf16.msra.mxu0 0
    %5240 = vmatprep.subr.bf16.mxu0 0
    %5241 = vmatpush1.bf16.msra.mxu0 0
    %5242 = vmatprep.subr.bf16.mxu0 0
    %5243 = vmatpush1.bf16.msra.mxu0 0
    %5244 = vmatprep.subr.bf16.mxu0 0
    %5245 = vmatpush1.bf16.msra.mxu0 0
    %5246 = vmatprep.subr.bf16.mxu0 0
    %5247 = vmatpush1.bf16.msra.mxu0 0
    %5248 = vmatprep.subr.bf16.mxu0 0
    %5249 = vmatpush1.bf16.msra.mxu0 %v5232
    %5250 = vmatprep.subr.bf16.mxu0 0
    %5251 = vmatpush2.bf16.msra.mxu0 0
    %5252 = vmatprep.subr.bf16.mxu0 0
    %5253 = vmatpush2.bf16.msra.mxu0 0
    %5254 = vmatprep.subr.bf16.mxu0 0
    %5255 = vmatpush2.bf16.msra.mxu0 0
    %5256 = vmatprep.subr.bf16.mxu0 0
    %5257 = vmatpush2.bf16.msra.mxu0 0
    %5258 = vmatprep.subr.bf16.mxu0 0
    %5259 = vmatpush2.bf16.msra.mxu0 0
    %5260 = vmatprep.subr.bf16.mxu0 0
    %5261 = vmatpush2.bf16.msra.mxu0 0
    %5262 = vmatprep.subr.bf16.mxu0 0
    %5263 = vmatpush2.bf16.msra.mxu0 0
    %5264 = vmatprep.subr.bf16.mxu0 0
    %5265 = vmatpush2.bf16.msra.mxu0 0
    %5266 = vmatprep.mubr.bf16.mxu0 0
    %5267 = vmatmul.mubr.bf16.gmra.mxu0 %v5229
    %v5268 = vpop.f32.mrf.mxu0
    %v5269 = vadd.f32 0.0, %v5268
    %v5270 = vpop.f32.mrf.mxu0
    %v5271 = vpop.f32.mrf.mxu0
    %v5272 = vpop.f32.mrf.mxu0
    %5273 = vdwg.mxu0
    %5274 = vrot.lane.b32.xlu0 %v4496, 64
    %v5275 = vpop.permute.xlu0 %5274
    %v5277 = vsel %vm419, %v4984, 0
    %v5280 = vsel %vm910, %v5275, 0
    %5282 = vmatprep.subr.bf16.mxu0 0
    %5283 = vmatpush1.bf16.msra.mxu0 0
    %5284 = vmatprep.subr.bf16.mxu0 0
    %5285 = vmatpush1.bf16.msra.mxu0 0
    %5286 = vmatprep.subr.bf16.mxu0 0
    %5287 = vmatpush1.bf16.msra.mxu0 0
    %5288 = vmatprep.subr.bf16.mxu0 0
    %5289 = vmatpush1.bf16.msra.mxu0 0
    %5290 = vmatprep.subr.bf16.mxu0 0
    %5291 = vmatpush1.bf16.msra.mxu0 0
    %5292 = vmatprep.subr.bf16.mxu0 0
    %5293 = vmatpush1.bf16.msra.mxu0 0
    %5294 = vmatprep.subr.bf16.mxu0 0
    %5295 = vmatpush1.bf16.msra.mxu0 0
    %5296 = vmatprep.subr.bf16.mxu0 0
    %5297 = vmatpush1.bf16.msra.mxu0 %v5280
    %5298 = vmatprep.subr.bf16.mxu0 0
    %5299 = vmatpush2.bf16.msra.mxu0 0
    %5300 = vmatprep.subr.bf16.mxu0 0
    %5301 = vmatpush2.bf16.msra.mxu0 0
    %5302 = vmatprep.subr.bf16.mxu0 0
    %5303 = vmatpush2.bf16.msra.mxu0 0
    %5304 = vmatprep.subr.bf16.mxu0 0
    %5305 = vmatpush2.bf16.msra.mxu0 0
    %5306 = vmatprep.subr.bf16.mxu0 0
    %5307 = vmatpush2.bf16.msra.mxu0 0
    %5308 = vmatprep.subr.bf16.mxu0 0
    %5309 = vmatpush2.bf16.msra.mxu0 0
    %5310 = vmatprep.subr.bf16.mxu0 0
    %5311 = vmatpush2.bf16.msra.mxu0 0
    %5312 = vmatprep.subr.bf16.mxu0 0
    %5313 = vmatpush2.bf16.msra.mxu0 0
    %5314 = vmatprep.mubr.bf16.mxu0 0
    %5315 = vmatmul.mubr.bf16.gmra.mxu0 %v5277
    %v5316 = vpop.f32.mrf.mxu0
    %v5317 = vadd.f32 0.0, %v5316
    %v5318 = vpop.f32.mrf.mxu0
    %v5319 = vpop.f32.mrf.mxu0
    %v5320 = vpop.f32.mrf.mxu0
    %5321 = vdwg.mxu0
    %5322 = vrot.lane.b32.xlu0 %v4497, 64
    %v5323 = vpop.permute.xlu0 %5322
    %v5325 = vsel %vm419, %v4985, 0
    %v5328 = vsel %vm910, %v5323, 0
    %5330 = vmatprep.subr.bf16.mxu0 0
    %5331 = vmatpush1.bf16.msra.mxu0 0
    %5332 = vmatprep.subr.bf16.mxu0 0
    %5333 = vmatpush1.bf16.msra.mxu0 0
    %5334 = vmatprep.subr.bf16.mxu0 0
    %5335 = vmatpush1.bf16.msra.mxu0 0
    %5336 = vmatprep.subr.bf16.mxu0 0
    %5337 = vmatpush1.bf16.msra.mxu0 0
    %5338 = vmatprep.subr.bf16.mxu0 0
    %5339 = vmatpush1.bf16.msra.mxu0 0
    %5340 = vmatprep.subr.bf16.mxu0 0
    %5341 = vmatpush1.bf16.msra.mxu0 0
    %5342 = vmatprep.subr.bf16.mxu0 0
    %5343 = vmatpush1.bf16.msra.mxu0 0
    %5344 = vmatprep.subr.bf16.mxu0 0
    %5345 = vmatpush1.bf16.msra.mxu0 %v5328
    %5346 = vmatprep.subr.bf16.mxu0 0
    %5347 = vmatpush2.bf16.msra.mxu0 0
    %5348 = vmatprep.subr.bf16.mxu0 0
    %5349 = vmatpush2.bf16.msra.mxu0 0
    %5350 = vmatprep.subr.bf16.mxu0 0
    %5351 = vmatpush2.bf16.msra.mxu0 0
    %5352 = vmatprep.subr.bf16.mxu0 0
    %5353 = vmatpush2.bf16.msra.mxu0 0
    %5354 = vmatprep.subr.bf16.mxu0 0
    %5355 = vmatpush2.bf16.msra.mxu0 0
    %5356 = vmatprep.subr.bf16.mxu0 0
    %5357 = vmatpush2.bf16.msra.mxu0 0
    %5358 = vmatprep.subr.bf16.mxu0 0
    %5359 = vmatpush2.bf16.msra.mxu0 0
    %5360 = vmatprep.subr.bf16.mxu0 0
    %5361 = vmatpush2.bf16.msra.mxu0 0
    %5362 = vmatprep.mubr.bf16.mxu0 0
    %5363 = vmatmul.mubr.bf16.gmra.mxu0 %v5325
    %v5364 = vpop.f32.mrf.mxu0
    %v5365 = vadd.f32 0.0, %v5364
    %v5366 = vpop.f32.mrf.mxu0
    %v5367 = vpop.f32.mrf.mxu0
    %v5368 = vpop.f32.mrf.mxu0
    %5369 = vdwg.mxu0
    %5372 = vrot.lane.b32.xlu0 %v5125, 8
    %v5373 = vpop.permute.xlu0 %5372
    %5374 = vrot.lane.b32.xlu0 %v5173, 8
    %v5375 = vpop.permute.xlu0 %5374
    %5380 = vrot.lane.b32.xlu0 %v5221, 16
    %v5381 = vpop.permute.xlu0 %5380
    %5382 = vrot.lane.b32.xlu0 %v5269, 16
    %v5383 = vpop.permute.xlu0 %5382
    %5388 = vrot.lane.b32.xlu0 %v5317, 24
    %v5389 = vpop.permute.xlu0 %5388
    %5390 = vrot.lane.b32.xlu0 %v5365, 24
    %v5391 = vpop.permute.xlu0 %5390
    %v5394 = vsel %vm419, %v5029, %v5373
    %v5395 = vsel %vm419, %v5077, %v5375
    %v5396 = vsel %vm1316, %v5394, %v5381
    %v5397 = vsel %vm1316, %v5395, %v5383
    %v5398 = vsel %vm1319, %v5396, %v5389
    %v5399 = vsel %vm1319, %v5397, %v5391
    %v5400 = vld [vmem:[#allocation2 + $0x10] sm:$0xf]
    %v5401 = vld [vmem:[#allocation2 + $0x38] sm:$0xf]
    %v5402 = vld [vmem:[#allocation2 + $0x60] sm:$0xf]
    %v5403 = vld [vmem:[#allocation2 + $0x88] sm:$0xf]
    %v5404 = vpack.c.bf16 %v5399, %v5398
    %v5409 = vunpack.c.l.b16 %v5400
    %v5410 = vunpack.c.l.b16 %v5401
    %v5411 = vunpack.c.l.b16 %v5402
    %v5412 = vunpack.c.l.b16 %v5403
    %v5413 = vpack.c.b16 %v5410, %v5409
    %v5414 = vpack.c.b16 %v5412, %v5411
    %v5418 = vsel %vm293, %v5404, 0
    %5420 = vmatprep.subr.bf16.mxu0 0
    %5421 = vmatpush1.bf16.msra.mxu0 0
    %5422 = vmatprep.subr.bf16.mxu0 0
    %5423 = vmatpush1.bf16.msra.mxu0 0
    %5424 = vmatprep.subr.bf16.mxu0 0
    %5425 = vmatpush1.bf16.msra.mxu0 0
    %5426 = vmatprep.subr.bf16.mxu0 0
    %5427 = vmatpush1.bf16.msra.mxu0 0
    %5428 = vmatprep.subr.bf16.mxu0 0
    %5429 = vmatpush1.bf16.msra.mxu0 0
    %5430 = vmatprep.subr.bf16.mxu0 0
    %5431 = vmatpush1.bf16.msra.mxu0 0
    %5432 = vmatprep.subr.bf16.mxu0 0
    %5433 = vmatpush1.bf16.msra.mxu0 %v5414
    %5434 = vmatprep.subr.bf16.mxu0 0
    %5435 = vmatpush1.bf16.msra.mxu0 %v5413
    %5436 = vmatprep.subr.bf16.mxu0 0
    %5437 = vmatpush2.bf16.msra.mxu0 0
    %5438 = vmatprep.subr.bf16.mxu0 0
    %5439 = vmatpush2.bf16.msra.mxu0 0
    %5440 = vmatprep.subr.bf16.mxu0 0
    %5441 = vmatpush2.bf16.msra.mxu0 0
    %5442 = vmatprep.subr.bf16.mxu0 0
    %5443 = vmatpush2.bf16.msra.mxu0 0
    %5444 = vmatprep.subr.bf16.mxu0 0
    %5445 = vmatpush2.bf16.msra.mxu0 0
    %5446 = vmatprep.subr.bf16.mxu0 0
    %5447 = vmatpush2.bf16.msra.mxu0 0
    %5448 = vmatprep.subr.bf16.mxu0 0
    %5449 = vmatpush2.bf16.msra.mxu0 0
    %5450 = vmatprep.subr.bf16.mxu0 0
    %5451 = vmatpush2.bf16.msra.mxu0 0
    %5452 = vmatprep.mubr.bf16.mxu0 0
    %5453 = vmatmul.mubr.bf16.gmra.mxu0 %v5418
    %v5454 = vpop.f32.mrf.mxu0
    %v5455 = vadd.f32 0.0, %v5454
    %v5456 = vpop.f32.mrf.mxu0
    %v5457 = vpop.f32.mrf.mxu0
    %v5458 = vadd.f32 0.0, %v5457
    %v5459 = vpop.f32.mrf.mxu0
    %5460 = vdwg.mxu0
    %v5461 = vadd.f32 %v244, %v5455
    %v5462 = vadd.f32 %v249, %v5458
    %v5463 = vld [vmem:[%s3 + $0x4] sm:$0x1]
    %v5464 = vmul.f32 %v5461, %v5461
    %v5465 = vmul.f32 %v5462, %v5462
    %v5466 = vsel %vm293, %v5464, 0.0
    %5467 = vadd.xlane.f32.xlu0 %v5466
    %v5468 = vpop.xlane.xlu0 %5467
    %v5469 = vsel %vm293, %v5465, 0.0
    %5470 = vadd.xlane.f32.xlu0 %v5469
    %v5471 = vpop.xlane.xlu0 %5470
    %v5472 = vmul.f32 %v5468, %v300
    %v5473 = vmul.f32 %v5471, %v300
    %v5474 = vadd.f32 %v5472, 1e-06
    %v5475 = vadd.f32 %v5473, 1e-06
    %v5476 = vrsqrt.pop %v5474
    %v5477 = vrsqrt.pop %v5475
    %v5478 = vmul.f32 %v5461, %v5476
    %v5479 = vmul.f32 %v5462, %v5477
    %v5480 = vlaneseq
    %v5481 = vshrl.u32 %v5480, 7
    %v5482 = vsub.s32 0, %v5481
    %v5483 = vrot.slane %v5463, %v5482
    %v5484 = vmul.f32 %v5478, %v5483
    %v5485 = vmul.f32 %v5479, %v5483
    %v5486 = vld [vmem:[#allocation2 + $0x14] sm:$0xf]
    %v5487 = vld [vmem:[#allocation2 + $0x3c] sm:$0xf]
    %v5488 = vld [vmem:[#allocation2 + $0x64] sm:$0xf]
    %v5489 = vld [vmem:[#allocation2 + $0x8c] sm:$0xf]
    %v5490 = vpack.c.bf16 %v5485, %v5484
    %v5495 = vunpack.c.l.b16 %v5486
    %v5496 = vunpack.c.l.b16 %v5487
    %v5497 = vunpack.c.l.b16 %v5488
    %v5498 = vunpack.c.l.b16 %v5489
    %v5499 = vpack.c.b16 %v5496, %v5495
    %v5500 = vpack.c.b16 %v5498, %v5497
    %v5504 = vsel %vm293, %v5490, 0
    %5506 = vmatprep.subr.bf16.mxu0 0
    %5507 = vmatpush1.bf16.msra.mxu0 0
    %5508 = vmatprep.subr.bf16.mxu0 0
    %5509 = vmatpush1.bf16.msra.mxu0 0
    %5510 = vmatprep.subr.bf16.mxu0 0
    %5511 = vmatpush1.bf16.msra.mxu0 0
    %5512 = vmatprep.subr.bf16.mxu0 0
    %5513 = vmatpush1.bf16.msra.mxu0 0
    %5514 = vmatprep.subr.bf16.mxu0 0
    %5515 = vmatpush1.bf16.msra.mxu0 0
    %5516 = vmatprep.subr.bf16.mxu0 0
    %5517 = vmatpush1.bf16.msra.mxu0 0
    %5518 = vmatprep.subr.bf16.mxu0 0
    %5519 = vmatpush1.bf16.msra.mxu0 %v5500
    %5520 = vmatprep.subr.bf16.mxu0 0
    %5521 = vmatpush1.bf16.msra.mxu0 %v5499
    %5522 = vmatprep.subr.bf16.mxu0 0
    %5523 = vmatpush2.bf16.msra.mxu0 0
    %5524 = vmatprep.subr.bf16.mxu0 0
    %5525 = vmatpush2.bf16.msra.mxu0 0
    %5526 = vmatprep.subr.bf16.mxu0 0
    %5527 = vmatpush2.bf16.msra.mxu0 0
    %5528 = vmatprep.subr.bf16.mxu0 0
    %5529 = vmatpush2.bf16.msra.mxu0 0
    %5530 = vmatprep.subr.bf16.mxu0 0
    %5531 = vmatpush2.bf16.msra.mxu0 0
    %5532 = vmatprep.subr.bf16.mxu0 0
    %5533 = vmatpush2.bf16.msra.mxu0 0
    %5534 = vmatprep.subr.bf16.mxu0 0
    %5535 = vmatpush2.bf16.msra.mxu0 0
    %5536 = vmatprep.subr.bf16.mxu0 0
    %5537 = vmatpush2.bf16.msra.mxu0 0
    %5538 = vmatprep.mubr.bf16.mxu0 0
    %5539 = vmatmul.mubr.bf16.gmra.mxu0 %v5504
    %v5540 = vpop.f32.mrf.mxu0
    %v5541 = vadd.f32 0.0, %v5540
    %v5542 = vpop.f32.mrf.mxu0
    %v5543 = vpop.f32.mrf.mxu0
    %v5544 = vadd.f32 0.0, %v5543
    %v5545 = vpop.f32.mrf.mxu0
    %5546 = vdwg.mxu0
    %v5547 = vld [vmem:[#allocation2 + $0x18] sm:$0xf]
    %v5548 = vld [vmem:[#allocation2 + $0x40] sm:$0xf]
    %v5549 = vld [vmem:[#allocation2 + $0x68] sm:$0xf]
    %v5550 = vld [vmem:[#allocation2 + $0x90] sm:$0xf]
    %v5551 = vpack.c.bf16 %v4401, %v4400
    %v5556 = vunpack.c.l.b16 %v5547
    %v5557 = vunpack.c.l.b16 %v5548
    %v5558 = vunpack.c.l.b16 %v5549
    %v5559 = vunpack.c.l.b16 %v5550
    %v5560 = vpack.c.b16 %v5557, %v5556
    %v5561 = vpack.c.b16 %v5559, %v5558
    %v5565 = vsel %vm293, %v5551, 0
    %5567 = vmatprep.subr.bf16.mxu0 0
    %5568 = vmatpush1.bf16.msra.mxu0 0
    %5569 = vmatprep.subr.bf16.mxu0 0
    %5570 = vmatpush1.bf16.msra.mxu0 0
    %5571 = vmatprep.subr.bf16.mxu0 0
    %5572 = vmatpush1.bf16.msra.mxu0 0
    %5573 = vmatprep.subr.bf16.mxu0 0
    %5574 = vmatpush1.bf16.msra.mxu0 0
    %5575 = vmatprep.subr.bf16.mxu0 0
    %5576 = vmatpush1.bf16.msra.mxu0 0
    %5577 = vmatprep.subr.bf16.mxu0 0
    %5578 = vmatpush1.bf16.msra.mxu0 0
    %5579 = vmatprep.subr.bf16.mxu0 0
    %5580 = vmatpush1.bf16.msra.mxu0 %v5561
    %5581 = vmatprep.subr.bf16.mxu0 0
    %5582 = vmatpush1.bf16.msra.mxu0 %v5560
    %5583 = vmatprep.subr.bf16.mxu0 0
    %5584 = vmatpush2.bf16.msra.mxu0 0
    %5585 = vmatprep.subr.bf16.mxu0 0
    %5586 = vmatpush2.bf16.msra.mxu0 0
    %5587 = vmatprep.subr.bf16.mxu0 0
    %5588 = vmatpush2.bf16.msra.mxu0 0
    %5589 = vmatprep.subr.bf16.mxu0 0
    %5590 = vmatpush2.bf16.msra.mxu0 0
    %5591 = vmatprep.subr.bf16.mxu0 0
    %5592 = vmatpush2.bf16.msra.mxu0 0
    %5593 = vmatprep.subr.bf16.mxu0 0
    %5594 = vmatpush2.bf16.msra.mxu0 0
    %5595 = vmatprep.subr.bf16.mxu0 0
    %5596 = vmatpush2.bf16.msra.mxu0 0
    %5597 = vmatprep.subr.bf16.mxu0 0
    %5598 = vmatpush2.bf16.msra.mxu0 0
    %5599 = vmatprep.mubr.bf16.mxu0 0
    %5600 = vmatmul.mubr.bf16.gmra.mxu0 %v5565
    %v5601 = vpop.f32.mrf.mxu0
    %v5602 = vadd.f32 0.0, %v5601
    %v5603 = vpop.f32.mrf.mxu0
    %v5604 = vpop.f32.mrf.mxu0
    %v5605 = vadd.f32 0.0, %v5604
    %v5606 = vpop.f32.mrf.mxu0
    %5607 = vdwg.mxu0
    %5610 = vrot.lane.b32.xlu0 %v5541, 120
    %v5611 = vpop.permute.xlu0 %5610
    %5612 = vrot.lane.b32.xlu0 %v5544, 120
    %v5613 = vpop.permute.xlu0 %5612
    %5616 = vrot.lane.b32.xlu0 %v5541, 112
    %v5617 = vpop.permute.xlu0 %5616
    %5618 = vrot.lane.b32.xlu0 %v5544, 112
    %v5619 = vpop.permute.xlu0 %5618
    %5622 = vrot.lane.b32.xlu0 %v5541, 104
    %v5623 = vpop.permute.xlu0 %5622
    %5624 = vrot.lane.b32.xlu0 %v5544, 104
    %v5625 = vpop.permute.xlu0 %5624
    %v5628 = vpack.c.bf16 %v5541, %v5541
    %v5629 = vpack.c.bf16 %v5544, %v5544
    %v5630 = vpack.c.bf16 %v5611, %v5611
    %v5631 = vpack.c.bf16 %v5613, %v5613
    %v5632 = vpack.c.bf16 %v5617, %v5617
    %v5633 = vpack.c.bf16 %v5619, %v5619
    %v5634 = vpack.c.bf16 %v5623, %v5623
    %v5635 = vpack.c.bf16 %v5625, %v5625
    %5638 = vrot.lane.b32.xlu0 %v5602, 120
    %v5639 = vpop.permute.xlu0 %5638
    %5640 = vrot.lane.b32.xlu0 %v5605, 120
    %v5641 = vpop.permute.xlu0 %5640
    %5644 = vrot.lane.b32.xlu0 %v5602, 112
    %v5645 = vpop.permute.xlu0 %5644
    %5646 = vrot.lane.b32.xlu0 %v5605, 112
    %v5647 = vpop.permute.xlu0 %5646
    %5650 = vrot.lane.b32.xlu0 %v5602, 104
    %v5651 = vpop.permute.xlu0 %5650
    %5652 = vrot.lane.b32.xlu0 %v5605, 104
    %v5653 = vpop.permute.xlu0 %5652
    %v5656 = vpack.c.bf16 %v5602, %v5602
    %v5657 = vpack.c.bf16 %v5605, %v5605
    %v5658 = vpack.c.bf16 %v5639, %v5639
    %v5659 = vpack.c.bf16 %v5641, %v5641
    %v5660 = vpack.c.bf16 %v5645, %v5645
    %v5661 = vpack.c.bf16 %v5647, %v5647
    %v5662 = vpack.c.bf16 %v5651, %v5651
    %v5663 = vpack.c.bf16 %v5653, %v5653
    %v5665 = vsel %vm419, %v5628, 0
    %v5668 = vsel %vm419, %v5656, 0
    %5670 = vmatprep.subr.bf16.mxu0 0
    %5671 = vmatpush1.bf16.xpose.msra.mxu0 0
    %5672 = vmatprep.subr.bf16.mxu0 0
    %5673 = vmatpush1.bf16.xpose.msra.mxu0 0
    %5674 = vmatprep.subr.bf16.mxu0 0
    %5675 = vmatpush1.bf16.xpose.msra.mxu0 0
    %5676 = vmatprep.subr.bf16.mxu0 0
    %5677 = vmatpush1.bf16.xpose.msra.mxu0 0
    %5678 = vmatprep.subr.bf16.mxu0 0
    %5679 = vmatpush1.bf16.xpose.msra.mxu0 0
    %5680 = vmatprep.subr.bf16.mxu0 0
    %5681 = vmatpush1.bf16.xpose.msra.mxu0 0
    %5682 = vmatprep.subr.bf16.mxu0 0
    %5683 = vmatpush1.bf16.xpose.msra.mxu0 0
    %5684 = vmatprep.subr.bf16.mxu0 0
    %5685 = vmatpush1.bf16.xpose.msra.mxu0 %v5668
    %5686 = vmatprep.subr.bf16.mxu0 0
    %5687 = vmatpush2.bf16.xpose.msra.mxu0 0
    %5688 = vmatprep.subr.bf16.mxu0 0
    %5689 = vmatpush2.bf16.xpose.msra.mxu0 0
    %5690 = vmatprep.subr.bf16.mxu0 0
    %5691 = vmatpush2.bf16.xpose.msra.mxu0 0
    %5692 = vmatprep.subr.bf16.mxu0 0
    %5693 = vmatpush2.bf16.xpose.msra.mxu0 0
    %5694 = vmatprep.subr.bf16.mxu0 0
    %5695 = vmatpush2.bf16.xpose.msra.mxu0 0
    %5696 = vmatprep.subr.bf16.mxu0 0
    %5697 = vmatpush2.bf16.xpose.msra.mxu0 0
    %5698 = vmatprep.subr.bf16.mxu0 0
    %5699 = vmatpush2.bf16.xpose.msra.mxu0 0
    %5700 = vmatprep.subr.bf16.mxu0 0
    %5701 = vmatpush2.bf16.xpose.msra.mxu0 0
    %5702 = vmatprep.mubr.bf16.mxu0 0
    %5703 = vmatmul.mubr.bf16.gmra.mxu0 %v5665
    %v5704 = vpop.f32.mrf.mxu0
    %v5705 = vadd.f32 0.0, %v5704
    %v5706 = vpop.f32.mrf.mxu0
    %v5707 = vpop.f32.mrf.mxu0
    %v5708 = vpop.f32.mrf.mxu0
    %5709 = vdwg.mxu0
    %v5711 = vsel %vm419, %v5629, 0
    %v5714 = vsel %vm419, %v5657, 0
    %5716 = vmatprep.subr.bf16.mxu0 0
    %5717 = vmatpush1.bf16.xpose.msra.mxu0 0
    %5718 = vmatprep.subr.bf16.mxu0 0
    %5719 = vmatpush1.bf16.xpose.msra.mxu0 0
    %5720 = vmatprep.subr.bf16.mxu0 0
    %5721 = vmatpush1.bf16.xpose.msra.mxu0 0
    %5722 = vmatprep.subr.bf16.mxu0 0
    %5723 = vmatpush1.bf16.xpose.msra.mxu0 0
    %5724 = vmatprep.subr.bf16.mxu0 0
    %5725 = vmatpush1.bf16.xpose.msra.mxu0 0
    %5726 = vmatprep.subr.bf16.mxu0 0
    %5727 = vmatpush1.bf16.xpose.msra.mxu0 0
    %5728 = vmatprep.subr.bf16.mxu0 0
    %5729 = vmatpush1.bf16.xpose.msra.mxu0 0
    %5730 = vmatprep.subr.bf16.mxu0 0
    %5731 = vmatpush1.bf16.xpose.msra.mxu0 %v5714
    %5732 = vmatprep.subr.bf16.mxu0 0
    %5733 = vmatpush2.bf16.xpose.msra.mxu0 0
    %5734 = vmatprep.subr.bf16.mxu0 0
    %5735 = vmatpush2.bf16.xpose.msra.mxu0 0
    %5736 = vmatprep.subr.bf16.mxu0 0
    %5737 = vmatpush2.bf16.xpose.msra.mxu0 0
    %5738 = vmatprep.subr.bf16.mxu0 0
    %5739 = vmatpush2.bf16.xpose.msra.mxu0 0
    %5740 = vmatprep.subr.bf16.mxu0 0
    %5741 = vmatpush2.bf16.xpose.msra.mxu0 0
    %5742 = vmatprep.subr.bf16.mxu0 0
    %5743 = vmatpush2.bf16.xpose.msra.mxu0 0
    %5744 = vmatprep.subr.bf16.mxu0 0
    %5745 = vmatpush2.bf16.xpose.msra.mxu0 0
    %5746 = vmatprep.subr.bf16.mxu0 0
    %5747 = vmatpush2.bf16.xpose.msra.mxu0 0
    %5748 = vmatprep.mubr.bf16.mxu0 0
    %5749 = vmatmul.mubr.bf16.gmra.mxu0 %v5711
    %v5750 = vpop.f32.mrf.mxu0
    %v5751 = vadd.f32 0.0, %v5750
    %v5752 = vpop.f32.mrf.mxu0
    %v5753 = vpop.f32.mrf.mxu0
    %v5754 = vpop.f32.mrf.mxu0
    %5755 = vdwg.mxu0
    %v5757 = vsel %vm419, %v5630, 0
    %v5760 = vsel %vm419, %v5658, 0
    %5762 = vmatprep.subr.bf16.mxu0 0
    %5763 = vmatpush1.bf16.xpose.msra.mxu0 0
    %5764 = vmatprep.subr.bf16.mxu0 0
    %5765 = vmatpush1.bf16.xpose.msra.mxu0 0
    %5766 = vmatprep.subr.bf16.mxu0 0
    %5767 = vmatpush1.bf16.xpose.msra.mxu0 0
    %5768 = vmatprep.subr.bf16.mxu0 0
    %5769 = vmatpush1.bf16.xpose.msra.mxu0 0
    %5770 = vmatprep.subr.bf16.mxu0 0
    %5771 = vmatpush1.bf16.xpose.msra.mxu0 0
    %5772 = vmatprep.subr.bf16.mxu0 0
    %5773 = vmatpush1.bf16.xpose.msra.mxu0 0
    %5774 = vmatprep.subr.bf16.mxu0 0
    %5775 = vmatpush1.bf16.xpose.msra.mxu0 0
    %5776 = vmatprep.subr.bf16.mxu0 0
    %5777 = vmatpush1.bf16.xpose.msra.mxu0 %v5760
    %5778 = vmatprep.subr.bf16.mxu0 0
    %5779 = vmatpush2.bf16.xpose.msra.mxu0 0
    %5780 = vmatprep.subr.bf16.mxu0 0
    %5781 = vmatpush2.bf16.xpose.msra.mxu0 0
    %5782 = vmatprep.subr.bf16.mxu0 0
    %5783 = vmatpush2.bf16.xpose.msra.mxu0 0
    %5784 = vmatprep.subr.bf16.mxu0 0
    %5785 = vmatpush2.bf16.xpose.msra.mxu0 0
    %5786 = vmatprep.subr.bf16.mxu0 0
    %5787 = vmatpush2.bf16.xpose.msra.mxu0 0
    %5788 = vmatprep.subr.bf16.mxu0 0
    %5789 = vmatpush2.bf16.xpose.msra.mxu0 0
    %5790 = vmatprep.subr.bf16.mxu0 0
    %5791 = vmatpush2.bf16.xpose.msra.mxu0 0
    %5792 = vmatprep.subr.bf16.mxu0 0
    %5793 = vmatpush2.bf16.xpose.msra.mxu0 0
    %5794 = vmatprep.mubr.bf16.mxu0 0
    %5795 = vmatmul.mubr.bf16.gmra.mxu0 %v5757
    %v5796 = vpop.f32.mrf.mxu0
    %v5797 = vadd.f32 0.0, %v5796
    %v5798 = vpop.f32.mrf.mxu0
    %v5799 = vpop.f32.mrf.mxu0
    %v5800 = vpop.f32.mrf.mxu0
    %5801 = vdwg.mxu0
    %v5803 = vsel %vm419, %v5631, 0
    %v5806 = vsel %vm419, %v5659, 0
    %5808 = vmatprep.subr.bf16.mxu0 0
    %5809 = vmatpush1.bf16.xpose.msra.mxu0 0
    %5810 = vmatprep.subr.bf16.mxu0 0
    %5811 = vmatpush1.bf16.xpose.msra.mxu0 0
    %5812 = vmatprep.subr.bf16.mxu0 0
    %5813 = vmatpush1.bf16.xpose.msra.mxu0 0
    %5814 = vmatprep.subr.bf16.mxu0 0
    %5815 = vmatpush1.bf16.xpose.msra.mxu0 0
    %5816 = vmatprep.subr.bf16.mxu0 0
    %5817 = vmatpush1.bf16.xpose.msra.mxu0 0
    %5818 = vmatprep.subr.bf16.mxu0 0
    %5819 = vmatpush1.bf16.xpose.msra.mxu0 0
    %5820 = vmatprep.subr.bf16.mxu0 0
    %5821 = vmatpush1.bf16.xpose.msra.mxu0 0
    %5822 = vmatprep.subr.bf16.mxu0 0
    %5823 = vmatpush1.bf16.xpose.msra.mxu0 %v5806
    %5824 = vmatprep.subr.bf16.mxu0 0
    %5825 = vmatpush2.bf16.xpose.msra.mxu0 0
    %5826 = vmatprep.subr.bf16.mxu0 0
    %5827 = vmatpush2.bf16.xpose.msra.mxu0 0
    %5828 = vmatprep.subr.bf16.mxu0 0
    %5829 = vmatpush2.bf16.xpose.msra.mxu0 0
    %5830 = vmatprep.subr.bf16.mxu0 0
    %5831 = vmatpush2.bf16.xpose.msra.mxu0 0
    %5832 = vmatprep.subr.bf16.mxu0 0
    %5833 = vmatpush2.bf16.xpose.msra.mxu0 0
    %5834 = vmatprep.subr.bf16.mxu0 0
    %5835 = vmatpush2.bf16.xpose.msra.mxu0 0
    %5836 = vmatprep.subr.bf16.mxu0 0
    %5837 = vmatpush2.bf16.xpose.msra.mxu0 0
    %5838 = vmatprep.subr.bf16.mxu0 0
    %5839 = vmatpush2.bf16.xpose.msra.mxu0 0
    %5840 = vmatprep.mubr.bf16.mxu0 0
    %5841 = vmatmul.mubr.bf16.gmra.mxu0 %v5803
    %v5842 = vpop.f32.mrf.mxu0
    %v5843 = vadd.f32 0.0, %v5842
    %v5844 = vpop.f32.mrf.mxu0
    %v5845 = vpop.f32.mrf.mxu0
    %v5846 = vpop.f32.mrf.mxu0
    %5847 = vdwg.mxu0
    %v5849 = vsel %vm419, %v5632, 0
    %v5852 = vsel %vm419, %v5660, 0
    %5854 = vmatprep.subr.bf16.mxu0 0
    %5855 = vmatpush1.bf16.xpose.msra.mxu0 0
    %5856 = vmatprep.subr.bf16.mxu0 0
    %5857 = vmatpush1.bf16.xpose.msra.mxu0 0
    %5858 = vmatprep.subr.bf16.mxu0 0
    %5859 = vmatpush1.bf16.xpose.msra.mxu0 0
    %5860 = vmatprep.subr.bf16.mxu0 0
    %5861 = vmatpush1.bf16.xpose.msra.mxu0 0
    %5862 = vmatprep.subr.bf16.mxu0 0
    %5863 = vmatpush1.bf16.xpose.msra.mxu0 0
    %5864 = vmatprep.subr.bf16.mxu0 0
    %5865 = vmatpush1.bf16.xpose.msra.mxu0 0
    %5866 = vmatprep.subr.bf16.mxu0 0
    %5867 = vmatpush1.bf16.xpose.msra.mxu0 0
    %5868 = vmatprep.subr.bf16.mxu0 0
    %5869 = vmatpush1.bf16.xpose.msra.mxu0 %v5852
    %5870 = vmatprep.subr.bf16.mxu0 0
    %5871 = vmatpush2.bf16.xpose.msra.mxu0 0
    %5872 = vmatprep.subr.bf16.mxu0 0
    %5873 = vmatpush2.bf16.xpose.msra.mxu0 0
    %5874 = vmatprep.subr.bf16.mxu0 0
    %5875 = vmatpush2.bf16.xpose.msra.mxu0 0
    %5876 = vmatprep.subr.bf16.mxu0 0
    %5877 = vmatpush2.bf16.xpose.msra.mxu0 0
    %5878 = vmatprep.subr.bf16.mxu0 0
    %5879 = vmatpush2.bf16.xpose.msra.mxu0 0
    %5880 = vmatprep.subr.bf16.mxu0 0
    %5881 = vmatpush2.bf16.xpose.msra.mxu0 0
    %5882 = vmatprep.subr.bf16.mxu0 0
    %5883 = vmatpush2.bf16.xpose.msra.mxu0 0
    %5884 = vmatprep.subr.bf16.mxu0 0
    %5885 = vmatpush2.bf16.xpose.msra.mxu0 0
    %5886 = vmatprep.mubr.bf16.mxu0 0
    %5887 = vmatmul.mubr.bf16.gmra.mxu0 %v5849
    %v5888 = vpop.f32.mrf.mxu0
    %v5889 = vadd.f32 0.0, %v5888
    %v5890 = vpop.f32.mrf.mxu0
    %v5891 = vpop.f32.mrf.mxu0
    %v5892 = vpop.f32.mrf.mxu0
    %5893 = vdwg.mxu0
    %v5895 = vsel %vm419, %v5633, 0
    %v5898 = vsel %vm419, %v5661, 0
    %5900 = vmatprep.subr.bf16.mxu0 0
    %5901 = vmatpush1.bf16.xpose.msra.mxu0 0
    %5902 = vmatprep.subr.bf16.mxu0 0
    %5903 = vmatpush1.bf16.xpose.msra.mxu0 0
    %5904 = vmatprep.subr.bf16.mxu0 0
    %5905 = vmatpush1.bf16.xpose.msra.mxu0 0
    %5906 = vmatprep.subr.bf16.mxu0 0
    %5907 = vmatpush1.bf16.xpose.msra.mxu0 0
    %5908 = vmatprep.subr.bf16.mxu0 0
    %5909 = vmatpush1.bf16.xpose.msra.mxu0 0
    %5910 = vmatprep.subr.bf16.mxu0 0
    %5911 = vmatpush1.bf16.xpose.msra.mxu0 0
    %5912 = vmatprep.subr.bf16.mxu0 0
    %5913 = vmatpush1.bf16.xpose.msra.mxu0 0
    %5914 = vmatprep.subr.bf16.mxu0 0
    %5915 = vmatpush1.bf16.xpose.msra.mxu0 %v5898
    %5916 = vmatprep.subr.bf16.mxu0 0
    %5917 = vmatpush2.bf16.xpose.msra.mxu0 0
    %5918 = vmatprep.subr.bf16.mxu0 0
    %5919 = vmatpush2.bf16.xpose.msra.mxu0 0
    %5920 = vmatprep.subr.bf16.mxu0 0
    %5921 = vmatpush2.bf16.xpose.msra.mxu0 0
    %5922 = vmatprep.subr.bf16.mxu0 0
    %5923 = vmatpush2.bf16.xpose.msra.mxu0 0
    %5924 = vmatprep.subr.bf16.mxu0 0
    %5925 = vmatpush2.bf16.xpose.msra.mxu0 0
    %5926 = vmatprep.subr.bf16.mxu0 0
    %5927 = vmatpush2.bf16.xpose.msra.mxu0 0
    %5928 = vmatprep.subr.bf16.mxu0 0
    %5929 = vmatpush2.bf16.xpose.msra.mxu0 0
    %5930 = vmatprep.subr.bf16.mxu0 0
    %5931 = vmatpush2.bf16.xpose.msra.mxu0 0
    %5932 = vmatprep.mubr.bf16.mxu0 0
    %5933 = vmatmul.mubr.bf16.gmra.mxu0 %v5895
    %v5934 = vpop.f32.mrf.mxu0
    %v5935 = vadd.f32 0.0, %v5934
    %v5936 = vpop.f32.mrf.mxu0
    %v5937 = vpop.f32.mrf.mxu0
    %v5938 = vpop.f32.mrf.mxu0
    %5939 = vdwg.mxu0
    %v5941 = vsel %vm419, %v5634, 0
    %v5944 = vsel %vm419, %v5662, 0
    %5946 = vmatprep.subr.bf16.mxu0 0
    %5947 = vmatpush1.bf16.xpose.msra.mxu0 0
    %5948 = vmatprep.subr.bf16.mxu0 0
    %5949 = vmatpush1.bf16.xpose.msra.mxu0 0
    %5950 = vmatprep.subr.bf16.mxu0 0
    %5951 = vmatpush1.bf16.xpose.msra.mxu0 0
    %5952 = vmatprep.subr.bf16.mxu0 0
    %5953 = vmatpush1.bf16.xpose.msra.mxu0 0
    %5954 = vmatprep.subr.bf16.mxu0 0
    %5955 = vmatpush1.bf16.xpose.msra.mxu0 0
    %5956 = vmatprep.subr.bf16.mxu0 0
    %5957 = vmatpush1.bf16.xpose.msra.mxu0 0
    %5958 = vmatprep.subr.bf16.mxu0 0
    %5959 = vmatpush1.bf16.xpose.msra.mxu0 0
    %5960 = vmatprep.subr.bf16.mxu0 0
    %5961 = vmatpush1.bf16.xpose.msra.mxu0 %v5944
    %5962 = vmatprep.subr.bf16.mxu0 0
    %5963 = vmatpush2.bf16.xpose.msra.mxu0 0
    %5964 = vmatprep.subr.bf16.mxu0 0
    %5965 = vmatpush2.bf16.xpose.msra.mxu0 0
    %5966 = vmatprep.subr.bf16.mxu0 0
    %5967 = vmatpush2.bf16.xpose.msra.mxu0 0
    %5968 = vmatprep.subr.bf16.mxu0 0
    %5969 = vmatpush2.bf16.xpose.msra.mxu0 0
    %5970 = vmatprep.subr.bf16.mxu0 0
    %5971 = vmatpush2.bf16.xpose.msra.mxu0 0
    %5972 = vmatprep.subr.bf16.mxu0 0
    %5973 = vmatpush2.bf16.xpose.msra.mxu0 0
    %5974 = vmatprep.subr.bf16.mxu0 0
    %5975 = vmatpush2.bf16.xpose.msra.mxu0 0
    %5976 = vmatprep.subr.bf16.mxu0 0
    %5977 = vmatpush2.bf16.xpose.msra.mxu0 0
    %5978 = vmatprep.mubr.bf16.mxu0 0
    %5979 = vmatmul.mubr.bf16.gmra.mxu0 %v5941
    %v5980 = vpop.f32.mrf.mxu0
    %v5981 = vadd.f32 0.0, %v5980
    %v5982 = vpop.f32.mrf.mxu0
    %v5983 = vpop.f32.mrf.mxu0
    %v5984 = vpop.f32.mrf.mxu0
    %5985 = vdwg.mxu0
    %v5987 = vsel %vm419, %v5635, 0
    %v5990 = vsel %vm419, %v5663, 0
    %5992 = vmatprep.subr.bf16.mxu0 0
    %5993 = vmatpush1.bf16.xpose.msra.mxu0 0
    %5994 = vmatprep.subr.bf16.mxu0 0
    %5995 = vmatpush1.bf16.xpose.msra.mxu0 0
    %5996 = vmatprep.subr.bf16.mxu0 0
    %5997 = vmatpush1.bf16.xpose.msra.mxu0 0
    %5998 = vmatprep.subr.bf16.mxu0 0
    %5999 = vmatpush1.bf16.xpose.msra.mxu0 0
    %6000 = vmatprep.subr.bf16.mxu0 0
    %6001 = vmatpush1.bf16.xpose.msra.mxu0 0
    %6002 = vmatprep.subr.bf16.mxu0 0
    %6003 = vmatpush1.bf16.xpose.msra.mxu0 0
    %6004 = vmatprep.subr.bf16.mxu0 0
    %6005 = vmatpush1.bf16.xpose.msra.mxu0 0
    %6006 = vmatprep.subr.bf16.mxu0 0
    %6007 = vmatpush1.bf16.xpose.msra.mxu0 %v5990
    %6008 = vmatprep.subr.bf16.mxu0 0
    %6009 = vmatpush2.bf16.xpose.msra.mxu0 0
    %6010 = vmatprep.subr.bf16.mxu0 0
    %6011 = vmatpush2.bf16.xpose.msra.mxu0 0
    %6012 = vmatprep.subr.bf16.mxu0 0
    %6013 = vmatpush2.bf16.xpose.msra.mxu0 0
    %6014 = vmatprep.subr.bf16.mxu0 0
    %6015 = vmatpush2.bf16.xpose.msra.mxu0 0
    %6016 = vmatprep.subr.bf16.mxu0 0
    %6017 = vmatpush2.bf16.xpose.msra.mxu0 0
    %6018 = vmatprep.subr.bf16.mxu0 0
    %6019 = vmatpush2.bf16.xpose.msra.mxu0 0
    %6020 = vmatprep.subr.bf16.mxu0 0
    %6021 = vmatpush2.bf16.xpose.msra.mxu0 0
    %6022 = vmatprep.subr.bf16.mxu0 0
    %6023 = vmatpush2.bf16.xpose.msra.mxu0 0
    %6024 = vmatprep.mubr.bf16.mxu0 0
    %6025 = vmatmul.mubr.bf16.gmra.mxu0 %v5987
    %v6026 = vpop.f32.mrf.mxu0
    %v6027 = vadd.f32 0.0, %v6026
    %v6028 = vpop.f32.mrf.mxu0
    %v6029 = vpop.f32.mrf.mxu0
    %v6030 = vpop.f32.mrf.mxu0
    %6031 = vdwg.mxu0
    %v6032 = vsel %vm419, %v5705, -inf
    %6033 = vmax.xlane.f32.xlu0 %v6032
    %v6034 = vpop.xlane.xlu0 %6033
    %v6035 = vsel %vm419, %v5751, -inf
    %6036 = vmax.xlane.f32.xlu0 %v6035
    %v6037 = vpop.xlane.xlu0 %6036
    %v6038 = vsel %vm419, %v5797, -inf
    %6039 = vmax.xlane.f32.xlu0 %v6038
    %v6040 = vpop.xlane.xlu0 %6039
    %v6041 = vsel %vm419, %v5843, -inf
    %6042 = vmax.xlane.f32.xlu0 %v6041
    %v6043 = vpop.xlane.xlu0 %6042
    %v6044 = vsel %vm419, %v5889, -inf
    %6045 = vmax.xlane.f32.xlu0 %v6044
    %v6046 = vpop.xlane.xlu0 %6045
    %v6047 = vsel %vm419, %v5935, -inf
    %6048 = vmax.xlane.f32.xlu0 %v6047
    %v6049 = vpop.xlane.xlu0 %6048
    %v6050 = vsel %vm419, %v5981, -inf
    %6051 = vmax.xlane.f32.xlu0 %v6050
    %v6052 = vpop.xlane.xlu0 %6051
    %v6053 = vsel %vm419, %v6027, -inf
    %6054 = vmax.xlane.f32.xlu0 %v6053
    %v6055 = vpop.xlane.xlu0 %6054
    %v6056 = vsub.f32 %v5705, %v6034
    %v6057 = vsub.f32 %v5751, %v6037
    %v6058 = vsub.f32 %v5797, %v6040
    %v6059 = vsub.f32 %v5843, %v6043
    %v6060 = vsub.f32 %v5889, %v6046
    %v6061 = vsub.f32 %v5935, %v6049
    %v6062 = vsub.f32 %v5981, %v6052
    %v6063 = vsub.f32 %v6027, %v6055
    %v6064 = vmul.f32 %v6056, 1.442695
    %v6065 = vpow.pop %v6064
    %v6066 = vmul.f32 %v6057, 1.442695
    %v6067 = vpow.pop %v6066
    %v6068 = vmul.f32 %v6058, 1.442695
    %v6069 = vpow.pop %v6068
    %v6070 = vmul.f32 %v6059, 1.442695
    %v6071 = vpow.pop %v6070
    %v6072 = vmul.f32 %v6060, 1.442695
    %v6073 = vpow.pop %v6072
    %v6074 = vmul.f32 %v6061, 1.442695
    %v6075 = vpow.pop %v6074
    %v6076 = vmul.f32 %v6062, 1.442695
    %v6077 = vpow.pop %v6076
    %v6078 = vmul.f32 %v6063, 1.442695
    %v6079 = vpow.pop %v6078
    %v6080 = vsel %vm419, %v6065, 0.0
    %6081 = vadd.xlane.f32.xlu0 %v6080
    %v6082 = vpop.xlane.xlu0 %6081
    %v6083 = vsel %vm419, %v6067, 0.0
    %6084 = vadd.xlane.f32.xlu0 %v6083
    %v6085 = vpop.xlane.xlu0 %6084
    %v6086 = vsel %vm419, %v6069, 0.0
    %6087 = vadd.xlane.f32.xlu0 %v6086
    %v6088 = vpop.xlane.xlu0 %6087
    %v6089 = vsel %vm419, %v6071, 0.0
    %6090 = vadd.xlane.f32.xlu0 %v6089
    %v6091 = vpop.xlane.xlu0 %6090
    %v6092 = vsel %vm419, %v6073, 0.0
    %6093 = vadd.xlane.f32.xlu0 %v6092
    %v6094 = vpop.xlane.xlu0 %6093
    %v6095 = vsel %vm419, %v6075, 0.0
    %6096 = vadd.xlane.f32.xlu0 %v6095
    %v6097 = vpop.xlane.xlu0 %6096
    %v6098 = vsel %vm419, %v6077, 0.0
    %6099 = vadd.xlane.f32.xlu0 %v6098
    %v6100 = vpop.xlane.xlu0 %6099
    %v6101 = vsel %vm419, %v6079, 0.0
    %6102 = vadd.xlane.f32.xlu0 %v6101
    %v6103 = vpop.xlane.xlu0 %6102
    %v6104 = vrcp.pop %v6082
    %v6105 = vmul.f32 %v6065, %v6104
    %v6106 = vrcp.pop %v6085
    %v6107 = vmul.f32 %v6067, %v6106
    %v6108 = vrcp.pop %v6088
    %v6109 = vmul.f32 %v6069, %v6108
    %v6110 = vrcp.pop %v6091
    %v6111 = vmul.f32 %v6071, %v6110
    %v6112 = vrcp.pop %v6094
    %v6113 = vmul.f32 %v6073, %v6112
    %v6114 = vrcp.pop %v6097
    %v6115 = vmul.f32 %v6075, %v6114
    %v6116 = vrcp.pop %v6100
    %v6117 = vmul.f32 %v6077, %v6116
    %v6118 = vrcp.pop %v6103
    %v6119 = vmul.f32 %v6079, %v6118
    %v6120 = vpack.c.bf16 %v6105, %v6105
    %v6121 = vpack.c.bf16 %v6107, %v6107
    %v6122 = vpack.c.bf16 %v6109, %v6109
    %v6123 = vpack.c.bf16 %v6111, %v6111
    %v6124 = vpack.c.bf16 %v6113, %v6113
    %v6125 = vpack.c.bf16 %v6115, %v6115
    %v6126 = vpack.c.bf16 %v6117, %v6117
    %v6127 = vpack.c.bf16 %v6119, %v6119
    %6129 = vrot.lane.b32.xlu0 %v5656, 96
    %v6130 = vpop.permute.xlu0 %6129
    %v6132 = vsel %vm419, %v6120, 0
    %v6135 = vsel %vm910, %v6130, 0
    %6137 = vmatprep.subr.bf16.mxu0 0
    %6138 = vmatpush1.bf16.msra.mxu0 0
    %6139 = vmatprep.subr.bf16.mxu0 0
    %6140 = vmatpush1.bf16.msra.mxu0 0
    %6141 = vmatprep.subr.bf16.mxu0 0
    %6142 = vmatpush1.bf16.msra.mxu0 0
    %6143 = vmatprep.subr.bf16.mxu0 0
    %6144 = vmatpush1.bf16.msra.mxu0 0
    %6145 = vmatprep.subr.bf16.mxu0 0
    %6146 = vmatpush1.bf16.msra.mxu0 0
    %6147 = vmatprep.subr.bf16.mxu0 0
    %6148 = vmatpush1.bf16.msra.mxu0 0
    %6149 = vmatprep.subr.bf16.mxu0 0
    %6150 = vmatpush1.bf16.msra.mxu0 0
    %6151 = vmatprep.subr.bf16.mxu0 0
    %6152 = vmatpush1.bf16.msra.mxu0 %v6135
    %6153 = vmatprep.subr.bf16.mxu0 0
    %6154 = vmatpush2.bf16.msra.mxu0 0
    %6155 = vmatprep.subr.bf16.mxu0 0
    %6156 = vmatpush2.bf16.msra.mxu0 0
    %6157 = vmatprep.subr.bf16.mxu0 0
    %6158 = vmatpush2.bf16.msra.mxu0 0
    %6159 = vmatprep.subr.bf16.mxu0 0
    %6160 = vmatpush2.bf16.msra.mxu0 0
    %6161 = vmatprep.subr.bf16.mxu0 0
    %6162 = vmatpush2.bf16.msra.mxu0 0
    %6163 = vmatprep.subr.bf16.mxu0 0
    %6164 = vmatpush2.bf16.msra.mxu0 0
    %6165 = vmatprep.subr.bf16.mxu0 0
    %6166 = vmatpush2.bf16.msra.mxu0 0
    %6167 = vmatprep.subr.bf16.mxu0 0
    %6168 = vmatpush2.bf16.msra.mxu0 0
    %6169 = vmatprep.mubr.bf16.mxu0 0
    %6170 = vmatmul.mubr.bf16.gmra.mxu0 %v6132
    %v6171 = vpop.f32.mrf.mxu0
    %v6172 = vadd.f32 0.0, %v6171
    %v6173 = vpop.f32.mrf.mxu0
    %v6174 = vpop.f32.mrf.mxu0
    %v6175 = vpop.f32.mrf.mxu0
    %6176 = vdwg.mxu0
    %6178 = vrot.lane.b32.xlu0 %v5657, 96
    %v6179 = vpop.permute.xlu0 %6178
    %v6181 = vsel %vm419, %v6121, 0
    %v6184 = vsel %vm910, %v6179, 0
    %6186 = vmatprep.subr.bf16.mxu0 0
    %6187 = vmatpush1.bf16.msra.mxu0 0
    %6188 = vmatprep.subr.bf16.mxu0 0
    %6189 = vmatpush1.bf16.msra.mxu0 0
    %6190 = vmatprep.subr.bf16.mxu0 0
    %6191 = vmatpush1.bf16.msra.mxu0 0
    %6192 = vmatprep.subr.bf16.mxu0 0
    %6193 = vmatpush1.bf16.msra.mxu0 0
    %6194 = vmatprep.subr.bf16.mxu0 0
    %6195 = vmatpush1.bf16.msra.mxu0 0
    %6196 = vmatprep.subr.bf16.mxu0 0
    %6197 = vmatpush1.bf16.msra.mxu0 0
    %6198 = vmatprep.subr.bf16.mxu0 0
    %6199 = vmatpush1.bf16.msra.mxu0 0
    %6200 = vmatprep.subr.bf16.mxu0 0
    %6201 = vmatpush1.bf16.msra.mxu0 %v6184
    %6202 = vmatprep.subr.bf16.mxu0 0
    %6203 = vmatpush2.bf16.msra.mxu0 0
    %6204 = vmatprep.subr.bf16.mxu0 0
    %6205 = vmatpush2.bf16.msra.mxu0 0
    %6206 = vmatprep.subr.bf16.mxu0 0
    %6207 = vmatpush2.bf16.msra.mxu0 0
    %6208 = vmatprep.subr.bf16.mxu0 0
    %6209 = vmatpush2.bf16.msra.mxu0 0
    %6210 = vmatprep.subr.bf16.mxu0 0
    %6211 = vmatpush2.bf16.msra.mxu0 0
    %6212 = vmatprep.subr.bf16.mxu0 0
    %6213 = vmatpush2.bf16.msra.mxu0 0
    %6214 = vmatprep.subr.bf16.mxu0 0
    %6215 = vmatpush2.bf16.msra.mxu0 0
    %6216 = vmatprep.subr.bf16.mxu0 0
    %6217 = vmatpush2.bf16.msra.mxu0 0
    %6218 = vmatprep.mubr.bf16.mxu0 0
    %6219 = vmatmul.mubr.bf16.gmra.mxu0 %v6181
    %v6220 = vpop.f32.mrf.mxu0
    %v6221 = vadd.f32 0.0, %v6220
    %v6222 = vpop.f32.mrf.mxu0
    %v6223 = vpop.f32.mrf.mxu0
    %v6224 = vpop.f32.mrf.mxu0
    %6225 = vdwg.mxu0
    %6227 = vrot.lane.b32.xlu0 %v5658, 96
    %v6228 = vpop.permute.xlu0 %6227
    %v6230 = vsel %vm419, %v6122, 0
    %v6233 = vsel %vm910, %v6228, 0
    %6235 = vmatprep.subr.bf16.mxu0 0
    %6236 = vmatpush1.bf16.msra.mxu0 0
    %6237 = vmatprep.subr.bf16.mxu0 0
    %6238 = vmatpush1.bf16.msra.mxu0 0
    %6239 = vmatprep.subr.bf16.mxu0 0
    %6240 = vmatpush1.bf16.msra.mxu0 0
    %6241 = vmatprep.subr.bf16.mxu0 0
    %6242 = vmatpush1.bf16.msra.mxu0 0
    %6243 = vmatprep.subr.bf16.mxu0 0
    %6244 = vmatpush1.bf16.msra.mxu0 0
    %6245 = vmatprep.subr.bf16.mxu0 0
    %6246 = vmatpush1.bf16.msra.mxu0 0
    %6247 = vmatprep.subr.bf16.mxu0 0
    %6248 = vmatpush1.bf16.msra.mxu0 0
    %6249 = vmatprep.subr.bf16.mxu0 0
    %6250 = vmatpush1.bf16.msra.mxu0 %v6233
    %6251 = vmatprep.subr.bf16.mxu0 0
    %6252 = vmatpush2.bf16.msra.mxu0 0
    %6253 = vmatprep.subr.bf16.mxu0 0
    %6254 = vmatpush2.bf16.msra.mxu0 0
    %6255 = vmatprep.subr.bf16.mxu0 0
    %6256 = vmatpush2.bf16.msra.mxu0 0
    %6257 = vmatprep.subr.bf16.mxu0 0
    %6258 = vmatpush2.bf16.msra.mxu0 0
    %6259 = vmatprep.subr.bf16.mxu0 0
    %6260 = vmatpush2.bf16.msra.mxu0 0
    %6261 = vmatprep.subr.bf16.mxu0 0
    %6262 = vmatpush2.bf16.msra.mxu0 0
    %6263 = vmatprep.subr.bf16.mxu0 0
    %6264 = vmatpush2.bf16.msra.mxu0 0
    %6265 = vmatprep.subr.bf16.mxu0 0
    %6266 = vmatpush2.bf16.msra.mxu0 0
    %6267 = vmatprep.mubr.bf16.mxu0 0
    %6268 = vmatmul.mubr.bf16.gmra.mxu0 %v6230
    %v6269 = vpop.f32.mrf.mxu0
    %v6270 = vadd.f32 0.0, %v6269
    %v6271 = vpop.f32.mrf.mxu0
    %v6272 = vpop.f32.mrf.mxu0
    %v6273 = vpop.f32.mrf.mxu0
    %6274 = vdwg.mxu0
    %6276 = vrot.lane.b32.xlu0 %v5659, 96
    %v6277 = vpop.permute.xlu0 %6276
    %v6279 = vsel %vm419, %v6123, 0
    %v6282 = vsel %vm910, %v6277, 0
    %6284 = vmatprep.subr.bf16.mxu0 0
    %6285 = vmatpush1.bf16.msra.mxu0 0
    %6286 = vmatprep.subr.bf16.mxu0 0
    %6287 = vmatpush1.bf16.msra.mxu0 0
    %6288 = vmatprep.subr.bf16.mxu0 0
    %6289 = vmatpush1.bf16.msra.mxu0 0
    %6290 = vmatprep.subr.bf16.mxu0 0
    %6291 = vmatpush1.bf16.msra.mxu0 0
    %6292 = vmatprep.subr.bf16.mxu0 0
    %6293 = vmatpush1.bf16.msra.mxu0 0
    %6294 = vmatprep.subr.bf16.mxu0 0
    %6295 = vmatpush1.bf16.msra.mxu0 0
    %6296 = vmatprep.subr.bf16.mxu0 0
    %6297 = vmatpush1.bf16.msra.mxu0 0
    %6298 = vmatprep.subr.bf16.mxu0 0
    %6299 = vmatpush1.bf16.msra.mxu0 %v6282
    %6300 = vmatprep.subr.bf16.mxu0 0
    %6301 = vmatpush2.bf16.msra.mxu0 0
    %6302 = vmatprep.subr.bf16.mxu0 0
    %6303 = vmatpush2.bf16.msra.mxu0 0
    %6304 = vmatprep.subr.bf16.mxu0 0
    %6305 = vmatpush2.bf16.msra.mxu0 0
    %6306 = vmatprep.subr.bf16.mxu0 0
    %6307 = vmatpush2.bf16.msra.mxu0 0
    %6308 = vmatprep.subr.bf16.mxu0 0
    %6309 = vmatpush2.bf16.msra.mxu0 0
    %6310 = vmatprep.subr.bf16.mxu0 0
    %6311 = vmatpush2.bf16.msra.mxu0 0
    %6312 = vmatprep.subr.bf16.mxu0 0
    %6313 = vmatpush2.bf16.msra.mxu0 0
    %6314 = vmatprep.subr.bf16.mxu0 0
    %6315 = vmatpush2.bf16.msra.mxu0 0
    %6316 = vmatprep.mubr.bf16.mxu0 0
    %6317 = vmatmul.mubr.bf16.gmra.mxu0 %v6279
    %v6318 = vpop.f32.mrf.mxu0
    %v6319 = vadd.f32 0.0, %v6318
    %v6320 = vpop.f32.mrf.mxu0
    %v6321 = vpop.f32.mrf.mxu0
    %v6322 = vpop.f32.mrf.mxu0
    %6323 = vdwg.mxu0
    %6325 = vrot.lane.b32.xlu0 %v5660, 96
    %v6326 = vpop.permute.xlu0 %6325
    %v6328 = vsel %vm419, %v6124, 0
    %v6331 = vsel %vm910, %v6326, 0
    %6333 = vmatprep.subr.bf16.mxu0 0
    %6334 = vmatpush1.bf16.msra.mxu0 0
    %6335 = vmatprep.subr.bf16.mxu0 0
    %6336 = vmatpush1.bf16.msra.mxu0 0
    %6337 = vmatprep.subr.bf16.mxu0 0
    %6338 = vmatpush1.bf16.msra.mxu0 0
    %6339 = vmatprep.subr.bf16.mxu0 0
    %6340 = vmatpush1.bf16.msra.mxu0 0
    %6341 = vmatprep.subr.bf16.mxu0 0
    %6342 = vmatpush1.bf16.msra.mxu0 0
    %6343 = vmatprep.subr.bf16.mxu0 0
    %6344 = vmatpush1.bf16.msra.mxu0 0
    %6345 = vmatprep.subr.bf16.mxu0 0
    %6346 = vmatpush1.bf16.msra.mxu0 0
    %6347 = vmatprep.subr.bf16.mxu0 0
    %6348 = vmatpush1.bf16.msra.mxu0 %v6331
    %6349 = vmatprep.subr.bf16.mxu0 0
    %6350 = vmatpush2.bf16.msra.mxu0 0
    %6351 = vmatprep.subr.bf16.mxu0 0
    %6352 = vmatpush2.bf16.msra.mxu0 0
    %6353 = vmatprep.subr.bf16.mxu0 0
    %6354 = vmatpush2.bf16.msra.mxu0 0
    %6355 = vmatprep.subr.bf16.mxu0 0
    %6356 = vmatpush2.bf16.msra.mxu0 0
    %6357 = vmatprep.subr.bf16.mxu0 0
    %6358 = vmatpush2.bf16.msra.mxu0 0
    %6359 = vmatprep.subr.bf16.mxu0 0
    %6360 = vmatpush2.bf16.msra.mxu0 0
    %6361 = vmatprep.subr.bf16.mxu0 0
    %6362 = vmatpush2.bf16.msra.mxu0 0
    %6363 = vmatprep.subr.bf16.mxu0 0
    %6364 = vmatpush2.bf16.msra.mxu0 0
    %6365 = vmatprep.mubr.bf16.mxu0 0
    %6366 = vmatmul.mubr.bf16.gmra.mxu0 %v6328
    %v6367 = vpop.f32.mrf.mxu0
    %v6368 = vadd.f32 0.0, %v6367
    %v6369 = vpop.f32.mrf.mxu0
    %v6370 = vpop.f32.mrf.mxu0
    %v6371 = vpop.f32.mrf.mxu0
    %6372 = vdwg.mxu0
    %6374 = vrot.lane.b32.xlu0 %v5661, 96
    %v6375 = vpop.permute.xlu0 %6374
    %v6377 = vsel %vm419, %v6125, 0
    %v6380 = vsel %vm910, %v6375, 0
    %6382 = vmatprep.subr.bf16.mxu0 0
    %6383 = vmatpush1.bf16.msra.mxu0 0
    %6384 = vmatprep.subr.bf16.mxu0 0
    %6385 = vmatpush1.bf16.msra.mxu0 0
    %6386 = vmatprep.subr.bf16.mxu0 0
    %6387 = vmatpush1.bf16.msra.mxu0 0
    %6388 = vmatprep.subr.bf16.mxu0 0
    %6389 = vmatpush1.bf16.msra.mxu0 0
    %6390 = vmatprep.subr.bf16.mxu0 0
    %6391 = vmatpush1.bf16.msra.mxu0 0
    %6392 = vmatprep.subr.bf16.mxu0 0
    %6393 = vmatpush1.bf16.msra.mxu0 0
    %6394 = vmatprep.subr.bf16.mxu0 0
    %6395 = vmatpush1.bf16.msra.mxu0 0
    %6396 = vmatprep.subr.bf16.mxu0 0
    %6397 = vmatpush1.bf16.msra.mxu0 %v6380
    %6398 = vmatprep.subr.bf16.mxu0 0
    %6399 = vmatpush2.bf16.msra.mxu0 0
    %6400 = vmatprep.subr.bf16.mxu0 0
    %6401 = vmatpush2.bf16.msra.mxu0 0
    %6402 = vmatprep.subr.bf16.mxu0 0
    %6403 = vmatpush2.bf16.msra.mxu0 0
    %6404 = vmatprep.subr.bf16.mxu0 0
    %6405 = vmatpush2.bf16.msra.mxu0 0
    %6406 = vmatprep.subr.bf16.mxu0 0
    %6407 = vmatpush2.bf16.msra.mxu0 0
    %6408 = vmatprep.subr.bf16.mxu0 0
    %6409 = vmatpush2.bf16.msra.mxu0 0
    %6410 = vmatprep.subr.bf16.mxu0 0
    %6411 = vmatpush2.bf16.msra.mxu0 0
    %6412 = vmatprep.subr.bf16.mxu0 0
    %6413 = vmatpush2.bf16.msra.mxu0 0
    %6414 = vmatprep.mubr.bf16.mxu0 0
    %6415 = vmatmul.mubr.bf16.gmra.mxu0 %v6377
    %v6416 = vpop.f32.mrf.mxu0
    %v6417 = vadd.f32 0.0, %v6416
    %v6418 = vpop.f32.mrf.mxu0
    %v6419 = vpop.f32.mrf.mxu0
    %v6420 = vpop.f32.mrf.mxu0
    %6421 = vdwg.mxu0
    %6423 = vrot.lane.b32.xlu0 %v5662, 96
    %v6424 = vpop.permute.xlu0 %6423
    %v6426 = vsel %vm419, %v6126, 0
    %v6429 = vsel %vm910, %v6424, 0
    %6431 = vmatprep.subr.bf16.mxu0 0
    %6432 = vmatpush1.bf16.msra.mxu0 0
    %6433 = vmatprep.subr.bf16.mxu0 0
    %6434 = vmatpush1.bf16.msra.mxu0 0
    %6435 = vmatprep.subr.bf16.mxu0 0
    %6436 = vmatpush1.bf16.msra.mxu0 0
    %6437 = vmatprep.subr.bf16.mxu0 0
    %6438 = vmatpush1.bf16.msra.mxu0 0
    %6439 = vmatprep.subr.bf16.mxu0 0
    %6440 = vmatpush1.bf16.msra.mxu0 0
    %6441 = vmatprep.subr.bf16.mxu0 0
    %6442 = vmatpush1.bf16.msra.mxu0 0
    %6443 = vmatprep.subr.bf16.mxu0 0
    %6444 = vmatpush1.bf16.msra.mxu0 0
    %6445 = vmatprep.subr.bf16.mxu0 0
    %6446 = vmatpush1.bf16.msra.mxu0 %v6429
    %6447 = vmatprep.subr.bf16.mxu0 0
    %6448 = vmatpush2.bf16.msra.mxu0 0
    %6449 = vmatprep.subr.bf16.mxu0 0
    %6450 = vmatpush2.bf16.msra.mxu0 0
    %6451 = vmatprep.subr.bf16.mxu0 0
    %6452 = vmatpush2.bf16.msra.mxu0 0
    %6453 = vmatprep.subr.bf16.mxu0 0
    %6454 = vmatpush2.bf16.msra.mxu0 0
    %6455 = vmatprep.subr.bf16.mxu0 0
    %6456 = vmatpush2.bf16.msra.mxu0 0
    %6457 = vmatprep.subr.bf16.mxu0 0
    %6458 = vmatpush2.bf16.msra.mxu0 0
    %6459 = vmatprep.subr.bf16.mxu0 0
    %6460 = vmatpush2.bf16.msra.mxu0 0
    %6461 = vmatprep.subr.bf16.mxu0 0
    %6462 = vmatpush2.bf16.msra.mxu0 0
    %6463 = vmatprep.mubr.bf16.mxu0 0
    %6464 = vmatmul.mubr.bf16.gmra.mxu0 %v6426
    %v6465 = vpop.f32.mrf.mxu0
    %v6466 = vadd.f32 0.0, %v6465
    %v6467 = vpop.f32.mrf.mxu0
    %v6468 = vpop.f32.mrf.mxu0
    %v6469 = vpop.f32.mrf.mxu0
    %6470 = vdwg.mxu0
    %6472 = vrot.lane.b32.xlu0 %v5663, 96
    %v6473 = vpop.permute.xlu0 %6472
    %v6475 = vsel %vm419, %v6127, 0
    %v6478 = vsel %vm910, %v6473, 0
    %6480 = vmatprep.subr.bf16.mxu0 0
    %6481 = vmatpush1.bf16.msra.mxu0 0
    %6482 = vmatprep.subr.bf16.mxu0 0
    %6483 = vmatpush1.bf16.msra.mxu0 0
    %6484 = vmatprep.subr.bf16.mxu0 0
    %6485 = vmatpush1.bf16.msra.mxu0 0
    %6486 = vmatprep.subr.bf16.mxu0 0
    %6487 = vmatpush1.bf16.msra.mxu0 0
    %6488 = vmatprep.subr.bf16.mxu0 0
    %6489 = vmatpush1.bf16.msra.mxu0 0
    %6490 = vmatprep.subr.bf16.mxu0 0
    %6491 = vmatpush1.bf16.msra.mxu0 0
    %6492 = vmatprep.subr.bf16.mxu0 0
    %6493 = vmatpush1.bf16.msra.mxu0 0
    %6494 = vmatprep.subr.bf16.mxu0 0
    %6495 = vmatpush1.bf16.msra.mxu0 %v6478
    %6496 = vmatprep.subr.bf16.mxu0 0
    %6497 = vmatpush2.bf16.msra.mxu0 0
    %6498 = vmatprep.subr.bf16.mxu0 0
    %6499 = vmatpush2.bf16.msra.mxu0 0
    %6500 = vmatprep.subr.bf16.mxu0 0
    %6501 = vmatpush2.bf16.msra.mxu0 0
    %6502 = vmatprep.subr.bf16.mxu0 0
    %6503 = vmatpush2.bf16.msra.mxu0 0
    %6504 = vmatprep.subr.bf16.mxu0 0
    %6505 = vmatpush2.bf16.msra.mxu0 0
    %6506 = vmatprep.subr.bf16.mxu0 0
    %6507 = vmatpush2.bf16.msra.mxu0 0
    %6508 = vmatprep.subr.bf16.mxu0 0
    %6509 = vmatpush2.bf16.msra.mxu0 0
    %6510 = vmatprep.subr.bf16.mxu0 0
    %6511 = vmatpush2.bf16.msra.mxu0 0
    %6512 = vmatprep.mubr.bf16.mxu0 0
    %6513 = vmatmul.mubr.bf16.gmra.mxu0 %v6475
    %v6514 = vpop.f32.mrf.mxu0
    %v6515 = vadd.f32 0.0, %v6514
    %v6516 = vpop.f32.mrf.mxu0
    %v6517 = vpop.f32.mrf.mxu0
    %v6518 = vpop.f32.mrf.mxu0
    %6519 = vdwg.mxu0
    %6522 = vrot.lane.b32.xlu0 %v6270, 8
    %v6523 = vpop.permute.xlu0 %6522
    %6524 = vrot.lane.b32.xlu0 %v6319, 8
    %v6525 = vpop.permute.xlu0 %6524
    %6530 = vrot.lane.b32.xlu0 %v6368, 16
    %v6531 = vpop.permute.xlu0 %6530
    %6532 = vrot.lane.b32.xlu0 %v6417, 16
    %v6533 = vpop.permute.xlu0 %6532
    %6538 = vrot.lane.b32.xlu0 %v6466, 24
    %v6539 = vpop.permute.xlu0 %6538
    %6540 = vrot.lane.b32.xlu0 %v6515, 24
    %v6541 = vpop.permute.xlu0 %6540
    %v6544 = vsel %vm419, %v6172, %v6523
    %v6545 = vsel %vm419, %v6221, %v6525
    %v6546 = vsel %vm1316, %v6544, %v6531
    %v6547 = vsel %vm1316, %v6545, %v6533
    %v6548 = vsel %vm1319, %v6546, %v6539
    %v6549 = vsel %vm1319, %v6547, %v6541
    %v6550 = vld [vmem:[#allocation2 + $0x1c] sm:$0xf]
    %v6551 = vld [vmem:[#allocation2 + $0x44] sm:$0xf]
    %v6552 = vld [vmem:[#allocation2 + $0x6c] sm:$0xf]
    %v6553 = vld [vmem:[#allocation2 + $0x94] sm:$0xf]
    %v6554 = vpack.c.bf16 %v6549, %v6548
    %v6559 = vunpack.c.l.b16 %v6550
    %v6560 = vunpack.c.l.b16 %v6551
    %v6561 = vunpack.c.l.b16 %v6552
    %v6562 = vunpack.c.l.b16 %v6553
    %v6563 = vpack.c.b16 %v6560, %v6559
    %v6564 = vpack.c.b16 %v6562, %v6561
    %v6568 = vsel %vm293, %v6554, 0
    %6570 = vmatprep.subr.bf16.mxu0 0
    %6571 = vmatpush1.bf16.msra.mxu0 0
    %6572 = vmatprep.subr.bf16.mxu0 0
    %6573 = vmatpush1.bf16.msra.mxu0 0
    %6574 = vmatprep.subr.bf16.mxu0 0
    %6575 = vmatpush1.bf16.msra.mxu0 0
    %6576 = vmatprep.subr.bf16.mxu0 0
    %6577 = vmatpush1.bf16.msra.mxu0 0
    %6578 = vmatprep.subr.bf16.mxu0 0
    %6579 = vmatpush1.bf16.msra.mxu0 0
    %6580 = vmatprep.subr.bf16.mxu0 0
    %6581 = vmatpush1.bf16.msra.mxu0 0
    %6582 = vmatprep.subr.bf16.mxu0 0
    %6583 = vmatpush1.bf16.msra.mxu0 %v6564
    %6584 = vmatprep.subr.bf16.mxu0 0
    %6585 = vmatpush1.bf16.msra.mxu0 %v6563
    %6586 = vmatprep.subr.bf16.mxu0 0
    %6587 = vmatpush2.bf16.msra.mxu0 0
    %6588 = vmatprep.subr.bf16.mxu0 0
    %6589 = vmatpush2.bf16.msra.mxu0 0
    %6590 = vmatprep.subr.bf16.mxu0 0
    %6591 = vmatpush2.bf16.msra.mxu0 0
    %6592 = vmatprep.subr.bf16.mxu0 0
    %6593 = vmatpush2.bf16.msra.mxu0 0
    %6594 = vmatprep.subr.bf16.mxu0 0
    %6595 = vmatpush2.bf16.msra.mxu0 0
    %6596 = vmatprep.subr.bf16.mxu0 0
    %6597 = vmatpush2.bf16.msra.mxu0 0
    %6598 = vmatprep.subr.bf16.mxu0 0
    %6599 = vmatpush2.bf16.msra.mxu0 0
    %6600 = vmatprep.subr.bf16.mxu0 0
    %6601 = vmatpush2.bf16.msra.mxu0 0
    %6602 = vmatprep.mubr.bf16.mxu0 0
    %6603 = vmatmul.mubr.bf16.gmra.mxu0 %v6568
    %v6604 = vpop.f32.mrf.mxu0
    %v6605 = vadd.f32 0.0, %v6604
    %v6606 = vpop.f32.mrf.mxu0
    %v6607 = vpop.f32.mrf.mxu0
    %v6608 = vadd.f32 0.0, %v6607
    %v6609 = vpop.f32.mrf.mxu0
    %6610 = vdwg.mxu0
    %v6611 = vadd.f32 %v5461, %v6605
    %v6612 = vadd.f32 %v5462, %v6608
    %v6613 = vld [vmem:[%s3 + $0x5] sm:$0x1]
    %v6614 = vmul.f32 %v6611, %v6611
    %v6615 = vmul.f32 %v6612, %v6612
    %v6616 = vsel %vm293, %v6614, 0.0
    %6617 = vadd.xlane.f32.xlu0 %v6616
    %v6618 = vpop.xlane.xlu0 %6617
    %v6619 = vsel %vm293, %v6615, 0.0
    %6620 = vadd.xlane.f32.xlu0 %v6619
    %v6621 = vpop.xlane.xlu0 %6620
    %v6622 = vmul.f32 %v6618, %v300
    %v6623 = vmul.f32 %v6621, %v300
    %v6624 = vadd.f32 %v6622, 1e-06
    %v6625 = vadd.f32 %v6623, 1e-06
    %v6626 = vrsqrt.pop %v6624
    %v6627 = vrsqrt.pop %v6625
    %v6628 = vmul.f32 %v6611, %v6626
    %v6629 = vmul.f32 %v6612, %v6627
    %v6630 = vlaneseq
    %v6631 = vshrl.u32 %v6630, 7
    %v6632 = vsub.s32 0, %v6631
    %v6633 = vrot.slane %v6613, %v6632
    %v6634 = vmul.f32 %v6628, %v6633
    %v6635 = vmul.f32 %v6629, %v6633
    %v6636 = vld [vmem:[#allocation2 + $0x20] sm:$0xf]
    %v6637 = vld [vmem:[#allocation2 + $0x48] sm:$0xf]
    %v6638 = vld [vmem:[#allocation2 + $0x70] sm:$0xf]
    %v6639 = vld [vmem:[#allocation2 + $0x98] sm:$0xf]
    %v6640 = vpack.c.bf16 %v6635, %v6634
    %v6645 = vunpack.c.l.b16 %v6636
    %v6646 = vunpack.c.l.b16 %v6637
    %v6647 = vunpack.c.l.b16 %v6638
    %v6648 = vunpack.c.l.b16 %v6639
    %v6649 = vpack.c.b16 %v6646, %v6645
    %v6650 = vpack.c.b16 %v6648, %v6647
    %v6654 = vsel %vm293, %v6640, 0
    %6656 = vmatprep.subr.bf16.mxu0 0
    %6657 = vmatpush1.bf16.msra.mxu0 0
    %6658 = vmatprep.subr.bf16.mxu0 0
    %6659 = vmatpush1.bf16.msra.mxu0 0
    %6660 = vmatprep.subr.bf16.mxu0 0
    %6661 = vmatpush1.bf16.msra.mxu0 0
    %6662 = vmatprep.subr.bf16.mxu0 0
    %6663 = vmatpush1.bf16.msra.mxu0 0
    %6664 = vmatprep.subr.bf16.mxu0 0
    %6665 = vmatpush1.bf16.msra.mxu0 0
    %6666 = vmatprep.subr.bf16.mxu0 0
    %6667 = vmatpush1.bf16.msra.mxu0 0
    %6668 = vmatprep.subr.bf16.mxu0 0
    %6669 = vmatpush1.bf16.msra.mxu0 %v6650
    %6670 = vmatprep.subr.bf16.mxu0 0
    %6671 = vmatpush1.bf16.msra.mxu0 %v6649
    %6672 = vmatprep.subr.bf16.mxu0 0
    %6673 = vmatpush2.bf16.msra.mxu0 0
    %6674 = vmatprep.subr.bf16.mxu0 0
    %6675 = vmatpush2.bf16.msra.mxu0 0
    %6676 = vmatprep.subr.bf16.mxu0 0
    %6677 = vmatpush2.bf16.msra.mxu0 0
    %6678 = vmatprep.subr.bf16.mxu0 0
    %6679 = vmatpush2.bf16.msra.mxu0 0
    %6680 = vmatprep.subr.bf16.mxu0 0
    %6681 = vmatpush2.bf16.msra.mxu0 0
    %6682 = vmatprep.subr.bf16.mxu0 0
    %6683 = vmatpush2.bf16.msra.mxu0 0
    %6684 = vmatprep.subr.bf16.mxu0 0
    %6685 = vmatpush2.bf16.msra.mxu0 0
    %6686 = vmatprep.subr.bf16.mxu0 0
    %6687 = vmatpush2.bf16.msra.mxu0 0
    %6688 = vmatprep.mubr.bf16.mxu0 0
    %6689 = vmatmul.mubr.bf16.gmra.mxu0 %v6654
    %v6690 = vpop.f32.mrf.mxu0
    %v6691 = vadd.f32 0.0, %v6690
    %v6692 = vpop.f32.mrf.mxu0
    %v6693 = vpop.f32.mrf.mxu0
    %v6694 = vadd.f32 0.0, %v6693
    %v6695 = vpop.f32.mrf.mxu0
    %6696 = vdwg.mxu0
    %v6697 = vmax.f32 %v6691, 0.0
    %v6698 = vmax.f32 %v6694, 0.0
    %v6699 = vld [vmem:[#allocation5 + $0x4] sm:$0xf]
    %v6700 = vld [vmem:[#allocation5 + $0xc] sm:$0xf]
    %v6701 = vld [vmem:[#allocation5 + $0x14] sm:$0xf]
    %v6702 = vld [vmem:[#allocation5 + $0x1c] sm:$0xf]
    %v6703 = vld [vmem:[#allocation5 + $0x24] sm:$0xf]
    %v6704 = vld [vmem:[#allocation5 + $0x2c] sm:$0xf]
    %v6705 = vld [vmem:[#allocation5 + $0x34] sm:$0xf]
    %v6706 = vld [vmem:[#allocation5 + $0x3c] sm:$0xf]
    %v6707 = vpack.c.bf16 %v6698, %v6697
    %v6716 = vunpack.c.l.b16 %v6699
    %v6717 = vunpack.c.l.b16 %v6700
    %v6718 = vunpack.c.l.b16 %v6701
    %v6719 = vunpack.c.l.b16 %v6702
    %v6720 = vunpack.c.l.b16 %v6703
    %v6721 = vunpack.c.l.b16 %v6704
    %v6722 = vunpack.c.l.b16 %v6705
    %v6723 = vunpack.c.l.b16 %v6706
    %v6724 = vpack.c.b16 %v6717, %v6716
    %v6725 = vpack.c.b16 %v6719, %v6718
    %v6726 = vpack.c.b16 %v6721, %v6720
    %v6727 = vpack.c.b16 %v6723, %v6722
    %v6733 = vsel %vm77, %v6707, 0
    %6735 = vmatprep.subr.bf16.mxu0 0
    %6736 = vmatpush1.bf16.msra.mxu0 0
    %6737 = vmatprep.subr.bf16.mxu0 0
    %6738 = vmatpush1.bf16.msra.mxu0 0
    %6739 = vmatprep.subr.bf16.mxu0 0
    %6740 = vmatpush1.bf16.msra.mxu0 0
    %6741 = vmatprep.subr.bf16.mxu0 0
    %6742 = vmatpush1.bf16.msra.mxu0 0
    %6743 = vmatprep.subr.bf16.mxu0 0
    %6744 = vmatpush1.bf16.msra.mxu0 %v6727
    %6745 = vmatprep.subr.bf16.mxu0 0
    %6746 = vmatpush1.bf16.msra.mxu0 %v6726
    %6747 = vmatprep.subr.bf16.mxu0 0
    %6748 = vmatpush1.bf16.msra.mxu0 %v6725
    %6749 = vmatprep.subr.bf16.mxu0 0
    %6750 = vmatpush1.bf16.msra.mxu0 %v6724
    %6751 = vmatprep.subr.bf16.mxu0 0
    %6752 = vmatpush2.bf16.msra.mxu0 0
    %6753 = vmatprep.subr.bf16.mxu0 0
    %6754 = vmatpush2.bf16.msra.mxu0 0
    %6755 = vmatprep.subr.bf16.mxu0 0
    %6756 = vmatpush2.bf16.msra.mxu0 0
    %6757 = vmatprep.subr.bf16.mxu0 0
    %6758 = vmatpush2.bf16.msra.mxu0 0
    %6759 = vmatprep.subr.bf16.mxu0 0
    %6760 = vmatpush2.bf16.msra.mxu0 0
    %6761 = vmatprep.subr.bf16.mxu0 0
    %6762 = vmatpush2.bf16.msra.mxu0 0
    %6763 = vmatprep.subr.bf16.mxu0 0
    %6764 = vmatpush2.bf16.msra.mxu0 0
    %6765 = vmatprep.subr.bf16.mxu0 0
    %6766 = vmatpush2.bf16.msra.mxu0 0
    %6767 = vmatprep.mubr.bf16.mxu0 0
    %6768 = vmatmul.mubr.bf16.gmra.mxu0 %v6733
    %v6769 = vpop.f32.mrf.mxu0
    %v6770 = vadd.f32 0.0, %v6769
    %v6771 = vpop.f32.mrf.mxu0
    %v6772 = vpop.f32.mrf.mxu0
    %v6773 = vadd.f32 0.0, %v6772
    %v6774 = vpop.f32.mrf.mxu0
    %6775 = vdwg.mxu0
    %v6776 = vadd.f32 %v6611, %v6770
    %v6777 = vadd.f32 %v6612, %v6773
    %v6778 = vld [vmem:[%s3 + $0x6] sm:$0x1]
    %v6779 = vmul.f32 %v6776, %v6776
    %v6780 = vmul.f32 %v6777, %v6777
    %v6781 = vsel %vm293, %v6779, 0.0
    %6782 = vadd.xlane.f32.xlu0 %v6781
    %v6783 = vpop.xlane.xlu0 %6782
    %v6784 = vsel %vm293, %v6780, 0.0
    %6785 = vadd.xlane.f32.xlu0 %v6784
    %v6786 = vpop.xlane.xlu0 %6785
    %v6787 = vmul.f32 %v6783, %v300
    %v6788 = vmul.f32 %v6786, %v300
    %v6789 = vadd.f32 %v6787, 1e-06
    %v6790 = vadd.f32 %v6788, 1e-06
    %v6791 = vrsqrt.pop %v6789
    %v6792 = vrsqrt.pop %v6790
    %v6793 = vmul.f32 %v6776, %v6791
    %v6794 = vmul.f32 %v6777, %v6792
    %v6795 = vlaneseq
    %v6796 = vshrl.u32 %v6795, 7
    %v6797 = vsub.s32 0, %v6796
    %v6798 = vrot.slane %v6778, %v6797
    %v6799 = vmul.f32 %v6793, %v6798
    %v6800 = vmul.f32 %v6794, %v6798
    %6801 = vst.msk [vmem:[#allocation7] sm:$0xff] %vm293, %v6799
    %6802 = vst.msk [vmem:[#allocation7 + $0x8] sm:$0xff] %vm293, %v6800
    // Predicated region
    $region34: #{forward.1} parent=1 // pred_check
      _
    $region35: #{forward.1} parent=1 // pred_check_branch
      %6804 = sbr.rel (0) target = $region37
    $region36: #{forward.1} parent=1 // pred_region
      %s6806 = ssub.s32 256, 256
      %6807 = vsyncadd [#allocation4], %s6806
      %s6808 = sshll.u32 [#allocation7], 4
      %s6809 = int_to_ptr.vmem [resolvable:$true] %s6808
      %6814 = dma.vmem_to_hbm [thread:$0]  %s6809, 256, %s6, [#allocation4], 128, 128, 8
    $region37: #{forward.1} parent=1 // pred_fallthru
      _
    // Predicated region
    $region38: #{forward.1} parent=1 // pred_check
      _
    $region39: #{forward.1} parent=1 // pred_check_branch
      %6816 = sbr.rel (0) target = $region41
    $region40: #{forward.1} parent=1 // pred_region
      %6817 = dma.done [#allocation4], 256
    $region41: #{forward.1} parent=1 // pred_fallthru
      _
    %6818 = vsyncpa [#allocation3], 1
    %6819 = vsyncpa [#allocation6], 1
    %6820 = vsyncpa [#allocation4], 1

</llo_original>
